<compile_context>
chip_gen: v7x
topology: tpu7x:2x2x1
jax: 0.10.0
libtpu: 0.0.40
codegen_flags: <defaults>
</compile_context>

<pallas_src>
import math
import numpy as np
import jax
import jax.numpy as jnp
from jax.experimental import pallas as pl
from jax.experimental.pallas import tpu as pltpu

HID = 64            # hid_dim
N_HEADS = 8         # n_heads
PF = 256            # pf_dim
HEAD_D = HID // N_HEADS
INV_SCALE = 1.0 / math.sqrt(float(HEAD_D))   # folded into Q weights at pack time
LN_EPS = 1e-5       # PyTorch nn.LayerNorm default

# bf16 operands are the right choice on v6e/v7x once B*T scales (keep
# preferred_element_type=f32; LayerNorm/softmax stay f32).  Kept at f32 here:
# on v5e the operand casts land on the bf16-less VPU, and f32 preserves the
# tight tolerance against the reference.
MATMUL_DTYPE = jnp.float32

# ---------------------------------------------------------------------------
# Packed parameter slab layouts (lane-concatenated; static offsets).
# ---------------------------------------------------------------------------
_W64_SEGS = [("sa_wqkv", 3 * HID), ("sa_wo", HID), ("ea_wq", HID),
             ("ea_wkv", 2 * HID), ("ea_wo", HID), ("pf_w1", PF)]
_BIAS_SEGS = [("ln_w", HID), ("ln_b", HID), ("sa_bqkv", 3 * HID),
              ("sa_bo", HID), ("ea_bq", HID), ("ea_bkv", 2 * HID),
              ("ea_bo", HID), ("pf_b1", PF), ("pf_b2", HID)]


def _offsets(segs):
    offs, o = {}, 0
    for name, width in segs:
        offs[name] = (o, o + width)
        o += width
    return offs, o


W64_OFF, W64_TOT = _offsets(_W64_SEGS)      # (64, 768)
BIAS_OFF, BIAS_TOT = _offsets(_BIAS_SEGS)   # (1, 960)


# ---------------------------------------------------------------------------
# Shared math (pure jnp; used inside the Pallas kernel and by the reference).
# ---------------------------------------------------------------------------
def _mm(x, w):
    return jnp.dot(x.astype(MATMUL_DTYPE), w.astype(MATMUL_DTYPE),
                   preferred_element_type=jnp.float32)


def _recip(x, use_pl_recip):
    if use_pl_recip:
        return pl.reciprocal(x, approx=True)   # EUP slot, effectively free
    return 1.0 / x


def _layer_norm(x, w, b):
    # Row reductions done as x @ ones on the (otherwise idle) MXU instead of
    # the XLU; var = E[x^2] - mean^2 keeps the two dots independent.
    ones_col = jnp.ones((HID, 1), dtype=jnp.float32)
    inv_h = 1.0 / HID
    mu = jnp.dot(x, ones_col, preferred_element_type=jnp.float32) * inv_h
    ex2 = jnp.dot(x * x, ones_col, preferred_element_type=jnp.float32) * inv_h
    var = ex2 - mu * mu
    return (x - mu) * jax.lax.rsqrt(var + LN_EPS) * w + b


def _heads_attention(Q, K, V, wo, bo, bsz, tq, tk, use_pl_recip):
    # Q: (bsz*tq, H), K/V: (bsz*tk, H).  Leading-dim reshapes only (safe).
    Qb = Q.reshape(bsz, tq, HID).astype(MATMUL_DTYPE)
    Kb = K.reshape(bsz, tk, HID).astype(MATMUL_DTYPE)
    Vb = V.reshape(bsz, tk, HID).astype(MATMUL_DTYPE)

    # Per-head score matmuls (lane slices are unavoidable without a
    # lane-splitting reshape), then fold the head axis into the BATCH axis so
    # everything downstream runs once, wide.
    e_list, v_list = [], []
    for h in range(N_HEADS):                     # static unroll over heads
        sl = slice(h * HEAD_D, (h + 1) * HEAD_D)
        e_list.append(jnp.einsum('bqd,bkd->bqk', Qb[:, :, sl], Kb[:, :, sl],
                                 preferred_element_type=jnp.float32))
        v_list.append(Vb[:, :, sl])
    e = jnp.concatenate(e_list, axis=0)          # (NH*bsz, tq, tk)
    vh = jnp.concatenate(v_list, axis=0)         # (NH*bsz, tk, HEAD_D)

    # ONE softmax chain for all heads & batches (1/sqrt(d) already folded
    # into the Q weights).
    m = jnp.max(e, axis=-1, keepdims=True)
    p = jnp.exp(e - m)
    a = p * _recip(jnp.sum(p, axis=-1, keepdims=True), use_pl_recip)

    # ONE batched AV contraction.
    ctx = jnp.einsum('zqk,zkd->zqd', a.astype(MATMUL_DTYPE), vh,
                     preferred_element_type=jnp.float32)   # (NH*bsz, tq, HEAD_D)

    # Output projection accumulated per head: no lane-axis concat of 8-lane
    # head results; the sum lands on the MXU / VPU adds instead of the XLU.
    wo_m = wo.astype(MATMUL_DTYPE)
    out = None
    for h in range(N_HEADS):
        ctx_h = ctx[h * bsz:(h + 1) * bsz].reshape(bsz * tq, HEAD_D)
        term = jnp.dot(ctx_h, wo_m[h * HEAD_D:(h + 1) * HEAD_D, :],
                       preferred_element_type=jnp.float32)
        out = term if out is None else out + term
    return out + bo


def _decoder_math(x, s, p, bsz, tq, tk, use_pl_recip):
    ln_w, ln_b = p["ln_w"], p["ln_b"]

    # self-attention + residual + LN (dropout = identity)
    qkv = _mm(x, p["sa_wqkv"]) + p["sa_bqkv"]            # fused (H, 3H) matmul
    sa = _heads_attention(qkv[:, 0 * HID:1 * HID],
                          qkv[:, 1 * HID:2 * HID],
                          qkv[:, 2 * HID:3 * HID],
                          p["sa_wo"], p["sa_bo"], bsz, tq, tq, use_pl_recip)
    x = _layer_norm(x + sa, ln_w, ln_b)

    # cross-attention (query = trg, key/value = src) + residual + LN
    Q = _mm(x, p["ea_wq"]) + p["ea_bq"]
    kv = _mm(s, p["ea_wkv"]) + p["ea_bkv"]               # fused (H, 2H) matmul
    ea = _heads_attention(Q, kv[:, :HID], kv[:, HID:],
                          p["ea_wo"], p["ea_bo"], bsz, tq, tk, use_pl_recip)
    x = _layer_norm(x + ea, ln_w, ln_b)

    # position-wise feedforward (Conv1d k=1 == per-position Linear)
    h1 = jnp.maximum(_mm(x, p["pf_w1"]) + p["pf_b1"], 0.0)
    ff = _mm(h1, p["pf_w2"]) + p["pf_b2"]
    x = _layer_norm(x + ff, ln_w, ln_b)
    return x


# ---------------------------------------------------------------------------
# Pallas wrapper: whole layer fused, whole batch folded into the matmul M dim.
# ---------------------------------------------------------------------------
def decoder_layer(trg, src, params, *, batch_groups=1):
    """batch_groups=1 maximizes matmul M and pays the param DMA / prologue
    cost once (right choice at small B*T on any generation).  Only switch to
    batch_groups=2 on v7x (two TensorCores) when Bg*T per core is >= ~256
    rows; note the param slabs are then fetched once per core.  VMEM note:
    today's working set is ~1 MiB; when scaling B*T keep the double-buffered
    activation blocks + (Bg*T, 256) FFN intermediate + params well under the
    32 MiB limit below (v7x has 64 MiB physical VMEM vs 128 MiB on v5e/v6e)."""
    B, T, H = trg.shape
    S = src.shape[1]
    assert H == HID and B % batch_groups == 0
    G = batch_groups
    Bg = B // G

    w64, w256, bias = params["w64"], params["w256"], params["bias"]
    trg2 = trg.reshape(B * T, H)
    src2 = src.reshape(B * S, H)

    def kernel(trg_ref, src_ref, w64_ref, w256_ref, bias_ref, out_ref):
        # Unpack the fused parameter slabs with static slices.
        p = {}
        for name, (lo, hi) in W64_OFF.items():
            p[name] = w64_ref[:, lo:hi]
        p["pf_w2"] = w256_ref[...]
        for name, (lo, hi) in BIAS_OFF.items():
            p[name] = bias_ref[:, lo:hi]

        x = trg_ref[...]        # (Bg*T, H)
        s = src_ref[...]        # (Bg*S, H)
        out_ref[...] = _decoder_math(x, s, p, Bg, T, S, use_pl_recip=True)

    in_specs = [
        pl.BlockSpec((Bg * T, H), lambda g: (g, 0)),
        pl.BlockSpec((Bg * S, H), lambda g: (g, 0)),
        pl.BlockSpec(w64.shape, lambda g: (0, 0)),
        pl.BlockSpec(w256.shape, lambda g: (0, 0)),
        pl.BlockSpec(bias.shape, lambda g: (0, 0)),
    ]

    out = pl.pallas_call(
        kernel,
        out_shape=jax.ShapeDtypeStruct((B * T, H), jnp.float32),
        grid=(G,),
        in_specs=in_specs,
        out_specs=pl.BlockSpec((Bg * T, H), lambda g: (g, 0)),
        compiler_params=pltpu.CompilerParams(
            dimension_semantics=("parallel",),
            vmem_limit_bytes=32 * 1024 * 1024,   # explicit; safe on v7x 64 MiB
        ),
    )(trg2, src2, w64, w256, bias)
    return out.reshape(B, T, H)


# ---------------------------------------------------------------------------
# Deterministic synthetic parameters (shapes follow the PyTorch __init__),
# generated per-matrix and then packed into the kernel's fused slabs
# (pure repacking + weight-side 1/sqrt(d) folding, same forward semantics).
# ---------------------------------------------------------------------------
def make_params(key):
    keys = jax.random.split(key, 32)
    ki = iter(keys)

    def w(shape, scale=0.05):
        return jax.random.normal(next(ki), shape, jnp.float32) * scale

    raw = {}
    raw["ln_w"] = 1.0 + w((1, HID), 0.02)        # nn.LayerNorm(hid_dim)
    raw["ln_b"] = w((1, HID), 0.02)
    for pre in ("sa", "ea"):                     # SelfAttention: w_q,w_k,w_v,fc
        for name in ("wq", "wk", "wv", "wo"):
            raw[f"{pre}_{name}"] = w((HID, HID))
        for name in ("bq", "bk", "bv", "bo"):
            raw[f"{pre}_{name}"] = w((1, HID), 0.02)
    raw["pf_w1"] = w((HID, PF))                  # Conv1d(hid, pf, 1)
    raw["pf_b1"] = w((1, PF), 0.02)
    raw["pf_w2"] = w((PF, HID))                  # Conv1d(pf, hid, 1)
    raw["pf_b2"] = w((1, HID), 0.02)
    return raw


def fuse_params(raw):
    # Fold the 1/sqrt(head_dim) attention scale into the Q projections
    # (done once at pack time, so no per-call multiply anywhere).
    fused = {
        "ln_w": raw["ln_w"], "ln_b": raw["ln_b"],
        "sa_wqkv": jnp.concatenate(
            [raw["sa_wq"] * INV_SCALE, raw["sa_wk"], raw["sa_wv"]], axis=1),
        "sa_bqkv": jnp.concatenate(
            [raw["sa_bq"] * INV_SCALE, raw["sa_bk"], raw["sa_bv"]], axis=1),
        "sa_wo": raw["sa_wo"], "sa_bo": raw["sa_bo"],
        "ea_wq": raw["ea_wq"] * INV_SCALE, "ea_bq": raw["ea_bq"] * INV_SCALE,
        "ea_wkv": jnp.concatenate([raw["ea_wk"], raw["ea_wv"]], axis=1),
        "ea_bkv": jnp.concatenate([raw["ea_bk"], raw["ea_bv"]], axis=1),
        "ea_wo": raw["ea_wo"], "ea_bo": raw["ea_bo"],
        "pf_w1": raw["pf_w1"], "pf_b1": raw["pf_b1"],
        "pf_w2": raw["pf_w2"], "pf_b2": raw["pf_b2"],
    }
    w64 = jnp.concatenate([fused[n] for n, _ in _W64_SEGS], axis=1)
    bias = jnp.concatenate([fused[n] for n, _ in _BIAS_SEGS], axis=1)
    assert w64.shape == (HID, W64_TOT) and bias.shape == (1, BIAS_TOT)
    return {"w64": w64, "w256": fused["pf_w2"], "bias": bias}


def _unpack_slabs(params):
    p = {}
    for name, (lo, hi) in W64_OFF.items():
        p[name] = params["w64"][:, lo:hi]
    p["pf_w2"] = params["w256"]
    for name, (lo, hi) in BIAS_OFF.items():
        p[name] = params["bias"][:, lo:hi]
    return p


def reference(trg, src, params):
    B, T, H = trg.shape
    S = src.shape[1]
    p = _unpack_slabs(params)
    out = _decoder_math(trg.reshape(B * T, H), src.reshape(B * S, H), p,
                        B, T, S, use_pl_recip=False)
    return out.reshape(B, T, H)


if __name__ == "__main__":
    key = jax.random.PRNGKey(0)
    k_p, k_t, k_s = jax.random.split(key, 3)

    B, T, S = 2, 8, 16
    params = fuse_params(make_params(k_p))
    trg = jax.random.normal(k_t, (B, T, HID), jnp.float32)
    src = jax.random.normal(k_s, (B, S, HID), jnp.float32)

    out = jax.block_until_ready(decoder_layer(trg, src, params))
    ref = jax.block_until_ready(reference(trg, src, params))

    # Tolerance is 5e-3 solely because the kernel's softmax uses the EUP
    # approximate reciprocal (pl.reciprocal(approx=True)); outputs are O(1)
    # after the final LayerNorm, so this still catches any real error.
    np.testing.assert_allclose(np.asarray(out), np.asarray(ref),
                               rtol=5e-3, atol=5e-3)
    assert out.shape == (B, T, HID)
    print("KERNEL_OK")
</pallas_src>

<mosaic_0001>
module attributes {stable_mosaic.version = 11 : i64} {
  func.func @kernel(%arg0: i32, %arg1: memref<16x64xf32, #tpu.memory_space<vmem>>, %arg2: memref<32x64xf32, #tpu.memory_space<vmem>>, %arg3: memref<64x768xf32, #tpu.memory_space<vmem>>, %arg4: memref<256x64xf32, #tpu.memory_space<vmem>>, %arg5: memref<1x960xf32, #tpu.memory_space<vmem>>, %arg6: memref<16x64xf32, #tpu.memory_space<vmem>>) attributes {dimension_semantics = [#tpu.dimension_semantics<parallel>], iteration_bounds = array<i64: 1>, scalar_prefetch = 0 : i64, scratch_operands = 0 : i64, tpu.core_type = #tpu.core_type<tc>, window_params = [{transform_indices = @transform_0, window_bounds = array<i64: 16, 64>}, {transform_indices = @transform_1, window_bounds = array<i64: 32, 64>}, {pipeline_mode = #tpu.pipeline_mode<synchronous>, transform_indices = @transform_2, window_bounds = array<i64: 64, 768>}, {pipeline_mode = #tpu.pipeline_mode<synchronous>, transform_indices = @transform_3, window_bounds = array<i64: 256, 64>}, {pipeline_mode = #tpu.pipeline_mode<synchronous>, transform_indices = @transform_4, window_bounds = array<i64: 1, 960>}, {transform_indices = @transform_5, window_bounds = array<i64: 16, 64>}]} {
    %c0 = arith.constant 0 : index
    %c0_0 = arith.constant 0 : index
    %0 = vector.load %arg3[%c0, %c0_0] : memref<64x768xf32, #tpu.memory_space<vmem>>, vector<64x192xf32>
    %c0_1 = arith.constant 0 : index
    %c192 = arith.constant 192 : index
    %1 = vector.load %arg3[%c0_1, %c192] : memref<64x768xf32, #tpu.memory_space<vmem>>, vector<64x64xf32>
    %c0_2 = arith.constant 0 : index
    %c256 = arith.constant 256 : index
    %2 = vector.load %arg3[%c0_2, %c256] : memref<64x768xf32, #tpu.memory_space<vmem>>, vector<64x64xf32>
    %c0_3 = arith.constant 0 : index
    %c320 = arith.constant 320 : index
    %3 = vector.load %arg3[%c0_3, %c320] : memref<64x768xf32, #tpu.memory_space<vmem>>, vector<64x128xf32>
    %c0_4 = arith.constant 0 : index
    %c448 = arith.constant 448 : index
    %4 = vector.load %arg3[%c0_4, %c448] : memref<64x768xf32, #tpu.memory_space<vmem>>, vector<64x64xf32>
    %c0_5 = arith.constant 0 : index
    %c512 = arith.constant 512 : index
    %5 = vector.load %arg3[%c0_5, %c512] : memref<64x768xf32, #tpu.memory_space<vmem>>, vector<64x256xf32>
    %c0_6 = arith.constant 0 : index
    %c0_7 = arith.constant 0 : index
    %6 = vector.load %arg4[%c0_6, %c0_7] : memref<256x64xf32, #tpu.memory_space<vmem>>, vector<256x64xf32>
    %c0_8 = arith.constant 0 : index
    %c0_9 = arith.constant 0 : index
    %7 = vector.load %arg5[%c0_8, %c0_9] : memref<1x960xf32, #tpu.memory_space<vmem>>, vector<1x64xf32>
    %c0_10 = arith.constant 0 : index
    %c64 = arith.constant 64 : index
    %8 = vector.load %arg5[%c0_10, %c64] : memref<1x960xf32, #tpu.memory_space<vmem>>, vector<1x64xf32>
    %c0_11 = arith.constant 0 : index
    %c128 = arith.constant 128 : index
    %9 = vector.load %arg5[%c0_11, %c128] : memref<1x960xf32, #tpu.memory_space<vmem>>, vector<1x192xf32>
    %c0_12 = arith.constant 0 : index
    %c320_13 = arith.constant 320 : index
    %10 = vector.load %arg5[%c0_12, %c320_13] : memref<1x960xf32, #tpu.memory_space<vmem>>, vector<1x64xf32>
    %c0_14 = arith.constant 0 : index
    %c384 = arith.constant 384 : index
    %11 = vector.load %arg5[%c0_14, %c384] : memref<1x960xf32, #tpu.memory_space<vmem>>, vector<1x64xf32>
    %c0_15 = arith.constant 0 : index
    %c448_16 = arith.constant 448 : index
    %12 = vector.load %arg5[%c0_15, %c448_16] : memref<1x960xf32, #tpu.memory_space<vmem>>, vector<1x128xf32>
    %c0_17 = arith.constant 0 : index
    %c576 = arith.constant 576 : index
    %13 = vector.load %arg5[%c0_17, %c576] : memref<1x960xf32, #tpu.memory_space<vmem>>, vector<1x64xf32>
    %c0_18 = arith.constant 0 : index
    %c640 = arith.constant 640 : index
    %14 = vector.load %arg5[%c0_18, %c640] : memref<1x960xf32, #tpu.memory_space<vmem>>, vector<1x256xf32>
    %c0_19 = arith.constant 0 : index
    %c896 = arith.constant 896 : index
    %15 = vector.load %arg5[%c0_19, %c896] : memref<1x960xf32, #tpu.memory_space<vmem>>, vector<1x64xf32>
    %c0_20 = arith.constant 0 : index
    %c0_21 = arith.constant 0 : index
    %16 = vector.load %arg1[%c0_20, %c0_21] : memref<16x64xf32, #tpu.memory_space<vmem>>, vector<16x64xf32>
    %c0_22 = arith.constant 0 : index
    %c0_23 = arith.constant 0 : index
    %17 = vector.load %arg2[%c0_22, %c0_23] : memref<32x64xf32, #tpu.memory_space<vmem>>, vector<32x64xf32>
    %cst = arith.constant dense<0.000000e+00> : vector<16x192xf32>
    %18 = tpu.matmul %16, %0, %cst {dimension_numbers = #tpu.dot_dimension_numbers<[1], [0], [0], [1], [0, 0, 1, 1], [], []>} : vector<16x64xf32>, vector<64x192xf32>, vector<16x192xf32> -> vector<16x192xf32>
    %19 = vector.broadcast %9 : vector<1x192xf32> to vector<16x192xf32>
    %20 = arith.addf %18, %19 : vector<16x192xf32>
    %21 = vector.extract_strided_slice %20 {offsets = [0, 0], sizes = [16, 64], strides = [1, 1]} : vector<16x192xf32> to vector<16x64xf32>
    %22 = vector.extract_strided_slice %20 {offsets = [0, 64], sizes = [16, 64], strides = [1, 1]} : vector<16x192xf32> to vector<16x64xf32>
    %23 = vector.extract_strided_slice %20 {offsets = [0, 128], sizes = [16, 64], strides = [1, 1]} : vector<16x192xf32> to vector<16x64xf32>
    %24 = vector.shape_cast %21 : vector<16x64xf32> to vector<2x8x64xf32>
    %25 = vector.shape_cast %22 : vector<16x64xf32> to vector<2x8x64xf32>
    %26 = vector.shape_cast %23 : vector<16x64xf32> to vector<2x8x64xf32>
    %27 = vector.extract_strided_slice %24 {offsets = [0, 0, 0], sizes = [2, 8, 8], strides = [1, 1, 1]} : vector<2x8x64xf32> to vector<2x8x8xf32>
    %28 = vector.extract_strided_slice %25 {offsets = [0, 0, 0], sizes = [2, 8, 8], strides = [1, 1, 1]} : vector<2x8x64xf32> to vector<2x8x8xf32>
    "tpu.trace_start"() <{level = 10 : i32, message = "bqd,bkd->bqk"}> : () -> ()
    %cst_24 = arith.constant dense<0.000000e+00> : vector<2x8x8xf32>
    %29 = tpu.matmul %27, %28, %cst_24 {dimension_numbers = #tpu.dot_dimension_numbers<[2], [2], [1], [1], [0, 0, 0, 1, 1, 1], [0], [0]>} : vector<2x8x8xf32>, vector<2x8x8xf32>, vector<2x8x8xf32> -> vector<2x8x8xf32>
    "tpu.trace_stop"() : () -> ()
    %30 = vector.extract_strided_slice %26 {offsets = [0, 0, 0], sizes = [2, 8, 8], strides = [1, 1, 1]} : vector<2x8x64xf32> to vector<2x8x8xf32>
    %31 = vector.extract_strided_slice %24 {offsets = [0, 0, 8], sizes = [2, 8, 8], strides = [1, 1, 1]} : vector<2x8x64xf32> to vector<2x8x8xf32>
    %32 = vector.extract_strided_slice %25 {offsets = [0, 0, 8], sizes = [2, 8, 8], strides = [1, 1, 1]} : vector<2x8x64xf32> to vector<2x8x8xf32>
    "tpu.trace_start"() <{level = 10 : i32, message = "bqd,bkd->bqk"}> : () -> ()
    %cst_25 = arith.constant dense<0.000000e+00> : vector<2x8x8xf32>
    %33 = tpu.matmul %31, %32, %cst_25 {dimension_numbers = #tpu.dot_dimension_numbers<[2], [2], [1], [1], [0, 0, 0, 1, 1, 1], [0], [0]>} : vector<2x8x8xf32>, vector<2x8x8xf32>, vector<2x8x8xf32> -> vector<2x8x8xf32>
    "tpu.trace_stop"() : () -> ()
    %34 = vector.extract_strided_slice %26 {offsets = [0, 0, 8], sizes = [2, 8, 8], strides = [1, 1, 1]} : vector<2x8x64xf32> to vector<2x8x8xf32>
    %35 = vector.extract_strided_slice %24 {offsets = [0, 0, 16], sizes = [2, 8, 8], strides = [1, 1, 1]} : vector<2x8x64xf32> to vector<2x8x8xf32>
    %36 = vector.extract_strided_slice %25 {offsets = [0, 0, 16], sizes = [2, 8, 8], strides = [1, 1, 1]} : vector<2x8x64xf32> to vector<2x8x8xf32>
    "tpu.trace_start"() <{level = 10 : i32, message = "bqd,bkd->bqk"}> : () -> ()
    %cst_26 = arith.constant dense<0.000000e+00> : vector<2x8x8xf32>
    %37 = tpu.matmul %35, %36, %cst_26 {dimension_numbers = #tpu.dot_dimension_numbers<[2], [2], [1], [1], [0, 0, 0, 1, 1, 1], [0], [0]>} : vector<2x8x8xf32>, vector<2x8x8xf32>, vector<2x8x8xf32> -> vector<2x8x8xf32>
    "tpu.trace_stop"() : () -> ()
    %38 = vector.extract_strided_slice %26 {offsets = [0, 0, 16], sizes = [2, 8, 8], strides = [1, 1, 1]} : vector<2x8x64xf32> to vector<2x8x8xf32>
    %39 = vector.extract_strided_slice %24 {offsets = [0, 0, 24], sizes = [2, 8, 8], strides = [1, 1, 1]} : vector<2x8x64xf32> to vector<2x8x8xf32>
    %40 = vector.extract_strided_slice %25 {offsets = [0, 0, 24], sizes = [2, 8, 8], strides = [1, 1, 1]} : vector<2x8x64xf32> to vector<2x8x8xf32>
    "tpu.trace_start"() <{level = 10 : i32, message = "bqd,bkd->bqk"}> : () -> ()
    %cst_27 = arith.constant dense<0.000000e+00> : vector<2x8x8xf32>
    %41 = tpu.matmul %39, %40, %cst_27 {dimension_numbers = #tpu.dot_dimension_numbers<[2], [2], [1], [1], [0, 0, 0, 1, 1, 1], [0], [0]>} : vector<2x8x8xf32>, vector<2x8x8xf32>, vector<2x8x8xf32> -> vector<2x8x8xf32>
    "tpu.trace_stop"() : () -> ()
    %42 = vector.extract_strided_slice %26 {offsets = [0, 0, 24], sizes = [2, 8, 8], strides = [1, 1, 1]} : vector<2x8x64xf32> to vector<2x8x8xf32>
    %43 = vector.extract_strided_slice %24 {offsets = [0, 0, 32], sizes = [2, 8, 8], strides = [1, 1, 1]} : vector<2x8x64xf32> to vector<2x8x8xf32>
    %44 = vector.extract_strided_slice %25 {offsets = [0, 0, 32], sizes = [2, 8, 8], strides = [1, 1, 1]} : vector<2x8x64xf32> to vector<2x8x8xf32>
    "tpu.trace_start"() <{level = 10 : i32, message = "bqd,bkd->bqk"}> : () -> ()
    %cst_28 = arith.constant dense<0.000000e+00> : vector<2x8x8xf32>
    %45 = tpu.matmul %43, %44, %cst_28 {dimension_numbers = #tpu.dot_dimension_numbers<[2], [2], [1], [1], [0, 0, 0, 1, 1, 1], [0], [0]>} : vector<2x8x8xf32>, vector<2x8x8xf32>, vector<2x8x8xf32> -> vector<2x8x8xf32>
    "tpu.trace_stop"() : () -> ()
    %46 = vector.extract_strided_slice %26 {offsets = [0, 0, 32], sizes = [2, 8, 8], strides = [1, 1, 1]} : vector<2x8x64xf32> to vector<2x8x8xf32>
    %47 = vector.extract_strided_slice %24 {offsets = [0, 0, 40], sizes = [2, 8, 8], strides = [1, 1, 1]} : vector<2x8x64xf32> to vector<2x8x8xf32>
    %48 = vector.extract_strided_slice %25 {offsets = [0, 0, 40], sizes = [2, 8, 8], strides = [1, 1, 1]} : vector<2x8x64xf32> to vector<2x8x8xf32>
    "tpu.trace_start"() <{level = 10 : i32, message = "bqd,bkd->bqk"}> : () -> ()
    %cst_29 = arith.constant dense<0.000000e+00> : vector<2x8x8xf32>
    %49 = tpu.matmul %47, %48, %cst_29 {dimension_numbers = #tpu.dot_dimension_numbers<[2], [2], [1], [1], [0, 0, 0, 1, 1, 1], [0], [0]>} : vector<2x8x8xf32>, vector<2x8x8xf32>, vector<2x8x8xf32> -> vector<2x8x8xf32>
    "tpu.trace_stop"() : () -> ()
    %50 = vector.extract_strided_slice %26 {offsets = [0, 0, 40], sizes = [2, 8, 8], strides = [1, 1, 1]} : vector<2x8x64xf32> to vector<2x8x8xf32>
    %51 = vector.extract_strided_slice %24 {offsets = [0, 0, 48], sizes = [2, 8, 8], strides = [1, 1, 1]} : vector<2x8x64xf32> to vector<2x8x8xf32>
    %52 = vector.extract_strided_slice %25 {offsets = [0, 0, 48], sizes = [2, 8, 8], strides = [1, 1, 1]} : vector<2x8x64xf32> to vector<2x8x8xf32>
    "tpu.trace_start"() <{level = 10 : i32, message = "bqd,bkd->bqk"}> : () -> ()
    %cst_30 = arith.constant dense<0.000000e+00> : vector<2x8x8xf32>
    %53 = tpu.matmul %51, %52, %cst_30 {dimension_numbers = #tpu.dot_dimension_numbers<[2], [2], [1], [1], [0, 0, 0, 1, 1, 1], [0], [0]>} : vector<2x8x8xf32>, vector<2x8x8xf32>, vector<2x8x8xf32> -> vector<2x8x8xf32>
    "tpu.trace_stop"() : () -> ()
    %54 = vector.extract_strided_slice %26 {offsets = [0, 0, 48], sizes = [2, 8, 8], strides = [1, 1, 1]} : vector<2x8x64xf32> to vector<2x8x8xf32>
    %55 = vector.extract_strided_slice %24 {offsets = [0, 0, 56], sizes = [2, 8, 8], strides = [1, 1, 1]} : vector<2x8x64xf32> to vector<2x8x8xf32>
    %56 = vector.extract_strided_slice %25 {offsets = [0, 0, 56], sizes = [2, 8, 8], strides = [1, 1, 1]} : vector<2x8x64xf32> to vector<2x8x8xf32>
    "tpu.trace_start"() <{level = 10 : i32, message = "bqd,bkd->bqk"}> : () -> ()
    %cst_31 = arith.constant dense<0.000000e+00> : vector<2x8x8xf32>
    %57 = tpu.matmul %55, %56, %cst_31 {dimension_numbers = #tpu.dot_dimension_numbers<[2], [2], [1], [1], [0, 0, 0, 1, 1, 1], [0], [0]>} : vector<2x8x8xf32>, vector<2x8x8xf32>, vector<2x8x8xf32> -> vector<2x8x8xf32>
    "tpu.trace_stop"() : () -> ()
    %58 = vector.extract_strided_slice %26 {offsets = [0, 0, 56], sizes = [2, 8, 8], strides = [1, 1, 1]} : vector<2x8x64xf32> to vector<2x8x8xf32>
    %59 = tpu.concatenate %29, %33, %37, %41, %45, %49, %53, %57 in 0 : vector<2x8x8xf32>, vector<2x8x8xf32>, vector<2x8x8xf32>, vector<2x8x8xf32>, vector<2x8x8xf32>, vector<2x8x8xf32>, vector<2x8x8xf32>, vector<2x8x8xf32> -> vector<16x8x8xf32>
    %60 = tpu.concatenate %30, %34, %38, %42, %46, %50, %54, %58 in 0 : vector<2x8x8xf32>, vector<2x8x8xf32>, vector<2x8x8xf32>, vector<2x8x8xf32>, vector<2x8x8xf32>, vector<2x8x8xf32>, vector<2x8x8xf32>, vector<2x8x8xf32> -> vector<16x8x8xf32>
    %cst_32 = arith.constant dense<0xFF800000> : vector<16x8xf32>
    %61 = vector.multi_reduction <maximumf>, %59, %cst_32 [2] : vector<16x8x8xf32> to vector<16x8xf32>
    %62 = vector.shape_cast %61 : vector<16x8xf32> to vector<16x8x1xf32>
    %63 = vector.broadcast %62 : vector<16x8x1xf32> to vector<16x8x8xf32>
    %64 = arith.subf %59, %63 : vector<16x8x8xf32>
    %65 = math.exp %64 : vector<16x8x8xf32>
    %cst_33 = arith.constant dense<0.000000e+00> : vector<16x8xf32>
    %66 = vector.multi_reduction <add>, %65, %cst_33 [2] : vector<16x8x8xf32> to vector<16x8xf32>
    %67 = vector.shape_cast %66 : vector<16x8xf32> to vector<16x8x1xf32>
    %68 = tpu.reciprocal %67 {approx = true} : vector<16x8x1xf32> -> vector<16x8x1xf32>
    %69 = vector.broadcast %68 : vector<16x8x1xf32> to vector<16x8x8xf32>
    %70 = arith.mulf %65, %69 : vector<16x8x8xf32>
    "tpu.trace_start"() <{level = 10 : i32, message = "zqk,zkd->zqd"}> : () -> ()
    %cst_34 = arith.constant dense<0.000000e+00> : vector<16x8x8xf32>
    %71 = tpu.matmul %70, %60, %cst_34 {dimension_numbers = #tpu.dot_dimension_numbers<[2], [1], [1], [2], [0, 0, 0, 1, 1, 2], [0], [0]>} : vector<16x8x8xf32>, vector<16x8x8xf32>, vector<16x8x8xf32> -> vector<16x8x8xf32>
    "tpu.trace_stop"() : () -> ()
    %72 = vector.extract_strided_slice %71 {offsets = [0, 0, 0], sizes = [2, 8, 8], strides = [1, 1, 1]} : vector<16x8x8xf32> to vector<2x8x8xf32>
    %73 = vector.shape_cast %72 : vector<2x8x8xf32> to vector<16x8xf32>
    %74 = vector.extract_strided_slice %1 {offsets = [0, 0], sizes = [8, 64], strides = [1, 1]} : vector<64x64xf32> to vector<8x64xf32>
    %cst_35 = arith.constant dense<0.000000e+00> : vector<16x64xf32>
    %75 = tpu.matmul %73, %74, %cst_35 {dimension_numbers = #tpu.dot_dimension_numbers<[1], [0], [0], [1], [0, 0, 1, 1], [], []>} : vector<16x8xf32>, vector<8x64xf32>, vector<16x64xf32> -> vector<16x64xf32>
    %76 = vector.extract_strided_slice %71 {offsets = [2, 0, 0], sizes = [2, 8, 8], strides = [1, 1, 1]} : vector<16x8x8xf32> to vector<2x8x8xf32>
    %77 = vector.shape_cast %76 : vector<2x8x8xf32> to vector<16x8xf32>
    %78 = vector.extract_strided_slice %1 {offsets = [8, 0], sizes = [8, 64], strides = [1, 1]} : vector<64x64xf32> to vector<8x64xf32>
    %cst_36 = arith.constant dense<0.000000e+00> : vector<16x64xf32>
    %79 = tpu.matmul %77, %78, %cst_36 {dimension_numbers = #tpu.dot_dimension_numbers<[1], [0], [0], [1], [0, 0, 1, 1], [], []>} : vector<16x8xf32>, vector<8x64xf32>, vector<16x64xf32> -> vector<16x64xf32>
    %80 = arith.addf %75, %79 : vector<16x64xf32>
    %81 = vector.extract_strided_slice %71 {offsets = [4, 0, 0], sizes = [2, 8, 8], strides = [1, 1, 1]} : vector<16x8x8xf32> to vector<2x8x8xf32>
    %82 = vector.shape_cast %81 : vector<2x8x8xf32> to vector<16x8xf32>
    %83 = vector.extract_strided_slice %1 {offsets = [16, 0], sizes = [8, 64], strides = [1, 1]} : vector<64x64xf32> to vector<8x64xf32>
    %cst_37 = arith.constant dense<0.000000e+00> : vector<16x64xf32>
    %84 = tpu.matmul %82, %83, %cst_37 {dimension_numbers = #tpu.dot_dimension_numbers<[1], [0], [0], [1], [0, 0, 1, 1], [], []>} : vector<16x8xf32>, vector<8x64xf32>, vector<16x64xf32> -> vector<16x64xf32>
    %85 = arith.addf %80, %84 : vector<16x64xf32>
    %86 = vector.extract_strided_slice %71 {offsets = [6, 0, 0], sizes = [2, 8, 8], strides = [1, 1, 1]} : vector<16x8x8xf32> to vector<2x8x8xf32>
    %87 = vector.shape_cast %86 : vector<2x8x8xf32> to vector<16x8xf32>
    %88 = vector.extract_strided_slice %1 {offsets = [24, 0], sizes = [8, 64], strides = [1, 1]} : vector<64x64xf32> to vector<8x64xf32>
    %cst_38 = arith.constant dense<0.000000e+00> : vector<16x64xf32>
    %89 = tpu.matmul %87, %88, %cst_38 {dimension_numbers = #tpu.dot_dimension_numbers<[1], [0], [0], [1], [0, 0, 1, 1], [], []>} : vector<16x8xf32>, vector<8x64xf32>, vector<16x64xf32> -> vector<16x64xf32>
    %90 = arith.addf %85, %89 : vector<16x64xf32>
    %91 = vector.extract_strided_slice %71 {offsets = [8, 0, 0], sizes = [2, 8, 8], strides = [1, 1, 1]} : vector<16x8x8xf32> to vector<2x8x8xf32>
    %92 = vector.shape_cast %91 : vector<2x8x8xf32> to vector<16x8xf32>
    %93 = vector.extract_strided_slice %1 {offsets = [32, 0], sizes = [8, 64], strides = [1, 1]} : vector<64x64xf32> to vector<8x64xf32>
    %cst_39 = arith.constant dense<0.000000e+00> : vector<16x64xf32>
    %94 = tpu.matmul %92, %93, %cst_39 {dimension_numbers = #tpu.dot_dimension_numbers<[1], [0], [0], [1], [0, 0, 1, 1], [], []>} : vector<16x8xf32>, vector<8x64xf32>, vector<16x64xf32> -> vector<16x64xf32>
    %95 = arith.addf %90, %94 : vector<16x64xf32>
    %96 = vector.extract_strided_slice %71 {offsets = [10, 0, 0], sizes = [2, 8, 8], strides = [1, 1, 1]} : vector<16x8x8xf32> to vector<2x8x8xf32>
    %97 = vector.shape_cast %96 : vector<2x8x8xf32> to vector<16x8xf32>
    %98 = vector.extract_strided_slice %1 {offsets = [40, 0], sizes = [8, 64], strides = [1, 1]} : vector<64x64xf32> to vector<8x64xf32>
    %cst_40 = arith.constant dense<0.000000e+00> : vector<16x64xf32>
    %99 = tpu.matmul %97, %98, %cst_40 {dimension_numbers = #tpu.dot_dimension_numbers<[1], [0], [0], [1], [0, 0, 1, 1], [], []>} : vector<16x8xf32>, vector<8x64xf32>, vector<16x64xf32> -> vector<16x64xf32>
    %100 = arith.addf %95, %99 : vector<16x64xf32>
    %101 = vector.extract_strided_slice %71 {offsets = [12, 0, 0], sizes = [2, 8, 8], strides = [1, 1, 1]} : vector<16x8x8xf32> to vector<2x8x8xf32>
    %102 = vector.shape_cast %101 : vector<2x8x8xf32> to vector<16x8xf32>
    %103 = vector.extract_strided_slice %1 {offsets = [48, 0], sizes = [8, 64], strides = [1, 1]} : vector<64x64xf32> to vector<8x64xf32>
    %cst_41 = arith.constant dense<0.000000e+00> : vector<16x64xf32>
    %104 = tpu.matmul %102, %103, %cst_41 {dimension_numbers = #tpu.dot_dimension_numbers<[1], [0], [0], [1], [0, 0, 1, 1], [], []>} : vector<16x8xf32>, vector<8x64xf32>, vector<16x64xf32> -> vector<16x64xf32>
    %105 = arith.addf %100, %104 : vector<16x64xf32>
    %106 = vector.extract_strided_slice %71 {offsets = [14, 0, 0], sizes = [2, 8, 8], strides = [1, 1, 1]} : vector<16x8x8xf32> to vector<2x8x8xf32>
    %107 = vector.shape_cast %106 : vector<2x8x8xf32> to vector<16x8xf32>
    %108 = vector.extract_strided_slice %1 {offsets = [56, 0], sizes = [8, 64], strides = [1, 1]} : vector<64x64xf32> to vector<8x64xf32>
    %cst_42 = arith.constant dense<0.000000e+00> : vector<16x64xf32>
    %109 = tpu.matmul %107, %108, %cst_42 {dimension_numbers = #tpu.dot_dimension_numbers<[1], [0], [0], [1], [0, 0, 1, 1], [], []>} : vector<16x8xf32>, vector<8x64xf32>, vector<16x64xf32> -> vector<16x64xf32>
    %110 = arith.addf %105, %109 : vector<16x64xf32>
    %111 = vector.broadcast %10 : vector<1x64xf32> to vector<16x64xf32>
    %112 = arith.addf %110, %111 : vector<16x64xf32>
    %113 = arith.addf %16, %112 : vector<16x64xf32>
    %cst_43 = arith.constant 1.000000e+00 : f32
    %114 = vector.broadcast %cst_43 : f32 to vector<64x1xf32>
    %cst_44 = arith.constant dense<0.000000e+00> : vector<16x1xf32>
    %115 = tpu.matmul %113, %114, %cst_44 {dimension_numbers = #tpu.dot_dimension_numbers<[1], [0], [0], [1], [0, 0, 1, 1], [], []>} : vector<16x64xf32>, vector<64x1xf32>, vector<16x1xf32> -> vector<16x1xf32>
    %cst_45 = arith.constant 1.562500e-02 : f32
    %116 = vector.broadcast %cst_45 : f32 to vector<16x1xf32>
    %117 = arith.mulf %115, %116 : vector<16x1xf32>
    %118 = arith.mulf %113, %113 : vector<16x64xf32>
    %cst_46 = arith.constant dense<0.000000e+00> : vector<16x1xf32>
    %119 = tpu.matmul %118, %114, %cst_46 {dimension_numbers = #tpu.dot_dimension_numbers<[1], [0], [0], [1], [0, 0, 1, 1], [], []>} : vector<16x64xf32>, vector<64x1xf32>, vector<16x1xf32> -> vector<16x1xf32>
    %cst_47 = arith.constant 1.562500e-02 : f32
    %120 = vector.broadcast %cst_47 : f32 to vector<16x1xf32>
    %121 = arith.mulf %119, %120 : vector<16x1xf32>
    %122 = arith.mulf %117, %117 : vector<16x1xf32>
    %123 = arith.subf %121, %122 : vector<16x1xf32>
    %124 = vector.broadcast %117 : vector<16x1xf32> to vector<16x64xf32>
    %125 = arith.subf %113, %124 : vector<16x64xf32>
    %cst_48 = arith.constant 9.99999974E-6 : f32
    %126 = vector.broadcast %cst_48 : f32 to vector<16x1xf32>
    %127 = arith.addf %123, %126 : vector<16x1xf32>
    %128 = math.rsqrt %127 : vector<16x1xf32>
    %129 = vector.broadcast %128 : vector<16x1xf32> to vector<16x64xf32>
    %130 = arith.mulf %125, %129 : vector<16x64xf32>
    %131 = vector.broadcast %7 : vector<1x64xf32> to vector<16x64xf32>
    %132 = arith.mulf %130, %131 : vector<16x64xf32>
    %133 = vector.broadcast %8 : vector<1x64xf32> to vector<16x64xf32>
    %134 = arith.addf %132, %133 : vector<16x64xf32>
    %cst_49 = arith.constant dense<0.000000e+00> : vector<16x64xf32>
    %135 = tpu.matmul %134, %2, %cst_49 {dimension_numbers = #tpu.dot_dimension_numbers<[1], [0], [0], [1], [0, 0, 1, 1], [], []>} : vector<16x64xf32>, vector<64x64xf32>, vector<16x64xf32> -> vector<16x64xf32>
    %136 = vector.broadcast %11 : vector<1x64xf32> to vector<16x64xf32>
    %137 = arith.addf %135, %136 : vector<16x64xf32>
    %cst_50 = arith.constant dense<0.000000e+00> : vector<32x128xf32>
    %138 = tpu.matmul %17, %3, %cst_50 {dimension_numbers = #tpu.dot_dimension_numbers<[1], [0], [0], [1], [0, 0, 1, 1], [], []>} : vector<32x64xf32>, vector<64x128xf32>, vector<32x128xf32> -> vector<32x128xf32>
    %139 = vector.broadcast %12 : vector<1x128xf32> to vector<32x128xf32>
    %140 = arith.addf %138, %139 : vector<32x128xf32>
    %141 = vector.extract_strided_slice %140 {offsets = [0, 0], sizes = [32, 64], strides = [1, 1]} : vector<32x128xf32> to vector<32x64xf32>
    %142 = vector.extract_strided_slice %140 {offsets = [0, 64], sizes = [32, 64], strides = [1, 1]} : vector<32x128xf32> to vector<32x64xf32>
    %143 = vector.shape_cast %137 : vector<16x64xf32> to vector<2x8x64xf32>
    %144 = vector.shape_cast %141 : vector<32x64xf32> to vector<2x16x64xf32>
    %145 = vector.shape_cast %142 : vector<32x64xf32> to vector<2x16x64xf32>
    %146 = vector.extract_strided_slice %143 {offsets = [0, 0, 0], sizes = [2, 8, 8], strides = [1, 1, 1]} : vector<2x8x64xf32> to vector<2x8x8xf32>
    %147 = vector.extract_strided_slice %144 {offsets = [0, 0, 0], sizes = [2, 16, 8], strides = [1, 1, 1]} : vector<2x16x64xf32> to vector<2x16x8xf32>
    "tpu.trace_start"() <{level = 10 : i32, message = "bqd,bkd->bqk"}> : () -> ()
    %cst_51 = arith.constant dense<0.000000e+00> : vector<2x8x16xf32>
    %148 = tpu.matmul %146, %147, %cst_51 {dimension_numbers = #tpu.dot_dimension_numbers<[2], [2], [1], [1], [0, 0, 0, 1, 1, 1], [0], [0]>} : vector<2x8x8xf32>, vector<2x16x8xf32>, vector<2x8x16xf32> -> vector<2x8x16xf32>
    "tpu.trace_stop"() : () -> ()
    %149 = vector.extract_strided_slice %145 {offsets = [0, 0, 0], sizes = [2, 16, 8], strides = [1, 1, 1]} : vector<2x16x64xf32> to vector<2x16x8xf32>
    %150 = vector.extract_strided_slice %143 {offsets = [0, 0, 8], sizes = [2, 8, 8], strides = [1, 1, 1]} : vector<2x8x64xf32> to vector<2x8x8xf32>
    %151 = vector.extract_strided_slice %144 {offsets = [0, 0, 8], sizes = [2, 16, 8], strides = [1, 1, 1]} : vector<2x16x64xf32> to vector<2x16x8xf32>
    "tpu.trace_start"() <{level = 10 : i32, message = "bqd,bkd->bqk"}> : () -> ()
    %cst_52 = arith.constant dense<0.000000e+00> : vector<2x8x16xf32>
    %152 = tpu.matmul %150, %151, %cst_52 {dimension_numbers = #tpu.dot_dimension_numbers<[2], [2], [1], [1], [0, 0, 0, 1, 1, 1], [0], [0]>} : vector<2x8x8xf32>, vector<2x16x8xf32>, vector<2x8x16xf32> -> vector<2x8x16xf32>
    "tpu.trace_stop"() : () -> ()
    %153 = vector.extract_strided_slice %145 {offsets = [0, 0, 8], sizes = [2, 16, 8], strides = [1, 1, 1]} : vector<2x16x64xf32> to vector<2x16x8xf32>
    %154 = vector.extract_strided_slice %143 {offsets = [0, 0, 16], sizes = [2, 8, 8], strides = [1, 1, 1]} : vector<2x8x64xf32> to vector<2x8x8xf32>
    %155 = vector.extract_strided_slice %144 {offsets = [0, 0, 16], sizes = [2, 16, 8], strides = [1, 1, 1]} : vector<2x16x64xf32> to vector<2x16x8xf32>
    "tpu.trace_start"() <{level = 10 : i32, message = "bqd,bkd->bqk"}> : () -> ()
    %cst_53 = arith.constant dense<0.000000e+00> : vector<2x8x16xf32>
    %156 = tpu.matmul %154, %155, %cst_53 {dimension_numbers = #tpu.dot_dimension_numbers<[2], [2], [1], [1], [0, 0, 0, 1, 1, 1], [0], [0]>} : vector<2x8x8xf32>, vector<2x16x8xf32>, vector<2x8x16xf32> -> vector<2x8x16xf32>
    "tpu.trace_stop"() : () -> ()
    %157 = vector.extract_strided_slice %145 {offsets = [0, 0, 16], sizes = [2, 16, 8], strides = [1, 1, 1]} : vector<2x16x64xf32> to vector<2x16x8xf32>
    %158 = vector.extract_strided_slice %143 {offsets = [0, 0, 24], sizes = [2, 8, 8], strides = [1, 1, 1]} : vector<2x8x64xf32> to vector<2x8x8xf32>
    %159 = vector.extract_strided_slice %144 {offsets = [0, 0, 24], sizes = [2, 16, 8], strides = [1, 1, 1]} : vector<2x16x64xf32> to vector<2x16x8xf32>
    "tpu.trace_start"() <{level = 10 : i32, message = "bqd,bkd->bqk"}> : () -> ()
    %cst_54 = arith.constant dense<0.000000e+00> : vector<2x8x16xf32>
    %160 = tpu.matmul %158, %159, %cst_54 {dimension_numbers = #tpu.dot_dimension_numbers<[2], [2], [1], [1], [0, 0, 0, 1, 1, 1], [0], [0]>} : vector<2x8x8xf32>, vector<2x16x8xf32>, vector<2x8x16xf32> -> vector<2x8x16xf32>
    "tpu.trace_stop"() : () -> ()
    %161 = vector.extract_strided_slice %145 {offsets = [0, 0, 24], sizes = [2, 16, 8], strides = [1, 1, 1]} : vector<2x16x64xf32> to vector<2x16x8xf32>
    %162 = vector.extract_strided_slice %143 {offsets = [0, 0, 32], sizes = [2, 8, 8], strides = [1, 1, 1]} : vector<2x8x64xf32> to vector<2x8x8xf32>
    %163 = vector.extract_strided_slice %144 {offsets = [0, 0, 32], sizes = [2, 16, 8], strides = [1, 1, 1]} : vector<2x16x64xf32> to vector<2x16x8xf32>
    "tpu.trace_start"() <{level = 10 : i32, message = "bqd,bkd->bqk"}> : () -> ()
    %cst_55 = arith.constant dense<0.000000e+00> : vector<2x8x16xf32>
    %164 = tpu.matmul %162, %163, %cst_55 {dimension_numbers = #tpu.dot_dimension_numbers<[2], [2], [1], [1], [0, 0, 0, 1, 1, 1], [0], [0]>} : vector<2x8x8xf32>, vector<2x16x8xf32>, vector<2x8x16xf32> -> vector<2x8x16xf32>
    "tpu.trace_stop"() : () -> ()
    %165 = vector.extract_strided_slice %145 {offsets = [0, 0, 32], sizes = [2, 16, 8], strides = [1, 1, 1]} : vector<2x16x64xf32> to vector<2x16x8xf32>
    %166 = vector.extract_strided_slice %143 {offsets = [0, 0, 40], sizes = [2, 8, 8], strides = [1, 1, 1]} : vector<2x8x64xf32> to vector<2x8x8xf32>
    %167 = vector.extract_strided_slice %144 {offsets = [0, 0, 40], sizes = [2, 16, 8], strides = [1, 1, 1]} : vector<2x16x64xf32> to vector<2x16x8xf32>
    "tpu.trace_start"() <{level = 10 : i32, message = "bqd,bkd->bqk"}> : () -> ()
    %cst_56 = arith.constant dense<0.000000e+00> : vector<2x8x16xf32>
    %168 = tpu.matmul %166, %167, %cst_56 {dimension_numbers = #tpu.dot_dimension_numbers<[2], [2], [1], [1], [0, 0, 0, 1, 1, 1], [0], [0]>} : vector<2x8x8xf32>, vector<2x16x8xf32>, vector<2x8x16xf32> -> vector<2x8x16xf32>
    "tpu.trace_stop"() : () -> ()
    %169 = vector.extract_strided_slice %145 {offsets = [0, 0, 40], sizes = [2, 16, 8], strides = [1, 1, 1]} : vector<2x16x64xf32> to vector<2x16x8xf32>
    %170 = vector.extract_strided_slice %143 {offsets = [0, 0, 48], sizes = [2, 8, 8], strides = [1, 1, 1]} : vector<2x8x64xf32> to vector<2x8x8xf32>
    %171 = vector.extract_strided_slice %144 {offsets = [0, 0, 48], sizes = [2, 16, 8], strides = [1, 1, 1]} : vector<2x16x64xf32> to vector<2x16x8xf32>
    "tpu.trace_start"() <{level = 10 : i32, message = "bqd,bkd->bqk"}> : () -> ()
    %cst_57 = arith.constant dense<0.000000e+00> : vector<2x8x16xf32>
    %172 = tpu.matmul %170, %171, %cst_57 {dimension_numbers = #tpu.dot_dimension_numbers<[2], [2], [1], [1], [0, 0, 0, 1, 1, 1], [0], [0]>} : vector<2x8x8xf32>, vector<2x16x8xf32>, vector<2x8x16xf32> -> vector<2x8x16xf32>
    "tpu.trace_stop"() : () -> ()
    %173 = vector.extract_strided_slice %145 {offsets = [0, 0, 48], sizes = [2, 16, 8], strides = [1, 1, 1]} : vector<2x16x64xf32> to vector<2x16x8xf32>
    %174 = vector.extract_strided_slice %143 {offsets = [0, 0, 56], sizes = [2, 8, 8], strides = [1, 1, 1]} : vector<2x8x64xf32> to vector<2x8x8xf32>
    %175 = vector.extract_strided_slice %144 {offsets = [0, 0, 56], sizes = [2, 16, 8], strides = [1, 1, 1]} : vector<2x16x64xf32> to vector<2x16x8xf32>
    "tpu.trace_start"() <{level = 10 : i32, message = "bqd,bkd->bqk"}> : () -> ()
    %cst_58 = arith.constant dense<0.000000e+00> : vector<2x8x16xf32>
    %176 = tpu.matmul %174, %175, %cst_58 {dimension_numbers = #tpu.dot_dimension_numbers<[2], [2], [1], [1], [0, 0, 0, 1, 1, 1], [0], [0]>} : vector<2x8x8xf32>, vector<2x16x8xf32>, vector<2x8x16xf32> -> vector<2x8x16xf32>
    "tpu.trace_stop"() : () -> ()
    %177 = vector.extract_strided_slice %145 {offsets = [0, 0, 56], sizes = [2, 16, 8], strides = [1, 1, 1]} : vector<2x16x64xf32> to vector<2x16x8xf32>
    %178 = tpu.concatenate %148, %152, %156, %160, %164, %168, %172, %176 in 0 : vector<2x8x16xf32>, vector<2x8x16xf32>, vector<2x8x16xf32>, vector<2x8x16xf32>, vector<2x8x16xf32>, vector<2x8x16xf32>, vector<2x8x16xf32>, vector<2x8x16xf32> -> vector<16x8x16xf32>
    %179 = tpu.concatenate %149, %153, %157, %161, %165, %169, %173, %177 in 0 : vector<2x16x8xf32>, vector<2x16x8xf32>, vector<2x16x8xf32>, vector<2x16x8xf32>, vector<2x16x8xf32>, vector<2x16x8xf32>, vector<2x16x8xf32>, vector<2x16x8xf32> -> vector<16x16x8xf32>
    %cst_59 = arith.constant dense<0xFF800000> : vector<16x8xf32>
    %180 = vector.multi_reduction <maximumf>, %178, %cst_59 [2] : vector<16x8x16xf32> to vector<16x8xf32>
    %181 = vector.shape_cast %180 : vector<16x8xf32> to vector<16x8x1xf32>
    %182 = vector.broadcast %181 : vector<16x8x1xf32> to vector<16x8x16xf32>
    %183 = arith.subf %178, %182 : vector<16x8x16xf32>
    %184 = math.exp %183 : vector<16x8x16xf32>
    %cst_60 = arith.constant dense<0.000000e+00> : vector<16x8xf32>
    %185 = vector.multi_reduction <add>, %184, %cst_60 [2] : vector<16x8x16xf32> to vector<16x8xf32>
    %186 = vector.shape_cast %185 : vector<16x8xf32> to vector<16x8x1xf32>
    %187 = tpu.reciprocal %186 {approx = true} : vector<16x8x1xf32> -> vector<16x8x1xf32>
    %188 = vector.broadcast %187 : vector<16x8x1xf32> to vector<16x8x16xf32>
    %189 = arith.mulf %184, %188 : vector<16x8x16xf32>
    "tpu.trace_start"() <{level = 10 : i32, message = "zqk,zkd->zqd"}> : () -> ()
    %cst_61 = arith.constant dense<0.000000e+00> : vector<16x8x8xf32>
    %190 = tpu.matmul %189, %179, %cst_61 {dimension_numbers = #tpu.dot_dimension_numbers<[2], [1], [1], [2], [0, 0, 0, 1, 1, 2], [0], [0]>} : vector<16x8x16xf32>, vector<16x16x8xf32>, vector<16x8x8xf32> -> vector<16x8x8xf32>
    "tpu.trace_stop"() : () -> ()
    %191 = vector.extract_strided_slice %190 {offsets = [0, 0, 0], sizes = [2, 8, 8], strides = [1, 1, 1]} : vector<16x8x8xf32> to vector<2x8x8xf32>
    %192 = vector.shape_cast %191 : vector<2x8x8xf32> to vector<16x8xf32>
    %193 = vector.extract_strided_slice %4 {offsets = [0, 0], sizes = [8, 64], strides = [1, 1]} : vector<64x64xf32> to vector<8x64xf32>
    %cst_62 = arith.constant dense<0.000000e+00> : vector<16x64xf32>
    %194 = tpu.matmul %192, %193, %cst_62 {dimension_numbers = #tpu.dot_dimension_numbers<[1], [0], [0], [1], [0, 0, 1, 1], [], []>} : vector<16x8xf32>, vector<8x64xf32>, vector<16x64xf32> -> vector<16x64xf32>
    %195 = vector.extract_strided_slice %190 {offsets = [2, 0, 0], sizes = [2, 8, 8], strides = [1, 1, 1]} : vector<16x8x8xf32> to vector<2x8x8xf32>
    %196 = vector.shape_cast %195 : vector<2x8x8xf32> to vector<16x8xf32>
    %197 = vector.extract_strided_slice %4 {offsets = [8, 0], sizes = [8, 64], strides = [1, 1]} : vector<64x64xf32> to vector<8x64xf32>
    %cst_63 = arith.constant dense<0.000000e+00> : vector<16x64xf32>
    %198 = tpu.matmul %196, %197, %cst_63 {dimension_numbers = #tpu.dot_dimension_numbers<[1], [0], [0], [1], [0, 0, 1, 1], [], []>} : vector<16x8xf32>, vector<8x64xf32>, vector<16x64xf32> -> vector<16x64xf32>
    %199 = arith.addf %194, %198 : vector<16x64xf32>
    %200 = vector.extract_strided_slice %190 {offsets = [4, 0, 0], sizes = [2, 8, 8], strides = [1, 1, 1]} : vector<16x8x8xf32> to vector<2x8x8xf32>
    %201 = vector.shape_cast %200 : vector<2x8x8xf32> to vector<16x8xf32>
    %202 = vector.extract_strided_slice %4 {offsets = [16, 0], sizes = [8, 64], strides = [1, 1]} : vector<64x64xf32> to vector<8x64xf32>
    %cst_64 = arith.constant dense<0.000000e+00> : vector<16x64xf32>
    %203 = tpu.matmul %201, %202, %cst_64 {dimension_numbers = #tpu.dot_dimension_numbers<[1], [0], [0], [1], [0, 0, 1, 1], [], []>} : vector<16x8xf32>, vector<8x64xf32>, vector<16x64xf32> -> vector<16x64xf32>
    %204 = arith.addf %199, %203 : vector<16x64xf32>
    %205 = vector.extract_strided_slice %190 {offsets = [6, 0, 0], sizes = [2, 8, 8], strides = [1, 1, 1]} : vector<16x8x8xf32> to vector<2x8x8xf32>
    %206 = vector.shape_cast %205 : vector<2x8x8xf32> to vector<16x8xf32>
    %207 = vector.extract_strided_slice %4 {offsets = [24, 0], sizes = [8, 64], strides = [1, 1]} : vector<64x64xf32> to vector<8x64xf32>
    %cst_65 = arith.constant dense<0.000000e+00> : vector<16x64xf32>
    %208 = tpu.matmul %206, %207, %cst_65 {dimension_numbers = #tpu.dot_dimension_numbers<[1], [0], [0], [1], [0, 0, 1, 1], [], []>} : vector<16x8xf32>, vector<8x64xf32>, vector<16x64xf32> -> vector<16x64xf32>
    %209 = arith.addf %204, %208 : vector<16x64xf32>
    %210 = vector.extract_strided_slice %190 {offsets = [8, 0, 0], sizes = [2, 8, 8], strides = [1, 1, 1]} : vector<16x8x8xf32> to vector<2x8x8xf32>
    %211 = vector.shape_cast %210 : vector<2x8x8xf32> to vector<16x8xf32>
    %212 = vector.extract_strided_slice %4 {offsets = [32, 0], sizes = [8, 64], strides = [1, 1]} : vector<64x64xf32> to vector<8x64xf32>
    %cst_66 = arith.constant dense<0.000000e+00> : vector<16x64xf32>
    %213 = tpu.matmul %211, %212, %cst_66 {dimension_numbers = #tpu.dot_dimension_numbers<[1], [0], [0], [1], [0, 0, 1, 1], [], []>} : vector<16x8xf32>, vector<8x64xf32>, vector<16x64xf32> -> vector<16x64xf32>
    %214 = arith.addf %209, %213 : vector<16x64xf32>
    %215 = vector.extract_strided_slice %190 {offsets = [10, 0, 0], sizes = [2, 8, 8], strides = [1, 1, 1]} : vector<16x8x8xf32> to vector<2x8x8xf32>
    %216 = vector.shape_cast %215 : vector<2x8x8xf32> to vector<16x8xf32>
    %217 = vector.extract_strided_slice %4 {offsets = [40, 0], sizes = [8, 64], strides = [1, 1]} : vector<64x64xf32> to vector<8x64xf32>
    %cst_67 = arith.constant dense<0.000000e+00> : vector<16x64xf32>
    %218 = tpu.matmul %216, %217, %cst_67 {dimension_numbers = #tpu.dot_dimension_numbers<[1], [0], [0], [1], [0, 0, 1, 1], [], []>} : vector<16x8xf32>, vector<8x64xf32>, vector<16x64xf32> -> vector<16x64xf32>
    %219 = arith.addf %214, %218 : vector<16x64xf32>
    %220 = vector.extract_strided_slice %190 {offsets = [12, 0, 0], sizes = [2, 8, 8], strides = [1, 1, 1]} : vector<16x8x8xf32> to vector<2x8x8xf32>
    %221 = vector.shape_cast %220 : vector<2x8x8xf32> to vector<16x8xf32>
    %222 = vector.extract_strided_slice %4 {offsets = [48, 0], sizes = [8, 64], strides = [1, 1]} : vector<64x64xf32> to vector<8x64xf32>
    %cst_68 = arith.constant dense<0.000000e+00> : vector<16x64xf32>
    %223 = tpu.matmul %221, %222, %cst_68 {dimension_numbers = #tpu.dot_dimension_numbers<[1], [0], [0], [1], [0, 0, 1, 1], [], []>} : vector<16x8xf32>, vector<8x64xf32>, vector<16x64xf32> -> vector<16x64xf32>
    %224 = arith.addf %219, %223 : vector<16x64xf32>
    %225 = vector.extract_strided_slice %190 {offsets = [14, 0, 0], sizes = [2, 8, 8], strides = [1, 1, 1]} : vector<16x8x8xf32> to vector<2x8x8xf32>
    %226 = vector.shape_cast %225 : vector<2x8x8xf32> to vector<16x8xf32>
    %227 = vector.extract_strided_slice %4 {offsets = [56, 0], sizes = [8, 64], strides = [1, 1]} : vector<64x64xf32> to vector<8x64xf32>
    %cst_69 = arith.constant dense<0.000000e+00> : vector<16x64xf32>
    %228 = tpu.matmul %226, %227, %cst_69 {dimension_numbers = #tpu.dot_dimension_numbers<[1], [0], [0], [1], [0, 0, 1, 1], [], []>} : vector<16x8xf32>, vector<8x64xf32>, vector<16x64xf32> -> vector<16x64xf32>
    %229 = arith.addf %224, %228 : vector<16x64xf32>
    %230 = vector.broadcast %13 : vector<1x64xf32> to vector<16x64xf32>
    %231 = arith.addf %229, %230 : vector<16x64xf32>
    %232 = arith.addf %134, %231 : vector<16x64xf32>
    %cst_70 = arith.constant 1.000000e+00 : f32
    %233 = vector.broadcast %cst_70 : f32 to vector<64x1xf32>
    %cst_71 = arith.constant dense<0.000000e+00> : vector<16x1xf32>
    %234 = tpu.matmul %232, %233, %cst_71 {dimension_numbers = #tpu.dot_dimension_numbers<[1], [0], [0], [1], [0, 0, 1, 1], [], []>} : vector<16x64xf32>, vector<64x1xf32>, vector<16x1xf32> -> vector<16x1xf32>
    %cst_72 = arith.constant 1.562500e-02 : f32
    %235 = vector.broadcast %cst_72 : f32 to vector<16x1xf32>
    %236 = arith.mulf %234, %235 : vector<16x1xf32>
    %237 = arith.mulf %232, %232 : vector<16x64xf32>
    %cst_73 = arith.constant dense<0.000000e+00> : vector<16x1xf32>
    %238 = tpu.matmul %237, %233, %cst_73 {dimension_numbers = #tpu.dot_dimension_numbers<[1], [0], [0], [1], [0, 0, 1, 1], [], []>} : vector<16x64xf32>, vector<64x1xf32>, vector<16x1xf32> -> vector<16x1xf32>
    %cst_74 = arith.constant 1.562500e-02 : f32
    %239 = vector.broadcast %cst_74 : f32 to vector<16x1xf32>
    %240 = arith.mulf %238, %239 : vector<16x1xf32>
    %241 = arith.mulf %236, %236 : vector<16x1xf32>
    %242 = arith.subf %240, %241 : vector<16x1xf32>
    %243 = vector.broadcast %236 : vector<16x1xf32> to vector<16x64xf32>
    %244 = arith.subf %232, %243 : vector<16x64xf32>
    %cst_75 = arith.constant 9.99999974E-6 : f32
    %245 = vector.broadcast %cst_75 : f32 to vector<16x1xf32>
    %246 = arith.addf %242, %245 : vector<16x1xf32>
    %247 = math.rsqrt %246 : vector<16x1xf32>
    %248 = vector.broadcast %247 : vector<16x1xf32> to vector<16x64xf32>
    %249 = arith.mulf %244, %248 : vector<16x64xf32>
    %250 = vector.broadcast %7 : vector<1x64xf32> to vector<16x64xf32>
    %251 = arith.mulf %249, %250 : vector<16x64xf32>
    %252 = vector.broadcast %8 : vector<1x64xf32> to vector<16x64xf32>
    %253 = arith.addf %251, %252 : vector<16x64xf32>
    %cst_76 = arith.constant dense<0.000000e+00> : vector<16x256xf32>
    %254 = tpu.matmul %253, %5, %cst_76 {dimension_numbers = #tpu.dot_dimension_numbers<[1], [0], [0], [1], [0, 0, 1, 1], [], []>} : vector<16x64xf32>, vector<64x256xf32>, vector<16x256xf32> -> vector<16x256xf32>
    %255 = vector.broadcast %14 : vector<1x256xf32> to vector<16x256xf32>
    %256 = arith.addf %254, %255 : vector<16x256xf32>
    %cst_77 = arith.constant 0.000000e+00 : f32
    %257 = vector.broadcast %cst_77 : f32 to vector<16x256xf32>
    %258 = arith.maximumf %256, %257 : vector<16x256xf32>
    %cst_78 = arith.constant dense<0.000000e+00> : vector<16x64xf32>
    %259 = tpu.matmul %258, %6, %cst_78 {dimension_numbers = #tpu.dot_dimension_numbers<[1], [0], [0], [1], [0, 0, 1, 1], [], []>} : vector<16x256xf32>, vector<256x64xf32>, vector<16x64xf32> -> vector<16x64xf32>
    %260 = vector.broadcast %15 : vector<1x64xf32> to vector<16x64xf32>
    %261 = arith.addf %259, %260 : vector<16x64xf32>
    %262 = arith.addf %253, %261 : vector<16x64xf32>
    %cst_79 = arith.constant 1.000000e+00 : f32
    %263 = vector.broadcast %cst_79 : f32 to vector<64x1xf32>
    %cst_80 = arith.constant dense<0.000000e+00> : vector<16x1xf32>
    %264 = tpu.matmul %262, %263, %cst_80 {dimension_numbers = #tpu.dot_dimension_numbers<[1], [0], [0], [1], [0, 0, 1, 1], [], []>} : vector<16x64xf32>, vector<64x1xf32>, vector<16x1xf32> -> vector<16x1xf32>
    %cst_81 = arith.constant 1.562500e-02 : f32
    %265 = vector.broadcast %cst_81 : f32 to vector<16x1xf32>
    %266 = arith.mulf %264, %265 : vector<16x1xf32>
    %267 = arith.mulf %262, %262 : vector<16x64xf32>
    %cst_82 = arith.constant dense<0.000000e+00> : vector<16x1xf32>
    %268 = tpu.matmul %267, %263, %cst_82 {dimension_numbers = #tpu.dot_dimension_numbers<[1], [0], [0], [1], [0, 0, 1, 1], [], []>} : vector<16x64xf32>, vector<64x1xf32>, vector<16x1xf32> -> vector<16x1xf32>
    %cst_83 = arith.constant 1.562500e-02 : f32
    %269 = vector.broadcast %cst_83 : f32 to vector<16x1xf32>
    %270 = arith.mulf %268, %269 : vector<16x1xf32>
    %271 = arith.mulf %266, %266 : vector<16x1xf32>
    %272 = arith.subf %270, %271 : vector<16x1xf32>
    %273 = vector.broadcast %266 : vector<16x1xf32> to vector<16x64xf32>
    %274 = arith.subf %262, %273 : vector<16x64xf32>
    %cst_84 = arith.constant 9.99999974E-6 : f32
    %275 = vector.broadcast %cst_84 : f32 to vector<16x1xf32>
    %276 = arith.addf %272, %275 : vector<16x1xf32>
    %277 = math.rsqrt %276 : vector<16x1xf32>
    %278 = vector.broadcast %277 : vector<16x1xf32> to vector<16x64xf32>
    %279 = arith.mulf %274, %278 : vector<16x64xf32>
    %280 = vector.broadcast %7 : vector<1x64xf32> to vector<16x64xf32>
    %281 = arith.mulf %279, %280 : vector<16x64xf32>
    %282 = vector.broadcast %8 : vector<1x64xf32> to vector<16x64xf32>
    %283 = arith.addf %281, %282 : vector<16x64xf32>
    %c0_85 = arith.constant 0 : index
    %c0_86 = arith.constant 0 : index
    %284 = vector.load %arg6[%c0_85, %c0_86] : memref<16x64xf32, #tpu.memory_space<vmem>>, vector<16x64xf32>
    tpu.vector_store %arg6[%c0_85, %c0_86], %283 {strides = array<i32>} : memref<16x64xf32, #tpu.memory_space<vmem>>, vector<16x64xf32>,
    return
  }
  func.func @transform_0(%arg0: i32) -> (i32, i32) {
    %c0_i32 = arith.constant 0 : i32
    %c0_i32_0 = arith.constant 0 : i32
    return %arg0, %c0_i32 : i32, i32
  }
  func.func @transform_1(%arg0: i32) -> (i32, i32) {
    %c0_i32 = arith.constant 0 : i32
    %c0_i32_0 = arith.constant 0 : i32
    return %arg0, %c0_i32 : i32, i32
  }
  func.func @transform_2(%arg0: i32) -> (i32, i32) {
    %c0_i32 = arith.constant 0 : i32
    %c0_i32_0 = arith.constant 0 : i32
    %c0_i32_1 = arith.constant 0 : i32
    return %c0_i32, %c0_i32_0 : i32, i32
  }
  func.func @transform_3(%arg0: i32) -> (i32, i32) {
    %c0_i32 = arith.constant 0 : i32
    %c0_i32_0 = arith.constant 0 : i32
    %c0_i32_1 = arith.constant 0 : i32
    return %c0_i32, %c0_i32_0 : i32, i32
  }
  func.func @transform_4(%arg0: i32) -> (i32, i32) {
    %c0_i32 = arith.constant 0 : i32
    %c0_i32_0 = arith.constant 0 : i32
    %c0_i32_1 = arith.constant 0 : i32
    return %c0_i32, %c0_i32_0 : i32, i32
  }
  func.func @transform_5(%arg0: i32) -> (i32, i32) {
    %c0_i32 = arith.constant 0 : i32
    %c0_i32_0 = arith.constant 0 : i32
    return %arg0, %c0_i32 : i32, i32
  }
}

</mosaic_0001>

<llo_original>
// kernel: tpu_custom_call.1
$region0: #{tpu_custom_call.1}
  #allocation0 [shape = 'u32[]', space=smem, size = 0x4, offset = 0x4, fixed_abs, tag = 'smem constant byte address 0x4 - core index']
  #allocation1 [shape = 'u32[144,128]{1,0:T(1,128)}', space=vmem, size = 0x12000, scoped, tag = 'internal scratch']
  %s0 = inlined_call_operand.hbm [shape: f32[16,64], index: 0, kind: input, shape index: {}]
  %s1 = inlined_call_operand.hbm [shape: f32[32,64], index: 1, kind: input, shape index: {}]
  %s2 = inlined_call_operand.vmem [shape: f32[64,768], index: 2, kind: input, shape index: {}]
  %s3 = inlined_call_operand.vmem [shape: f32[256,64], index: 3, kind: input, shape index: {}]
  %s4 = inlined_call_operand.vmem [shape: f32[1,960], index: 4, kind: input, shape index: {}]
  %s5 = inlined_call_operand.hbm [shape: f32[16,64], index: 5, kind: output, shape index: {}]
  %s6 = sld [smem:[#allocation0]]
  $region38: #{tpu_custom_call.1} parent=0
    _
  %s8 = ssub.s32 1, %s6
  %s9 = scalar_select 0, %s8, %s6
  $region1: #{tpu_custom_call.1} parent=0
    #allocation2 [shape = 'u8[8192]{0}', space=vmem, size = 0x2000, scoped, tag = 'input window, operand 0, single buffered']
    #allocation3 [shape = 's32[1]{0}', space=sflag, size = 0x4, scoped, tag = 'scoped memory for tpu_custom_call.1']
    #allocation4 [shape = 's32[1]{0}', space=sflag, size = 0x4, scoped, tag = 'scoped memory for tpu_custom_call.1']
    #allocation5 [shape = 'u8[16384]{0}', space=vmem, size = 0x4000, scoped, tag = 'input window, operand 1, single buffered']
    #allocation6 [shape = 's32[1]{0}', space=sflag, size = 0x4, scoped, tag = 'scoped memory for tpu_custom_call.1']
    #allocation7 [shape = 'u8[8192]{0}', space=vmem, size = 0x2000, scoped, tag = 'output window, operand 0, single buffered']
    %10 = vsyncpa [#allocation3], 0
    %11 = vsyncpa [#allocation6], 0
    %12 = vsyncpa [#allocation4], 0
    // Predicated region
    $region2: #{tpu_custom_call.1} parent=1 // pred_check
      _
    $region3: #{tpu_custom_call.1} parent=1 // pred_check_branch
      %14 = sbr.rel (0) target = $region5
    $region4: #{tpu_custom_call.1} parent=1 // pred_region
      %s16 = ssub.s32 256, 256
      %17 = vsyncadd [#allocation3], %s16
      %s18 = sshll.u32 [#allocation2], 4
      %s19 = int_to_ptr.vmem [resolvable:$true] %s18
      %24 = dma.hbm_to_vmem [thread:$0]  %s0, 256, %s19, [#allocation3], 128, 128, 8
    $region5: #{tpu_custom_call.1} parent=1 // pred_fallthru
      _
    // Predicated region
    $region6: #{tpu_custom_call.1} parent=1 // pred_check
      _
    $region7: #{tpu_custom_call.1} parent=1 // pred_check_branch
      %26 = sbr.rel (0) target = $region9
    $region8: #{tpu_custom_call.1} parent=1 // pred_region
      %s28 = ssub.s32 512, 512
      %29 = vsyncadd [#allocation6], %s28
      %s30 = sshll.u32 [#allocation5], 4
      %s31 = int_to_ptr.vmem [resolvable:$true] %s30
      %36 = dma.hbm_to_vmem [thread:$0]  %s1, 512, %s31, [#allocation6], 128, 128, 8
    $region9: #{tpu_custom_call.1} parent=1 // pred_fallthru
      _
    // Predicated region
    $region10: #{tpu_custom_call.1} parent=1 // pred_check
      _
    $region11: #{tpu_custom_call.1} parent=1 // pred_check_branch
      %38 = sbr.rel (0) target = $region13
    $region12: #{tpu_custom_call.1} parent=1 // pred_region
      _
    $region13: #{tpu_custom_call.1} parent=1 // pred_fallthru
      _
    // Predicated region
    $region14: #{tpu_custom_call.1} parent=1 // pred_check
      _
    $region15: #{tpu_custom_call.1} parent=1 // pred_check_branch
      %40 = sbr.rel (0) target = $region17
    $region16: #{tpu_custom_call.1} parent=1 // pred_region
      _
    $region17: #{tpu_custom_call.1} parent=1 // pred_fallthru
      _
    // Predicated region
    $region18: #{tpu_custom_call.1} parent=1 // pred_check
      _
    $region19: #{tpu_custom_call.1} parent=1 // pred_check_branch
      %42 = sbr.rel (0) target = $region21
    $region20: #{tpu_custom_call.1} parent=1 // pred_region
      _
    $region21: #{tpu_custom_call.1} parent=1 // pred_fallthru
      _
    // Predicated region
    $region22: #{tpu_custom_call.1} parent=1 // pred_check
      _
    $region23: #{tpu_custom_call.1} parent=1 // pred_check_branch
      %44 = sbr.rel (0) target = $region25
    $region24: #{tpu_custom_call.1} parent=1 // pred_region
      %45 = dma.done [#allocation3], 256
    $region25: #{tpu_custom_call.1} parent=1 // pred_fallthru
      _
    // Predicated region
    $region26: #{tpu_custom_call.1} parent=1 // pred_check
      _
    $region27: #{tpu_custom_call.1} parent=1 // pred_check_branch
      %47 = sbr.rel (0) target = $region29
    $region28: #{tpu_custom_call.1} parent=1 // pred_region
      %48 = dma.done [#allocation6], 512
    $region29: #{tpu_custom_call.1} parent=1 // pred_fallthru
      _
    %v49 = vld [vmem:[%s2] sm:$0xff]
    %v50 = vld [vmem:[%s2 + $0x8] sm:$0xff]
    %v51 = vld [vmem:[%s2 + $0x30] sm:$0xff]
    %v52 = vld [vmem:[%s2 + $0x38] sm:$0xff]
    %v53 = vld [vmem:[%s2 + $0x60] sm:$0xff]
    %v54 = vld [vmem:[%s2 + $0x68] sm:$0xff]
    %v55 = vld [vmem:[%s2 + $0x90] sm:$0xff]
    %v56 = vld [vmem:[%s2 + $0x98] sm:$0xff]
    %v57 = vld [vmem:[%s2 + $0xc0] sm:$0xff]
    %v58 = vld [vmem:[%s2 + $0xc8] sm:$0xff]
    %v59 = vld [vmem:[%s2 + $0xf0] sm:$0xff]
    %v60 = vld [vmem:[%s2 + $0xf8] sm:$0xff]
    %v61 = vld [vmem:[%s2 + $0x120] sm:$0xff]
    %v62 = vld [vmem:[%s2 + $0x128] sm:$0xff]
    %v63 = vld [vmem:[%s2 + $0x150] sm:$0xff]
    %v64 = vld [vmem:[%s2 + $0x158] sm:$0xff]
    %v65 = vld [vmem:[%s2 + $0x10] sm:$0xff]
    %v66 = vld [vmem:[%s2 + $0x40] sm:$0xff]
    %v67 = vld [vmem:[%s2 + $0x70] sm:$0xff]
    %v68 = vld [vmem:[%s2 + $0xa0] sm:$0xff]
    %v69 = vld [vmem:[%s2 + $0xd0] sm:$0xff]
    %v70 = vld [vmem:[%s2 + $0x100] sm:$0xff]
    %v71 = vld [vmem:[%s2 + $0x130] sm:$0xff]
    %v72 = vld [vmem:[%s2 + $0x160] sm:$0xff]
    %v73 = vld [vmem:[%s2 + $0x18] sm:$0xff]
    %v74 = vld [vmem:[%s2 + $0x48] sm:$0xff]
    %v75 = vld [vmem:[%s2 + $0x78] sm:$0xff]
    %v76 = vld [vmem:[%s2 + $0xa8] sm:$0xff]
    %v77 = vld [vmem:[%s2 + $0xd8] sm:$0xff]
    %v78 = vld [vmem:[%s2 + $0x108] sm:$0xff]
    %v79 = vld [vmem:[%s2 + $0x138] sm:$0xff]
    %v80 = vld [vmem:[%s2 + $0x168] sm:$0xff]
    %v81 = vld [vmem:[%s2 + $0x20] sm:$0xff]
    %v82 = vld [vmem:[%s2 + $0x28] sm:$0xff]
    %v83 = vld [vmem:[%s2 + $0x50] sm:$0xff]
    %v84 = vld [vmem:[%s2 + $0x58] sm:$0xff]
    %v85 = vld [vmem:[%s2 + $0x80] sm:$0xff]
    %v86 = vld [vmem:[%s2 + $0x88] sm:$0xff]
    %v87 = vld [vmem:[%s2 + $0xb0] sm:$0xff]
    %v88 = vld [vmem:[%s2 + $0xb8] sm:$0xff]
    %v89 = vld [vmem:[%s2 + $0xe0] sm:$0xff]
    %v90 = vld [vmem:[%s2 + $0xe8] sm:$0xff]
    %v91 = vld [vmem:[%s2 + $0x110] sm:$0xff]
    %v92 = vld [vmem:[%s2 + $0x118] sm:$0xff]
    %v93 = vld [vmem:[%s2 + $0x140] sm:$0xff]
    %v94 = vld [vmem:[%s2 + $0x148] sm:$0xff]
    %v95 = vld [vmem:[%s2 + $0x170] sm:$0xff]
    %v96 = vld [vmem:[%s2 + $0x178] sm:$0xff]
    %v97 = vld [vmem:[%s3] sm:$0xff]
    %v98 = vld [vmem:[%s3 + $0x8] sm:$0xff]
    %v99 = vld [vmem:[%s3 + $0x10] sm:$0xff]
    %v100 = vld [vmem:[%s3 + $0x18] sm:$0xff]
    %v101 = vld [vmem:[%s3 + $0x20] sm:$0xff]
    %v102 = vld [vmem:[%s3 + $0x28] sm:$0xff]
    %v103 = vld [vmem:[%s3 + $0x30] sm:$0xff]
    %v104 = vld [vmem:[%s3 + $0x38] sm:$0xff]
    %v105 = vld [vmem:[%s3 + $0x40] sm:$0xff]
    %v106 = vld [vmem:[%s3 + $0x48] sm:$0xff]
    %v107 = vld [vmem:[%s3 + $0x50] sm:$0xff]
    %v108 = vld [vmem:[%s3 + $0x58] sm:$0xff]
    %v109 = vld [vmem:[%s3 + $0x60] sm:$0xff]
    %v110 = vld [vmem:[%s3 + $0x68] sm:$0xff]
    %v111 = vld [vmem:[%s3 + $0x70] sm:$0xff]
    %v112 = vld [vmem:[%s3 + $0x78] sm:$0xff]
    %v113 = vld [vmem:[%s3 + $0x80] sm:$0xff]
    %v114 = vld [vmem:[%s3 + $0x88] sm:$0xff]
    %v115 = vld [vmem:[%s3 + $0x90] sm:$0xff]
    %v116 = vld [vmem:[%s3 + $0x98] sm:$0xff]
    %v117 = vld [vmem:[%s3 + $0xa0] sm:$0xff]
    %v118 = vld [vmem:[%s3 + $0xa8] sm:$0xff]
    %v119 = vld [vmem:[%s3 + $0xb0] sm:$0xff]
    %v120 = vld [vmem:[%s3 + $0xb8] sm:$0xff]
    %v121 = vld [vmem:[%s3 + $0xc0] sm:$0xff]
    %v122 = vld [vmem:[%s3 + $0xc8] sm:$0xff]
    %v123 = vld [vmem:[%s3 + $0xd0] sm:$0xff]
    %v124 = vld [vmem:[%s3 + $0xd8] sm:$0xff]
    %v125 = vld [vmem:[%s3 + $0xe0] sm:$0xff]
    %v126 = vld [vmem:[%s3 + $0xe8] sm:$0xff]
    %v127 = vld [vmem:[%s3 + $0xf0] sm:$0xff]
    %v128 = vld [vmem:[%s3 + $0xf8] sm:$0xff]
    %v129 = vld [vmem:[%s4] sm:$0x1]
    %v130 = vld [vmem:[%s4 + $0x1] sm:$0x3]
    %v131 = vld [vmem:[%s4 + $0x2] sm:$0x1]
    %v132 = vld [vmem:[%s4 + $0x3] sm:$0x1]
    %v133 = vld [vmem:[%s4 + $0x3] sm:$0x3]
    %v134 = vld [vmem:[%s4 + $0x4] sm:$0x1]
    %v135 = vld [vmem:[%s4 + $0x5] sm:$0x3]
    %v136 = vld [vmem:[%s4 + $0x7] sm:$0x1]
    %v137 = vld [vmem:[#allocation2] sm:$0xff]
    %v138 = vld [vmem:[#allocation2 + $0x8] sm:$0xff]
    %v139 = vld [vmem:[#allocation5] sm:$0xff]
    %v140 = vld [vmem:[#allocation5 + $0x8] sm:$0xff]
    %v141 = vld [vmem:[#allocation5 + $0x10] sm:$0xff]
    %v142 = vld [vmem:[#allocation5 + $0x18] sm:$0xff]
    %v144 = vlaneseq
    %v145 = vshrl.u32 %v144, 7
    %v146 = vsub.s32 0, %v145
    %v147 = vrot.slane %v130, %v146
    %v148 = vlaneseq
    %v149 = vshrl.u32 %v148, 7
    %v150 = vsub.s32 1, %v149
    %v151 = vrot.slane %v130, %v150
    %vm154 = vcmask 523264
    %v156 = vsel %vm154, %v137, 0
    %v159 = vsel %vm154, %v138, 0
    %161 = vmatprep.subr.mxu0 %v50
    %162 = vmatpush1.msra.mxu0 %v49
    %163 = vmatprep.subr.mxu0 %v52
    %164 = vmatpush1.msra.mxu0 %v51
    %165 = vmatprep.subr.mxu0 %v54
    %166 = vmatpush1.msra.mxu0 %v53
    %167 = vmatprep.subr.mxu0 %v56
    %168 = vmatpush1.msra.mxu0 %v55
    %169 = vmatprep.subr.mxu0 %v58
    %170 = vmatpush1.msra.mxu0 %v57
    %171 = vmatprep.subr.mxu0 %v60
    %172 = vmatpush1.msra.mxu0 %v59
    %173 = vmatprep.subr.mxu0 %v62
    %174 = vmatpush1.msra.mxu0 %v61
    %175 = vmatprep.subr.mxu0 %v64
    %176 = vmatpush1.msra.mxu0 %v63
    %177 = vmatprep.subr.mxu0 0.0
    %178 = vmatpush1.msra.mxu0 0.0
    %179 = vmatprep.subr.mxu0 0.0
    %180 = vmatpush1.msra.mxu0 0.0
    %181 = vmatprep.subr.mxu0 0.0
    %182 = vmatpush1.msra.mxu0 0.0
    %183 = vmatprep.subr.mxu0 0.0
    %184 = vmatpush1.msra.mxu0 0.0
    %185 = vmatprep.subr.mxu0 0.0
    %186 = vmatpush1.msra.mxu0 0.0
    %187 = vmatprep.subr.mxu0 0.0
    %188 = vmatpush1.msra.mxu0 0.0
    %189 = vmatprep.subr.mxu0 0.0
    %190 = vmatpush1.msra.mxu0 0.0
    %191 = vmatprep.subr.mxu0 0.0
    %192 = vmatpush1.msra.mxu0 0.0
    %193 = vmatprep.subr.mxu0 0.0
    %194 = vmatpush1.msra.mxu0 0.0
    %195 = vmatprep.subr.mxu0 0.0
    %196 = vmatpush1.msra.mxu0 0.0
    %197 = vmatprep.subr.mxu0 0.0
    %198 = vmatpush1.msra.mxu0 0.0
    %199 = vmatprep.subr.mxu0 0.0
    %200 = vmatpush1.msra.mxu0 0.0
    %201 = vmatprep.subr.mxu0 0.0
    %202 = vmatpush1.msra.mxu0 0.0
    %203 = vmatprep.subr.mxu0 0.0
    %204 = vmatpush1.msra.mxu0 0.0
    %205 = vmatprep.subr.mxu0 0.0
    %206 = vmatpush1.msra.mxu0 0.0
    %207 = vmatprep.subr.mxu0 0.0
    %208 = vmatpush1.msra.mxu0 0.0
    %209 = vmatprep.subr.mxu0 0.0
    %210 = vmatpush1.msra.mxu0 0.0
    %211 = vmatprep.subr.mxu0 0.0
    %212 = vmatpush1.msra.mxu0 0.0
    %213 = vmatprep.subr.mxu0 0.0
    %214 = vmatpush1.msra.mxu0 0.0
    %215 = vmatprep.subr.mxu0 0.0
    %216 = vmatpush1.msra.mxu0 0.0
    %217 = vmatprep.subr.mxu0 0.0
    %218 = vmatpush1.msra.mxu0 0.0
    %219 = vmatprep.subr.mxu0 0.0
    %220 = vmatpush1.msra.mxu0 0.0
    %221 = vmatprep.subr.mxu0 0.0
    %222 = vmatpush1.msra.mxu0 0.0
    %223 = vmatprep.subr.mxu0 0.0
    %224 = vmatpush1.msra.mxu0 0.0
    %225 = vmatprep.mubr.f32.mxu0 0.0
    %226 = vmatmul.mubr.f32.gmra.mrb[0].mxu0 %v156
    %v227 = vpop.f32.mrb[0].mxu0
    %v228 = vadd.f32 %v147, %v227
    %v229 = vpop.f32.mrb[0].mxu0
    %v230 = vadd.f32 %v151, %v229
    %231 = vmatprep.mubr.f32.mxu0 0.0
    %232 = vmatmul.mubr.f32.gmra.mrb[0].mxu0 %v159
    %v233 = vpop.f32.mrb[0].mxu0
    %v234 = vadd.f32 %v147, %v233
    %v235 = vpop.f32.mrb[0].mxu0
    %v236 = vadd.f32 %v151, %v235
    %237 = vdwg.mxu0
    %239 = vrot.lane.b32.xlu0 %v228, 64
    %v240 = vpop.permute.xlu0 %239
    %vm241 = vcmask 64512
    %v242 = vsel %vm241, %v228, 0
    %v244 = vsel %vm241, %v240, 0
    %246 = vmatprep.subr.mxu0 0.0
    %247 = vmatpush1.xpose.msra.mxu0 %v244
    %248 = vmatprep.subr.mxu0 0.0
    %249 = vmatpush1.xpose.msra.mxu0 0.0
    %250 = vmatprep.subr.mxu0 0.0
    %251 = vmatpush1.xpose.msra.mxu0 0.0
    %252 = vmatprep.subr.mxu0 0.0
    %253 = vmatpush1.xpose.msra.mxu0 0.0
    %254 = vmatprep.subr.mxu0 0.0
    %255 = vmatpush1.xpose.msra.mxu0 0.0
    %256 = vmatprep.subr.mxu0 0.0
    %257 = vmatpush1.xpose.msra.mxu0 0.0
    %258 = vmatprep.subr.mxu0 0.0
    %259 = vmatpush1.xpose.msra.mxu0 0.0
    %260 = vmatprep.subr.mxu0 0.0
    %261 = vmatpush1.xpose.msra.mxu0 0.0
    %262 = vmatprep.subr.mxu0 0.0
    %263 = vmatpush1.xpose.msra.mxu0 0.0
    %264 = vmatprep.subr.mxu0 0.0
    %265 = vmatpush1.xpose.msra.mxu0 0.0
    %266 = vmatprep.subr.mxu0 0.0
    %267 = vmatpush1.xpose.msra.mxu0 0.0
    %268 = vmatprep.subr.mxu0 0.0
    %269 = vmatpush1.xpose.msra.mxu0 0.0
    %270 = vmatprep.subr.mxu0 0.0
    %271 = vmatpush1.xpose.msra.mxu0 0.0
    %272 = vmatprep.subr.mxu0 0.0
    %273 = vmatpush1.xpose.msra.mxu0 0.0
    %274 = vmatprep.subr.mxu0 0.0
    %275 = vmatpush1.xpose.msra.mxu0 0.0
    %276 = vmatprep.subr.mxu0 0.0
    %277 = vmatpush1.xpose.msra.mxu0 0.0
    %278 = vmatprep.subr.mxu0 0.0
    %279 = vmatpush1.xpose.msra.mxu0 0.0
    %280 = vmatprep.subr.mxu0 0.0
    %281 = vmatpush1.xpose.msra.mxu0 0.0
    %282 = vmatprep.subr.mxu0 0.0
    %283 = vmatpush1.xpose.msra.mxu0 0.0
    %284 = vmatprep.subr.mxu0 0.0
    %285 = vmatpush1.xpose.msra.mxu0 0.0
    %286 = vmatprep.subr.mxu0 0.0
    %287 = vmatpush1.xpose.msra.mxu0 0.0
    %288 = vmatprep.subr.mxu0 0.0
    %289 = vmatpush1.xpose.msra.mxu0 0.0
    %290 = vmatprep.subr.mxu0 0.0
    %291 = vmatpush1.xpose.msra.mxu0 0.0
    %292 = vmatprep.subr.mxu0 0.0
    %293 = vmatpush1.xpose.msra.mxu0 0.0
    %294 = vmatprep.subr.mxu0 0.0
    %295 = vmatpush1.xpose.msra.mxu0 0.0
    %296 = vmatprep.subr.mxu0 0.0
    %297 = vmatpush1.xpose.msra.mxu0 0.0
    %298 = vmatprep.subr.mxu0 0.0
    %299 = vmatpush1.xpose.msra.mxu0 0.0
    %300 = vmatprep.subr.mxu0 0.0
    %301 = vmatpush1.xpose.msra.mxu0 0.0
    %302 = vmatprep.subr.mxu0 0.0
    %303 = vmatpush1.xpose.msra.mxu0 0.0
    %304 = vmatprep.subr.mxu0 0.0
    %305 = vmatpush1.xpose.msra.mxu0 0.0
    %306 = vmatprep.subr.mxu0 0.0
    %307 = vmatpush1.xpose.msra.mxu0 0.0
    %308 = vmatprep.subr.mxu0 0.0
    %309 = vmatpush1.xpose.msra.mxu0 0.0
    %310 = vmatprep.mubr.f32.mxu0 0.0
    %311 = vmatmul.mubr.f32.gmra.mrb[0].mxu0 %v242
    %v312 = vpop.f32.mrb[0].mxu0
    %v313 = vadd.f32 0.0, %v312
    %v314 = vpop.f32.mrb[0].mxu0
    %315 = vdwg.mxu0
    %317 = vrot.lane.b32.xlu0 %v234, 64
    %v318 = vpop.permute.xlu0 %317
    %v319 = vsel %vm241, %v234, 0
    %v321 = vsel %vm241, %v318, 0
    %323 = vmatprep.subr.mxu0 0.0
    %324 = vmatpush1.xpose.msra.mxu0 %v321
    %325 = vmatprep.subr.mxu0 0.0
    %326 = vmatpush1.xpose.msra.mxu0 0.0
    %327 = vmatprep.subr.mxu0 0.0
    %328 = vmatpush1.xpose.msra.mxu0 0.0
    %329 = vmatprep.subr.mxu0 0.0
    %330 = vmatpush1.xpose.msra.mxu0 0.0
    %331 = vmatprep.subr.mxu0 0.0
    %332 = vmatpush1.xpose.msra.mxu0 0.0
    %333 = vmatprep.subr.mxu0 0.0
    %334 = vmatpush1.xpose.msra.mxu0 0.0
    %335 = vmatprep.subr.mxu0 0.0
    %336 = vmatpush1.xpose.msra.mxu0 0.0
    %337 = vmatprep.subr.mxu0 0.0
    %338 = vmatpush1.xpose.msra.mxu0 0.0
    %339 = vmatprep.subr.mxu0 0.0
    %340 = vmatpush1.xpose.msra.mxu0 0.0
    %341 = vmatprep.subr.mxu0 0.0
    %342 = vmatpush1.xpose.msra.mxu0 0.0
    %343 = vmatprep.subr.mxu0 0.0
    %344 = vmatpush1.xpose.msra.mxu0 0.0
    %345 = vmatprep.subr.mxu0 0.0
    %346 = vmatpush1.xpose.msra.mxu0 0.0
    %347 = vmatprep.subr.mxu0 0.0
    %348 = vmatpush1.xpose.msra.mxu0 0.0
    %349 = vmatprep.subr.mxu0 0.0
    %350 = vmatpush1.xpose.msra.mxu0 0.0
    %351 = vmatprep.subr.mxu0 0.0
    %352 = vmatpush1.xpose.msra.mxu0 0.0
    %353 = vmatprep.subr.mxu0 0.0
    %354 = vmatpush1.xpose.msra.mxu0 0.0
    %355 = vmatprep.subr.mxu0 0.0
    %356 = vmatpush1.xpose.msra.mxu0 0.0
    %357 = vmatprep.subr.mxu0 0.0
    %358 = vmatpush1.xpose.msra.mxu0 0.0
    %359 = vmatprep.subr.mxu0 0.0
    %360 = vmatpush1.xpose.msra.mxu0 0.0
    %361 = vmatprep.subr.mxu0 0.0
    %362 = vmatpush1.xpose.msra.mxu0 0.0
    %363 = vmatprep.subr.mxu0 0.0
    %364 = vmatpush1.xpose.msra.mxu0 0.0
    %365 = vmatprep.subr.mxu0 0.0
    %366 = vmatpush1.xpose.msra.mxu0 0.0
    %367 = vmatprep.subr.mxu0 0.0
    %368 = vmatpush1.xpose.msra.mxu0 0.0
    %369 = vmatprep.subr.mxu0 0.0
    %370 = vmatpush1.xpose.msra.mxu0 0.0
    %371 = vmatprep.subr.mxu0 0.0
    %372 = vmatpush1.xpose.msra.mxu0 0.0
    %373 = vmatprep.subr.mxu0 0.0
    %374 = vmatpush1.xpose.msra.mxu0 0.0
    %375 = vmatprep.subr.mxu0 0.0
    %376 = vmatpush1.xpose.msra.mxu0 0.0
    %377 = vmatprep.subr.mxu0 0.0
    %378 = vmatpush1.xpose.msra.mxu0 0.0
    %379 = vmatprep.subr.mxu0 0.0
    %380 = vmatpush1.xpose.msra.mxu0 0.0
    %381 = vmatprep.subr.mxu0 0.0
    %382 = vmatpush1.xpose.msra.mxu0 0.0
    %383 = vmatprep.subr.mxu0 0.0
    %384 = vmatpush1.xpose.msra.mxu0 0.0
    %385 = vmatprep.subr.mxu0 0.0
    %386 = vmatpush1.xpose.msra.mxu0 0.0
    %387 = vmatprep.mubr.f32.mxu0 0.0
    %388 = vmatmul.mubr.f32.gmra.mrb[0].mxu0 %v319
    %v389 = vpop.f32.mrb[0].mxu0
    %v390 = vadd.f32 0.0, %v389
    %v391 = vpop.f32.mrb[0].mxu0
    %392 = vdwg.mxu0
    %393 = vrot.lane.b32.xlu0 %v228, 120
    %v394 = vpop.permute.xlu0 %393
    %395 = vrot.lane.b32.xlu0 %v228, 56
    %v396 = vpop.permute.xlu0 %395
    %v397 = vsel %vm241, %v394, 0
    %v399 = vsel %vm241, %v396, 0
    %401 = vmatprep.subr.mxu0 0.0
    %402 = vmatpush1.xpose.msra.mxu0 %v399
    %403 = vmatprep.subr.mxu0 0.0
    %404 = vmatpush1.xpose.msra.mxu0 0.0
    %405 = vmatprep.subr.mxu0 0.0
    %406 = vmatpush1.xpose.msra.mxu0 0.0
    %407 = vmatprep.subr.mxu0 0.0
    %408 = vmatpush1.xpose.msra.mxu0 0.0
    %409 = vmatprep.subr.mxu0 0.0
    %410 = vmatpush1.xpose.msra.mxu0 0.0
    %411 = vmatprep.subr.mxu0 0.0
    %412 = vmatpush1.xpose.msra.mxu0 0.0
    %413 = vmatprep.subr.mxu0 0.0
    %414 = vmatpush1.xpose.msra.mxu0 0.0
    %415 = vmatprep.subr.mxu0 0.0
    %416 = vmatpush1.xpose.msra.mxu0 0.0
    %417 = vmatprep.subr.mxu0 0.0
    %418 = vmatpush1.xpose.msra.mxu0 0.0
    %419 = vmatprep.subr.mxu0 0.0
    %420 = vmatpush1.xpose.msra.mxu0 0.0
    %421 = vmatprep.subr.mxu0 0.0
    %422 = vmatpush1.xpose.msra.mxu0 0.0
    %423 = vmatprep.subr.mxu0 0.0
    %424 = vmatpush1.xpose.msra.mxu0 0.0
    %425 = vmatprep.subr.mxu0 0.0
    %426 = vmatpush1.xpose.msra.mxu0 0.0
    %427 = vmatprep.subr.mxu0 0.0
    %428 = vmatpush1.xpose.msra.mxu0 0.0
    %429 = vmatprep.subr.mxu0 0.0
    %430 = vmatpush1.xpose.msra.mxu0 0.0
    %431 = vmatprep.subr.mxu0 0.0
    %432 = vmatpush1.xpose.msra.mxu0 0.0
    %433 = vmatprep.subr.mxu0 0.0
    %434 = vmatpush1.xpose.msra.mxu0 0.0
    %435 = vmatprep.subr.mxu0 0.0
    %436 = vmatpush1.xpose.msra.mxu0 0.0
    %437 = vmatprep.subr.mxu0 0.0
    %438 = vmatpush1.xpose.msra.mxu0 0.0
    %439 = vmatprep.subr.mxu0 0.0
    %440 = vmatpush1.xpose.msra.mxu0 0.0
    %441 = vmatprep.subr.mxu0 0.0
    %442 = vmatpush1.xpose.msra.mxu0 0.0
    %443 = vmatprep.subr.mxu0 0.0
    %444 = vmatpush1.xpose.msra.mxu0 0.0
    %445 = vmatprep.subr.mxu0 0.0
    %446 = vmatpush1.xpose.msra.mxu0 0.0
    %447 = vmatprep.subr.mxu0 0.0
    %448 = vmatpush1.xpose.msra.mxu0 0.0
    %449 = vmatprep.subr.mxu0 0.0
    %450 = vmatpush1.xpose.msra.mxu0 0.0
    %451 = vmatprep.subr.mxu0 0.0
    %452 = vmatpush1.xpose.msra.mxu0 0.0
    %453 = vmatprep.subr.mxu0 0.0
    %454 = vmatpush1.xpose.msra.mxu0 0.0
    %455 = vmatprep.subr.mxu0 0.0
    %456 = vmatpush1.xpose.msra.mxu0 0.0
    %457 = vmatprep.subr.mxu0 0.0
    %458 = vmatpush1.xpose.msra.mxu0 0.0
    %459 = vmatprep.subr.mxu0 0.0
    %460 = vmatpush1.xpose.msra.mxu0 0.0
    %461 = vmatprep.subr.mxu0 0.0
    %462 = vmatpush1.xpose.msra.mxu0 0.0
    %463 = vmatprep.subr.mxu0 0.0
    %464 = vmatpush1.xpose.msra.mxu0 0.0
    %465 = vmatprep.mubr.f32.mxu0 0.0
    %466 = vmatmul.mubr.f32.gmra.mrb[0].mxu0 %v397
    %v467 = vpop.f32.mrb[0].mxu0
    %v468 = vadd.f32 0.0, %v467
    %v469 = vpop.f32.mrb[0].mxu0
    %470 = vdwg.mxu0
    %471 = vrot.lane.b32.xlu0 %v234, 120
    %v472 = vpop.permute.xlu0 %471
    %473 = vrot.lane.b32.xlu0 %v234, 56
    %v474 = vpop.permute.xlu0 %473
    %v475 = vsel %vm241, %v472, 0
    %v477 = vsel %vm241, %v474, 0
    %479 = vmatprep.subr.mxu0 0.0
    %480 = vmatpush1.xpose.msra.mxu0 %v477
    %481 = vmatprep.subr.mxu0 0.0
    %482 = vmatpush1.xpose.msra.mxu0 0.0
    %483 = vmatprep.subr.mxu0 0.0
    %484 = vmatpush1.xpose.msra.mxu0 0.0
    %485 = vmatprep.subr.mxu0 0.0
    %486 = vmatpush1.xpose.msra.mxu0 0.0
    %487 = vmatprep.subr.mxu0 0.0
    %488 = vmatpush1.xpose.msra.mxu0 0.0
    %489 = vmatprep.subr.mxu0 0.0
    %490 = vmatpush1.xpose.msra.mxu0 0.0
    %491 = vmatprep.subr.mxu0 0.0
    %492 = vmatpush1.xpose.msra.mxu0 0.0
    %493 = vmatprep.subr.mxu0 0.0
    %494 = vmatpush1.xpose.msra.mxu0 0.0
    %495 = vmatprep.subr.mxu0 0.0
    %496 = vmatpush1.xpose.msra.mxu0 0.0
    %497 = vmatprep.subr.mxu0 0.0
    %498 = vmatpush1.xpose.msra.mxu0 0.0
    %499 = vmatprep.subr.mxu0 0.0
    %500 = vmatpush1.xpose.msra.mxu0 0.0
    %501 = vmatprep.subr.mxu0 0.0
    %502 = vmatpush1.xpose.msra.mxu0 0.0
    %503 = vmatprep.subr.mxu0 0.0
    %504 = vmatpush1.xpose.msra.mxu0 0.0
    %505 = vmatprep.subr.mxu0 0.0
    %506 = vmatpush1.xpose.msra.mxu0 0.0
    %507 = vmatprep.subr.mxu0 0.0
    %508 = vmatpush1.xpose.msra.mxu0 0.0
    %509 = vmatprep.subr.mxu0 0.0
    %510 = vmatpush1.xpose.msra.mxu0 0.0
    %511 = vmatprep.subr.mxu0 0.0
    %512 = vmatpush1.xpose.msra.mxu0 0.0
    %513 = vmatprep.subr.mxu0 0.0
    %514 = vmatpush1.xpose.msra.mxu0 0.0
    %515 = vmatprep.subr.mxu0 0.0
    %516 = vmatpush1.xpose.msra.mxu0 0.0
    %517 = vmatprep.subr.mxu0 0.0
    %518 = vmatpush1.xpose.msra.mxu0 0.0
    %519 = vmatprep.subr.mxu0 0.0
    %520 = vmatpush1.xpose.msra.mxu0 0.0
    %521 = vmatprep.subr.mxu0 0.0
    %522 = vmatpush1.xpose.msra.mxu0 0.0
    %523 = vmatprep.subr.mxu0 0.0
    %524 = vmatpush1.xpose.msra.mxu0 0.0
    %525 = vmatprep.subr.mxu0 0.0
    %526 = vmatpush1.xpose.msra.mxu0 0.0
    %527 = vmatprep.subr.mxu0 0.0
    %528 = vmatpush1.xpose.msra.mxu0 0.0
    %529 = vmatprep.subr.mxu0 0.0
    %530 = vmatpush1.xpose.msra.mxu0 0.0
    %531 = vmatprep.subr.mxu0 0.0
    %532 = vmatpush1.xpose.msra.mxu0 0.0
    %533 = vmatprep.subr.mxu0 0.0
    %534 = vmatpush1.xpose.msra.mxu0 0.0
    %535 = vmatprep.subr.mxu0 0.0
    %536 = vmatpush1.xpose.msra.mxu0 0.0
    %537 = vmatprep.subr.mxu0 0.0
    %538 = vmatpush1.xpose.msra.mxu0 0.0
    %539 = vmatprep.subr.mxu0 0.0
    %540 = vmatpush1.xpose.msra.mxu0 0.0
    %541 = vmatprep.subr.mxu0 0.0
    %542 = vmatpush1.xpose.msra.mxu0 0.0
    %543 = vmatprep.mubr.f32.mxu0 0.0
    %544 = vmatmul.mubr.f32.gmra.mrb[0].mxu0 %v475
    %v545 = vpop.f32.mrb[0].mxu0
    %v546 = vadd.f32 0.0, %v545
    %v547 = vpop.f32.mrb[0].mxu0
    %548 = vdwg.mxu0
    %549 = vrot.lane.b32.xlu0 %v228, 112
    %v550 = vpop.permute.xlu0 %549
    %551 = vrot.lane.b32.xlu0 %v228, 48
    %v552 = vpop.permute.xlu0 %551
    %v553 = vsel %vm241, %v550, 0
    %v555 = vsel %vm241, %v552, 0
    %557 = vmatprep.subr.mxu0 0.0
    %558 = vmatpush1.xpose.msra.mxu0 %v555
    %559 = vmatprep.subr.mxu0 0.0
    %560 = vmatpush1.xpose.msra.mxu0 0.0
    %561 = vmatprep.subr.mxu0 0.0
    %562 = vmatpush1.xpose.msra.mxu0 0.0
    %563 = vmatprep.subr.mxu0 0.0
    %564 = vmatpush1.xpose.msra.mxu0 0.0
    %565 = vmatprep.subr.mxu0 0.0
    %566 = vmatpush1.xpose.msra.mxu0 0.0
    %567 = vmatprep.subr.mxu0 0.0
    %568 = vmatpush1.xpose.msra.mxu0 0.0
    %569 = vmatprep.subr.mxu0 0.0
    %570 = vmatpush1.xpose.msra.mxu0 0.0
    %571 = vmatprep.subr.mxu0 0.0
    %572 = vmatpush1.xpose.msra.mxu0 0.0
    %573 = vmatprep.subr.mxu0 0.0
    %574 = vmatpush1.xpose.msra.mxu0 0.0
    %575 = vmatprep.subr.mxu0 0.0
    %576 = vmatpush1.xpose.msra.mxu0 0.0
    %577 = vmatprep.subr.mxu0 0.0
    %578 = vmatpush1.xpose.msra.mxu0 0.0
    %579 = vmatprep.subr.mxu0 0.0
    %580 = vmatpush1.xpose.msra.mxu0 0.0
    %581 = vmatprep.subr.mxu0 0.0
    %582 = vmatpush1.xpose.msra.mxu0 0.0
    %583 = vmatprep.subr.mxu0 0.0
    %584 = vmatpush1.xpose.msra.mxu0 0.0
    %585 = vmatprep.subr.mxu0 0.0
    %586 = vmatpush1.xpose.msra.mxu0 0.0
    %587 = vmatprep.subr.mxu0 0.0
    %588 = vmatpush1.xpose.msra.mxu0 0.0
    %589 = vmatprep.subr.mxu0 0.0
    %590 = vmatpush1.xpose.msra.mxu0 0.0
    %591 = vmatprep.subr.mxu0 0.0
    %592 = vmatpush1.xpose.msra.mxu0 0.0
    %593 = vmatprep.subr.mxu0 0.0
    %594 = vmatpush1.xpose.msra.mxu0 0.0
    %595 = vmatprep.subr.mxu0 0.0
    %596 = vmatpush1.xpose.msra.mxu0 0.0
    %597 = vmatprep.subr.mxu0 0.0
    %598 = vmatpush1.xpose.msra.mxu0 0.0
    %599 = vmatprep.subr.mxu0 0.0
    %600 = vmatpush1.xpose.msra.mxu0 0.0
    %601 = vmatprep.subr.mxu0 0.0
    %602 = vmatpush1.xpose.msra.mxu0 0.0
    %603 = vmatprep.subr.mxu0 0.0
    %604 = vmatpush1.xpose.msra.mxu0 0.0
    %605 = vmatprep.subr.mxu0 0.0
    %606 = vmatpush1.xpose.msra.mxu0 0.0
    %607 = vmatprep.subr.mxu0 0.0
    %608 = vmatpush1.xpose.msra.mxu0 0.0
    %609 = vmatprep.subr.mxu0 0.0
    %610 = vmatpush1.xpose.msra.mxu0 0.0
    %611 = vmatprep.subr.mxu0 0.0
    %612 = vmatpush1.xpose.msra.mxu0 0.0
    %613 = vmatprep.subr.mxu0 0.0
    %614 = vmatpush1.xpose.msra.mxu0 0.0
    %615 = vmatprep.subr.mxu0 0.0
    %616 = vmatpush1.xpose.msra.mxu0 0.0
    %617 = vmatprep.subr.mxu0 0.0
    %618 = vmatpush1.xpose.msra.mxu0 0.0
    %619 = vmatprep.subr.mxu0 0.0
    %620 = vmatpush1.xpose.msra.mxu0 0.0
    %621 = vmatprep.mubr.f32.mxu0 0.0
    %622 = vmatmul.mubr.f32.gmra.mrb[0].mxu0 %v553
    %v623 = vpop.f32.mrb[0].mxu0
    %v624 = vadd.f32 0.0, %v623
    %v625 = vpop.f32.mrb[0].mxu0
    %626 = vdwg.mxu0
    %627 = vrot.lane.b32.xlu0 %v234, 112
    %v628 = vpop.permute.xlu0 %627
    %629 = vrot.lane.b32.xlu0 %v234, 48
    %v630 = vpop.permute.xlu0 %629
    %v631 = vsel %vm241, %v628, 0
    %v633 = vsel %vm241, %v630, 0
    %635 = vmatprep.subr.mxu0 0.0
    %636 = vmatpush1.xpose.msra.mxu0 %v633
    %637 = vmatprep.subr.mxu0 0.0
    %638 = vmatpush1.xpose.msra.mxu0 0.0
    %639 = vmatprep.subr.mxu0 0.0
    %640 = vmatpush1.xpose.msra.mxu0 0.0
    %641 = vmatprep.subr.mxu0 0.0
    %642 = vmatpush1.xpose.msra.mxu0 0.0
    %643 = vmatprep.subr.mxu0 0.0
    %644 = vmatpush1.xpose.msra.mxu0 0.0
    %645 = vmatprep.subr.mxu0 0.0
    %646 = vmatpush1.xpose.msra.mxu0 0.0
    %647 = vmatprep.subr.mxu0 0.0
    %648 = vmatpush1.xpose.msra.mxu0 0.0
    %649 = vmatprep.subr.mxu0 0.0
    %650 = vmatpush1.xpose.msra.mxu0 0.0
    %651 = vmatprep.subr.mxu0 0.0
    %652 = vmatpush1.xpose.msra.mxu0 0.0
    %653 = vmatprep.subr.mxu0 0.0
    %654 = vmatpush1.xpose.msra.mxu0 0.0
    %655 = vmatprep.subr.mxu0 0.0
    %656 = vmatpush1.xpose.msra.mxu0 0.0
    %657 = vmatprep.subr.mxu0 0.0
    %658 = vmatpush1.xpose.msra.mxu0 0.0
    %659 = vmatprep.subr.mxu0 0.0
    %660 = vmatpush1.xpose.msra.mxu0 0.0
    %661 = vmatprep.subr.mxu0 0.0
    %662 = vmatpush1.xpose.msra.mxu0 0.0
    %663 = vmatprep.subr.mxu0 0.0
    %664 = vmatpush1.xpose.msra.mxu0 0.0
    %665 = vmatprep.subr.mxu0 0.0
    %666 = vmatpush1.xpose.msra.mxu0 0.0
    %667 = vmatprep.subr.mxu0 0.0
    %668 = vmatpush1.xpose.msra.mxu0 0.0
    %669 = vmatprep.subr.mxu0 0.0
    %670 = vmatpush1.xpose.msra.mxu0 0.0
    %671 = vmatprep.subr.mxu0 0.0
    %672 = vmatpush1.xpose.msra.mxu0 0.0
    %673 = vmatprep.subr.mxu0 0.0
    %674 = vmatpush1.xpose.msra.mxu0 0.0
    %675 = vmatprep.subr.mxu0 0.0
    %676 = vmatpush1.xpose.msra.mxu0 0.0
    %677 = vmatprep.subr.mxu0 0.0
    %678 = vmatpush1.xpose.msra.mxu0 0.0
    %679 = vmatprep.subr.mxu0 0.0
    %680 = vmatpush1.xpose.msra.mxu0 0.0
    %681 = vmatprep.subr.mxu0 0.0
    %682 = vmatpush1.xpose.msra.mxu0 0.0
    %683 = vmatprep.subr.mxu0 0.0
    %684 = vmatpush1.xpose.msra.mxu0 0.0
    %685 = vmatprep.subr.mxu0 0.0
    %686 = vmatpush1.xpose.msra.mxu0 0.0
    %687 = vmatprep.subr.mxu0 0.0
    %688 = vmatpush1.xpose.msra.mxu0 0.0
    %689 = vmatprep.subr.mxu0 0.0
    %690 = vmatpush1.xpose.msra.mxu0 0.0
    %691 = vmatprep.subr.mxu0 0.0
    %692 = vmatpush1.xpose.msra.mxu0 0.0
    %693 = vmatprep.subr.mxu0 0.0
    %694 = vmatpush1.xpose.msra.mxu0 0.0
    %695 = vmatprep.subr.mxu0 0.0
    %696 = vmatpush1.xpose.msra.mxu0 0.0
    %697 = vmatprep.subr.mxu0 0.0
    %698 = vmatpush1.xpose.msra.mxu0 0.0
    %699 = vmatprep.mubr.f32.mxu0 0.0
    %700 = vmatmul.mubr.f32.gmra.mrb[0].mxu0 %v631
    %v701 = vpop.f32.mrb[0].mxu0
    %v702 = vadd.f32 0.0, %v701
    %v703 = vpop.f32.mrb[0].mxu0
    %704 = vdwg.mxu0
    %705 = vrot.lane.b32.xlu0 %v228, 104
    %v706 = vpop.permute.xlu0 %705
    %707 = vrot.lane.b32.xlu0 %v228, 40
    %v708 = vpop.permute.xlu0 %707
    %v709 = vsel %vm241, %v706, 0
    %v711 = vsel %vm241, %v708, 0
    %713 = vmatprep.subr.mxu0 0.0
    %714 = vmatpush1.xpose.msra.mxu0 %v711
    %715 = vmatprep.subr.mxu0 0.0
    %716 = vmatpush1.xpose.msra.mxu0 0.0
    %717 = vmatprep.subr.mxu0 0.0
    %718 = vmatpush1.xpose.msra.mxu0 0.0
    %719 = vmatprep.subr.mxu0 0.0
    %720 = vmatpush1.xpose.msra.mxu0 0.0
    %721 = vmatprep.subr.mxu0 0.0
    %722 = vmatpush1.xpose.msra.mxu0 0.0
    %723 = vmatprep.subr.mxu0 0.0
    %724 = vmatpush1.xpose.msra.mxu0 0.0
    %725 = vmatprep.subr.mxu0 0.0
    %726 = vmatpush1.xpose.msra.mxu0 0.0
    %727 = vmatprep.subr.mxu0 0.0
    %728 = vmatpush1.xpose.msra.mxu0 0.0
    %729 = vmatprep.subr.mxu0 0.0
    %730 = vmatpush1.xpose.msra.mxu0 0.0
    %731 = vmatprep.subr.mxu0 0.0
    %732 = vmatpush1.xpose.msra.mxu0 0.0
    %733 = vmatprep.subr.mxu0 0.0
    %734 = vmatpush1.xpose.msra.mxu0 0.0
    %735 = vmatprep.subr.mxu0 0.0
    %736 = vmatpush1.xpose.msra.mxu0 0.0
    %737 = vmatprep.subr.mxu0 0.0
    %738 = vmatpush1.xpose.msra.mxu0 0.0
    %739 = vmatprep.subr.mxu0 0.0
    %740 = vmatpush1.xpose.msra.mxu0 0.0
    %741 = vmatprep.subr.mxu0 0.0
    %742 = vmatpush1.xpose.msra.mxu0 0.0
    %743 = vmatprep.subr.mxu0 0.0
    %744 = vmatpush1.xpose.msra.mxu0 0.0
    %745 = vmatprep.subr.mxu0 0.0
    %746 = vmatpush1.xpose.msra.mxu0 0.0
    %747 = vmatprep.subr.mxu0 0.0
    %748 = vmatpush1.xpose.msra.mxu0 0.0
    %749 = vmatprep.subr.mxu0 0.0
    %750 = vmatpush1.xpose.msra.mxu0 0.0
    %751 = vmatprep.subr.mxu0 0.0
    %752 = vmatpush1.xpose.msra.mxu0 0.0
    %753 = vmatprep.subr.mxu0 0.0
    %754 = vmatpush1.xpose.msra.mxu0 0.0
    %755 = vmatprep.subr.mxu0 0.0
    %756 = vmatpush1.xpose.msra.mxu0 0.0
    %757 = vmatprep.subr.mxu0 0.0
    %758 = vmatpush1.xpose.msra.mxu0 0.0
    %759 = vmatprep.subr.mxu0 0.0
    %760 = vmatpush1.xpose.msra.mxu0 0.0
    %761 = vmatprep.subr.mxu0 0.0
    %762 = vmatpush1.xpose.msra.mxu0 0.0
    %763 = vmatprep.subr.mxu0 0.0
    %764 = vmatpush1.xpose.msra.mxu0 0.0
    %765 = vmatprep.subr.mxu0 0.0
    %766 = vmatpush1.xpose.msra.mxu0 0.0
    %767 = vmatprep.subr.mxu0 0.0
    %768 = vmatpush1.xpose.msra.mxu0 0.0
    %769 = vmatprep.subr.mxu0 0.0
    %770 = vmatpush1.xpose.msra.mxu0 0.0
    %771 = vmatprep.subr.mxu0 0.0
    %772 = vmatpush1.xpose.msra.mxu0 0.0
    %773 = vmatprep.subr.mxu0 0.0
    %774 = vmatpush1.xpose.msra.mxu0 0.0
    %775 = vmatprep.subr.mxu0 0.0
    %776 = vmatpush1.xpose.msra.mxu0 0.0
    %777 = vmatprep.mubr.f32.mxu0 0.0
    %778 = vmatmul.mubr.f32.gmra.mrb[0].mxu0 %v709
    %v779 = vpop.f32.mrb[0].mxu0
    %v780 = vadd.f32 0.0, %v779
    %v781 = vpop.f32.mrb[0].mxu0
    %782 = vdwg.mxu0
    %783 = vrot.lane.b32.xlu0 %v234, 104
    %v784 = vpop.permute.xlu0 %783
    %785 = vrot.lane.b32.xlu0 %v234, 40
    %v786 = vpop.permute.xlu0 %785
    %v787 = vsel %vm241, %v784, 0
    %v789 = vsel %vm241, %v786, 0
    %791 = vmatprep.subr.mxu0 0.0
    %792 = vmatpush1.xpose.msra.mxu0 %v789
    %793 = vmatprep.subr.mxu0 0.0
    %794 = vmatpush1.xpose.msra.mxu0 0.0
    %795 = vmatprep.subr.mxu0 0.0
    %796 = vmatpush1.xpose.msra.mxu0 0.0
    %797 = vmatprep.subr.mxu0 0.0
    %798 = vmatpush1.xpose.msra.mxu0 0.0
    %799 = vmatprep.subr.mxu0 0.0
    %800 = vmatpush1.xpose.msra.mxu0 0.0
    %801 = vmatprep.subr.mxu0 0.0
    %802 = vmatpush1.xpose.msra.mxu0 0.0
    %803 = vmatprep.subr.mxu0 0.0
    %804 = vmatpush1.xpose.msra.mxu0 0.0
    %805 = vmatprep.subr.mxu0 0.0
    %806 = vmatpush1.xpose.msra.mxu0 0.0
    %807 = vmatprep.subr.mxu0 0.0
    %808 = vmatpush1.xpose.msra.mxu0 0.0
    %809 = vmatprep.subr.mxu0 0.0
    %810 = vmatpush1.xpose.msra.mxu0 0.0
    %811 = vmatprep.subr.mxu0 0.0
    %812 = vmatpush1.xpose.msra.mxu0 0.0
    %813 = vmatprep.subr.mxu0 0.0
    %814 = vmatpush1.xpose.msra.mxu0 0.0
    %815 = vmatprep.subr.mxu0 0.0
    %816 = vmatpush1.xpose.msra.mxu0 0.0
    %817 = vmatprep.subr.mxu0 0.0
    %818 = vmatpush1.xpose.msra.mxu0 0.0
    %819 = vmatprep.subr.mxu0 0.0
    %820 = vmatpush1.xpose.msra.mxu0 0.0
    %821 = vmatprep.subr.mxu0 0.0
    %822 = vmatpush1.xpose.msra.mxu0 0.0
    %823 = vmatprep.subr.mxu0 0.0
    %824 = vmatpush1.xpose.msra.mxu0 0.0
    %825 = vmatprep.subr.mxu0 0.0
    %826 = vmatpush1.xpose.msra.mxu0 0.0
    %827 = vmatprep.subr.mxu0 0.0
    %828 = vmatpush1.xpose.msra.mxu0 0.0
    %829 = vmatprep.subr.mxu0 0.0
    %830 = vmatpush1.xpose.msra.mxu0 0.0
    %831 = vmatprep.subr.mxu0 0.0
    %832 = vmatpush1.xpose.msra.mxu0 0.0
    %833 = vmatprep.subr.mxu0 0.0
    %834 = vmatpush1.xpose.msra.mxu0 0.0
    %835 = vmatprep.subr.mxu0 0.0
    %836 = vmatpush1.xpose.msra.mxu0 0.0
    %837 = vmatprep.subr.mxu0 0.0
    %838 = vmatpush1.xpose.msra.mxu0 0.0
    %839 = vmatprep.subr.mxu0 0.0
    %840 = vmatpush1.xpose.msra.mxu0 0.0
    %841 = vmatprep.subr.mxu0 0.0
    %842 = vmatpush1.xpose.msra.mxu0 0.0
    %843 = vmatprep.subr.mxu0 0.0
    %844 = vmatpush1.xpose.msra.mxu0 0.0
    %845 = vmatprep.subr.mxu0 0.0
    %846 = vmatpush1.xpose.msra.mxu0 0.0
    %847 = vmatprep.subr.mxu0 0.0
    %848 = vmatpush1.xpose.msra.mxu0 0.0
    %849 = vmatprep.subr.mxu0 0.0
    %850 = vmatpush1.xpose.msra.mxu0 0.0
    %851 = vmatprep.subr.mxu0 0.0
    %852 = vmatpush1.xpose.msra.mxu0 0.0
    %853 = vmatprep.subr.mxu0 0.0
    %854 = vmatpush1.xpose.msra.mxu0 0.0
    %855 = vmatprep.mubr.f32.mxu0 0.0
    %856 = vmatmul.mubr.f32.gmra.mrb[0].mxu0 %v787
    %v857 = vpop.f32.mrb[0].mxu0
    %v858 = vadd.f32 0.0, %v857
    %v859 = vpop.f32.mrb[0].mxu0
    %860 = vdwg.mxu0
    %861 = vrot.lane.b32.xlu0 %v228, 96
    %v862 = vpop.permute.xlu0 %861
    %863 = vrot.lane.b32.xlu0 %v228, 32
    %v864 = vpop.permute.xlu0 %863
    %v865 = vsel %vm241, %v862, 0
    %v867 = vsel %vm241, %v864, 0
    %869 = vmatprep.subr.mxu0 0.0
    %870 = vmatpush1.xpose.msra.mxu0 %v867
    %871 = vmatprep.subr.mxu0 0.0
    %872 = vmatpush1.xpose.msra.mxu0 0.0
    %873 = vmatprep.subr.mxu0 0.0
    %874 = vmatpush1.xpose.msra.mxu0 0.0
    %875 = vmatprep.subr.mxu0 0.0
    %876 = vmatpush1.xpose.msra.mxu0 0.0
    %877 = vmatprep.subr.mxu0 0.0
    %878 = vmatpush1.xpose.msra.mxu0 0.0
    %879 = vmatprep.subr.mxu0 0.0
    %880 = vmatpush1.xpose.msra.mxu0 0.0
    %881 = vmatprep.subr.mxu0 0.0
    %882 = vmatpush1.xpose.msra.mxu0 0.0
    %883 = vmatprep.subr.mxu0 0.0
    %884 = vmatpush1.xpose.msra.mxu0 0.0
    %885 = vmatprep.subr.mxu0 0.0
    %886 = vmatpush1.xpose.msra.mxu0 0.0
    %887 = vmatprep.subr.mxu0 0.0
    %888 = vmatpush1.xpose.msra.mxu0 0.0
    %889 = vmatprep.subr.mxu0 0.0
    %890 = vmatpush1.xpose.msra.mxu0 0.0
    %891 = vmatprep.subr.mxu0 0.0
    %892 = vmatpush1.xpose.msra.mxu0 0.0
    %893 = vmatprep.subr.mxu0 0.0
    %894 = vmatpush1.xpose.msra.mxu0 0.0
    %895 = vmatprep.subr.mxu0 0.0
    %896 = vmatpush1.xpose.msra.mxu0 0.0
    %897 = vmatprep.subr.mxu0 0.0
    %898 = vmatpush1.xpose.msra.mxu0 0.0
    %899 = vmatprep.subr.mxu0 0.0
    %900 = vmatpush1.xpose.msra.mxu0 0.0
    %901 = vmatprep.subr.mxu0 0.0
    %902 = vmatpush1.xpose.msra.mxu0 0.0
    %903 = vmatprep.subr.mxu0 0.0
    %904 = vmatpush1.xpose.msra.mxu0 0.0
    %905 = vmatprep.subr.mxu0 0.0
    %906 = vmatpush1.xpose.msra.mxu0 0.0
    %907 = vmatprep.subr.mxu0 0.0
    %908 = vmatpush1.xpose.msra.mxu0 0.0
    %909 = vmatprep.subr.mxu0 0.0
    %910 = vmatpush1.xpose.msra.mxu0 0.0
    %911 = vmatprep.subr.mxu0 0.0
    %912 = vmatpush1.xpose.msra.mxu0 0.0
    %913 = vmatprep.subr.mxu0 0.0
    %914 = vmatpush1.xpose.msra.mxu0 0.0
    %915 = vmatprep.subr.mxu0 0.0
    %916 = vmatpush1.xpose.msra.mxu0 0.0
    %917 = vmatprep.subr.mxu0 0.0
    %918 = vmatpush1.xpose.msra.mxu0 0.0
    %919 = vmatprep.subr.mxu0 0.0
    %920 = vmatpush1.xpose.msra.mxu0 0.0
    %921 = vmatprep.subr.mxu0 0.0
    %922 = vmatpush1.xpose.msra.mxu0 0.0
    %923 = vmatprep.subr.mxu0 0.0
    %924 = vmatpush1.xpose.msra.mxu0 0.0
    %925 = vmatprep.subr.mxu0 0.0
    %926 = vmatpush1.xpose.msra.mxu0 0.0
    %927 = vmatprep.subr.mxu0 0.0
    %928 = vmatpush1.xpose.msra.mxu0 0.0
    %929 = vmatprep.subr.mxu0 0.0
    %930 = vmatpush1.xpose.msra.mxu0 0.0
    %931 = vmatprep.subr.mxu0 0.0
    %932 = vmatpush1.xpose.msra.mxu0 0.0
    %933 = vmatprep.mubr.f32.mxu0 0.0
    %934 = vmatmul.mubr.f32.gmra.mrb[0].mxu0 %v865
    %v935 = vpop.f32.mrb[0].mxu0
    %v936 = vadd.f32 0.0, %v935
    %v937 = vpop.f32.mrb[0].mxu0
    %938 = vdwg.mxu0
    %939 = vrot.lane.b32.xlu0 %v234, 96
    %v940 = vpop.permute.xlu0 %939
    %941 = vrot.lane.b32.xlu0 %v234, 32
    %v942 = vpop.permute.xlu0 %941
    %v943 = vsel %vm241, %v940, 0
    %v945 = vsel %vm241, %v942, 0
    %947 = vmatprep.subr.mxu0 0.0
    %948 = vmatpush1.xpose.msra.mxu0 %v945
    %949 = vmatprep.subr.mxu0 0.0
    %950 = vmatpush1.xpose.msra.mxu0 0.0
    %951 = vmatprep.subr.mxu0 0.0
    %952 = vmatpush1.xpose.msra.mxu0 0.0
    %953 = vmatprep.subr.mxu0 0.0
    %954 = vmatpush1.xpose.msra.mxu0 0.0
    %955 = vmatprep.subr.mxu0 0.0
    %956 = vmatpush1.xpose.msra.mxu0 0.0
    %957 = vmatprep.subr.mxu0 0.0
    %958 = vmatpush1.xpose.msra.mxu0 0.0
    %959 = vmatprep.subr.mxu0 0.0
    %960 = vmatpush1.xpose.msra.mxu0 0.0
    %961 = vmatprep.subr.mxu0 0.0
    %962 = vmatpush1.xpose.msra.mxu0 0.0
    %963 = vmatprep.subr.mxu0 0.0
    %964 = vmatpush1.xpose.msra.mxu0 0.0
    %965 = vmatprep.subr.mxu0 0.0
    %966 = vmatpush1.xpose.msra.mxu0 0.0
    %967 = vmatprep.subr.mxu0 0.0
    %968 = vmatpush1.xpose.msra.mxu0 0.0
    %969 = vmatprep.subr.mxu0 0.0
    %970 = vmatpush1.xpose.msra.mxu0 0.0
    %971 = vmatprep.subr.mxu0 0.0
    %972 = vmatpush1.xpose.msra.mxu0 0.0
    %973 = vmatprep.subr.mxu0 0.0
    %974 = vmatpush1.xpose.msra.mxu0 0.0
    %975 = vmatprep.subr.mxu0 0.0
    %976 = vmatpush1.xpose.msra.mxu0 0.0
    %977 = vmatprep.subr.mxu0 0.0
    %978 = vmatpush1.xpose.msra.mxu0 0.0
    %979 = vmatprep.subr.mxu0 0.0
    %980 = vmatpush1.xpose.msra.mxu0 0.0
    %981 = vmatprep.subr.mxu0 0.0
    %982 = vmatpush1.xpose.msra.mxu0 0.0
    %983 = vmatprep.subr.mxu0 0.0
    %984 = vmatpush1.xpose.msra.mxu0 0.0
    %985 = vmatprep.subr.mxu0 0.0
    %986 = vmatpush1.xpose.msra.mxu0 0.0
    %987 = vmatprep.subr.mxu0 0.0
    %988 = vmatpush1.xpose.msra.mxu0 0.0
    %989 = vmatprep.subr.mxu0 0.0
    %990 = vmatpush1.xpose.msra.mxu0 0.0
    %991 = vmatprep.subr.mxu0 0.0
    %992 = vmatpush1.xpose.msra.mxu0 0.0
    %993 = vmatprep.subr.mxu0 0.0
    %994 = vmatpush1.xpose.msra.mxu0 0.0
    %995 = vmatprep.subr.mxu0 0.0
    %996 = vmatpush1.xpose.msra.mxu0 0.0
    %997 = vmatprep.subr.mxu0 0.0
    %998 = vmatpush1.xpose.msra.mxu0 0.0
    %999 = vmatprep.subr.mxu0 0.0
    %1000 = vmatpush1.xpose.msra.mxu0 0.0
    %1001 = vmatprep.subr.mxu0 0.0
    %1002 = vmatpush1.xpose.msra.mxu0 0.0
    %1003 = vmatprep.subr.mxu0 0.0
    %1004 = vmatpush1.xpose.msra.mxu0 0.0
    %1005 = vmatprep.subr.mxu0 0.0
    %1006 = vmatpush1.xpose.msra.mxu0 0.0
    %1007 = vmatprep.subr.mxu0 0.0
    %1008 = vmatpush1.xpose.msra.mxu0 0.0
    %1009 = vmatprep.subr.mxu0 0.0
    %1010 = vmatpush1.xpose.msra.mxu0 0.0
    %1011 = vmatprep.mubr.f32.mxu0 0.0
    %1012 = vmatmul.mubr.f32.gmra.mrb[0].mxu0 %v943
    %v1013 = vpop.f32.mrb[0].mxu0
    %v1014 = vadd.f32 0.0, %v1013
    %v1015 = vpop.f32.mrb[0].mxu0
    %1016 = vdwg.mxu0
    %1017 = vrot.lane.b32.xlu0 %v228, 88
    %v1018 = vpop.permute.xlu0 %1017
    %1019 = vrot.lane.b32.xlu0 %v228, 24
    %v1020 = vpop.permute.xlu0 %1019
    %v1021 = vsel %vm241, %v1018, 0
    %v1023 = vsel %vm241, %v1020, 0
    %1025 = vmatprep.subr.mxu0 0.0
    %1026 = vmatpush1.xpose.msra.mxu0 %v1023
    %1027 = vmatprep.subr.mxu0 0.0
    %1028 = vmatpush1.xpose.msra.mxu0 0.0
    %1029 = vmatprep.subr.mxu0 0.0
    %1030 = vmatpush1.xpose.msra.mxu0 0.0
    %1031 = vmatprep.subr.mxu0 0.0
    %1032 = vmatpush1.xpose.msra.mxu0 0.0
    %1033 = vmatprep.subr.mxu0 0.0
    %1034 = vmatpush1.xpose.msra.mxu0 0.0
    %1035 = vmatprep.subr.mxu0 0.0
    %1036 = vmatpush1.xpose.msra.mxu0 0.0
    %1037 = vmatprep.subr.mxu0 0.0
    %1038 = vmatpush1.xpose.msra.mxu0 0.0
    %1039 = vmatprep.subr.mxu0 0.0
    %1040 = vmatpush1.xpose.msra.mxu0 0.0
    %1041 = vmatprep.subr.mxu0 0.0
    %1042 = vmatpush1.xpose.msra.mxu0 0.0
    %1043 = vmatprep.subr.mxu0 0.0
    %1044 = vmatpush1.xpose.msra.mxu0 0.0
    %1045 = vmatprep.subr.mxu0 0.0
    %1046 = vmatpush1.xpose.msra.mxu0 0.0
    %1047 = vmatprep.subr.mxu0 0.0
    %1048 = vmatpush1.xpose.msra.mxu0 0.0
    %1049 = vmatprep.subr.mxu0 0.0
    %1050 = vmatpush1.xpose.msra.mxu0 0.0
    %1051 = vmatprep.subr.mxu0 0.0
    %1052 = vmatpush1.xpose.msra.mxu0 0.0
    %1053 = vmatprep.subr.mxu0 0.0
    %1054 = vmatpush1.xpose.msra.mxu0 0.0
    %1055 = vmatprep.subr.mxu0 0.0
    %1056 = vmatpush1.xpose.msra.mxu0 0.0
    %1057 = vmatprep.subr.mxu0 0.0
    %1058 = vmatpush1.xpose.msra.mxu0 0.0
    %1059 = vmatprep.subr.mxu0 0.0
    %1060 = vmatpush1.xpose.msra.mxu0 0.0
    %1061 = vmatprep.subr.mxu0 0.0
    %1062 = vmatpush1.xpose.msra.mxu0 0.0
    %1063 = vmatprep.subr.mxu0 0.0
    %1064 = vmatpush1.xpose.msra.mxu0 0.0
    %1065 = vmatprep.subr.mxu0 0.0
    %1066 = vmatpush1.xpose.msra.mxu0 0.0
    %1067 = vmatprep.subr.mxu0 0.0
    %1068 = vmatpush1.xpose.msra.mxu0 0.0
    %1069 = vmatprep.subr.mxu0 0.0
    %1070 = vmatpush1.xpose.msra.mxu0 0.0
    %1071 = vmatprep.subr.mxu0 0.0
    %1072 = vmatpush1.xpose.msra.mxu0 0.0
    %1073 = vmatprep.subr.mxu0 0.0
    %1074 = vmatpush1.xpose.msra.mxu0 0.0
    %1075 = vmatprep.subr.mxu0 0.0
    %1076 = vmatpush1.xpose.msra.mxu0 0.0
    %1077 = vmatprep.subr.mxu0 0.0
    %1078 = vmatpush1.xpose.msra.mxu0 0.0
    %1079 = vmatprep.subr.mxu0 0.0
    %1080 = vmatpush1.xpose.msra.mxu0 0.0
    %1081 = vmatprep.subr.mxu0 0.0
    %1082 = vmatpush1.xpose.msra.mxu0 0.0
    %1083 = vmatprep.subr.mxu0 0.0
    %1084 = vmatpush1.xpose.msra.mxu0 0.0
    %1085 = vmatprep.subr.mxu0 0.0
    %1086 = vmatpush1.xpose.msra.mxu0 0.0
    %1087 = vmatprep.subr.mxu0 0.0
    %1088 = vmatpush1.xpose.msra.mxu0 0.0
    %1089 = vmatprep.mubr.f32.mxu0 0.0
    %1090 = vmatmul.mubr.f32.gmra.mrb[0].mxu0 %v1021
    %v1091 = vpop.f32.mrb[0].mxu0
    %v1092 = vadd.f32 0.0, %v1091
    %v1093 = vpop.f32.mrb[0].mxu0
    %1094 = vdwg.mxu0
    %1095 = vrot.lane.b32.xlu0 %v234, 88
    %v1096 = vpop.permute.xlu0 %1095
    %1097 = vrot.lane.b32.xlu0 %v234, 24
    %v1098 = vpop.permute.xlu0 %1097
    %v1099 = vsel %vm241, %v1096, 0
    %v1101 = vsel %vm241, %v1098, 0
    %1103 = vmatprep.subr.mxu0 0.0
    %1104 = vmatpush1.xpose.msra.mxu0 %v1101
    %1105 = vmatprep.subr.mxu0 0.0
    %1106 = vmatpush1.xpose.msra.mxu0 0.0
    %1107 = vmatprep.subr.mxu0 0.0
    %1108 = vmatpush1.xpose.msra.mxu0 0.0
    %1109 = vmatprep.subr.mxu0 0.0
    %1110 = vmatpush1.xpose.msra.mxu0 0.0
    %1111 = vmatprep.subr.mxu0 0.0
    %1112 = vmatpush1.xpose.msra.mxu0 0.0
    %1113 = vmatprep.subr.mxu0 0.0
    %1114 = vmatpush1.xpose.msra.mxu0 0.0
    %1115 = vmatprep.subr.mxu0 0.0
    %1116 = vmatpush1.xpose.msra.mxu0 0.0
    %1117 = vmatprep.subr.mxu0 0.0
    %1118 = vmatpush1.xpose.msra.mxu0 0.0
    %1119 = vmatprep.subr.mxu0 0.0
    %1120 = vmatpush1.xpose.msra.mxu0 0.0
    %1121 = vmatprep.subr.mxu0 0.0
    %1122 = vmatpush1.xpose.msra.mxu0 0.0
    %1123 = vmatprep.subr.mxu0 0.0
    %1124 = vmatpush1.xpose.msra.mxu0 0.0
    %1125 = vmatprep.subr.mxu0 0.0
    %1126 = vmatpush1.xpose.msra.mxu0 0.0
    %1127 = vmatprep.subr.mxu0 0.0
    %1128 = vmatpush1.xpose.msra.mxu0 0.0
    %1129 = vmatprep.subr.mxu0 0.0
    %1130 = vmatpush1.xpose.msra.mxu0 0.0
    %1131 = vmatprep.subr.mxu0 0.0
    %1132 = vmatpush1.xpose.msra.mxu0 0.0
    %1133 = vmatprep.subr.mxu0 0.0
    %1134 = vmatpush1.xpose.msra.mxu0 0.0
    %1135 = vmatprep.subr.mxu0 0.0
    %1136 = vmatpush1.xpose.msra.mxu0 0.0
    %1137 = vmatprep.subr.mxu0 0.0
    %1138 = vmatpush1.xpose.msra.mxu0 0.0
    %1139 = vmatprep.subr.mxu0 0.0
    %1140 = vmatpush1.xpose.msra.mxu0 0.0
    %1141 = vmatprep.subr.mxu0 0.0
    %1142 = vmatpush1.xpose.msra.mxu0 0.0
    %1143 = vmatprep.subr.mxu0 0.0
    %1144 = vmatpush1.xpose.msra.mxu0 0.0
    %1145 = vmatprep.subr.mxu0 0.0
    %1146 = vmatpush1.xpose.msra.mxu0 0.0
    %1147 = vmatprep.subr.mxu0 0.0
    %1148 = vmatpush1.xpose.msra.mxu0 0.0
    %1149 = vmatprep.subr.mxu0 0.0
    %1150 = vmatpush1.xpose.msra.mxu0 0.0
    %1151 = vmatprep.subr.mxu0 0.0
    %1152 = vmatpush1.xpose.msra.mxu0 0.0
    %1153 = vmatprep.subr.mxu0 0.0
    %1154 = vmatpush1.xpose.msra.mxu0 0.0
    %1155 = vmatprep.subr.mxu0 0.0
    %1156 = vmatpush1.xpose.msra.mxu0 0.0
    %1157 = vmatprep.subr.mxu0 0.0
    %1158 = vmatpush1.xpose.msra.mxu0 0.0
    %1159 = vmatprep.subr.mxu0 0.0
    %1160 = vmatpush1.xpose.msra.mxu0 0.0
    %1161 = vmatprep.subr.mxu0 0.0
    %1162 = vmatpush1.xpose.msra.mxu0 0.0
    %1163 = vmatprep.subr.mxu0 0.0
    %1164 = vmatpush1.xpose.msra.mxu0 0.0
    %1165 = vmatprep.subr.mxu0 0.0
    %1166 = vmatpush1.xpose.msra.mxu0 0.0
    %1167 = vmatprep.mubr.f32.mxu0 0.0
    %1168 = vmatmul.mubr.f32.gmra.mrb[0].mxu0 %v1099
    %v1169 = vpop.f32.mrb[0].mxu0
    %v1170 = vadd.f32 0.0, %v1169
    %v1171 = vpop.f32.mrb[0].mxu0
    %1172 = vdwg.mxu0
    %1173 = vrot.lane.b32.xlu0 %v228, 80
    %v1174 = vpop.permute.xlu0 %1173
    %1175 = vrot.lane.b32.xlu0 %v228, 16
    %v1176 = vpop.permute.xlu0 %1175
    %v1177 = vsel %vm241, %v1174, 0
    %v1179 = vsel %vm241, %v1176, 0
    %1181 = vmatprep.subr.mxu0 0.0
    %1182 = vmatpush1.xpose.msra.mxu0 %v1179
    %1183 = vmatprep.subr.mxu0 0.0
    %1184 = vmatpush1.xpose.msra.mxu0 0.0
    %1185 = vmatprep.subr.mxu0 0.0
    %1186 = vmatpush1.xpose.msra.mxu0 0.0
    %1187 = vmatprep.subr.mxu0 0.0
    %1188 = vmatpush1.xpose.msra.mxu0 0.0
    %1189 = vmatprep.subr.mxu0 0.0
    %1190 = vmatpush1.xpose.msra.mxu0 0.0
    %1191 = vmatprep.subr.mxu0 0.0
    %1192 = vmatpush1.xpose.msra.mxu0 0.0
    %1193 = vmatprep.subr.mxu0 0.0
    %1194 = vmatpush1.xpose.msra.mxu0 0.0
    %1195 = vmatprep.subr.mxu0 0.0
    %1196 = vmatpush1.xpose.msra.mxu0 0.0
    %1197 = vmatprep.subr.mxu0 0.0
    %1198 = vmatpush1.xpose.msra.mxu0 0.0
    %1199 = vmatprep.subr.mxu0 0.0
    %1200 = vmatpush1.xpose.msra.mxu0 0.0
    %1201 = vmatprep.subr.mxu0 0.0
    %1202 = vmatpush1.xpose.msra.mxu0 0.0
    %1203 = vmatprep.subr.mxu0 0.0
    %1204 = vmatpush1.xpose.msra.mxu0 0.0
    %1205 = vmatprep.subr.mxu0 0.0
    %1206 = vmatpush1.xpose.msra.mxu0 0.0
    %1207 = vmatprep.subr.mxu0 0.0
    %1208 = vmatpush1.xpose.msra.mxu0 0.0
    %1209 = vmatprep.subr.mxu0 0.0
    %1210 = vmatpush1.xpose.msra.mxu0 0.0
    %1211 = vmatprep.subr.mxu0 0.0
    %1212 = vmatpush1.xpose.msra.mxu0 0.0
    %1213 = vmatprep.subr.mxu0 0.0
    %1214 = vmatpush1.xpose.msra.mxu0 0.0
    %1215 = vmatprep.subr.mxu0 0.0
    %1216 = vmatpush1.xpose.msra.mxu0 0.0
    %1217 = vmatprep.subr.mxu0 0.0
    %1218 = vmatpush1.xpose.msra.mxu0 0.0
    %1219 = vmatprep.subr.mxu0 0.0
    %1220 = vmatpush1.xpose.msra.mxu0 0.0
    %1221 = vmatprep.subr.mxu0 0.0
    %1222 = vmatpush1.xpose.msra.mxu0 0.0
    %1223 = vmatprep.subr.mxu0 0.0
    %1224 = vmatpush1.xpose.msra.mxu0 0.0
    %1225 = vmatprep.subr.mxu0 0.0
    %1226 = vmatpush1.xpose.msra.mxu0 0.0
    %1227 = vmatprep.subr.mxu0 0.0
    %1228 = vmatpush1.xpose.msra.mxu0 0.0
    %1229 = vmatprep.subr.mxu0 0.0
    %1230 = vmatpush1.xpose.msra.mxu0 0.0
    %1231 = vmatprep.subr.mxu0 0.0
    %1232 = vmatpush1.xpose.msra.mxu0 0.0
    %1233 = vmatprep.subr.mxu0 0.0
    %1234 = vmatpush1.xpose.msra.mxu0 0.0
    %1235 = vmatprep.subr.mxu0 0.0
    %1236 = vmatpush1.xpose.msra.mxu0 0.0
    %1237 = vmatprep.subr.mxu0 0.0
    %1238 = vmatpush1.xpose.msra.mxu0 0.0
    %1239 = vmatprep.subr.mxu0 0.0
    %1240 = vmatpush1.xpose.msra.mxu0 0.0
    %1241 = vmatprep.subr.mxu0 0.0
    %1242 = vmatpush1.xpose.msra.mxu0 0.0
    %1243 = vmatprep.subr.mxu0 0.0
    %1244 = vmatpush1.xpose.msra.mxu0 0.0
    %1245 = vmatprep.mubr.f32.mxu0 0.0
    %1246 = vmatmul.mubr.f32.gmra.mrb[0].mxu0 %v1177
    %v1247 = vpop.f32.mrb[0].mxu0
    %v1248 = vadd.f32 0.0, %v1247
    %v1249 = vpop.f32.mrb[0].mxu0
    %1250 = vdwg.mxu0
    %1251 = vrot.lane.b32.xlu0 %v234, 80
    %v1252 = vpop.permute.xlu0 %1251
    %1253 = vrot.lane.b32.xlu0 %v234, 16
    %v1254 = vpop.permute.xlu0 %1253
    %v1255 = vsel %vm241, %v1252, 0
    %v1257 = vsel %vm241, %v1254, 0
    %1259 = vmatprep.subr.mxu0 0.0
    %1260 = vmatpush1.xpose.msra.mxu0 %v1257
    %1261 = vmatprep.subr.mxu0 0.0
    %1262 = vmatpush1.xpose.msra.mxu0 0.0
    %1263 = vmatprep.subr.mxu0 0.0
    %1264 = vmatpush1.xpose.msra.mxu0 0.0
    %1265 = vmatprep.subr.mxu0 0.0
    %1266 = vmatpush1.xpose.msra.mxu0 0.0
    %1267 = vmatprep.subr.mxu0 0.0
    %1268 = vmatpush1.xpose.msra.mxu0 0.0
    %1269 = vmatprep.subr.mxu0 0.0
    %1270 = vmatpush1.xpose.msra.mxu0 0.0
    %1271 = vmatprep.subr.mxu0 0.0
    %1272 = vmatpush1.xpose.msra.mxu0 0.0
    %1273 = vmatprep.subr.mxu0 0.0
    %1274 = vmatpush1.xpose.msra.mxu0 0.0
    %1275 = vmatprep.subr.mxu0 0.0
    %1276 = vmatpush1.xpose.msra.mxu0 0.0
    %1277 = vmatprep.subr.mxu0 0.0
    %1278 = vmatpush1.xpose.msra.mxu0 0.0
    %1279 = vmatprep.subr.mxu0 0.0
    %1280 = vmatpush1.xpose.msra.mxu0 0.0
    %1281 = vmatprep.subr.mxu0 0.0
    %1282 = vmatpush1.xpose.msra.mxu0 0.0
    %1283 = vmatprep.subr.mxu0 0.0
    %1284 = vmatpush1.xpose.msra.mxu0 0.0
    %1285 = vmatprep.subr.mxu0 0.0
    %1286 = vmatpush1.xpose.msra.mxu0 0.0
    %1287 = vmatprep.subr.mxu0 0.0
    %1288 = vmatpush1.xpose.msra.mxu0 0.0
    %1289 = vmatprep.subr.mxu0 0.0
    %1290 = vmatpush1.xpose.msra.mxu0 0.0
    %1291 = vmatprep.subr.mxu0 0.0
    %1292 = vmatpush1.xpose.msra.mxu0 0.0
    %1293 = vmatprep.subr.mxu0 0.0
    %1294 = vmatpush1.xpose.msra.mxu0 0.0
    %1295 = vmatprep.subr.mxu0 0.0
    %1296 = vmatpush1.xpose.msra.mxu0 0.0
    %1297 = vmatprep.subr.mxu0 0.0
    %1298 = vmatpush1.xpose.msra.mxu0 0.0
    %1299 = vmatprep.subr.mxu0 0.0
    %1300 = vmatpush1.xpose.msra.mxu0 0.0
    %1301 = vmatprep.subr.mxu0 0.0
    %1302 = vmatpush1.xpose.msra.mxu0 0.0
    %1303 = vmatprep.subr.mxu0 0.0
    %1304 = vmatpush1.xpose.msra.mxu0 0.0
    %1305 = vmatprep.subr.mxu0 0.0
    %1306 = vmatpush1.xpose.msra.mxu0 0.0
    %1307 = vmatprep.subr.mxu0 0.0
    %1308 = vmatpush1.xpose.msra.mxu0 0.0
    %1309 = vmatprep.subr.mxu0 0.0
    %1310 = vmatpush1.xpose.msra.mxu0 0.0
    %1311 = vmatprep.subr.mxu0 0.0
    %1312 = vmatpush1.xpose.msra.mxu0 0.0
    %1313 = vmatprep.subr.mxu0 0.0
    %1314 = vmatpush1.xpose.msra.mxu0 0.0
    %1315 = vmatprep.subr.mxu0 0.0
    %1316 = vmatpush1.xpose.msra.mxu0 0.0
    %1317 = vmatprep.subr.mxu0 0.0
    %1318 = vmatpush1.xpose.msra.mxu0 0.0
    %1319 = vmatprep.subr.mxu0 0.0
    %1320 = vmatpush1.xpose.msra.mxu0 0.0
    %1321 = vmatprep.subr.mxu0 0.0
    %1322 = vmatpush1.xpose.msra.mxu0 0.0
    %1323 = vmatprep.mubr.f32.mxu0 0.0
    %1324 = vmatmul.mubr.f32.gmra.mrb[0].mxu0 %v1255
    %v1325 = vpop.f32.mrb[0].mxu0
    %v1326 = vadd.f32 0.0, %v1325
    %v1327 = vpop.f32.mrb[0].mxu0
    %1328 = vdwg.mxu0
    %1329 = vrot.lane.b32.xlu0 %v228, 72
    %v1330 = vpop.permute.xlu0 %1329
    %1331 = vrot.lane.b32.xlu0 %v228, 8
    %v1332 = vpop.permute.xlu0 %1331
    %v1333 = vsel %vm241, %v1330, 0
    %v1335 = vsel %vm241, %v1332, 0
    %1337 = vmatprep.subr.mxu0 0.0
    %1338 = vmatpush1.xpose.msra.mxu0 %v1335
    %1339 = vmatprep.subr.mxu0 0.0
    %1340 = vmatpush1.xpose.msra.mxu0 0.0
    %1341 = vmatprep.subr.mxu0 0.0
    %1342 = vmatpush1.xpose.msra.mxu0 0.0
    %1343 = vmatprep.subr.mxu0 0.0
    %1344 = vmatpush1.xpose.msra.mxu0 0.0
    %1345 = vmatprep.subr.mxu0 0.0
    %1346 = vmatpush1.xpose.msra.mxu0 0.0
    %1347 = vmatprep.subr.mxu0 0.0
    %1348 = vmatpush1.xpose.msra.mxu0 0.0
    %1349 = vmatprep.subr.mxu0 0.0
    %1350 = vmatpush1.xpose.msra.mxu0 0.0
    %1351 = vmatprep.subr.mxu0 0.0
    %1352 = vmatpush1.xpose.msra.mxu0 0.0
    %1353 = vmatprep.subr.mxu0 0.0
    %1354 = vmatpush1.xpose.msra.mxu0 0.0
    %1355 = vmatprep.subr.mxu0 0.0
    %1356 = vmatpush1.xpose.msra.mxu0 0.0
    %1357 = vmatprep.subr.mxu0 0.0
    %1358 = vmatpush1.xpose.msra.mxu0 0.0
    %1359 = vmatprep.subr.mxu0 0.0
    %1360 = vmatpush1.xpose.msra.mxu0 0.0
    %1361 = vmatprep.subr.mxu0 0.0
    %1362 = vmatpush1.xpose.msra.mxu0 0.0
    %1363 = vmatprep.subr.mxu0 0.0
    %1364 = vmatpush1.xpose.msra.mxu0 0.0
    %1365 = vmatprep.subr.mxu0 0.0
    %1366 = vmatpush1.xpose.msra.mxu0 0.0
    %1367 = vmatprep.subr.mxu0 0.0
    %1368 = vmatpush1.xpose.msra.mxu0 0.0
    %1369 = vmatprep.subr.mxu0 0.0
    %1370 = vmatpush1.xpose.msra.mxu0 0.0
    %1371 = vmatprep.subr.mxu0 0.0
    %1372 = vmatpush1.xpose.msra.mxu0 0.0
    %1373 = vmatprep.subr.mxu0 0.0
    %1374 = vmatpush1.xpose.msra.mxu0 0.0
    %1375 = vmatprep.subr.mxu0 0.0
    %1376 = vmatpush1.xpose.msra.mxu0 0.0
    %1377 = vmatprep.subr.mxu0 0.0
    %1378 = vmatpush1.xpose.msra.mxu0 0.0
    %1379 = vmatprep.subr.mxu0 0.0
    %1380 = vmatpush1.xpose.msra.mxu0 0.0
    %1381 = vmatprep.subr.mxu0 0.0
    %1382 = vmatpush1.xpose.msra.mxu0 0.0
    %1383 = vmatprep.subr.mxu0 0.0
    %1384 = vmatpush1.xpose.msra.mxu0 0.0
    %1385 = vmatprep.subr.mxu0 0.0
    %1386 = vmatpush1.xpose.msra.mxu0 0.0
    %1387 = vmatprep.subr.mxu0 0.0
    %1388 = vmatpush1.xpose.msra.mxu0 0.0
    %1389 = vmatprep.subr.mxu0 0.0
    %1390 = vmatpush1.xpose.msra.mxu0 0.0
    %1391 = vmatprep.subr.mxu0 0.0
    %1392 = vmatpush1.xpose.msra.mxu0 0.0
    %1393 = vmatprep.subr.mxu0 0.0
    %1394 = vmatpush1.xpose.msra.mxu0 0.0
    %1395 = vmatprep.subr.mxu0 0.0
    %1396 = vmatpush1.xpose.msra.mxu0 0.0
    %1397 = vmatprep.subr.mxu0 0.0
    %1398 = vmatpush1.xpose.msra.mxu0 0.0
    %1399 = vmatprep.subr.mxu0 0.0
    %1400 = vmatpush1.xpose.msra.mxu0 0.0
    %1401 = vmatprep.mubr.f32.mxu0 0.0
    %1402 = vmatmul.mubr.f32.gmra.mrb[0].mxu0 %v1333
    %v1403 = vpop.f32.mrb[0].mxu0
    %v1404 = vadd.f32 0.0, %v1403
    %v1405 = vpop.f32.mrb[0].mxu0
    %1406 = vdwg.mxu0
    %1407 = vrot.lane.b32.xlu0 %v234, 72
    %v1408 = vpop.permute.xlu0 %1407
    %1409 = vrot.lane.b32.xlu0 %v234, 8
    %v1410 = vpop.permute.xlu0 %1409
    %v1411 = vsel %vm241, %v1408, 0
    %v1413 = vsel %vm241, %v1410, 0
    %1415 = vmatprep.subr.mxu0 0.0
    %1416 = vmatpush1.xpose.msra.mxu0 %v1413
    %1417 = vmatprep.subr.mxu0 0.0
    %1418 = vmatpush1.xpose.msra.mxu0 0.0
    %1419 = vmatprep.subr.mxu0 0.0
    %1420 = vmatpush1.xpose.msra.mxu0 0.0
    %1421 = vmatprep.subr.mxu0 0.0
    %1422 = vmatpush1.xpose.msra.mxu0 0.0
    %1423 = vmatprep.subr.mxu0 0.0
    %1424 = vmatpush1.xpose.msra.mxu0 0.0
    %1425 = vmatprep.subr.mxu0 0.0
    %1426 = vmatpush1.xpose.msra.mxu0 0.0
    %1427 = vmatprep.subr.mxu0 0.0
    %1428 = vmatpush1.xpose.msra.mxu0 0.0
    %1429 = vmatprep.subr.mxu0 0.0
    %1430 = vmatpush1.xpose.msra.mxu0 0.0
    %1431 = vmatprep.subr.mxu0 0.0
    %1432 = vmatpush1.xpose.msra.mxu0 0.0
    %1433 = vmatprep.subr.mxu0 0.0
    %1434 = vmatpush1.xpose.msra.mxu0 0.0
    %1435 = vmatprep.subr.mxu0 0.0
    %1436 = vmatpush1.xpose.msra.mxu0 0.0
    %1437 = vmatprep.subr.mxu0 0.0
    %1438 = vmatpush1.xpose.msra.mxu0 0.0
    %1439 = vmatprep.subr.mxu0 0.0
    %1440 = vmatpush1.xpose.msra.mxu0 0.0
    %1441 = vmatprep.subr.mxu0 0.0
    %1442 = vmatpush1.xpose.msra.mxu0 0.0
    %1443 = vmatprep.subr.mxu0 0.0
    %1444 = vmatpush1.xpose.msra.mxu0 0.0
    %1445 = vmatprep.subr.mxu0 0.0
    %1446 = vmatpush1.xpose.msra.mxu0 0.0
    %1447 = vmatprep.subr.mxu0 0.0
    %1448 = vmatpush1.xpose.msra.mxu0 0.0
    %1449 = vmatprep.subr.mxu0 0.0
    %1450 = vmatpush1.xpose.msra.mxu0 0.0
    %1451 = vmatprep.subr.mxu0 0.0
    %1452 = vmatpush1.xpose.msra.mxu0 0.0
    %1453 = vmatprep.subr.mxu0 0.0
    %1454 = vmatpush1.xpose.msra.mxu0 0.0
    %1455 = vmatprep.subr.mxu0 0.0
    %1456 = vmatpush1.xpose.msra.mxu0 0.0
    %1457 = vmatprep.subr.mxu0 0.0
    %1458 = vmatpush1.xpose.msra.mxu0 0.0
    %1459 = vmatprep.subr.mxu0 0.0
    %1460 = vmatpush1.xpose.msra.mxu0 0.0
    %1461 = vmatprep.subr.mxu0 0.0
    %1462 = vmatpush1.xpose.msra.mxu0 0.0
    %1463 = vmatprep.subr.mxu0 0.0
    %1464 = vmatpush1.xpose.msra.mxu0 0.0
    %1465 = vmatprep.subr.mxu0 0.0
    %1466 = vmatpush1.xpose.msra.mxu0 0.0
    %1467 = vmatprep.subr.mxu0 0.0
    %1468 = vmatpush1.xpose.msra.mxu0 0.0
    %1469 = vmatprep.subr.mxu0 0.0
    %1470 = vmatpush1.xpose.msra.mxu0 0.0
    %1471 = vmatprep.subr.mxu0 0.0
    %1472 = vmatpush1.xpose.msra.mxu0 0.0
    %1473 = vmatprep.subr.mxu0 0.0
    %1474 = vmatpush1.xpose.msra.mxu0 0.0
    %1475 = vmatprep.subr.mxu0 0.0
    %1476 = vmatpush1.xpose.msra.mxu0 0.0
    %1477 = vmatprep.subr.mxu0 0.0
    %1478 = vmatpush1.xpose.msra.mxu0 0.0
    %1479 = vmatprep.mubr.f32.mxu0 0.0
    %1480 = vmatmul.mubr.f32.gmra.mrb[0].mxu0 %v1411
    %v1481 = vpop.f32.mrb[0].mxu0
    %v1482 = vadd.f32 0.0, %v1481
    %v1483 = vpop.f32.mrb[0].mxu0
    %1484 = vdwg.mxu0
    %1487 = vrot.lane.b32.xlu0 %v230, 120
    %v1488 = vpop.permute.xlu0 %1487
    %1489 = vrot.lane.b32.xlu0 %v236, 120
    %v1490 = vpop.permute.xlu0 %1489
    %1493 = vrot.lane.b32.xlu0 %v230, 112
    %v1494 = vpop.permute.xlu0 %1493
    %1495 = vrot.lane.b32.xlu0 %v236, 112
    %v1496 = vpop.permute.xlu0 %1495
    %1499 = vrot.lane.b32.xlu0 %v230, 104
    %v1500 = vpop.permute.xlu0 %1499
    %1501 = vrot.lane.b32.xlu0 %v236, 104
    %v1502 = vpop.permute.xlu0 %1501
    %1505 = vrot.lane.b32.xlu0 %v230, 96
    %v1506 = vpop.permute.xlu0 %1505
    %1507 = vrot.lane.b32.xlu0 %v236, 96
    %v1508 = vpop.permute.xlu0 %1507
    %1511 = vrot.lane.b32.xlu0 %v230, 88
    %v1512 = vpop.permute.xlu0 %1511
    %1513 = vrot.lane.b32.xlu0 %v236, 88
    %v1514 = vpop.permute.xlu0 %1513
    %1517 = vrot.lane.b32.xlu0 %v230, 80
    %v1518 = vpop.permute.xlu0 %1517
    %1519 = vrot.lane.b32.xlu0 %v236, 80
    %v1520 = vpop.permute.xlu0 %1519
    %1523 = vrot.lane.b32.xlu0 %v230, 72
    %v1524 = vpop.permute.xlu0 %1523
    %1525 = vrot.lane.b32.xlu0 %v236, 72
    %v1526 = vpop.permute.xlu0 %1525
    %v1529 = vsel %vm241, %v313, -inf
    %1530 = vmax.xlane.f32.xlu0 %v1529
    %v1531 = vpop.xlane.xlu0 %1530
    %v1532 = vsel %vm241, %v390, -inf
    %1533 = vmax.xlane.f32.xlu0 %v1532
    %v1534 = vpop.xlane.xlu0 %1533
    %v1535 = vsel %vm241, %v468, -inf
    %1536 = vmax.xlane.f32.xlu0 %v1535
    %v1537 = vpop.xlane.xlu0 %1536
    %v1538 = vsel %vm241, %v546, -inf
    %1539 = vmax.xlane.f32.xlu0 %v1538
    %v1540 = vpop.xlane.xlu0 %1539
    %v1541 = vsel %vm241, %v624, -inf
    %1542 = vmax.xlane.f32.xlu0 %v1541
    %v1543 = vpop.xlane.xlu0 %1542
    %v1544 = vsel %vm241, %v702, -inf
    %1545 = vmax.xlane.f32.xlu0 %v1544
    %v1546 = vpop.xlane.xlu0 %1545
    %v1547 = vsel %vm241, %v780, -inf
    %1548 = vmax.xlane.f32.xlu0 %v1547
    %v1549 = vpop.xlane.xlu0 %1548
    %v1550 = vsel %vm241, %v858, -inf
    %1551 = vmax.xlane.f32.xlu0 %v1550
    %v1552 = vpop.xlane.xlu0 %1551
    %v1553 = vsel %vm241, %v936, -inf
    %1554 = vmax.xlane.f32.xlu0 %v1553
    %v1555 = vpop.xlane.xlu0 %1554
    %v1556 = vsel %vm241, %v1014, -inf
    %1557 = vmax.xlane.f32.xlu0 %v1556
    %v1558 = vpop.xlane.xlu0 %1557
    %v1559 = vsel %vm241, %v1092, -inf
    %1560 = vmax.xlane.f32.xlu0 %v1559
    %v1561 = vpop.xlane.xlu0 %1560
    %v1562 = vsel %vm241, %v1170, -inf
    %1563 = vmax.xlane.f32.xlu0 %v1562
    %v1564 = vpop.xlane.xlu0 %1563
    %v1565 = vsel %vm241, %v1248, -inf
    %1566 = vmax.xlane.f32.xlu0 %v1565
    %v1567 = vpop.xlane.xlu0 %1566
    %v1568 = vsel %vm241, %v1326, -inf
    %1569 = vmax.xlane.f32.xlu0 %v1568
    %v1570 = vpop.xlane.xlu0 %1569
    %v1571 = vsel %vm241, %v1404, -inf
    %1572 = vmax.xlane.f32.xlu0 %v1571
    %v1573 = vpop.xlane.xlu0 %1572
    %v1574 = vsel %vm241, %v1482, -inf
    %1575 = vmax.xlane.f32.xlu0 %v1574
    %v1576 = vpop.xlane.xlu0 %1575
    %v1577 = vsub.f32 %v313, %v1531
    %v1578 = vsub.f32 %v390, %v1534
    %v1579 = vsub.f32 %v468, %v1537
    %v1580 = vsub.f32 %v546, %v1540
    %v1581 = vsub.f32 %v624, %v1543
    %v1582 = vsub.f32 %v702, %v1546
    %v1583 = vsub.f32 %v780, %v1549
    %v1584 = vsub.f32 %v858, %v1552
    %v1585 = vsub.f32 %v936, %v1555
    %v1586 = vsub.f32 %v1014, %v1558
    %v1587 = vsub.f32 %v1092, %v1561
    %v1588 = vsub.f32 %v1170, %v1564
    %v1589 = vsub.f32 %v1248, %v1567
    %v1590 = vsub.f32 %v1326, %v1570
    %v1591 = vsub.f32 %v1404, %v1573
    %v1592 = vsub.f32 %v1482, %v1576
    %v1593 = vmul.f32 %v1577, 1.442695
    %v1594 = vpow.pop %v1593
    %v1595 = vmul.f32 %v1578, 1.442695
    %v1596 = vpow.pop %v1595
    %v1597 = vmul.f32 %v1579, 1.442695
    %v1598 = vpow.pop %v1597
    %v1599 = vmul.f32 %v1580, 1.442695
    %v1600 = vpow.pop %v1599
    %v1601 = vmul.f32 %v1581, 1.442695
    %v1602 = vpow.pop %v1601
    %v1603 = vmul.f32 %v1582, 1.442695
    %v1604 = vpow.pop %v1603
    %v1605 = vmul.f32 %v1583, 1.442695
    %v1606 = vpow.pop %v1605
    %v1607 = vmul.f32 %v1584, 1.442695
    %v1608 = vpow.pop %v1607
    %v1609 = vmul.f32 %v1585, 1.442695
    %v1610 = vpow.pop %v1609
    %v1611 = vmul.f32 %v1586, 1.442695
    %v1612 = vpow.pop %v1611
    %v1613 = vmul.f32 %v1587, 1.442695
    %v1614 = vpow.pop %v1613
    %v1615 = vmul.f32 %v1588, 1.442695
    %v1616 = vpow.pop %v1615
    %v1617 = vmul.f32 %v1589, 1.442695
    %v1618 = vpow.pop %v1617
    %v1619 = vmul.f32 %v1590, 1.442695
    %v1620 = vpow.pop %v1619
    %v1621 = vmul.f32 %v1591, 1.442695
    %v1622 = vpow.pop %v1621
    %v1623 = vmul.f32 %v1592, 1.442695
    %v1624 = vpow.pop %v1623
    %v1625 = vsel %vm241, %v1594, 0.0
    %1626 = vadd.xlane.f32.xlu0 %v1625
    %v1627 = vpop.xlane.xlu0 %1626
    %v1628 = vsel %vm241, %v1596, 0.0
    %1629 = vadd.xlane.f32.xlu0 %v1628
    %v1630 = vpop.xlane.xlu0 %1629
    %v1631 = vsel %vm241, %v1598, 0.0
    %1632 = vadd.xlane.f32.xlu0 %v1631
    %v1633 = vpop.xlane.xlu0 %1632
    %v1634 = vsel %vm241, %v1600, 0.0
    %1635 = vadd.xlane.f32.xlu0 %v1634
    %v1636 = vpop.xlane.xlu0 %1635
    %v1637 = vsel %vm241, %v1602, 0.0
    %1638 = vadd.xlane.f32.xlu0 %v1637
    %v1639 = vpop.xlane.xlu0 %1638
    %v1640 = vsel %vm241, %v1604, 0.0
    %1641 = vadd.xlane.f32.xlu0 %v1640
    %v1642 = vpop.xlane.xlu0 %1641
    %v1643 = vsel %vm241, %v1606, 0.0
    %1644 = vadd.xlane.f32.xlu0 %v1643
    %v1645 = vpop.xlane.xlu0 %1644
    %v1646 = vsel %vm241, %v1608, 0.0
    %1647 = vadd.xlane.f32.xlu0 %v1646
    %v1648 = vpop.xlane.xlu0 %1647
    %v1649 = vsel %vm241, %v1610, 0.0
    %1650 = vadd.xlane.f32.xlu0 %v1649
    %v1651 = vpop.xlane.xlu0 %1650
    %v1652 = vsel %vm241, %v1612, 0.0
    %1653 = vadd.xlane.f32.xlu0 %v1652
    %v1654 = vpop.xlane.xlu0 %1653
    %v1655 = vsel %vm241, %v1614, 0.0
    %1656 = vadd.xlane.f32.xlu0 %v1655
    %v1657 = vpop.xlane.xlu0 %1656
    %v1658 = vsel %vm241, %v1616, 0.0
    %1659 = vadd.xlane.f32.xlu0 %v1658
    %v1660 = vpop.xlane.xlu0 %1659
    %v1661 = vsel %vm241, %v1618, 0.0
    %1662 = vadd.xlane.f32.xlu0 %v1661
    %v1663 = vpop.xlane.xlu0 %1662
    %v1664 = vsel %vm241, %v1620, 0.0
    %1665 = vadd.xlane.f32.xlu0 %v1664
    %v1666 = vpop.xlane.xlu0 %1665
    %v1667 = vsel %vm241, %v1622, 0.0
    %1668 = vadd.xlane.f32.xlu0 %v1667
    %v1669 = vpop.xlane.xlu0 %1668
    %v1670 = vsel %vm241, %v1624, 0.0
    %1671 = vadd.xlane.f32.xlu0 %v1670
    %v1672 = vpop.xlane.xlu0 %1671
    %v1673 = vrcp.pop %v1627
    %v1674 = vrcp.pop %v1630
    %v1675 = vrcp.pop %v1633
    %v1676 = vrcp.pop %v1636
    %v1677 = vrcp.pop %v1639
    %v1678 = vrcp.pop %v1642
    %v1679 = vrcp.pop %v1645
    %v1680 = vrcp.pop %v1648
    %v1681 = vrcp.pop %v1651
    %v1682 = vrcp.pop %v1654
    %v1683 = vrcp.pop %v1657
    %v1684 = vrcp.pop %v1660
    %v1685 = vrcp.pop %v1663
    %v1686 = vrcp.pop %v1666
    %v1687 = vrcp.pop %v1669
    %v1688 = vrcp.pop %v1672
    %v1689 = vmul.f32 %v1594, %v1673
    %v1690 = vmul.f32 %v1596, %v1674
    %v1691 = vmul.f32 %v1598, %v1675
    %v1692 = vmul.f32 %v1600, %v1676
    %v1693 = vmul.f32 %v1602, %v1677
    %v1694 = vmul.f32 %v1604, %v1678
    %v1695 = vmul.f32 %v1606, %v1679
    %v1696 = vmul.f32 %v1608, %v1680
    %v1697 = vmul.f32 %v1610, %v1681
    %v1698 = vmul.f32 %v1612, %v1682
    %v1699 = vmul.f32 %v1614, %v1683
    %v1700 = vmul.f32 %v1616, %v1684
    %v1701 = vmul.f32 %v1618, %v1685
    %v1702 = vmul.f32 %v1620, %v1686
    %v1703 = vmul.f32 %v1622, %v1687
    %v1704 = vmul.f32 %v1624, %v1688
    %v1706 = vsel %vm241, %v1689, 0
    %1708 = vmatprep.subr.mxu0 0.0
    %1709 = vmatpush1.msra.mxu0 %v230
    %1710 = vmatprep.subr.mxu0 0.0
    %1711 = vmatpush1.msra.mxu0 0.0
    %1712 = vmatprep.subr.mxu0 0.0
    %1713 = vmatpush1.msra.mxu0 0.0
    %1714 = vmatprep.subr.mxu0 0.0
    %1715 = vmatpush1.msra.mxu0 0.0
    %1716 = vmatprep.subr.mxu0 0.0
    %1717 = vmatpush1.msra.mxu0 0.0
    %1718 = vmatprep.subr.mxu0 0.0
    %1719 = vmatpush1.msra.mxu0 0.0
    %1720 = vmatprep.subr.mxu0 0.0
    %1721 = vmatpush1.msra.mxu0 0.0
    %1722 = vmatprep.subr.mxu0 0.0
    %1723 = vmatpush1.msra.mxu0 0.0
    %1724 = vmatprep.subr.mxu0 0.0
    %1725 = vmatpush1.msra.mxu0 0.0
    %1726 = vmatprep.subr.mxu0 0.0
    %1727 = vmatpush1.msra.mxu0 0.0
    %1728 = vmatprep.subr.mxu0 0.0
    %1729 = vmatpush1.msra.mxu0 0.0
    %1730 = vmatprep.subr.mxu0 0.0
    %1731 = vmatpush1.msra.mxu0 0.0
    %1732 = vmatprep.subr.mxu0 0.0
    %1733 = vmatpush1.msra.mxu0 0.0
    %1734 = vmatprep.subr.mxu0 0.0
    %1735 = vmatpush1.msra.mxu0 0.0
    %1736 = vmatprep.subr.mxu0 0.0
    %1737 = vmatpush1.msra.mxu0 0.0
    %1738 = vmatprep.subr.mxu0 0.0
    %1739 = vmatpush1.msra.mxu0 0.0
    %1740 = vmatprep.subr.mxu0 0.0
    %1741 = vmatpush1.msra.mxu0 0.0
    %1742 = vmatprep.subr.mxu0 0.0
    %1743 = vmatpush1.msra.mxu0 0.0
    %1744 = vmatprep.subr.mxu0 0.0
    %1745 = vmatpush1.msra.mxu0 0.0
    %1746 = vmatprep.subr.mxu0 0.0
    %1747 = vmatpush1.msra.mxu0 0.0
    %1748 = vmatprep.subr.mxu0 0.0
    %1749 = vmatpush1.msra.mxu0 0.0
    %1750 = vmatprep.subr.mxu0 0.0
    %1751 = vmatpush1.msra.mxu0 0.0
    %1752 = vmatprep.subr.mxu0 0.0
    %1753 = vmatpush1.msra.mxu0 0.0
    %1754 = vmatprep.subr.mxu0 0.0
    %1755 = vmatpush1.msra.mxu0 0.0
    %1756 = vmatprep.subr.mxu0 0.0
    %1757 = vmatpush1.msra.mxu0 0.0
    %1758 = vmatprep.subr.mxu0 0.0
    %1759 = vmatpush1.msra.mxu0 0.0
    %1760 = vmatprep.subr.mxu0 0.0
    %1761 = vmatpush1.msra.mxu0 0.0
    %1762 = vmatprep.subr.mxu0 0.0
    %1763 = vmatpush1.msra.mxu0 0.0
    %1764 = vmatprep.subr.mxu0 0.0
    %1765 = vmatpush1.msra.mxu0 0.0
    %1766 = vmatprep.subr.mxu0 0.0
    %1767 = vmatpush1.msra.mxu0 0.0
    %1768 = vmatprep.subr.mxu0 0.0
    %1769 = vmatpush1.msra.mxu0 0.0
    %1770 = vmatprep.subr.mxu0 0.0
    %1771 = vmatpush1.msra.mxu0 0.0
    %1772 = vmatprep.mubr.f32.mxu0 0.0
    %1773 = vmatmul.mubr.f32.gmra.mrb[0].mxu0 %v1706
    %v1774 = vpop.f32.mrb[0].mxu0
    %v1775 = vadd.f32 0.0, %v1774
    %v1776 = vpop.f32.mrb[0].mxu0
    %1777 = vdwg.mxu0
    %v1779 = vsel %vm241, %v1690, 0
    %1781 = vmatprep.subr.mxu0 0.0
    %1782 = vmatpush1.msra.mxu0 %v236
    %1783 = vmatprep.subr.mxu0 0.0
    %1784 = vmatpush1.msra.mxu0 0.0
    %1785 = vmatprep.subr.mxu0 0.0
    %1786 = vmatpush1.msra.mxu0 0.0
    %1787 = vmatprep.subr.mxu0 0.0
    %1788 = vmatpush1.msra.mxu0 0.0
    %1789 = vmatprep.subr.mxu0 0.0
    %1790 = vmatpush1.msra.mxu0 0.0
    %1791 = vmatprep.subr.mxu0 0.0
    %1792 = vmatpush1.msra.mxu0 0.0
    %1793 = vmatprep.subr.mxu0 0.0
    %1794 = vmatpush1.msra.mxu0 0.0
    %1795 = vmatprep.subr.mxu0 0.0
    %1796 = vmatpush1.msra.mxu0 0.0
    %1797 = vmatprep.subr.mxu0 0.0
    %1798 = vmatpush1.msra.mxu0 0.0
    %1799 = vmatprep.subr.mxu0 0.0
    %1800 = vmatpush1.msra.mxu0 0.0
    %1801 = vmatprep.subr.mxu0 0.0
    %1802 = vmatpush1.msra.mxu0 0.0
    %1803 = vmatprep.subr.mxu0 0.0
    %1804 = vmatpush1.msra.mxu0 0.0
    %1805 = vmatprep.subr.mxu0 0.0
    %1806 = vmatpush1.msra.mxu0 0.0
    %1807 = vmatprep.subr.mxu0 0.0
    %1808 = vmatpush1.msra.mxu0 0.0
    %1809 = vmatprep.subr.mxu0 0.0
    %1810 = vmatpush1.msra.mxu0 0.0
    %1811 = vmatprep.subr.mxu0 0.0
    %1812 = vmatpush1.msra.mxu0 0.0
    %1813 = vmatprep.subr.mxu0 0.0
    %1814 = vmatpush1.msra.mxu0 0.0
    %1815 = vmatprep.subr.mxu0 0.0
    %1816 = vmatpush1.msra.mxu0 0.0
    %1817 = vmatprep.subr.mxu0 0.0
    %1818 = vmatpush1.msra.mxu0 0.0
    %1819 = vmatprep.subr.mxu0 0.0
    %1820 = vmatpush1.msra.mxu0 0.0
    %1821 = vmatprep.subr.mxu0 0.0
    %1822 = vmatpush1.msra.mxu0 0.0
    %1823 = vmatprep.subr.mxu0 0.0
    %1824 = vmatpush1.msra.mxu0 0.0
    %1825 = vmatprep.subr.mxu0 0.0
    %1826 = vmatpush1.msra.mxu0 0.0
    %1827 = vmatprep.subr.mxu0 0.0
    %1828 = vmatpush1.msra.mxu0 0.0
    %1829 = vmatprep.subr.mxu0 0.0
    %1830 = vmatpush1.msra.mxu0 0.0
    %1831 = vmatprep.subr.mxu0 0.0
    %1832 = vmatpush1.msra.mxu0 0.0
    %1833 = vmatprep.subr.mxu0 0.0
    %1834 = vmatpush1.msra.mxu0 0.0
    %1835 = vmatprep.subr.mxu0 0.0
    %1836 = vmatpush1.msra.mxu0 0.0
    %1837 = vmatprep.subr.mxu0 0.0
    %1838 = vmatpush1.msra.mxu0 0.0
    %1839 = vmatprep.subr.mxu0 0.0
    %1840 = vmatpush1.msra.mxu0 0.0
    %1841 = vmatprep.subr.mxu0 0.0
    %1842 = vmatpush1.msra.mxu0 0.0
    %1843 = vmatprep.subr.mxu0 0.0
    %1844 = vmatpush1.msra.mxu0 0.0
    %1845 = vmatprep.mubr.f32.mxu0 0.0
    %1846 = vmatmul.mubr.f32.gmra.mrb[0].mxu0 %v1779
    %v1847 = vpop.f32.mrb[0].mxu0
    %v1848 = vadd.f32 0.0, %v1847
    %v1849 = vpop.f32.mrb[0].mxu0
    %1850 = vdwg.mxu0
    %v1852 = vsel %vm241, %v1691, 0
    %1854 = vmatprep.subr.mxu0 0.0
    %1855 = vmatpush1.msra.mxu0 %v1488
    %1856 = vmatprep.subr.mxu0 0.0
    %1857 = vmatpush1.msra.mxu0 0.0
    %1858 = vmatprep.subr.mxu0 0.0
    %1859 = vmatpush1.msra.mxu0 0.0
    %1860 = vmatprep.subr.mxu0 0.0
    %1861 = vmatpush1.msra.mxu0 0.0
    %1862 = vmatprep.subr.mxu0 0.0
    %1863 = vmatpush1.msra.mxu0 0.0
    %1864 = vmatprep.subr.mxu0 0.0
    %1865 = vmatpush1.msra.mxu0 0.0
    %1866 = vmatprep.subr.mxu0 0.0
    %1867 = vmatpush1.msra.mxu0 0.0
    %1868 = vmatprep.subr.mxu0 0.0
    %1869 = vmatpush1.msra.mxu0 0.0
    %1870 = vmatprep.subr.mxu0 0.0
    %1871 = vmatpush1.msra.mxu0 0.0
    %1872 = vmatprep.subr.mxu0 0.0
    %1873 = vmatpush1.msra.mxu0 0.0
    %1874 = vmatprep.subr.mxu0 0.0
    %1875 = vmatpush1.msra.mxu0 0.0
    %1876 = vmatprep.subr.mxu0 0.0
    %1877 = vmatpush1.msra.mxu0 0.0
    %1878 = vmatprep.subr.mxu0 0.0
    %1879 = vmatpush1.msra.mxu0 0.0
    %1880 = vmatprep.subr.mxu0 0.0
    %1881 = vmatpush1.msra.mxu0 0.0
    %1882 = vmatprep.subr.mxu0 0.0
    %1883 = vmatpush1.msra.mxu0 0.0
    %1884 = vmatprep.subr.mxu0 0.0
    %1885 = vmatpush1.msra.mxu0 0.0
    %1886 = vmatprep.subr.mxu0 0.0
    %1887 = vmatpush1.msra.mxu0 0.0
    %1888 = vmatprep.subr.mxu0 0.0
    %1889 = vmatpush1.msra.mxu0 0.0
    %1890 = vmatprep.subr.mxu0 0.0
    %1891 = vmatpush1.msra.mxu0 0.0
    %1892 = vmatprep.subr.mxu0 0.0
    %1893 = vmatpush1.msra.mxu0 0.0
    %1894 = vmatprep.subr.mxu0 0.0
    %1895 = vmatpush1.msra.mxu0 0.0
    %1896 = vmatprep.subr.mxu0 0.0
    %1897 = vmatpush1.msra.mxu0 0.0
    %1898 = vmatprep.subr.mxu0 0.0
    %1899 = vmatpush1.msra.mxu0 0.0
    %1900 = vmatprep.subr.mxu0 0.0
    %1901 = vmatpush1.msra.mxu0 0.0
    %1902 = vmatprep.subr.mxu0 0.0
    %1903 = vmatpush1.msra.mxu0 0.0
    %1904 = vmatprep.subr.mxu0 0.0
    %1905 = vmatpush1.msra.mxu0 0.0
    %1906 = vmatprep.subr.mxu0 0.0
    %1907 = vmatpush1.msra.mxu0 0.0
    %1908 = vmatprep.subr.mxu0 0.0
    %1909 = vmatpush1.msra.mxu0 0.0
    %1910 = vmatprep.subr.mxu0 0.0
    %1911 = vmatpush1.msra.mxu0 0.0
    %1912 = vmatprep.subr.mxu0 0.0
    %1913 = vmatpush1.msra.mxu0 0.0
    %1914 = vmatprep.subr.mxu0 0.0
    %1915 = vmatpush1.msra.mxu0 0.0
    %1916 = vmatprep.subr.mxu0 0.0
    %1917 = vmatpush1.msra.mxu0 0.0
    %1918 = vmatprep.mubr.f32.mxu0 0.0
    %1919 = vmatmul.mubr.f32.gmra.mrb[0].mxu0 %v1852
    %v1920 = vpop.f32.mrb[0].mxu0
    %v1921 = vadd.f32 0.0, %v1920
    %v1922 = vpop.f32.mrb[0].mxu0
    %1923 = vdwg.mxu0
    %v1925 = vsel %vm241, %v1692, 0
    %1927 = vmatprep.subr.mxu0 0.0
    %1928 = vmatpush1.msra.mxu0 %v1490
    %1929 = vmatprep.subr.mxu0 0.0
    %1930 = vmatpush1.msra.mxu0 0.0
    %1931 = vmatprep.subr.mxu0 0.0
    %1932 = vmatpush1.msra.mxu0 0.0
    %1933 = vmatprep.subr.mxu0 0.0
    %1934 = vmatpush1.msra.mxu0 0.0
    %1935 = vmatprep.subr.mxu0 0.0
    %1936 = vmatpush1.msra.mxu0 0.0
    %1937 = vmatprep.subr.mxu0 0.0
    %1938 = vmatpush1.msra.mxu0 0.0
    %1939 = vmatprep.subr.mxu0 0.0
    %1940 = vmatpush1.msra.mxu0 0.0
    %1941 = vmatprep.subr.mxu0 0.0
    %1942 = vmatpush1.msra.mxu0 0.0
    %1943 = vmatprep.subr.mxu0 0.0
    %1944 = vmatpush1.msra.mxu0 0.0
    %1945 = vmatprep.subr.mxu0 0.0
    %1946 = vmatpush1.msra.mxu0 0.0
    %1947 = vmatprep.subr.mxu0 0.0
    %1948 = vmatpush1.msra.mxu0 0.0
    %1949 = vmatprep.subr.mxu0 0.0
    %1950 = vmatpush1.msra.mxu0 0.0
    %1951 = vmatprep.subr.mxu0 0.0
    %1952 = vmatpush1.msra.mxu0 0.0
    %1953 = vmatprep.subr.mxu0 0.0
    %1954 = vmatpush1.msra.mxu0 0.0
    %1955 = vmatprep.subr.mxu0 0.0
    %1956 = vmatpush1.msra.mxu0 0.0
    %1957 = vmatprep.subr.mxu0 0.0
    %1958 = vmatpush1.msra.mxu0 0.0
    %1959 = vmatprep.subr.mxu0 0.0
    %1960 = vmatpush1.msra.mxu0 0.0
    %1961 = vmatprep.subr.mxu0 0.0
    %1962 = vmatpush1.msra.mxu0 0.0
    %1963 = vmatprep.subr.mxu0 0.0
    %1964 = vmatpush1.msra.mxu0 0.0
    %1965 = vmatprep.subr.mxu0 0.0
    %1966 = vmatpush1.msra.mxu0 0.0
    %1967 = vmatprep.subr.mxu0 0.0
    %1968 = vmatpush1.msra.mxu0 0.0
    %1969 = vmatprep.subr.mxu0 0.0
    %1970 = vmatpush1.msra.mxu0 0.0
    %1971 = vmatprep.subr.mxu0 0.0
    %1972 = vmatpush1.msra.mxu0 0.0
    %1973 = vmatprep.subr.mxu0 0.0
    %1974 = vmatpush1.msra.mxu0 0.0
    %1975 = vmatprep.subr.mxu0 0.0
    %1976 = vmatpush1.msra.mxu0 0.0
    %1977 = vmatprep.subr.mxu0 0.0
    %1978 = vmatpush1.msra.mxu0 0.0
    %1979 = vmatprep.subr.mxu0 0.0
    %1980 = vmatpush1.msra.mxu0 0.0
    %1981 = vmatprep.subr.mxu0 0.0
    %1982 = vmatpush1.msra.mxu0 0.0
    %1983 = vmatprep.subr.mxu0 0.0
    %1984 = vmatpush1.msra.mxu0 0.0
    %1985 = vmatprep.subr.mxu0 0.0
    %1986 = vmatpush1.msra.mxu0 0.0
    %1987 = vmatprep.subr.mxu0 0.0
    %1988 = vmatpush1.msra.mxu0 0.0
    %1989 = vmatprep.subr.mxu0 0.0
    %1990 = vmatpush1.msra.mxu0 0.0
    %1991 = vmatprep.mubr.f32.mxu0 0.0
    %1992 = vmatmul.mubr.f32.gmra.mrb[0].mxu0 %v1925
    %v1993 = vpop.f32.mrb[0].mxu0
    %v1994 = vadd.f32 0.0, %v1993
    %v1995 = vpop.f32.mrb[0].mxu0
    %1996 = vdwg.mxu0
    %v1998 = vsel %vm241, %v1693, 0
    %2000 = vmatprep.subr.mxu0 0.0
    %2001 = vmatpush1.msra.mxu0 %v1494
    %2002 = vmatprep.subr.mxu0 0.0
    %2003 = vmatpush1.msra.mxu0 0.0
    %2004 = vmatprep.subr.mxu0 0.0
    %2005 = vmatpush1.msra.mxu0 0.0
    %2006 = vmatprep.subr.mxu0 0.0
    %2007 = vmatpush1.msra.mxu0 0.0
    %2008 = vmatprep.subr.mxu0 0.0
    %2009 = vmatpush1.msra.mxu0 0.0
    %2010 = vmatprep.subr.mxu0 0.0
    %2011 = vmatpush1.msra.mxu0 0.0
    %2012 = vmatprep.subr.mxu0 0.0
    %2013 = vmatpush1.msra.mxu0 0.0
    %2014 = vmatprep.subr.mxu0 0.0
    %2015 = vmatpush1.msra.mxu0 0.0
    %2016 = vmatprep.subr.mxu0 0.0
    %2017 = vmatpush1.msra.mxu0 0.0
    %2018 = vmatprep.subr.mxu0 0.0
    %2019 = vmatpush1.msra.mxu0 0.0
    %2020 = vmatprep.subr.mxu0 0.0
    %2021 = vmatpush1.msra.mxu0 0.0
    %2022 = vmatprep.subr.mxu0 0.0
    %2023 = vmatpush1.msra.mxu0 0.0
    %2024 = vmatprep.subr.mxu0 0.0
    %2025 = vmatpush1.msra.mxu0 0.0
    %2026 = vmatprep.subr.mxu0 0.0
    %2027 = vmatpush1.msra.mxu0 0.0
    %2028 = vmatprep.subr.mxu0 0.0
    %2029 = vmatpush1.msra.mxu0 0.0
    %2030 = vmatprep.subr.mxu0 0.0
    %2031 = vmatpush1.msra.mxu0 0.0
    %2032 = vmatprep.subr.mxu0 0.0
    %2033 = vmatpush1.msra.mxu0 0.0
    %2034 = vmatprep.subr.mxu0 0.0
    %2035 = vmatpush1.msra.mxu0 0.0
    %2036 = vmatprep.subr.mxu0 0.0
    %2037 = vmatpush1.msra.mxu0 0.0
    %2038 = vmatprep.subr.mxu0 0.0
    %2039 = vmatpush1.msra.mxu0 0.0
    %2040 = vmatprep.subr.mxu0 0.0
    %2041 = vmatpush1.msra.mxu0 0.0
    %2042 = vmatprep.subr.mxu0 0.0
    %2043 = vmatpush1.msra.mxu0 0.0
    %2044 = vmatprep.subr.mxu0 0.0
    %2045 = vmatpush1.msra.mxu0 0.0
    %2046 = vmatprep.subr.mxu0 0.0
    %2047 = vmatpush1.msra.mxu0 0.0
    %2048 = vmatprep.subr.mxu0 0.0
    %2049 = vmatpush1.msra.mxu0 0.0
    %2050 = vmatprep.subr.mxu0 0.0
    %2051 = vmatpush1.msra.mxu0 0.0
    %2052 = vmatprep.subr.mxu0 0.0
    %2053 = vmatpush1.msra.mxu0 0.0
    %2054 = vmatprep.subr.mxu0 0.0
    %2055 = vmatpush1.msra.mxu0 0.0
    %2056 = vmatprep.subr.mxu0 0.0
    %2057 = vmatpush1.msra.mxu0 0.0
    %2058 = vmatprep.subr.mxu0 0.0
    %2059 = vmatpush1.msra.mxu0 0.0
    %2060 = vmatprep.subr.mxu0 0.0
    %2061 = vmatpush1.msra.mxu0 0.0
    %2062 = vmatprep.subr.mxu0 0.0
    %2063 = vmatpush1.msra.mxu0 0.0
    %2064 = vmatprep.mubr.f32.mxu0 0.0
    %2065 = vmatmul.mubr.f32.gmra.mrb[0].mxu0 %v1998
    %v2066 = vpop.f32.mrb[0].mxu0
    %v2067 = vadd.f32 0.0, %v2066
    %v2068 = vpop.f32.mrb[0].mxu0
    %2069 = vdwg.mxu0
    %v2071 = vsel %vm241, %v1694, 0
    %2073 = vmatprep.subr.mxu0 0.0
    %2074 = vmatpush1.msra.mxu0 %v1496
    %2075 = vmatprep.subr.mxu0 0.0
    %2076 = vmatpush1.msra.mxu0 0.0
    %2077 = vmatprep.subr.mxu0 0.0
    %2078 = vmatpush1.msra.mxu0 0.0
    %2079 = vmatprep.subr.mxu0 0.0
    %2080 = vmatpush1.msra.mxu0 0.0
    %2081 = vmatprep.subr.mxu0 0.0
    %2082 = vmatpush1.msra.mxu0 0.0
    %2083 = vmatprep.subr.mxu0 0.0
    %2084 = vmatpush1.msra.mxu0 0.0
    %2085 = vmatprep.subr.mxu0 0.0
    %2086 = vmatpush1.msra.mxu0 0.0
    %2087 = vmatprep.subr.mxu0 0.0
    %2088 = vmatpush1.msra.mxu0 0.0
    %2089 = vmatprep.subr.mxu0 0.0
    %2090 = vmatpush1.msra.mxu0 0.0
    %2091 = vmatprep.subr.mxu0 0.0
    %2092 = vmatpush1.msra.mxu0 0.0
    %2093 = vmatprep.subr.mxu0 0.0
    %2094 = vmatpush1.msra.mxu0 0.0
    %2095 = vmatprep.subr.mxu0 0.0
    %2096 = vmatpush1.msra.mxu0 0.0
    %2097 = vmatprep.subr.mxu0 0.0
    %2098 = vmatpush1.msra.mxu0 0.0
    %2099 = vmatprep.subr.mxu0 0.0
    %2100 = vmatpush1.msra.mxu0 0.0
    %2101 = vmatprep.subr.mxu0 0.0
    %2102 = vmatpush1.msra.mxu0 0.0
    %2103 = vmatprep.subr.mxu0 0.0
    %2104 = vmatpush1.msra.mxu0 0.0
    %2105 = vmatprep.subr.mxu0 0.0
    %2106 = vmatpush1.msra.mxu0 0.0
    %2107 = vmatprep.subr.mxu0 0.0
    %2108 = vmatpush1.msra.mxu0 0.0
    %2109 = vmatprep.subr.mxu0 0.0
    %2110 = vmatpush1.msra.mxu0 0.0
    %2111 = vmatprep.subr.mxu0 0.0
    %2112 = vmatpush1.msra.mxu0 0.0
    %2113 = vmatprep.subr.mxu0 0.0
    %2114 = vmatpush1.msra.mxu0 0.0
    %2115 = vmatprep.subr.mxu0 0.0
    %2116 = vmatpush1.msra.mxu0 0.0
    %2117 = vmatprep.subr.mxu0 0.0
    %2118 = vmatpush1.msra.mxu0 0.0
    %2119 = vmatprep.subr.mxu0 0.0
    %2120 = vmatpush1.msra.mxu0 0.0
    %2121 = vmatprep.subr.mxu0 0.0
    %2122 = vmatpush1.msra.mxu0 0.0
    %2123 = vmatprep.subr.mxu0 0.0
    %2124 = vmatpush1.msra.mxu0 0.0
    %2125 = vmatprep.subr.mxu0 0.0
    %2126 = vmatpush1.msra.mxu0 0.0
    %2127 = vmatprep.subr.mxu0 0.0
    %2128 = vmatpush1.msra.mxu0 0.0
    %2129 = vmatprep.subr.mxu0 0.0
    %2130 = vmatpush1.msra.mxu0 0.0
    %2131 = vmatprep.subr.mxu0 0.0
    %2132 = vmatpush1.msra.mxu0 0.0
    %2133 = vmatprep.subr.mxu0 0.0
    %2134 = vmatpush1.msra.mxu0 0.0
    %2135 = vmatprep.subr.mxu0 0.0
    %2136 = vmatpush1.msra.mxu0 0.0
    %2137 = vmatprep.mubr.f32.mxu0 0.0
    %2138 = vmatmul.mubr.f32.gmra.mrb[0].mxu0 %v2071
    %v2139 = vpop.f32.mrb[0].mxu0
    %v2140 = vadd.f32 0.0, %v2139
    %v2141 = vpop.f32.mrb[0].mxu0
    %2142 = vdwg.mxu0
    %v2144 = vsel %vm241, %v1695, 0
    %2146 = vmatprep.subr.mxu0 0.0
    %2147 = vmatpush1.msra.mxu0 %v1500
    %2148 = vmatprep.subr.mxu0 0.0
    %2149 = vmatpush1.msra.mxu0 0.0
    %2150 = vmatprep.subr.mxu0 0.0
    %2151 = vmatpush1.msra.mxu0 0.0
    %2152 = vmatprep.subr.mxu0 0.0
    %2153 = vmatpush1.msra.mxu0 0.0
    %2154 = vmatprep.subr.mxu0 0.0
    %2155 = vmatpush1.msra.mxu0 0.0
    %2156 = vmatprep.subr.mxu0 0.0
    %2157 = vmatpush1.msra.mxu0 0.0
    %2158 = vmatprep.subr.mxu0 0.0
    %2159 = vmatpush1.msra.mxu0 0.0
    %2160 = vmatprep.subr.mxu0 0.0
    %2161 = vmatpush1.msra.mxu0 0.0
    %2162 = vmatprep.subr.mxu0 0.0
    %2163 = vmatpush1.msra.mxu0 0.0
    %2164 = vmatprep.subr.mxu0 0.0
    %2165 = vmatpush1.msra.mxu0 0.0
    %2166 = vmatprep.subr.mxu0 0.0
    %2167 = vmatpush1.msra.mxu0 0.0
    %2168 = vmatprep.subr.mxu0 0.0
    %2169 = vmatpush1.msra.mxu0 0.0
    %2170 = vmatprep.subr.mxu0 0.0
    %2171 = vmatpush1.msra.mxu0 0.0
    %2172 = vmatprep.subr.mxu0 0.0
    %2173 = vmatpush1.msra.mxu0 0.0
    %2174 = vmatprep.subr.mxu0 0.0
    %2175 = vmatpush1.msra.mxu0 0.0
    %2176 = vmatprep.subr.mxu0 0.0
    %2177 = vmatpush1.msra.mxu0 0.0
    %2178 = vmatprep.subr.mxu0 0.0
    %2179 = vmatpush1.msra.mxu0 0.0
    %2180 = vmatprep.subr.mxu0 0.0
    %2181 = vmatpush1.msra.mxu0 0.0
    %2182 = vmatprep.subr.mxu0 0.0
    %2183 = vmatpush1.msra.mxu0 0.0
    %2184 = vmatprep.subr.mxu0 0.0
    %2185 = vmatpush1.msra.mxu0 0.0
    %2186 = vmatprep.subr.mxu0 0.0
    %2187 = vmatpush1.msra.mxu0 0.0
    %2188 = vmatprep.subr.mxu0 0.0
    %2189 = vmatpush1.msra.mxu0 0.0
    %2190 = vmatprep.subr.mxu0 0.0
    %2191 = vmatpush1.msra.mxu0 0.0
    %2192 = vmatprep.subr.mxu0 0.0
    %2193 = vmatpush1.msra.mxu0 0.0
    %2194 = vmatprep.subr.mxu0 0.0
    %2195 = vmatpush1.msra.mxu0 0.0
    %2196 = vmatprep.subr.mxu0 0.0
    %2197 = vmatpush1.msra.mxu0 0.0
    %2198 = vmatprep.subr.mxu0 0.0
    %2199 = vmatpush1.msra.mxu0 0.0
    %2200 = vmatprep.subr.mxu0 0.0
    %2201 = vmatpush1.msra.mxu0 0.0
    %2202 = vmatprep.subr.mxu0 0.0
    %2203 = vmatpush1.msra.mxu0 0.0
    %2204 = vmatprep.subr.mxu0 0.0
    %2205 = vmatpush1.msra.mxu0 0.0
    %2206 = vmatprep.subr.mxu0 0.0
    %2207 = vmatpush1.msra.mxu0 0.0
    %2208 = vmatprep.subr.mxu0 0.0
    %2209 = vmatpush1.msra.mxu0 0.0
    %2210 = vmatprep.mubr.f32.mxu0 0.0
    %2211 = vmatmul.mubr.f32.gmra.mrb[0].mxu0 %v2144
    %v2212 = vpop.f32.mrb[0].mxu0
    %v2213 = vadd.f32 0.0, %v2212
    %v2214 = vpop.f32.mrb[0].mxu0
    %2215 = vdwg.mxu0
    %v2217 = vsel %vm241, %v1696, 0
    %2219 = vmatprep.subr.mxu0 0.0
    %2220 = vmatpush1.msra.mxu0 %v1502
    %2221 = vmatprep.subr.mxu0 0.0
    %2222 = vmatpush1.msra.mxu0 0.0
    %2223 = vmatprep.subr.mxu0 0.0
    %2224 = vmatpush1.msra.mxu0 0.0
    %2225 = vmatprep.subr.mxu0 0.0
    %2226 = vmatpush1.msra.mxu0 0.0
    %2227 = vmatprep.subr.mxu0 0.0
    %2228 = vmatpush1.msra.mxu0 0.0
    %2229 = vmatprep.subr.mxu0 0.0
    %2230 = vmatpush1.msra.mxu0 0.0
    %2231 = vmatprep.subr.mxu0 0.0
    %2232 = vmatpush1.msra.mxu0 0.0
    %2233 = vmatprep.subr.mxu0 0.0
    %2234 = vmatpush1.msra.mxu0 0.0
    %2235 = vmatprep.subr.mxu0 0.0
    %2236 = vmatpush1.msra.mxu0 0.0
    %2237 = vmatprep.subr.mxu0 0.0
    %2238 = vmatpush1.msra.mxu0 0.0
    %2239 = vmatprep.subr.mxu0 0.0
    %2240 = vmatpush1.msra.mxu0 0.0
    %2241 = vmatprep.subr.mxu0 0.0
    %2242 = vmatpush1.msra.mxu0 0.0
    %2243 = vmatprep.subr.mxu0 0.0
    %2244 = vmatpush1.msra.mxu0 0.0
    %2245 = vmatprep.subr.mxu0 0.0
    %2246 = vmatpush1.msra.mxu0 0.0
    %2247 = vmatprep.subr.mxu0 0.0
    %2248 = vmatpush1.msra.mxu0 0.0
    %2249 = vmatprep.subr.mxu0 0.0
    %2250 = vmatpush1.msra.mxu0 0.0
    %2251 = vmatprep.subr.mxu0 0.0
    %2252 = vmatpush1.msra.mxu0 0.0
    %2253 = vmatprep.subr.mxu0 0.0
    %2254 = vmatpush1.msra.mxu0 0.0
    %2255 = vmatprep.subr.mxu0 0.0
    %2256 = vmatpush1.msra.mxu0 0.0
    %2257 = vmatprep.subr.mxu0 0.0
    %2258 = vmatpush1.msra.mxu0 0.0
    %2259 = vmatprep.subr.mxu0 0.0
    %2260 = vmatpush1.msra.mxu0 0.0
    %2261 = vmatprep.subr.mxu0 0.0
    %2262 = vmatpush1.msra.mxu0 0.0
    %2263 = vmatprep.subr.mxu0 0.0
    %2264 = vmatpush1.msra.mxu0 0.0
    %2265 = vmatprep.subr.mxu0 0.0
    %2266 = vmatpush1.msra.mxu0 0.0
    %2267 = vmatprep.subr.mxu0 0.0
    %2268 = vmatpush1.msra.mxu0 0.0
    %2269 = vmatprep.subr.mxu0 0.0
    %2270 = vmatpush1.msra.mxu0 0.0
    %2271 = vmatprep.subr.mxu0 0.0
    %2272 = vmatpush1.msra.mxu0 0.0
    %2273 = vmatprep.subr.mxu0 0.0
    %2274 = vmatpush1.msra.mxu0 0.0
    %2275 = vmatprep.subr.mxu0 0.0
    %2276 = vmatpush1.msra.mxu0 0.0
    %2277 = vmatprep.subr.mxu0 0.0
    %2278 = vmatpush1.msra.mxu0 0.0
    %2279 = vmatprep.subr.mxu0 0.0
    %2280 = vmatpush1.msra.mxu0 0.0
    %2281 = vmatprep.subr.mxu0 0.0
    %2282 = vmatpush1.msra.mxu0 0.0
    %2283 = vmatprep.mubr.f32.mxu0 0.0
    %2284 = vmatmul.mubr.f32.gmra.mrb[0].mxu0 %v2217
    %v2285 = vpop.f32.mrb[0].mxu0
    %v2286 = vadd.f32 0.0, %v2285
    %v2287 = vpop.f32.mrb[0].mxu0
    %2288 = vdwg.mxu0
    %v2290 = vsel %vm241, %v1697, 0
    %2292 = vmatprep.subr.mxu0 0.0
    %2293 = vmatpush1.msra.mxu0 %v1506
    %2294 = vmatprep.subr.mxu0 0.0
    %2295 = vmatpush1.msra.mxu0 0.0
    %2296 = vmatprep.subr.mxu0 0.0
    %2297 = vmatpush1.msra.mxu0 0.0
    %2298 = vmatprep.subr.mxu0 0.0
    %2299 = vmatpush1.msra.mxu0 0.0
    %2300 = vmatprep.subr.mxu0 0.0
    %2301 = vmatpush1.msra.mxu0 0.0
    %2302 = vmatprep.subr.mxu0 0.0
    %2303 = vmatpush1.msra.mxu0 0.0
    %2304 = vmatprep.subr.mxu0 0.0
    %2305 = vmatpush1.msra.mxu0 0.0
    %2306 = vmatprep.subr.mxu0 0.0
    %2307 = vmatpush1.msra.mxu0 0.0
    %2308 = vmatprep.subr.mxu0 0.0
    %2309 = vmatpush1.msra.mxu0 0.0
    %2310 = vmatprep.subr.mxu0 0.0
    %2311 = vmatpush1.msra.mxu0 0.0
    %2312 = vmatprep.subr.mxu0 0.0
    %2313 = vmatpush1.msra.mxu0 0.0
    %2314 = vmatprep.subr.mxu0 0.0
    %2315 = vmatpush1.msra.mxu0 0.0
    %2316 = vmatprep.subr.mxu0 0.0
    %2317 = vmatpush1.msra.mxu0 0.0
    %2318 = vmatprep.subr.mxu0 0.0
    %2319 = vmatpush1.msra.mxu0 0.0
    %2320 = vmatprep.subr.mxu0 0.0
    %2321 = vmatpush1.msra.mxu0 0.0
    %2322 = vmatprep.subr.mxu0 0.0
    %2323 = vmatpush1.msra.mxu0 0.0
    %2324 = vmatprep.subr.mxu0 0.0
    %2325 = vmatpush1.msra.mxu0 0.0
    %2326 = vmatprep.subr.mxu0 0.0
    %2327 = vmatpush1.msra.mxu0 0.0
    %2328 = vmatprep.subr.mxu0 0.0
    %2329 = vmatpush1.msra.mxu0 0.0
    %2330 = vmatprep.subr.mxu0 0.0
    %2331 = vmatpush1.msra.mxu0 0.0
    %2332 = vmatprep.subr.mxu0 0.0
    %2333 = vmatpush1.msra.mxu0 0.0
    %2334 = vmatprep.subr.mxu0 0.0
    %2335 = vmatpush1.msra.mxu0 0.0
    %2336 = vmatprep.subr.mxu0 0.0
    %2337 = vmatpush1.msra.mxu0 0.0
    %2338 = vmatprep.subr.mxu0 0.0
    %2339 = vmatpush1.msra.mxu0 0.0
    %2340 = vmatprep.subr.mxu0 0.0
    %2341 = vmatpush1.msra.mxu0 0.0
    %2342 = vmatprep.subr.mxu0 0.0
    %2343 = vmatpush1.msra.mxu0 0.0
    %2344 = vmatprep.subr.mxu0 0.0
    %2345 = vmatpush1.msra.mxu0 0.0
    %2346 = vmatprep.subr.mxu0 0.0
    %2347 = vmatpush1.msra.mxu0 0.0
    %2348 = vmatprep.subr.mxu0 0.0
    %2349 = vmatpush1.msra.mxu0 0.0
    %2350 = vmatprep.subr.mxu0 0.0
    %2351 = vmatpush1.msra.mxu0 0.0
    %2352 = vmatprep.subr.mxu0 0.0
    %2353 = vmatpush1.msra.mxu0 0.0
    %2354 = vmatprep.subr.mxu0 0.0
    %2355 = vmatpush1.msra.mxu0 0.0
    %2356 = vmatprep.mubr.f32.mxu0 0.0
    %2357 = vmatmul.mubr.f32.gmra.mrb[0].mxu0 %v2290
    %v2358 = vpop.f32.mrb[0].mxu0
    %v2359 = vadd.f32 0.0, %v2358
    %v2360 = vpop.f32.mrb[0].mxu0
    %2361 = vdwg.mxu0
    %v2363 = vsel %vm241, %v1698, 0
    %2365 = vmatprep.subr.mxu0 0.0
    %2366 = vmatpush1.msra.mxu0 %v1508
    %2367 = vmatprep.subr.mxu0 0.0
    %2368 = vmatpush1.msra.mxu0 0.0
    %2369 = vmatprep.subr.mxu0 0.0
    %2370 = vmatpush1.msra.mxu0 0.0
    %2371 = vmatprep.subr.mxu0 0.0
    %2372 = vmatpush1.msra.mxu0 0.0
    %2373 = vmatprep.subr.mxu0 0.0
    %2374 = vmatpush1.msra.mxu0 0.0
    %2375 = vmatprep.subr.mxu0 0.0
    %2376 = vmatpush1.msra.mxu0 0.0
    %2377 = vmatprep.subr.mxu0 0.0
    %2378 = vmatpush1.msra.mxu0 0.0
    %2379 = vmatprep.subr.mxu0 0.0
    %2380 = vmatpush1.msra.mxu0 0.0
    %2381 = vmatprep.subr.mxu0 0.0
    %2382 = vmatpush1.msra.mxu0 0.0
    %2383 = vmatprep.subr.mxu0 0.0
    %2384 = vmatpush1.msra.mxu0 0.0
    %2385 = vmatprep.subr.mxu0 0.0
    %2386 = vmatpush1.msra.mxu0 0.0
    %2387 = vmatprep.subr.mxu0 0.0
    %2388 = vmatpush1.msra.mxu0 0.0
    %2389 = vmatprep.subr.mxu0 0.0
    %2390 = vmatpush1.msra.mxu0 0.0
    %2391 = vmatprep.subr.mxu0 0.0
    %2392 = vmatpush1.msra.mxu0 0.0
    %2393 = vmatprep.subr.mxu0 0.0
    %2394 = vmatpush1.msra.mxu0 0.0
    %2395 = vmatprep.subr.mxu0 0.0
    %2396 = vmatpush1.msra.mxu0 0.0
    %2397 = vmatprep.subr.mxu0 0.0
    %2398 = vmatpush1.msra.mxu0 0.0
    %2399 = vmatprep.subr.mxu0 0.0
    %2400 = vmatpush1.msra.mxu0 0.0
    %2401 = vmatprep.subr.mxu0 0.0
    %2402 = vmatpush1.msra.mxu0 0.0
    %2403 = vmatprep.subr.mxu0 0.0
    %2404 = vmatpush1.msra.mxu0 0.0
    %2405 = vmatprep.subr.mxu0 0.0
    %2406 = vmatpush1.msra.mxu0 0.0
    %2407 = vmatprep.subr.mxu0 0.0
    %2408 = vmatpush1.msra.mxu0 0.0
    %2409 = vmatprep.subr.mxu0 0.0
    %2410 = vmatpush1.msra.mxu0 0.0
    %2411 = vmatprep.subr.mxu0 0.0
    %2412 = vmatpush1.msra.mxu0 0.0
    %2413 = vmatprep.subr.mxu0 0.0
    %2414 = vmatpush1.msra.mxu0 0.0
    %2415 = vmatprep.subr.mxu0 0.0
    %2416 = vmatpush1.msra.mxu0 0.0
    %2417 = vmatprep.subr.mxu0 0.0
    %2418 = vmatpush1.msra.mxu0 0.0
    %2419 = vmatprep.subr.mxu0 0.0
    %2420 = vmatpush1.msra.mxu0 0.0
    %2421 = vmatprep.subr.mxu0 0.0
    %2422 = vmatpush1.msra.mxu0 0.0
    %2423 = vmatprep.subr.mxu0 0.0
    %2424 = vmatpush1.msra.mxu0 0.0
    %2425 = vmatprep.subr.mxu0 0.0
    %2426 = vmatpush1.msra.mxu0 0.0
    %2427 = vmatprep.subr.mxu0 0.0
    %2428 = vmatpush1.msra.mxu0 0.0
    %2429 = vmatprep.mubr.f32.mxu0 0.0
    %2430 = vmatmul.mubr.f32.gmra.mrb[0].mxu0 %v2363
    %v2431 = vpop.f32.mrb[0].mxu0
    %v2432 = vadd.f32 0.0, %v2431
    %v2433 = vpop.f32.mrb[0].mxu0
    %2434 = vdwg.mxu0
    %v2436 = vsel %vm241, %v1699, 0
    %2438 = vmatprep.subr.mxu0 0.0
    %2439 = vmatpush1.msra.mxu0 %v1512
    %2440 = vmatprep.subr.mxu0 0.0
    %2441 = vmatpush1.msra.mxu0 0.0
    %2442 = vmatprep.subr.mxu0 0.0
    %2443 = vmatpush1.msra.mxu0 0.0
    %2444 = vmatprep.subr.mxu0 0.0
    %2445 = vmatpush1.msra.mxu0 0.0
    %2446 = vmatprep.subr.mxu0 0.0
    %2447 = vmatpush1.msra.mxu0 0.0
    %2448 = vmatprep.subr.mxu0 0.0
    %2449 = vmatpush1.msra.mxu0 0.0
    %2450 = vmatprep.subr.mxu0 0.0
    %2451 = vmatpush1.msra.mxu0 0.0
    %2452 = vmatprep.subr.mxu0 0.0
    %2453 = vmatpush1.msra.mxu0 0.0
    %2454 = vmatprep.subr.mxu0 0.0
    %2455 = vmatpush1.msra.mxu0 0.0
    %2456 = vmatprep.subr.mxu0 0.0
    %2457 = vmatpush1.msra.mxu0 0.0
    %2458 = vmatprep.subr.mxu0 0.0
    %2459 = vmatpush1.msra.mxu0 0.0
    %2460 = vmatprep.subr.mxu0 0.0
    %2461 = vmatpush1.msra.mxu0 0.0
    %2462 = vmatprep.subr.mxu0 0.0
    %2463 = vmatpush1.msra.mxu0 0.0
    %2464 = vmatprep.subr.mxu0 0.0
    %2465 = vmatpush1.msra.mxu0 0.0
    %2466 = vmatprep.subr.mxu0 0.0
    %2467 = vmatpush1.msra.mxu0 0.0
    %2468 = vmatprep.subr.mxu0 0.0
    %2469 = vmatpush1.msra.mxu0 0.0
    %2470 = vmatprep.subr.mxu0 0.0
    %2471 = vmatpush1.msra.mxu0 0.0
    %2472 = vmatprep.subr.mxu0 0.0
    %2473 = vmatpush1.msra.mxu0 0.0
    %2474 = vmatprep.subr.mxu0 0.0
    %2475 = vmatpush1.msra.mxu0 0.0
    %2476 = vmatprep.subr.mxu0 0.0
    %2477 = vmatpush1.msra.mxu0 0.0
    %2478 = vmatprep.subr.mxu0 0.0
    %2479 = vmatpush1.msra.mxu0 0.0
    %2480 = vmatprep.subr.mxu0 0.0
    %2481 = vmatpush1.msra.mxu0 0.0
    %2482 = vmatprep.subr.mxu0 0.0
    %2483 = vmatpush1.msra.mxu0 0.0
    %2484 = vmatprep.subr.mxu0 0.0
    %2485 = vmatpush1.msra.mxu0 0.0
    %2486 = vmatprep.subr.mxu0 0.0
    %2487 = vmatpush1.msra.mxu0 0.0
    %2488 = vmatprep.subr.mxu0 0.0
    %2489 = vmatpush1.msra.mxu0 0.0
    %2490 = vmatprep.subr.mxu0 0.0
    %2491 = vmatpush1.msra.mxu0 0.0
    %2492 = vmatprep.subr.mxu0 0.0
    %2493 = vmatpush1.msra.mxu0 0.0
    %2494 = vmatprep.subr.mxu0 0.0
    %2495 = vmatpush1.msra.mxu0 0.0
    %2496 = vmatprep.subr.mxu0 0.0
    %2497 = vmatpush1.msra.mxu0 0.0
    %2498 = vmatprep.subr.mxu0 0.0
    %2499 = vmatpush1.msra.mxu0 0.0
    %2500 = vmatprep.subr.mxu0 0.0
    %2501 = vmatpush1.msra.mxu0 0.0
    %2502 = vmatprep.mubr.f32.mxu0 0.0
    %2503 = vmatmul.mubr.f32.gmra.mrb[0].mxu0 %v2436
    %v2504 = vpop.f32.mrb[0].mxu0
    %v2505 = vadd.f32 0.0, %v2504
    %v2506 = vpop.f32.mrb[0].mxu0
    %2507 = vdwg.mxu0
    %v2509 = vsel %vm241, %v1700, 0
    %2511 = vmatprep.subr.mxu0 0.0
    %2512 = vmatpush1.msra.mxu0 %v1514
    %2513 = vmatprep.subr.mxu0 0.0
    %2514 = vmatpush1.msra.mxu0 0.0
    %2515 = vmatprep.subr.mxu0 0.0
    %2516 = vmatpush1.msra.mxu0 0.0
    %2517 = vmatprep.subr.mxu0 0.0
    %2518 = vmatpush1.msra.mxu0 0.0
    %2519 = vmatprep.subr.mxu0 0.0
    %2520 = vmatpush1.msra.mxu0 0.0
    %2521 = vmatprep.subr.mxu0 0.0
    %2522 = vmatpush1.msra.mxu0 0.0
    %2523 = vmatprep.subr.mxu0 0.0
    %2524 = vmatpush1.msra.mxu0 0.0
    %2525 = vmatprep.subr.mxu0 0.0
    %2526 = vmatpush1.msra.mxu0 0.0
    %2527 = vmatprep.subr.mxu0 0.0
    %2528 = vmatpush1.msra.mxu0 0.0
    %2529 = vmatprep.subr.mxu0 0.0
    %2530 = vmatpush1.msra.mxu0 0.0
    %2531 = vmatprep.subr.mxu0 0.0
    %2532 = vmatpush1.msra.mxu0 0.0
    %2533 = vmatprep.subr.mxu0 0.0
    %2534 = vmatpush1.msra.mxu0 0.0
    %2535 = vmatprep.subr.mxu0 0.0
    %2536 = vmatpush1.msra.mxu0 0.0
    %2537 = vmatprep.subr.mxu0 0.0
    %2538 = vmatpush1.msra.mxu0 0.0
    %2539 = vmatprep.subr.mxu0 0.0
    %2540 = vmatpush1.msra.mxu0 0.0
    %2541 = vmatprep.subr.mxu0 0.0
    %2542 = vmatpush1.msra.mxu0 0.0
    %2543 = vmatprep.subr.mxu0 0.0
    %2544 = vmatpush1.msra.mxu0 0.0
    %2545 = vmatprep.subr.mxu0 0.0
    %2546 = vmatpush1.msra.mxu0 0.0
    %2547 = vmatprep.subr.mxu0 0.0
    %2548 = vmatpush1.msra.mxu0 0.0
    %2549 = vmatprep.subr.mxu0 0.0
    %2550 = vmatpush1.msra.mxu0 0.0
    %2551 = vmatprep.subr.mxu0 0.0
    %2552 = vmatpush1.msra.mxu0 0.0
    %2553 = vmatprep.subr.mxu0 0.0
    %2554 = vmatpush1.msra.mxu0 0.0
    %2555 = vmatprep.subr.mxu0 0.0
    %2556 = vmatpush1.msra.mxu0 0.0
    %2557 = vmatprep.subr.mxu0 0.0
    %2558 = vmatpush1.msra.mxu0 0.0
    %2559 = vmatprep.subr.mxu0 0.0
    %2560 = vmatpush1.msra.mxu0 0.0
    %2561 = vmatprep.subr.mxu0 0.0
    %2562 = vmatpush1.msra.mxu0 0.0
    %2563 = vmatprep.subr.mxu0 0.0
    %2564 = vmatpush1.msra.mxu0 0.0
    %2565 = vmatprep.subr.mxu0 0.0
    %2566 = vmatpush1.msra.mxu0 0.0
    %2567 = vmatprep.subr.mxu0 0.0
    %2568 = vmatpush1.msra.mxu0 0.0
    %2569 = vmatprep.subr.mxu0 0.0
    %2570 = vmatpush1.msra.mxu0 0.0
    %2571 = vmatprep.subr.mxu0 0.0
    %2572 = vmatpush1.msra.mxu0 0.0
    %2573 = vmatprep.subr.mxu0 0.0
    %2574 = vmatpush1.msra.mxu0 0.0
    %2575 = vmatprep.mubr.f32.mxu0 0.0
    %2576 = vmatmul.mubr.f32.gmra.mrb[0].mxu0 %v2509
    %v2577 = vpop.f32.mrb[0].mxu0
    %v2578 = vadd.f32 0.0, %v2577
    %v2579 = vpop.f32.mrb[0].mxu0
    %2580 = vdwg.mxu0
    %v2582 = vsel %vm241, %v1701, 0
    %2584 = vmatprep.subr.mxu0 0.0
    %2585 = vmatpush1.msra.mxu0 %v1518
    %2586 = vmatprep.subr.mxu0 0.0
    %2587 = vmatpush1.msra.mxu0 0.0
    %2588 = vmatprep.subr.mxu0 0.0
    %2589 = vmatpush1.msra.mxu0 0.0
    %2590 = vmatprep.subr.mxu0 0.0
    %2591 = vmatpush1.msra.mxu0 0.0
    %2592 = vmatprep.subr.mxu0 0.0
    %2593 = vmatpush1.msra.mxu0 0.0
    %2594 = vmatprep.subr.mxu0 0.0
    %2595 = vmatpush1.msra.mxu0 0.0
    %2596 = vmatprep.subr.mxu0 0.0
    %2597 = vmatpush1.msra.mxu0 0.0
    %2598 = vmatprep.subr.mxu0 0.0
    %2599 = vmatpush1.msra.mxu0 0.0
    %2600 = vmatprep.subr.mxu0 0.0
    %2601 = vmatpush1.msra.mxu0 0.0
    %2602 = vmatprep.subr.mxu0 0.0
    %2603 = vmatpush1.msra.mxu0 0.0
    %2604 = vmatprep.subr.mxu0 0.0
    %2605 = vmatpush1.msra.mxu0 0.0
    %2606 = vmatprep.subr.mxu0 0.0
    %2607 = vmatpush1.msra.mxu0 0.0
    %2608 = vmatprep.subr.mxu0 0.0
    %2609 = vmatpush1.msra.mxu0 0.0
    %2610 = vmatprep.subr.mxu0 0.0
    %2611 = vmatpush1.msra.mxu0 0.0
    %2612 = vmatprep.subr.mxu0 0.0
    %2613 = vmatpush1.msra.mxu0 0.0
    %2614 = vmatprep.subr.mxu0 0.0
    %2615 = vmatpush1.msra.mxu0 0.0
    %2616 = vmatprep.subr.mxu0 0.0
    %2617 = vmatpush1.msra.mxu0 0.0
    %2618 = vmatprep.subr.mxu0 0.0
    %2619 = vmatpush1.msra.mxu0 0.0
    %2620 = vmatprep.subr.mxu0 0.0
    %2621 = vmatpush1.msra.mxu0 0.0
    %2622 = vmatprep.subr.mxu0 0.0
    %2623 = vmatpush1.msra.mxu0 0.0
    %2624 = vmatprep.subr.mxu0 0.0
    %2625 = vmatpush1.msra.mxu0 0.0
    %2626 = vmatprep.subr.mxu0 0.0
    %2627 = vmatpush1.msra.mxu0 0.0
    %2628 = vmatprep.subr.mxu0 0.0
    %2629 = vmatpush1.msra.mxu0 0.0
    %2630 = vmatprep.subr.mxu0 0.0
    %2631 = vmatpush1.msra.mxu0 0.0
    %2632 = vmatprep.subr.mxu0 0.0
    %2633 = vmatpush1.msra.mxu0 0.0
    %2634 = vmatprep.subr.mxu0 0.0
    %2635 = vmatpush1.msra.mxu0 0.0
    %2636 = vmatprep.subr.mxu0 0.0
    %2637 = vmatpush1.msra.mxu0 0.0
    %2638 = vmatprep.subr.mxu0 0.0
    %2639 = vmatpush1.msra.mxu0 0.0
    %2640 = vmatprep.subr.mxu0 0.0
    %2641 = vmatpush1.msra.mxu0 0.0
    %2642 = vmatprep.subr.mxu0 0.0
    %2643 = vmatpush1.msra.mxu0 0.0
    %2644 = vmatprep.subr.mxu0 0.0
    %2645 = vmatpush1.msra.mxu0 0.0
    %2646 = vmatprep.subr.mxu0 0.0
    %2647 = vmatpush1.msra.mxu0 0.0
    %2648 = vmatprep.mubr.f32.mxu0 0.0
    %2649 = vmatmul.mubr.f32.gmra.mrb[0].mxu0 %v2582
    %v2650 = vpop.f32.mrb[0].mxu0
    %v2651 = vadd.f32 0.0, %v2650
    %v2652 = vpop.f32.mrb[0].mxu0
    %2653 = vdwg.mxu0
    %v2655 = vsel %vm241, %v1702, 0
    %2657 = vmatprep.subr.mxu0 0.0
    %2658 = vmatpush1.msra.mxu0 %v1520
    %2659 = vmatprep.subr.mxu0 0.0
    %2660 = vmatpush1.msra.mxu0 0.0
    %2661 = vmatprep.subr.mxu0 0.0
    %2662 = vmatpush1.msra.mxu0 0.0
    %2663 = vmatprep.subr.mxu0 0.0
    %2664 = vmatpush1.msra.mxu0 0.0
    %2665 = vmatprep.subr.mxu0 0.0
    %2666 = vmatpush1.msra.mxu0 0.0
    %2667 = vmatprep.subr.mxu0 0.0
    %2668 = vmatpush1.msra.mxu0 0.0
    %2669 = vmatprep.subr.mxu0 0.0
    %2670 = vmatpush1.msra.mxu0 0.0
    %2671 = vmatprep.subr.mxu0 0.0
    %2672 = vmatpush1.msra.mxu0 0.0
    %2673 = vmatprep.subr.mxu0 0.0
    %2674 = vmatpush1.msra.mxu0 0.0
    %2675 = vmatprep.subr.mxu0 0.0
    %2676 = vmatpush1.msra.mxu0 0.0
    %2677 = vmatprep.subr.mxu0 0.0
    %2678 = vmatpush1.msra.mxu0 0.0
    %2679 = vmatprep.subr.mxu0 0.0
    %2680 = vmatpush1.msra.mxu0 0.0
    %2681 = vmatprep.subr.mxu0 0.0
    %2682 = vmatpush1.msra.mxu0 0.0
    %2683 = vmatprep.subr.mxu0 0.0
    %2684 = vmatpush1.msra.mxu0 0.0
    %2685 = vmatprep.subr.mxu0 0.0
    %2686 = vmatpush1.msra.mxu0 0.0
    %2687 = vmatprep.subr.mxu0 0.0
    %2688 = vmatpush1.msra.mxu0 0.0
    %2689 = vmatprep.subr.mxu0 0.0
    %2690 = vmatpush1.msra.mxu0 0.0
    %2691 = vmatprep.subr.mxu0 0.0
    %2692 = vmatpush1.msra.mxu0 0.0
    %2693 = vmatprep.subr.mxu0 0.0
    %2694 = vmatpush1.msra.mxu0 0.0
    %2695 = vmatprep.subr.mxu0 0.0
    %2696 = vmatpush1.msra.mxu0 0.0
    %2697 = vmatprep.subr.mxu0 0.0
    %2698 = vmatpush1.msra.mxu0 0.0
    %2699 = vmatprep.subr.mxu0 0.0
    %2700 = vmatpush1.msra.mxu0 0.0
    %2701 = vmatprep.subr.mxu0 0.0
    %2702 = vmatpush1.msra.mxu0 0.0
    %2703 = vmatprep.subr.mxu0 0.0
    %2704 = vmatpush1.msra.mxu0 0.0
    %2705 = vmatprep.subr.mxu0 0.0
    %2706 = vmatpush1.msra.mxu0 0.0
    %2707 = vmatprep.subr.mxu0 0.0
    %2708 = vmatpush1.msra.mxu0 0.0
    %2709 = vmatprep.subr.mxu0 0.0
    %2710 = vmatpush1.msra.mxu0 0.0
    %2711 = vmatprep.subr.mxu0 0.0
    %2712 = vmatpush1.msra.mxu0 0.0
    %2713 = vmatprep.subr.mxu0 0.0
    %2714 = vmatpush1.msra.mxu0 0.0
    %2715 = vmatprep.subr.mxu0 0.0
    %2716 = vmatpush1.msra.mxu0 0.0
    %2717 = vmatprep.subr.mxu0 0.0
    %2718 = vmatpush1.msra.mxu0 0.0
    %2719 = vmatprep.subr.mxu0 0.0
    %2720 = vmatpush1.msra.mxu0 0.0
    %2721 = vmatprep.mubr.f32.mxu0 0.0
    %2722 = vmatmul.mubr.f32.gmra.mrb[0].mxu0 %v2655
    %v2723 = vpop.f32.mrb[0].mxu0
    %v2724 = vadd.f32 0.0, %v2723
    %v2725 = vpop.f32.mrb[0].mxu0
    %2726 = vdwg.mxu0
    %v2728 = vsel %vm241, %v1703, 0
    %2730 = vmatprep.subr.mxu0 0.0
    %2731 = vmatpush1.msra.mxu0 %v1524
    %2732 = vmatprep.subr.mxu0 0.0
    %2733 = vmatpush1.msra.mxu0 0.0
    %2734 = vmatprep.subr.mxu0 0.0
    %2735 = vmatpush1.msra.mxu0 0.0
    %2736 = vmatprep.subr.mxu0 0.0
    %2737 = vmatpush1.msra.mxu0 0.0
    %2738 = vmatprep.subr.mxu0 0.0
    %2739 = vmatpush1.msra.mxu0 0.0
    %2740 = vmatprep.subr.mxu0 0.0
    %2741 = vmatpush1.msra.mxu0 0.0
    %2742 = vmatprep.subr.mxu0 0.0
    %2743 = vmatpush1.msra.mxu0 0.0
    %2744 = vmatprep.subr.mxu0 0.0
    %2745 = vmatpush1.msra.mxu0 0.0
    %2746 = vmatprep.subr.mxu0 0.0
    %2747 = vmatpush1.msra.mxu0 0.0
    %2748 = vmatprep.subr.mxu0 0.0
    %2749 = vmatpush1.msra.mxu0 0.0
    %2750 = vmatprep.subr.mxu0 0.0
    %2751 = vmatpush1.msra.mxu0 0.0
    %2752 = vmatprep.subr.mxu0 0.0
    %2753 = vmatpush1.msra.mxu0 0.0
    %2754 = vmatprep.subr.mxu0 0.0
    %2755 = vmatpush1.msra.mxu0 0.0
    %2756 = vmatprep.subr.mxu0 0.0
    %2757 = vmatpush1.msra.mxu0 0.0
    %2758 = vmatprep.subr.mxu0 0.0
    %2759 = vmatpush1.msra.mxu0 0.0
    %2760 = vmatprep.subr.mxu0 0.0
    %2761 = vmatpush1.msra.mxu0 0.0
    %2762 = vmatprep.subr.mxu0 0.0
    %2763 = vmatpush1.msra.mxu0 0.0
    %2764 = vmatprep.subr.mxu0 0.0
    %2765 = vmatpush1.msra.mxu0 0.0
    %2766 = vmatprep.subr.mxu0 0.0
    %2767 = vmatpush1.msra.mxu0 0.0
    %2768 = vmatprep.subr.mxu0 0.0
    %2769 = vmatpush1.msra.mxu0 0.0
    %2770 = vmatprep.subr.mxu0 0.0
    %2771 = vmatpush1.msra.mxu0 0.0
    %2772 = vmatprep.subr.mxu0 0.0
    %2773 = vmatpush1.msra.mxu0 0.0
    %2774 = vmatprep.subr.mxu0 0.0
    %2775 = vmatpush1.msra.mxu0 0.0
    %2776 = vmatprep.subr.mxu0 0.0
    %2777 = vmatpush1.msra.mxu0 0.0
    %2778 = vmatprep.subr.mxu0 0.0
    %2779 = vmatpush1.msra.mxu0 0.0
    %2780 = vmatprep.subr.mxu0 0.0
    %2781 = vmatpush1.msra.mxu0 0.0
    %2782 = vmatprep.subr.mxu0 0.0
    %2783 = vmatpush1.msra.mxu0 0.0
    %2784 = vmatprep.subr.mxu0 0.0
    %2785 = vmatpush1.msra.mxu0 0.0
    %2786 = vmatprep.subr.mxu0 0.0
    %2787 = vmatpush1.msra.mxu0 0.0
    %2788 = vmatprep.subr.mxu0 0.0
    %2789 = vmatpush1.msra.mxu0 0.0
    %2790 = vmatprep.subr.mxu0 0.0
    %2791 = vmatpush1.msra.mxu0 0.0
    %2792 = vmatprep.subr.mxu0 0.0
    %2793 = vmatpush1.msra.mxu0 0.0
    %2794 = vmatprep.mubr.f32.mxu0 0.0
    %2795 = vmatmul.mubr.f32.gmra.mrb[0].mxu0 %v2728
    %v2796 = vpop.f32.mrb[0].mxu0
    %v2797 = vadd.f32 0.0, %v2796
    %v2798 = vpop.f32.mrb[0].mxu0
    %2799 = vdwg.mxu0
    %v2801 = vsel %vm241, %v1704, 0
    %2803 = vmatprep.subr.mxu0 0.0
    %2804 = vmatpush1.msra.mxu0 %v1526
    %2805 = vmatprep.subr.mxu0 0.0
    %2806 = vmatpush1.msra.mxu0 0.0
    %2807 = vmatprep.subr.mxu0 0.0
    %2808 = vmatpush1.msra.mxu0 0.0
    %2809 = vmatprep.subr.mxu0 0.0
    %2810 = vmatpush1.msra.mxu0 0.0
    %2811 = vmatprep.subr.mxu0 0.0
    %2812 = vmatpush1.msra.mxu0 0.0
    %2813 = vmatprep.subr.mxu0 0.0
    %2814 = vmatpush1.msra.mxu0 0.0
    %2815 = vmatprep.subr.mxu0 0.0
    %2816 = vmatpush1.msra.mxu0 0.0
    %2817 = vmatprep.subr.mxu0 0.0
    %2818 = vmatpush1.msra.mxu0 0.0
    %2819 = vmatprep.subr.mxu0 0.0
    %2820 = vmatpush1.msra.mxu0 0.0
    %2821 = vmatprep.subr.mxu0 0.0
    %2822 = vmatpush1.msra.mxu0 0.0
    %2823 = vmatprep.subr.mxu0 0.0
    %2824 = vmatpush1.msra.mxu0 0.0
    %2825 = vmatprep.subr.mxu0 0.0
    %2826 = vmatpush1.msra.mxu0 0.0
    %2827 = vmatprep.subr.mxu0 0.0
    %2828 = vmatpush1.msra.mxu0 0.0
    %2829 = vmatprep.subr.mxu0 0.0
    %2830 = vmatpush1.msra.mxu0 0.0
    %2831 = vmatprep.subr.mxu0 0.0
    %2832 = vmatpush1.msra.mxu0 0.0
    %2833 = vmatprep.subr.mxu0 0.0
    %2834 = vmatpush1.msra.mxu0 0.0
    %2835 = vmatprep.subr.mxu0 0.0
    %2836 = vmatpush1.msra.mxu0 0.0
    %2837 = vmatprep.subr.mxu0 0.0
    %2838 = vmatpush1.msra.mxu0 0.0
    %2839 = vmatprep.subr.mxu0 0.0
    %2840 = vmatpush1.msra.mxu0 0.0
    %2841 = vmatprep.subr.mxu0 0.0
    %2842 = vmatpush1.msra.mxu0 0.0
    %2843 = vmatprep.subr.mxu0 0.0
    %2844 = vmatpush1.msra.mxu0 0.0
    %2845 = vmatprep.subr.mxu0 0.0
    %2846 = vmatpush1.msra.mxu0 0.0
    %2847 = vmatprep.subr.mxu0 0.0
    %2848 = vmatpush1.msra.mxu0 0.0
    %2849 = vmatprep.subr.mxu0 0.0
    %2850 = vmatpush1.msra.mxu0 0.0
    %2851 = vmatprep.subr.mxu0 0.0
    %2852 = vmatpush1.msra.mxu0 0.0
    %2853 = vmatprep.subr.mxu0 0.0
    %2854 = vmatpush1.msra.mxu0 0.0
    %2855 = vmatprep.subr.mxu0 0.0
    %2856 = vmatpush1.msra.mxu0 0.0
    %2857 = vmatprep.subr.mxu0 0.0
    %2858 = vmatpush1.msra.mxu0 0.0
    %2859 = vmatprep.subr.mxu0 0.0
    %2860 = vmatpush1.msra.mxu0 0.0
    %2861 = vmatprep.subr.mxu0 0.0
    %2862 = vmatpush1.msra.mxu0 0.0
    %2863 = vmatprep.subr.mxu0 0.0
    %2864 = vmatpush1.msra.mxu0 0.0
    %2865 = vmatprep.subr.mxu0 0.0
    %2866 = vmatpush1.msra.mxu0 0.0
    %2867 = vmatprep.mubr.f32.mxu0 0.0
    %2868 = vmatmul.mubr.f32.gmra.mrb[0].mxu0 %v2801
    %v2869 = vpop.f32.mrb[0].mxu0
    %v2870 = vadd.f32 0.0, %v2869
    %v2871 = vpop.f32.mrb[0].mxu0
    %2872 = vdwg.mxu0
    %2874 = vrot.lane.b32.xlu0 %v52, 64
    %v2875 = vpop.permute.xlu0 %2874
    %v2878 = vsel %vm241, %v1921, 0
    %v2881 = vsel %vm241, %v1994, 0
    %2883 = vmatprep.subr.mxu0 0.0
    %2884 = vmatpush1.msra.mxu0 %v2875
    %2885 = vmatprep.subr.mxu0 0.0
    %2886 = vmatpush1.msra.mxu0 0.0
    %2887 = vmatprep.subr.mxu0 0.0
    %2888 = vmatpush1.msra.mxu0 0.0
    %2889 = vmatprep.subr.mxu0 0.0
    %2890 = vmatpush1.msra.mxu0 0.0
    %2891 = vmatprep.subr.mxu0 0.0
    %2892 = vmatpush1.msra.mxu0 0.0
    %2893 = vmatprep.subr.mxu0 0.0
    %2894 = vmatpush1.msra.mxu0 0.0
    %2895 = vmatprep.subr.mxu0 0.0
    %2896 = vmatpush1.msra.mxu0 0.0
    %2897 = vmatprep.subr.mxu0 0.0
    %2898 = vmatpush1.msra.mxu0 0.0
    %2899 = vmatprep.subr.mxu0 0.0
    %2900 = vmatpush1.msra.mxu0 0.0
    %2901 = vmatprep.subr.mxu0 0.0
    %2902 = vmatpush1.msra.mxu0 0.0
    %2903 = vmatprep.subr.mxu0 0.0
    %2904 = vmatpush1.msra.mxu0 0.0
    %2905 = vmatprep.subr.mxu0 0.0
    %2906 = vmatpush1.msra.mxu0 0.0
    %2907 = vmatprep.subr.mxu0 0.0
    %2908 = vmatpush1.msra.mxu0 0.0
    %2909 = vmatprep.subr.mxu0 0.0
    %2910 = vmatpush1.msra.mxu0 0.0
    %2911 = vmatprep.subr.mxu0 0.0
    %2912 = vmatpush1.msra.mxu0 0.0
    %2913 = vmatprep.subr.mxu0 0.0
    %2914 = vmatpush1.msra.mxu0 0.0
    %2915 = vmatprep.subr.mxu0 0.0
    %2916 = vmatpush1.msra.mxu0 0.0
    %2917 = vmatprep.subr.mxu0 0.0
    %2918 = vmatpush1.msra.mxu0 0.0
    %2919 = vmatprep.subr.mxu0 0.0
    %2920 = vmatpush1.msra.mxu0 0.0
    %2921 = vmatprep.subr.mxu0 0.0
    %2922 = vmatpush1.msra.mxu0 0.0
    %2923 = vmatprep.subr.mxu0 0.0
    %2924 = vmatpush1.msra.mxu0 0.0
    %2925 = vmatprep.subr.mxu0 0.0
    %2926 = vmatpush1.msra.mxu0 0.0
    %2927 = vmatprep.subr.mxu0 0.0
    %2928 = vmatpush1.msra.mxu0 0.0
    %2929 = vmatprep.subr.mxu0 0.0
    %2930 = vmatpush1.msra.mxu0 0.0
    %2931 = vmatprep.subr.mxu0 0.0
    %2932 = vmatpush1.msra.mxu0 0.0
    %2933 = vmatprep.subr.mxu0 0.0
    %2934 = vmatpush1.msra.mxu0 0.0
    %2935 = vmatprep.subr.mxu0 0.0
    %2936 = vmatpush1.msra.mxu0 0.0
    %2937 = vmatprep.subr.mxu0 0.0
    %2938 = vmatpush1.msra.mxu0 0.0
    %2939 = vmatprep.subr.mxu0 0.0
    %2940 = vmatpush1.msra.mxu0 0.0
    %2941 = vmatprep.subr.mxu0 0.0
    %2942 = vmatpush1.msra.mxu0 0.0
    %2943 = vmatprep.subr.mxu0 0.0
    %2944 = vmatpush1.msra.mxu0 0.0
    %2945 = vmatprep.subr.mxu0 0.0
    %2946 = vmatpush1.msra.mxu0 0.0
    %2947 = vmatprep.mubr.f32.mxu0 0.0
    %2948 = vmatmul.mubr.f32.gmra.mrb[0].mxu0 %v2878
    %v2949 = vpop.f32.mrb[0].mxu0
    %v2950 = vadd.f32 0.0, %v2949
    %v2951 = vpop.f32.mrb[0].mxu0
    %2952 = vmatprep.mubr.f32.mxu0 0.0
    %2953 = vmatmul.mubr.f32.gmra.mrb[0].mxu0 %v2881
    %v2954 = vpop.f32.mrb[0].mxu0
    %v2955 = vadd.f32 0.0, %v2954
    %v2956 = vpop.f32.mrb[0].mxu0
    %2957 = vdwg.mxu0
    %2959 = vrot.lane.b32.xlu0 %v50, 64
    %v2960 = vpop.permute.xlu0 %2959
    %v2963 = vsel %vm241, %v1775, 0
    %v2966 = vsel %vm241, %v1848, 0
    %2968 = vmatprep.subr.mxu0 0.0
    %2969 = vmatpush1.msra.mxu0 %v2960
    %2970 = vmatprep.subr.mxu0 0.0
    %2971 = vmatpush1.msra.mxu0 0.0
    %2972 = vmatprep.subr.mxu0 0.0
    %2973 = vmatpush1.msra.mxu0 0.0
    %2974 = vmatprep.subr.mxu0 0.0
    %2975 = vmatpush1.msra.mxu0 0.0
    %2976 = vmatprep.subr.mxu0 0.0
    %2977 = vmatpush1.msra.mxu0 0.0
    %2978 = vmatprep.subr.mxu0 0.0
    %2979 = vmatpush1.msra.mxu0 0.0
    %2980 = vmatprep.subr.mxu0 0.0
    %2981 = vmatpush1.msra.mxu0 0.0
    %2982 = vmatprep.subr.mxu0 0.0
    %2983 = vmatpush1.msra.mxu0 0.0
    %2984 = vmatprep.subr.mxu0 0.0
    %2985 = vmatpush1.msra.mxu0 0.0
    %2986 = vmatprep.subr.mxu0 0.0
    %2987 = vmatpush1.msra.mxu0 0.0
    %2988 = vmatprep.subr.mxu0 0.0
    %2989 = vmatpush1.msra.mxu0 0.0
    %2990 = vmatprep.subr.mxu0 0.0
    %2991 = vmatpush1.msra.mxu0 0.0
    %2992 = vmatprep.subr.mxu0 0.0
    %2993 = vmatpush1.msra.mxu0 0.0
    %2994 = vmatprep.subr.mxu0 0.0
    %2995 = vmatpush1.msra.mxu0 0.0
    %2996 = vmatprep.subr.mxu0 0.0
    %2997 = vmatpush1.msra.mxu0 0.0
    %2998 = vmatprep.subr.mxu0 0.0
    %2999 = vmatpush1.msra.mxu0 0.0
    %3000 = vmatprep.subr.mxu0 0.0
    %3001 = vmatpush1.msra.mxu0 0.0
    %3002 = vmatprep.subr.mxu0 0.0
    %3003 = vmatpush1.msra.mxu0 0.0
    %3004 = vmatprep.subr.mxu0 0.0
    %3005 = vmatpush1.msra.mxu0 0.0
    %3006 = vmatprep.subr.mxu0 0.0
    %3007 = vmatpush1.msra.mxu0 0.0
    %3008 = vmatprep.subr.mxu0 0.0
    %3009 = vmatpush1.msra.mxu0 0.0
    %3010 = vmatprep.subr.mxu0 0.0
    %3011 = vmatpush1.msra.mxu0 0.0
    %3012 = vmatprep.subr.mxu0 0.0
    %3013 = vmatpush1.msra.mxu0 0.0
    %3014 = vmatprep.subr.mxu0 0.0
    %3015 = vmatpush1.msra.mxu0 0.0
    %3016 = vmatprep.subr.mxu0 0.0
    %3017 = vmatpush1.msra.mxu0 0.0
    %3018 = vmatprep.subr.mxu0 0.0
    %3019 = vmatpush1.msra.mxu0 0.0
    %3020 = vmatprep.subr.mxu0 0.0
    %3021 = vmatpush1.msra.mxu0 0.0
    %3022 = vmatprep.subr.mxu0 0.0
    %3023 = vmatpush1.msra.mxu0 0.0
    %3024 = vmatprep.subr.mxu0 0.0
    %3025 = vmatpush1.msra.mxu0 0.0
    %3026 = vmatprep.subr.mxu0 0.0
    %3027 = vmatpush1.msra.mxu0 0.0
    %3028 = vmatprep.subr.mxu0 0.0
    %3029 = vmatpush1.msra.mxu0 0.0
    %3030 = vmatprep.subr.mxu0 0.0
    %3031 = vmatpush1.msra.mxu0 0.0
    %3032 = vmatprep.mubr.f32.mxu0 0.0
    %3033 = vmatmul.mubr.f32.gmra.mrb[0].mxu0 %v2963
    %v3034 = vpop.f32.mrb[0].mxu0
    %v3035 = vadd.f32 %v2950, %v3034
    %v3036 = vpop.f32.mrb[0].mxu0
    %3037 = vmatprep.mubr.f32.mxu0 0.0
    %3038 = vmatmul.mubr.f32.gmra.mrb[0].mxu0 %v2966
    %v3039 = vpop.f32.mrb[0].mxu0
    %v3040 = vadd.f32 %v2955, %v3039
    %v3041 = vpop.f32.mrb[0].mxu0
    %3042 = vdwg.mxu0
    %3044 = vrot.lane.b32.xlu0 %v54, 64
    %v3045 = vpop.permute.xlu0 %3044
    %v3048 = vsel %vm241, %v2067, 0
    %v3051 = vsel %vm241, %v2140, 0
    %3053 = vmatprep.subr.mxu0 0.0
    %3054 = vmatpush1.msra.mxu0 %v3045
    %3055 = vmatprep.subr.mxu0 0.0
    %3056 = vmatpush1.msra.mxu0 0.0
    %3057 = vmatprep.subr.mxu0 0.0
    %3058 = vmatpush1.msra.mxu0 0.0
    %3059 = vmatprep.subr.mxu0 0.0
    %3060 = vmatpush1.msra.mxu0 0.0
    %3061 = vmatprep.subr.mxu0 0.0
    %3062 = vmatpush1.msra.mxu0 0.0
    %3063 = vmatprep.subr.mxu0 0.0
    %3064 = vmatpush1.msra.mxu0 0.0
    %3065 = vmatprep.subr.mxu0 0.0
    %3066 = vmatpush1.msra.mxu0 0.0
    %3067 = vmatprep.subr.mxu0 0.0
    %3068 = vmatpush1.msra.mxu0 0.0
    %3069 = vmatprep.subr.mxu0 0.0
    %3070 = vmatpush1.msra.mxu0 0.0
    %3071 = vmatprep.subr.mxu0 0.0
    %3072 = vmatpush1.msra.mxu0 0.0
    %3073 = vmatprep.subr.mxu0 0.0
    %3074 = vmatpush1.msra.mxu0 0.0
    %3075 = vmatprep.subr.mxu0 0.0
    %3076 = vmatpush1.msra.mxu0 0.0
    %3077 = vmatprep.subr.mxu0 0.0
    %3078 = vmatpush1.msra.mxu0 0.0
    %3079 = vmatprep.subr.mxu0 0.0
    %3080 = vmatpush1.msra.mxu0 0.0
    %3081 = vmatprep.subr.mxu0 0.0
    %3082 = vmatpush1.msra.mxu0 0.0
    %3083 = vmatprep.subr.mxu0 0.0
    %3084 = vmatpush1.msra.mxu0 0.0
    %3085 = vmatprep.subr.mxu0 0.0
    %3086 = vmatpush1.msra.mxu0 0.0
    %3087 = vmatprep.subr.mxu0 0.0
    %3088 = vmatpush1.msra.mxu0 0.0
    %3089 = vmatprep.subr.mxu0 0.0
    %3090 = vmatpush1.msra.mxu0 0.0
    %3091 = vmatprep.subr.mxu0 0.0
    %3092 = vmatpush1.msra.mxu0 0.0
    %3093 = vmatprep.subr.mxu0 0.0
    %3094 = vmatpush1.msra.mxu0 0.0
    %3095 = vmatprep.subr.mxu0 0.0
    %3096 = vmatpush1.msra.mxu0 0.0
    %3097 = vmatprep.subr.mxu0 0.0
    %3098 = vmatpush1.msra.mxu0 0.0
    %3099 = vmatprep.subr.mxu0 0.0
    %3100 = vmatpush1.msra.mxu0 0.0
    %3101 = vmatprep.subr.mxu0 0.0
    %3102 = vmatpush1.msra.mxu0 0.0
    %3103 = vmatprep.subr.mxu0 0.0
    %3104 = vmatpush1.msra.mxu0 0.0
    %3105 = vmatprep.subr.mxu0 0.0
    %3106 = vmatpush1.msra.mxu0 0.0
    %3107 = vmatprep.subr.mxu0 0.0
    %3108 = vmatpush1.msra.mxu0 0.0
    %3109 = vmatprep.subr.mxu0 0.0
    %3110 = vmatpush1.msra.mxu0 0.0
    %3111 = vmatprep.subr.mxu0 0.0
    %3112 = vmatpush1.msra.mxu0 0.0
    %3113 = vmatprep.subr.mxu0 0.0
    %3114 = vmatpush1.msra.mxu0 0.0
    %3115 = vmatprep.subr.mxu0 0.0
    %3116 = vmatpush1.msra.mxu0 0.0
    %3117 = vmatprep.mubr.f32.mxu0 0.0
    %3118 = vmatmul.mubr.f32.gmra.mrb[0].mxu0 %v3048
    %v3119 = vpop.f32.mrb[0].mxu0
    %v3120 = vadd.f32 0.0, %v3119
    %v3121 = vpop.f32.mrb[0].mxu0
    %3122 = vmatprep.mubr.f32.mxu0 0.0
    %3123 = vmatmul.mubr.f32.gmra.mrb[0].mxu0 %v3051
    %v3124 = vpop.f32.mrb[0].mxu0
    %v3125 = vadd.f32 0.0, %v3124
    %v3126 = vpop.f32.mrb[0].mxu0
    %3127 = vdwg.mxu0
    %v3128 = vadd.f32 %v3035, %v3120
    %v3129 = vadd.f32 %v3040, %v3125
    %3131 = vrot.lane.b32.xlu0 %v56, 64
    %v3132 = vpop.permute.xlu0 %3131
    %v3135 = vsel %vm241, %v2213, 0
    %v3138 = vsel %vm241, %v2286, 0
    %3140 = vmatprep.subr.mxu0 0.0
    %3141 = vmatpush1.msra.mxu0 %v3132
    %3142 = vmatprep.subr.mxu0 0.0
    %3143 = vmatpush1.msra.mxu0 0.0
    %3144 = vmatprep.subr.mxu0 0.0
    %3145 = vmatpush1.msra.mxu0 0.0
    %3146 = vmatprep.subr.mxu0 0.0
    %3147 = vmatpush1.msra.mxu0 0.0
    %3148 = vmatprep.subr.mxu0 0.0
    %3149 = vmatpush1.msra.mxu0 0.0
    %3150 = vmatprep.subr.mxu0 0.0
    %3151 = vmatpush1.msra.mxu0 0.0
    %3152 = vmatprep.subr.mxu0 0.0
    %3153 = vmatpush1.msra.mxu0 0.0
    %3154 = vmatprep.subr.mxu0 0.0
    %3155 = vmatpush1.msra.mxu0 0.0
    %3156 = vmatprep.subr.mxu0 0.0
    %3157 = vmatpush1.msra.mxu0 0.0
    %3158 = vmatprep.subr.mxu0 0.0
    %3159 = vmatpush1.msra.mxu0 0.0
    %3160 = vmatprep.subr.mxu0 0.0
    %3161 = vmatpush1.msra.mxu0 0.0
    %3162 = vmatprep.subr.mxu0 0.0
    %3163 = vmatpush1.msra.mxu0 0.0
    %3164 = vmatprep.subr.mxu0 0.0
    %3165 = vmatpush1.msra.mxu0 0.0
    %3166 = vmatprep.subr.mxu0 0.0
    %3167 = vmatpush1.msra.mxu0 0.0
    %3168 = vmatprep.subr.mxu0 0.0
    %3169 = vmatpush1.msra.mxu0 0.0
    %3170 = vmatprep.subr.mxu0 0.0
    %3171 = vmatpush1.msra.mxu0 0.0
    %3172 = vmatprep.subr.mxu0 0.0
    %3173 = vmatpush1.msra.mxu0 0.0
    %3174 = vmatprep.subr.mxu0 0.0
    %3175 = vmatpush1.msra.mxu0 0.0
    %3176 = vmatprep.subr.mxu0 0.0
    %3177 = vmatpush1.msra.mxu0 0.0
    %3178 = vmatprep.subr.mxu0 0.0
    %3179 = vmatpush1.msra.mxu0 0.0
    %3180 = vmatprep.subr.mxu0 0.0
    %3181 = vmatpush1.msra.mxu0 0.0
    %3182 = vmatprep.subr.mxu0 0.0
    %3183 = vmatpush1.msra.mxu0 0.0
    %3184 = vmatprep.subr.mxu0 0.0
    %3185 = vmatpush1.msra.mxu0 0.0
    %3186 = vmatprep.subr.mxu0 0.0
    %3187 = vmatpush1.msra.mxu0 0.0
    %3188 = vmatprep.subr.mxu0 0.0
    %3189 = vmatpush1.msra.mxu0 0.0
    %3190 = vmatprep.subr.mxu0 0.0
    %3191 = vmatpush1.msra.mxu0 0.0
    %3192 = vmatprep.subr.mxu0 0.0
    %3193 = vmatpush1.msra.mxu0 0.0
    %3194 = vmatprep.subr.mxu0 0.0
    %3195 = vmatpush1.msra.mxu0 0.0
    %3196 = vmatprep.subr.mxu0 0.0
    %3197 = vmatpush1.msra.mxu0 0.0
    %3198 = vmatprep.subr.mxu0 0.0
    %3199 = vmatpush1.msra.mxu0 0.0
    %3200 = vmatprep.subr.mxu0 0.0
    %3201 = vmatpush1.msra.mxu0 0.0
    %3202 = vmatprep.subr.mxu0 0.0
    %3203 = vmatpush1.msra.mxu0 0.0
    %3204 = vmatprep.mubr.f32.mxu0 0.0
    %3205 = vmatmul.mubr.f32.gmra.mrb[0].mxu0 %v3135
    %v3206 = vpop.f32.mrb[0].mxu0
    %v3207 = vadd.f32 0.0, %v3206
    %v3208 = vpop.f32.mrb[0].mxu0
    %3209 = vmatprep.mubr.f32.mxu0 0.0
    %3210 = vmatmul.mubr.f32.gmra.mrb[0].mxu0 %v3138
    %v3211 = vpop.f32.mrb[0].mxu0
    %v3212 = vadd.f32 0.0, %v3211
    %v3213 = vpop.f32.mrb[0].mxu0
    %3214 = vdwg.mxu0
    %v3215 = vadd.f32 %v3128, %v3207
    %v3216 = vadd.f32 %v3129, %v3212
    %3218 = vrot.lane.b32.xlu0 %v58, 64
    %v3219 = vpop.permute.xlu0 %3218
    %v3222 = vsel %vm241, %v2359, 0
    %v3225 = vsel %vm241, %v2432, 0
    %3227 = vmatprep.subr.mxu0 0.0
    %3228 = vmatpush1.msra.mxu0 %v3219
    %3229 = vmatprep.subr.mxu0 0.0
    %3230 = vmatpush1.msra.mxu0 0.0
    %3231 = vmatprep.subr.mxu0 0.0
    %3232 = vmatpush1.msra.mxu0 0.0
    %3233 = vmatprep.subr.mxu0 0.0
    %3234 = vmatpush1.msra.mxu0 0.0
    %3235 = vmatprep.subr.mxu0 0.0
    %3236 = vmatpush1.msra.mxu0 0.0
    %3237 = vmatprep.subr.mxu0 0.0
    %3238 = vmatpush1.msra.mxu0 0.0
    %3239 = vmatprep.subr.mxu0 0.0
    %3240 = vmatpush1.msra.mxu0 0.0
    %3241 = vmatprep.subr.mxu0 0.0
    %3242 = vmatpush1.msra.mxu0 0.0
    %3243 = vmatprep.subr.mxu0 0.0
    %3244 = vmatpush1.msra.mxu0 0.0
    %3245 = vmatprep.subr.mxu0 0.0
    %3246 = vmatpush1.msra.mxu0 0.0
    %3247 = vmatprep.subr.mxu0 0.0
    %3248 = vmatpush1.msra.mxu0 0.0
    %3249 = vmatprep.subr.mxu0 0.0
    %3250 = vmatpush1.msra.mxu0 0.0
    %3251 = vmatprep.subr.mxu0 0.0
    %3252 = vmatpush1.msra.mxu0 0.0
    %3253 = vmatprep.subr.mxu0 0.0
    %3254 = vmatpush1.msra.mxu0 0.0
    %3255 = vmatprep.subr.mxu0 0.0
    %3256 = vmatpush1.msra.mxu0 0.0
    %3257 = vmatprep.subr.mxu0 0.0
    %3258 = vmatpush1.msra.mxu0 0.0
    %3259 = vmatprep.subr.mxu0 0.0
    %3260 = vmatpush1.msra.mxu0 0.0
    %3261 = vmatprep.subr.mxu0 0.0
    %3262 = vmatpush1.msra.mxu0 0.0
    %3263 = vmatprep.subr.mxu0 0.0
    %3264 = vmatpush1.msra.mxu0 0.0
    %3265 = vmatprep.subr.mxu0 0.0
    %3266 = vmatpush1.msra.mxu0 0.0
    %3267 = vmatprep.subr.mxu0 0.0
    %3268 = vmatpush1.msra.mxu0 0.0
    %3269 = vmatprep.subr.mxu0 0.0
    %3270 = vmatpush1.msra.mxu0 0.0
    %3271 = vmatprep.subr.mxu0 0.0
    %3272 = vmatpush1.msra.mxu0 0.0
    %3273 = vmatprep.subr.mxu0 0.0
    %3274 = vmatpush1.msra.mxu0 0.0
    %3275 = vmatprep.subr.mxu0 0.0
    %3276 = vmatpush1.msra.mxu0 0.0
    %3277 = vmatprep.subr.mxu0 0.0
    %3278 = vmatpush1.msra.mxu0 0.0
    %3279 = vmatprep.subr.mxu0 0.0
    %3280 = vmatpush1.msra.mxu0 0.0
    %3281 = vmatprep.subr.mxu0 0.0
    %3282 = vmatpush1.msra.mxu0 0.0
    %3283 = vmatprep.subr.mxu0 0.0
    %3284 = vmatpush1.msra.mxu0 0.0
    %3285 = vmatprep.subr.mxu0 0.0
    %3286 = vmatpush1.msra.mxu0 0.0
    %3287 = vmatprep.subr.mxu0 0.0
    %3288 = vmatpush1.msra.mxu0 0.0
    %3289 = vmatprep.subr.mxu0 0.0
    %3290 = vmatpush1.msra.mxu0 0.0
    %3291 = vmatprep.mubr.f32.mxu0 0.0
    %3292 = vmatmul.mubr.f32.gmra.mrb[0].mxu0 %v3222
    %v3293 = vpop.f32.mrb[0].mxu0
    %v3294 = vadd.f32 0.0, %v3293
    %v3295 = vpop.f32.mrb[0].mxu0
    %3296 = vmatprep.mubr.f32.mxu0 0.0
    %3297 = vmatmul.mubr.f32.gmra.mrb[0].mxu0 %v3225
    %v3298 = vpop.f32.mrb[0].mxu0
    %v3299 = vadd.f32 0.0, %v3298
    %v3300 = vpop.f32.mrb[0].mxu0
    %3301 = vdwg.mxu0
    %v3302 = vadd.f32 %v3215, %v3294
    %v3303 = vadd.f32 %v3216, %v3299
    %3305 = vrot.lane.b32.xlu0 %v60, 64
    %v3306 = vpop.permute.xlu0 %3305
    %v3309 = vsel %vm241, %v2505, 0
    %v3312 = vsel %vm241, %v2578, 0
    %3314 = vmatprep.subr.mxu0 0.0
    %3315 = vmatpush1.msra.mxu0 %v3306
    %3316 = vmatprep.subr.mxu0 0.0
    %3317 = vmatpush1.msra.mxu0 0.0
    %3318 = vmatprep.subr.mxu0 0.0
    %3319 = vmatpush1.msra.mxu0 0.0
    %3320 = vmatprep.subr.mxu0 0.0
    %3321 = vmatpush1.msra.mxu0 0.0
    %3322 = vmatprep.subr.mxu0 0.0
    %3323 = vmatpush1.msra.mxu0 0.0
    %3324 = vmatprep.subr.mxu0 0.0
    %3325 = vmatpush1.msra.mxu0 0.0
    %3326 = vmatprep.subr.mxu0 0.0
    %3327 = vmatpush1.msra.mxu0 0.0
    %3328 = vmatprep.subr.mxu0 0.0
    %3329 = vmatpush1.msra.mxu0 0.0
    %3330 = vmatprep.subr.mxu0 0.0
    %3331 = vmatpush1.msra.mxu0 0.0
    %3332 = vmatprep.subr.mxu0 0.0
    %3333 = vmatpush1.msra.mxu0 0.0
    %3334 = vmatprep.subr.mxu0 0.0
    %3335 = vmatpush1.msra.mxu0 0.0
    %3336 = vmatprep.subr.mxu0 0.0
    %3337 = vmatpush1.msra.mxu0 0.0
    %3338 = vmatprep.subr.mxu0 0.0
    %3339 = vmatpush1.msra.mxu0 0.0
    %3340 = vmatprep.subr.mxu0 0.0
    %3341 = vmatpush1.msra.mxu0 0.0
    %3342 = vmatprep.subr.mxu0 0.0
    %3343 = vmatpush1.msra.mxu0 0.0
    %3344 = vmatprep.subr.mxu0 0.0
    %3345 = vmatpush1.msra.mxu0 0.0
    %3346 = vmatprep.subr.mxu0 0.0
    %3347 = vmatpush1.msra.mxu0 0.0
    %3348 = vmatprep.subr.mxu0 0.0
    %3349 = vmatpush1.msra.mxu0 0.0
    %3350 = vmatprep.subr.mxu0 0.0
    %3351 = vmatpush1.msra.mxu0 0.0
    %3352 = vmatprep.subr.mxu0 0.0
    %3353 = vmatpush1.msra.mxu0 0.0
    %3354 = vmatprep.subr.mxu0 0.0
    %3355 = vmatpush1.msra.mxu0 0.0
    %3356 = vmatprep.subr.mxu0 0.0
    %3357 = vmatpush1.msra.mxu0 0.0
    %3358 = vmatprep.subr.mxu0 0.0
    %3359 = vmatpush1.msra.mxu0 0.0
    %3360 = vmatprep.subr.mxu0 0.0
    %3361 = vmatpush1.msra.mxu0 0.0
    %3362 = vmatprep.subr.mxu0 0.0
    %3363 = vmatpush1.msra.mxu0 0.0
    %3364 = vmatprep.subr.mxu0 0.0
    %3365 = vmatpush1.msra.mxu0 0.0
    %3366 = vmatprep.subr.mxu0 0.0
    %3367 = vmatpush1.msra.mxu0 0.0
    %3368 = vmatprep.subr.mxu0 0.0
    %3369 = vmatpush1.msra.mxu0 0.0
    %3370 = vmatprep.subr.mxu0 0.0
    %3371 = vmatpush1.msra.mxu0 0.0
    %3372 = vmatprep.subr.mxu0 0.0
    %3373 = vmatpush1.msra.mxu0 0.0
    %3374 = vmatprep.subr.mxu0 0.0
    %3375 = vmatpush1.msra.mxu0 0.0
    %3376 = vmatprep.subr.mxu0 0.0
    %3377 = vmatpush1.msra.mxu0 0.0
    %3378 = vmatprep.mubr.f32.mxu0 0.0
    %3379 = vmatmul.mubr.f32.gmra.mrb[0].mxu0 %v3309
    %v3380 = vpop.f32.mrb[0].mxu0
    %v3381 = vadd.f32 0.0, %v3380
    %v3382 = vpop.f32.mrb[0].mxu0
    %3383 = vmatprep.mubr.f32.mxu0 0.0
    %3384 = vmatmul.mubr.f32.gmra.mrb[0].mxu0 %v3312
    %v3385 = vpop.f32.mrb[0].mxu0
    %v3386 = vadd.f32 0.0, %v3385
    %v3387 = vpop.f32.mrb[0].mxu0
    %3388 = vdwg.mxu0
    %v3389 = vadd.f32 %v3302, %v3381
    %v3390 = vadd.f32 %v3303, %v3386
    %3392 = vrot.lane.b32.xlu0 %v62, 64
    %v3393 = vpop.permute.xlu0 %3392
    %v3396 = vsel %vm241, %v2651, 0
    %v3399 = vsel %vm241, %v2724, 0
    %3401 = vmatprep.subr.mxu0 0.0
    %3402 = vmatpush1.msra.mxu0 %v3393
    %3403 = vmatprep.subr.mxu0 0.0
    %3404 = vmatpush1.msra.mxu0 0.0
    %3405 = vmatprep.subr.mxu0 0.0
    %3406 = vmatpush1.msra.mxu0 0.0
    %3407 = vmatprep.subr.mxu0 0.0
    %3408 = vmatpush1.msra.mxu0 0.0
    %3409 = vmatprep.subr.mxu0 0.0
    %3410 = vmatpush1.msra.mxu0 0.0
    %3411 = vmatprep.subr.mxu0 0.0
    %3412 = vmatpush1.msra.mxu0 0.0
    %3413 = vmatprep.subr.mxu0 0.0
    %3414 = vmatpush1.msra.mxu0 0.0
    %3415 = vmatprep.subr.mxu0 0.0
    %3416 = vmatpush1.msra.mxu0 0.0
    %3417 = vmatprep.subr.mxu0 0.0
    %3418 = vmatpush1.msra.mxu0 0.0
    %3419 = vmatprep.subr.mxu0 0.0
    %3420 = vmatpush1.msra.mxu0 0.0
    %3421 = vmatprep.subr.mxu0 0.0
    %3422 = vmatpush1.msra.mxu0 0.0
    %3423 = vmatprep.subr.mxu0 0.0
    %3424 = vmatpush1.msra.mxu0 0.0
    %3425 = vmatprep.subr.mxu0 0.0
    %3426 = vmatpush1.msra.mxu0 0.0
    %3427 = vmatprep.subr.mxu0 0.0
    %3428 = vmatpush1.msra.mxu0 0.0
    %3429 = vmatprep.subr.mxu0 0.0
    %3430 = vmatpush1.msra.mxu0 0.0
    %3431 = vmatprep.subr.mxu0 0.0
    %3432 = vmatpush1.msra.mxu0 0.0
    %3433 = vmatprep.subr.mxu0 0.0
    %3434 = vmatpush1.msra.mxu0 0.0
    %3435 = vmatprep.subr.mxu0 0.0
    %3436 = vmatpush1.msra.mxu0 0.0
    %3437 = vmatprep.subr.mxu0 0.0
    %3438 = vmatpush1.msra.mxu0 0.0
    %3439 = vmatprep.subr.mxu0 0.0
    %3440 = vmatpush1.msra.mxu0 0.0
    %3441 = vmatprep.subr.mxu0 0.0
    %3442 = vmatpush1.msra.mxu0 0.0
    %3443 = vmatprep.subr.mxu0 0.0
    %3444 = vmatpush1.msra.mxu0 0.0
    %3445 = vmatprep.subr.mxu0 0.0
    %3446 = vmatpush1.msra.mxu0 0.0
    %3447 = vmatprep.subr.mxu0 0.0
    %3448 = vmatpush1.msra.mxu0 0.0
    %3449 = vmatprep.subr.mxu0 0.0
    %3450 = vmatpush1.msra.mxu0 0.0
    %3451 = vmatprep.subr.mxu0 0.0
    %3452 = vmatpush1.msra.mxu0 0.0
    %3453 = vmatprep.subr.mxu0 0.0
    %3454 = vmatpush1.msra.mxu0 0.0
    %3455 = vmatprep.subr.mxu0 0.0
    %3456 = vmatpush1.msra.mxu0 0.0
    %3457 = vmatprep.subr.mxu0 0.0
    %3458 = vmatpush1.msra.mxu0 0.0
    %3459 = vmatprep.subr.mxu0 0.0
    %3460 = vmatpush1.msra.mxu0 0.0
    %3461 = vmatprep.subr.mxu0 0.0
    %3462 = vmatpush1.msra.mxu0 0.0
    %3463 = vmatprep.subr.mxu0 0.0
    %3464 = vmatpush1.msra.mxu0 0.0
    %3465 = vmatprep.mubr.f32.mxu0 0.0
    %3466 = vmatmul.mubr.f32.gmra.mrb[0].mxu0 %v3396
    %v3467 = vpop.f32.mrb[0].mxu0
    %v3468 = vadd.f32 0.0, %v3467
    %v3469 = vpop.f32.mrb[0].mxu0
    %3470 = vmatprep.mubr.f32.mxu0 0.0
    %3471 = vmatmul.mubr.f32.gmra.mrb[0].mxu0 %v3399
    %v3472 = vpop.f32.mrb[0].mxu0
    %v3473 = vadd.f32 0.0, %v3472
    %v3474 = vpop.f32.mrb[0].mxu0
    %3475 = vdwg.mxu0
    %v3476 = vadd.f32 %v3389, %v3468
    %v3477 = vadd.f32 %v3390, %v3473
    %3479 = vrot.lane.b32.xlu0 %v64, 64
    %v3480 = vpop.permute.xlu0 %3479
    %v3483 = vsel %vm241, %v2797, 0
    %v3486 = vsel %vm241, %v2870, 0
    %3488 = vmatprep.subr.mxu0 0.0
    %3489 = vmatpush1.msra.mxu0 %v3480
    %3490 = vmatprep.subr.mxu0 0.0
    %3491 = vmatpush1.msra.mxu0 0.0
    %3492 = vmatprep.subr.mxu0 0.0
    %3493 = vmatpush1.msra.mxu0 0.0
    %3494 = vmatprep.subr.mxu0 0.0
    %3495 = vmatpush1.msra.mxu0 0.0
    %3496 = vmatprep.subr.mxu0 0.0
    %3497 = vmatpush1.msra.mxu0 0.0
    %3498 = vmatprep.subr.mxu0 0.0
    %3499 = vmatpush1.msra.mxu0 0.0
    %3500 = vmatprep.subr.mxu0 0.0
    %3501 = vmatpush1.msra.mxu0 0.0
    %3502 = vmatprep.subr.mxu0 0.0
    %3503 = vmatpush1.msra.mxu0 0.0
    %3504 = vmatprep.subr.mxu0 0.0
    %3505 = vmatpush1.msra.mxu0 0.0
    %3506 = vmatprep.subr.mxu0 0.0
    %3507 = vmatpush1.msra.mxu0 0.0
    %3508 = vmatprep.subr.mxu0 0.0
    %3509 = vmatpush1.msra.mxu0 0.0
    %3510 = vmatprep.subr.mxu0 0.0
    %3511 = vmatpush1.msra.mxu0 0.0
    %3512 = vmatprep.subr.mxu0 0.0
    %3513 = vmatpush1.msra.mxu0 0.0
    %3514 = vmatprep.subr.mxu0 0.0
    %3515 = vmatpush1.msra.mxu0 0.0
    %3516 = vmatprep.subr.mxu0 0.0
    %3517 = vmatpush1.msra.mxu0 0.0
    %3518 = vmatprep.subr.mxu0 0.0
    %3519 = vmatpush1.msra.mxu0 0.0
    %3520 = vmatprep.subr.mxu0 0.0
    %3521 = vmatpush1.msra.mxu0 0.0
    %3522 = vmatprep.subr.mxu0 0.0
    %3523 = vmatpush1.msra.mxu0 0.0
    %3524 = vmatprep.subr.mxu0 0.0
    %3525 = vmatpush1.msra.mxu0 0.0
    %3526 = vmatprep.subr.mxu0 0.0
    %3527 = vmatpush1.msra.mxu0 0.0
    %3528 = vmatprep.subr.mxu0 0.0
    %3529 = vmatpush1.msra.mxu0 0.0
    %3530 = vmatprep.subr.mxu0 0.0
    %3531 = vmatpush1.msra.mxu0 0.0
    %3532 = vmatprep.subr.mxu0 0.0
    %3533 = vmatpush1.msra.mxu0 0.0
    %3534 = vmatprep.subr.mxu0 0.0
    %3535 = vmatpush1.msra.mxu0 0.0
    %3536 = vmatprep.subr.mxu0 0.0
    %3537 = vmatpush1.msra.mxu0 0.0
    %3538 = vmatprep.subr.mxu0 0.0
    %3539 = vmatpush1.msra.mxu0 0.0
    %3540 = vmatprep.subr.mxu0 0.0
    %3541 = vmatpush1.msra.mxu0 0.0
    %3542 = vmatprep.subr.mxu0 0.0
    %3543 = vmatpush1.msra.mxu0 0.0
    %3544 = vmatprep.subr.mxu0 0.0
    %3545 = vmatpush1.msra.mxu0 0.0
    %3546 = vmatprep.subr.mxu0 0.0
    %3547 = vmatpush1.msra.mxu0 0.0
    %3548 = vmatprep.subr.mxu0 0.0
    %3549 = vmatpush1.msra.mxu0 0.0
    %3550 = vmatprep.subr.mxu0 0.0
    %3551 = vmatpush1.msra.mxu0 0.0
    %3552 = vmatprep.mubr.f32.mxu0 0.0
    %3553 = vmatmul.mubr.f32.gmra.mrb[0].mxu0 %v3483
    %v3554 = vpop.f32.mrb[0].mxu0
    %v3555 = vadd.f32 0.0, %v3554
    %v3556 = vpop.f32.mrb[0].mxu0
    %3557 = vmatprep.mubr.f32.mxu0 0.0
    %3558 = vmatmul.mubr.f32.gmra.mrb[0].mxu0 %v3486
    %v3559 = vpop.f32.mrb[0].mxu0
    %v3560 = vadd.f32 0.0, %v3559
    %v3561 = vpop.f32.mrb[0].mxu0
    %3562 = vdwg.mxu0
    %v3563 = vadd.f32 %v3476, %v3555
    %v3564 = vadd.f32 %v3477, %v3560
    %v3566 = vlaneseq
    %v3567 = vshrl.u32 %v3566, 7
    %v3568 = vsub.s32 0, %v3567
    %v3569 = vrot.slane %v131, %v3568
    %3570 = vrot.lane.b32.xlu0 %v3569, 64
    %v3571 = vpop.permute.xlu0 %3570
    %v3573 = vadd.f32 %v3563, %v3571
    %v3574 = vadd.f32 %v3564, %v3571
    %v3575 = vadd.f32 %v137, %v3573
    %v3576 = vadd.f32 %v138, %v3574
    %v3578 = vsel %vm154, %v3575, 0
    %v3581 = vsel %vm154, %v3576, 0
    %3583 = vmatprep.subr.mxu0 0.0
    %3584 = vmatpush1.msra.mxu0 1.0
    %3585 = vmatprep.subr.mxu0 0.0
    %3586 = vmatpush1.msra.mxu0 1.0
    %3587 = vmatprep.subr.mxu0 0.0
    %3588 = vmatpush1.msra.mxu0 1.0
    %3589 = vmatprep.subr.mxu0 0.0
    %3590 = vmatpush1.msra.mxu0 1.0
    %3591 = vmatprep.subr.mxu0 0.0
    %3592 = vmatpush1.msra.mxu0 1.0
    %3593 = vmatprep.subr.mxu0 0.0
    %3594 = vmatpush1.msra.mxu0 1.0
    %3595 = vmatprep.subr.mxu0 0.0
    %3596 = vmatpush1.msra.mxu0 1.0
    %3597 = vmatprep.subr.mxu0 0.0
    %3598 = vmatpush1.msra.mxu0 1.0
    %3599 = vmatprep.subr.mxu0 0.0
    %3600 = vmatpush1.msra.mxu0 0.0
    %3601 = vmatprep.subr.mxu0 0.0
    %3602 = vmatpush1.msra.mxu0 0.0
    %3603 = vmatprep.subr.mxu0 0.0
    %3604 = vmatpush1.msra.mxu0 0.0
    %3605 = vmatprep.subr.mxu0 0.0
    %3606 = vmatpush1.msra.mxu0 0.0
    %3607 = vmatprep.subr.mxu0 0.0
    %3608 = vmatpush1.msra.mxu0 0.0
    %3609 = vmatprep.subr.mxu0 0.0
    %3610 = vmatpush1.msra.mxu0 0.0
    %3611 = vmatprep.subr.mxu0 0.0
    %3612 = vmatpush1.msra.mxu0 0.0
    %3613 = vmatprep.subr.mxu0 0.0
    %3614 = vmatpush1.msra.mxu0 0.0
    %3615 = vmatprep.subr.mxu0 0.0
    %3616 = vmatpush1.msra.mxu0 0.0
    %3617 = vmatprep.subr.mxu0 0.0
    %3618 = vmatpush1.msra.mxu0 0.0
    %3619 = vmatprep.subr.mxu0 0.0
    %3620 = vmatpush1.msra.mxu0 0.0
    %3621 = vmatprep.subr.mxu0 0.0
    %3622 = vmatpush1.msra.mxu0 0.0
    %3623 = vmatprep.subr.mxu0 0.0
    %3624 = vmatpush1.msra.mxu0 0.0
    %3625 = vmatprep.subr.mxu0 0.0
    %3626 = vmatpush1.msra.mxu0 0.0
    %3627 = vmatprep.subr.mxu0 0.0
    %3628 = vmatpush1.msra.mxu0 0.0
    %3629 = vmatprep.subr.mxu0 0.0
    %3630 = vmatpush1.msra.mxu0 0.0
    %3631 = vmatprep.subr.mxu0 0.0
    %3632 = vmatpush1.msra.mxu0 0.0
    %3633 = vmatprep.subr.mxu0 0.0
    %3634 = vmatpush1.msra.mxu0 0.0
    %3635 = vmatprep.subr.mxu0 0.0
    %3636 = vmatpush1.msra.mxu0 0.0
    %3637 = vmatprep.subr.mxu0 0.0
    %3638 = vmatpush1.msra.mxu0 0.0
    %3639 = vmatprep.subr.mxu0 0.0
    %3640 = vmatpush1.msra.mxu0 0.0
    %3641 = vmatprep.subr.mxu0 0.0
    %3642 = vmatpush1.msra.mxu0 0.0
    %3643 = vmatprep.subr.mxu0 0.0
    %3644 = vmatpush1.msra.mxu0 0.0
    %3645 = vmatprep.subr.mxu0 0.0
    %3646 = vmatpush1.msra.mxu0 0.0
    %3647 = vmatprep.mubr.f32.mxu0 0.0
    %3648 = vmatmul.mubr.f32.gmra.mrb[0].mxu0 %v3578
    %v3649 = vpop.f32.mrb[0].mxu0
    %v3650 = vadd.f32 0.0, %v3649
    %v3651 = vpop.f32.mrb[0].mxu0
    %3652 = vmatprep.mubr.f32.mxu0 0.0
    %3653 = vmatmul.mubr.f32.gmra.mrb[0].mxu0 %v3581
    %v3654 = vpop.f32.mrb[0].mxu0
    %v3655 = vadd.f32 0.0, %v3654
    %v3656 = vpop.f32.mrb[0].mxu0
    %3657 = vdwg.mxu0
    %v3658 = vmul.f32 %v3650, 0.015625
    %v3659 = vmul.f32 %v3655, 0.015625
    %v3660 = vmul.f32 %v3575, %v3575
    %v3661 = vmul.f32 %v3576, %v3576
    %v3663 = vsel %vm154, %v3660, 0
    %v3666 = vsel %vm154, %v3661, 0
    %3668 = vmatprep.subr.mxu0 0.0
    %3669 = vmatpush1.msra.mxu0 1.0
    %3670 = vmatprep.subr.mxu0 0.0
    %3671 = vmatpush1.msra.mxu0 1.0
    %3672 = vmatprep.subr.mxu0 0.0
    %3673 = vmatpush1.msra.mxu0 1.0
    %3674 = vmatprep.subr.mxu0 0.0
    %3675 = vmatpush1.msra.mxu0 1.0
    %3676 = vmatprep.subr.mxu0 0.0
    %3677 = vmatpush1.msra.mxu0 1.0
    %3678 = vmatprep.subr.mxu0 0.0
    %3679 = vmatpush1.msra.mxu0 1.0
    %3680 = vmatprep.subr.mxu0 0.0
    %3681 = vmatpush1.msra.mxu0 1.0
    %3682 = vmatprep.subr.mxu0 0.0
    %3683 = vmatpush1.msra.mxu0 1.0
    %3684 = vmatprep.subr.mxu0 0.0
    %3685 = vmatpush1.msra.mxu0 0.0
    %3686 = vmatprep.subr.mxu0 0.0
    %3687 = vmatpush1.msra.mxu0 0.0
    %3688 = vmatprep.subr.mxu0 0.0
    %3689 = vmatpush1.msra.mxu0 0.0
    %3690 = vmatprep.subr.mxu0 0.0
    %3691 = vmatpush1.msra.mxu0 0.0
    %3692 = vmatprep.subr.mxu0 0.0
    %3693 = vmatpush1.msra.mxu0 0.0
    %3694 = vmatprep.subr.mxu0 0.0
    %3695 = vmatpush1.msra.mxu0 0.0
    %3696 = vmatprep.subr.mxu0 0.0
    %3697 = vmatpush1.msra.mxu0 0.0
    %3698 = vmatprep.subr.mxu0 0.0
    %3699 = vmatpush1.msra.mxu0 0.0
    %3700 = vmatprep.subr.mxu0 0.0
    %3701 = vmatpush1.msra.mxu0 0.0
    %3702 = vmatprep.subr.mxu0 0.0
    %3703 = vmatpush1.msra.mxu0 0.0
    %3704 = vmatprep.subr.mxu0 0.0
    %3705 = vmatpush1.msra.mxu0 0.0
    %3706 = vmatprep.subr.mxu0 0.0
    %3707 = vmatpush1.msra.mxu0 0.0
    %3708 = vmatprep.subr.mxu0 0.0
    %3709 = vmatpush1.msra.mxu0 0.0
    %3710 = vmatprep.subr.mxu0 0.0
    %3711 = vmatpush1.msra.mxu0 0.0
    %3712 = vmatprep.subr.mxu0 0.0
    %3713 = vmatpush1.msra.mxu0 0.0
    %3714 = vmatprep.subr.mxu0 0.0
    %3715 = vmatpush1.msra.mxu0 0.0
    %3716 = vmatprep.subr.mxu0 0.0
    %3717 = vmatpush1.msra.mxu0 0.0
    %3718 = vmatprep.subr.mxu0 0.0
    %3719 = vmatpush1.msra.mxu0 0.0
    %3720 = vmatprep.subr.mxu0 0.0
    %3721 = vmatpush1.msra.mxu0 0.0
    %3722 = vmatprep.subr.mxu0 0.0
    %3723 = vmatpush1.msra.mxu0 0.0
    %3724 = vmatprep.subr.mxu0 0.0
    %3725 = vmatpush1.msra.mxu0 0.0
    %3726 = vmatprep.subr.mxu0 0.0
    %3727 = vmatpush1.msra.mxu0 0.0
    %3728 = vmatprep.subr.mxu0 0.0
    %3729 = vmatpush1.msra.mxu0 0.0
    %3730 = vmatprep.subr.mxu0 0.0
    %3731 = vmatpush1.msra.mxu0 0.0
    %3732 = vmatprep.mubr.f32.mxu0 0.0
    %3733 = vmatmul.mubr.f32.gmra.mrb[0].mxu0 %v3663
    %v3734 = vpop.f32.mrb[0].mxu0
    %v3735 = vadd.f32 0.0, %v3734
    %v3736 = vpop.f32.mrb[0].mxu0
    %3737 = vmatprep.mubr.f32.mxu0 0.0
    %3738 = vmatmul.mubr.f32.gmra.mrb[0].mxu0 %v3666
    %v3739 = vpop.f32.mrb[0].mxu0
    %v3740 = vadd.f32 0.0, %v3739
    %v3741 = vpop.f32.mrb[0].mxu0
    %3742 = vdwg.mxu0
    %v3743 = vmul.f32 %v3735, 0.015625
    %v3744 = vmul.f32 %v3740, 0.015625
    %v3745 = vmul.f32 %v3658, %v3658
    %v3746 = vmul.f32 %v3659, %v3659
    %v3747 = vsub.f32 %v3743, %v3745
    %v3748 = vsub.f32 %v3744, %v3746
    %3750 = vset.pattern.permute.xlu0 0
    %3751 = vperm.xlu0 %3750, %v3658
    %v3752 = vpop.permute.xlu0 %3751
    %3755 = vset.pattern.permute.xlu0 0
    %3756 = vperm.xlu0 %3755, %v3659
    %v3757 = vpop.permute.xlu0 %3756
    %v3759 = vsub.f32 %v3575, %v3752
    %v3760 = vsub.f32 %v3576, %v3757
    %v3761 = vadd.f32 %v3747, 1e-05
    %v3762 = vadd.f32 %v3748, 1e-05
    %v3763 = vrsqrt.pop %v3761
    %v3764 = vrsqrt.pop %v3762
    %3766 = vset.pattern.permute.xlu0 0
    %3767 = vperm.xlu0 %3766, %v3763
    %v3768 = vpop.permute.xlu0 %3767
    %3771 = vset.pattern.permute.xlu0 0
    %3772 = vperm.xlu0 %3771, %v3764
    %v3773 = vpop.permute.xlu0 %3772
    %v3775 = vmul.f32 %v3759, %v3768
    %v3776 = vmul.f32 %v3760, %v3773
    %v3778 = vlaneseq
    %v3779 = vshrl.u32 %v3778, 7
    %v3780 = vsub.s32 0, %v3779
    %v3781 = vrot.slane %v129, %v3780
    %v3783 = vmul.f32 %v3775, %v3781
    %v3784 = vmul.f32 %v3776, %v3781
    %3785 = vrot.lane.b32.xlu0 %v3781, 64
    %v3786 = vpop.permute.xlu0 %3785
    %v3788 = vadd.f32 %v3783, %v3786
    %v3789 = vadd.f32 %v3784, %v3786
    %v3791 = vlaneseq
    %v3792 = vshrl.u32 %v3791, 7
    %v3793 = vsub.s32 0, %v3792
    %v3794 = vrot.slane %v132, %v3793
    %v3797 = vsel %vm154, %v3788, 0
    %v3800 = vsel %vm154, %v3789, 0
    %3802 = vmatprep.subr.mxu0 0.0
    %3803 = vmatpush1.msra.mxu0 %v65
    %3804 = vmatprep.subr.mxu0 0.0
    %3805 = vmatpush1.msra.mxu0 %v66
    %3806 = vmatprep.subr.mxu0 0.0
    %3807 = vmatpush1.msra.mxu0 %v67
    %3808 = vmatprep.subr.mxu0 0.0
    %3809 = vmatpush1.msra.mxu0 %v68
    %3810 = vmatprep.subr.mxu0 0.0
    %3811 = vmatpush1.msra.mxu0 %v69
    %3812 = vmatprep.subr.mxu0 0.0
    %3813 = vmatpush1.msra.mxu0 %v70
    %3814 = vmatprep.subr.mxu0 0.0
    %3815 = vmatpush1.msra.mxu0 %v71
    %3816 = vmatprep.subr.mxu0 0.0
    %3817 = vmatpush1.msra.mxu0 %v72
    %3818 = vmatprep.subr.mxu0 0.0
    %3819 = vmatpush1.msra.mxu0 0.0
    %3820 = vmatprep.subr.mxu0 0.0
    %3821 = vmatpush1.msra.mxu0 0.0
    %3822 = vmatprep.subr.mxu0 0.0
    %3823 = vmatpush1.msra.mxu0 0.0
    %3824 = vmatprep.subr.mxu0 0.0
    %3825 = vmatpush1.msra.mxu0 0.0
    %3826 = vmatprep.subr.mxu0 0.0
    %3827 = vmatpush1.msra.mxu0 0.0
    %3828 = vmatprep.subr.mxu0 0.0
    %3829 = vmatpush1.msra.mxu0 0.0
    %3830 = vmatprep.subr.mxu0 0.0
    %3831 = vmatpush1.msra.mxu0 0.0
    %3832 = vmatprep.subr.mxu0 0.0
    %3833 = vmatpush1.msra.mxu0 0.0
    %3834 = vmatprep.subr.mxu0 0.0
    %3835 = vmatpush1.msra.mxu0 0.0
    %3836 = vmatprep.subr.mxu0 0.0
    %3837 = vmatpush1.msra.mxu0 0.0
    %3838 = vmatprep.subr.mxu0 0.0
    %3839 = vmatpush1.msra.mxu0 0.0
    %3840 = vmatprep.subr.mxu0 0.0
    %3841 = vmatpush1.msra.mxu0 0.0
    %3842 = vmatprep.subr.mxu0 0.0
    %3843 = vmatpush1.msra.mxu0 0.0
    %3844 = vmatprep.subr.mxu0 0.0
    %3845 = vmatpush1.msra.mxu0 0.0
    %3846 = vmatprep.subr.mxu0 0.0
    %3847 = vmatpush1.msra.mxu0 0.0
    %3848 = vmatprep.subr.mxu0 0.0
    %3849 = vmatpush1.msra.mxu0 0.0
    %3850 = vmatprep.subr.mxu0 0.0
    %3851 = vmatpush1.msra.mxu0 0.0
    %3852 = vmatprep.subr.mxu0 0.0
    %3853 = vmatpush1.msra.mxu0 0.0
    %3854 = vmatprep.subr.mxu0 0.0
    %3855 = vmatpush1.msra.mxu0 0.0
    %3856 = vmatprep.subr.mxu0 0.0
    %3857 = vmatpush1.msra.mxu0 0.0
    %3858 = vmatprep.subr.mxu0 0.0
    %3859 = vmatpush1.msra.mxu0 0.0
    %3860 = vmatprep.subr.mxu0 0.0
    %3861 = vmatpush1.msra.mxu0 0.0
    %3862 = vmatprep.subr.mxu0 0.0
    %3863 = vmatpush1.msra.mxu0 0.0
    %3864 = vmatprep.subr.mxu0 0.0
    %3865 = vmatpush1.msra.mxu0 0.0
    %3866 = vmatprep.mubr.f32.mxu0 0.0
    %3867 = vmatmul.mubr.f32.gmra.mrb[0].mxu0 %v3797
    %v3868 = vpop.f32.mrb[0].mxu0
    %v3869 = vadd.f32 %v3794, %v3868
    %v3870 = vpop.f32.mrb[0].mxu0
    %3871 = vmatprep.mubr.f32.mxu0 0.0
    %3872 = vmatmul.mubr.f32.gmra.mrb[0].mxu0 %v3800
    %v3873 = vpop.f32.mrb[0].mxu0
    %v3874 = vadd.f32 %v3794, %v3873
    %v3875 = vpop.f32.mrb[0].mxu0
    %3876 = vdwg.mxu0
    %v3878 = vlaneseq
    %v3879 = vshrl.u32 %v3878, 7
    %v3880 = vsub.s32 0, %v3879
    %v3881 = vrot.slane %v133, %v3880
    %v3882 = vlaneseq
    %v3883 = vshrl.u32 %v3882, 7
    %v3884 = vsub.s32 1, %v3883
    %v3885 = vrot.slane %v133, %v3884
    %3902 = vrot.lane.b32.xlu0 %v65, 64
    %v3903 = vpop.permute.xlu0 %3902
    %3904 = vrot.lane.b32.xlu0 %v73, 64
    %v3905 = vpop.permute.xlu0 %3904
    %3906 = vrot.lane.b32.xlu0 %v66, 64
    %v3907 = vpop.permute.xlu0 %3906
    %3908 = vrot.lane.b32.xlu0 %v74, 64
    %v3909 = vpop.permute.xlu0 %3908
    %3910 = vrot.lane.b32.xlu0 %v67, 64
    %v3911 = vpop.permute.xlu0 %3910
    %3912 = vrot.lane.b32.xlu0 %v75, 64
    %v3913 = vpop.permute.xlu0 %3912
    %3914 = vrot.lane.b32.xlu0 %v68, 64
    %v3915 = vpop.permute.xlu0 %3914
    %3916 = vrot.lane.b32.xlu0 %v76, 64
    %v3917 = vpop.permute.xlu0 %3916
    %3918 = vrot.lane.b32.xlu0 %v69, 64
    %v3919 = vpop.permute.xlu0 %3918
    %3920 = vrot.lane.b32.xlu0 %v77, 64
    %v3921 = vpop.permute.xlu0 %3920
    %3922 = vrot.lane.b32.xlu0 %v70, 64
    %v3923 = vpop.permute.xlu0 %3922
    %3924 = vrot.lane.b32.xlu0 %v78, 64
    %v3925 = vpop.permute.xlu0 %3924
    %3926 = vrot.lane.b32.xlu0 %v71, 64
    %v3927 = vpop.permute.xlu0 %3926
    %3928 = vrot.lane.b32.xlu0 %v79, 64
    %v3929 = vpop.permute.xlu0 %3928
    %3930 = vrot.lane.b32.xlu0 %v72, 64
    %v3931 = vpop.permute.xlu0 %3930
    %3932 = vrot.lane.b32.xlu0 %v80, 64
    %v3933 = vpop.permute.xlu0 %3932
    %v3934 = vsel %vm154, %v3903, %v3905
    %v3935 = vsel %vm154, %v3907, %v3909
    %v3936 = vsel %vm154, %v3911, %v3913
    %v3937 = vsel %vm154, %v3915, %v3917
    %v3938 = vsel %vm154, %v3919, %v3921
    %v3939 = vsel %vm154, %v3923, %v3925
    %v3940 = vsel %vm154, %v3927, %v3929
    %v3941 = vsel %vm154, %v3931, %v3933
    %3950 = vrot.lane.b32.xlu0 %v3881, 64
    %v3951 = vpop.permute.xlu0 %3950
    %3952 = vrot.lane.b32.xlu0 %v3885, 64
    %v3953 = vpop.permute.xlu0 %3952
    %v3954 = vsel %vm154, %v3951, %v3953
    %v3957 = vsel %vm154, %v139, 0
    %v3960 = vsel %vm154, %v140, 0
    %v3963 = vsel %vm154, %v141, 0
    %v3966 = vsel %vm154, %v142, 0
    %3968 = vmatprep.subr.mxu0 0.0
    %3969 = vmatpush1.msra.mxu0 %v3934
    %3970 = vmatprep.subr.mxu0 0.0
    %3971 = vmatpush1.msra.mxu0 %v3935
    %3972 = vmatprep.subr.mxu0 0.0
    %3973 = vmatpush1.msra.mxu0 %v3936
    %3974 = vmatprep.subr.mxu0 0.0
    %3975 = vmatpush1.msra.mxu0 %v3937
    %3976 = vmatprep.subr.mxu0 0.0
    %3977 = vmatpush1.msra.mxu0 %v3938
    %3978 = vmatprep.subr.mxu0 0.0
    %3979 = vmatpush1.msra.mxu0 %v3939
    %3980 = vmatprep.subr.mxu0 0.0
    %3981 = vmatpush1.msra.mxu0 %v3940
    %3982 = vmatprep.subr.mxu0 0.0
    %3983 = vmatpush1.msra.mxu0 %v3941
    %3984 = vmatprep.subr.mxu0 0.0
    %3985 = vmatpush1.msra.mxu0 0.0
    %3986 = vmatprep.subr.mxu0 0.0
    %3987 = vmatpush1.msra.mxu0 0.0
    %3988 = vmatprep.subr.mxu0 0.0
    %3989 = vmatpush1.msra.mxu0 0.0
    %3990 = vmatprep.subr.mxu0 0.0
    %3991 = vmatpush1.msra.mxu0 0.0
    %3992 = vmatprep.subr.mxu0 0.0
    %3993 = vmatpush1.msra.mxu0 0.0
    %3994 = vmatprep.subr.mxu0 0.0
    %3995 = vmatpush1.msra.mxu0 0.0
    %3996 = vmatprep.subr.mxu0 0.0
    %3997 = vmatpush1.msra.mxu0 0.0
    %3998 = vmatprep.subr.mxu0 0.0
    %3999 = vmatpush1.msra.mxu0 0.0
    %4000 = vmatprep.subr.mxu0 0.0
    %4001 = vmatpush1.msra.mxu0 0.0
    %4002 = vmatprep.subr.mxu0 0.0
    %4003 = vmatpush1.msra.mxu0 0.0
    %4004 = vmatprep.subr.mxu0 0.0
    %4005 = vmatpush1.msra.mxu0 0.0
    %4006 = vmatprep.subr.mxu0 0.0
    %4007 = vmatpush1.msra.mxu0 0.0
    %4008 = vmatprep.subr.mxu0 0.0
    %4009 = vmatpush1.msra.mxu0 0.0
    %4010 = vmatprep.subr.mxu0 0.0
    %4011 = vmatpush1.msra.mxu0 0.0
    %4012 = vmatprep.subr.mxu0 0.0
    %4013 = vmatpush1.msra.mxu0 0.0
    %4014 = vmatprep.subr.mxu0 0.0
    %4015 = vmatpush1.msra.mxu0 0.0
    %4016 = vmatprep.subr.mxu0 0.0
    %4017 = vmatpush1.msra.mxu0 0.0
    %4018 = vmatprep.subr.mxu0 0.0
    %4019 = vmatpush1.msra.mxu0 0.0
    %4020 = vmatprep.subr.mxu0 0.0
    %4021 = vmatpush1.msra.mxu0 0.0
    %4022 = vmatprep.subr.mxu0 0.0
    %4023 = vmatpush1.msra.mxu0 0.0
    %4024 = vmatprep.subr.mxu0 0.0
    %4025 = vmatpush1.msra.mxu0 0.0
    %4026 = vmatprep.subr.mxu0 0.0
    %4027 = vmatpush1.msra.mxu0 0.0
    %4028 = vmatprep.subr.mxu0 0.0
    %4029 = vmatpush1.msra.mxu0 0.0
    %4030 = vmatprep.subr.mxu0 0.0
    %4031 = vmatpush1.msra.mxu0 0.0
    %4032 = vmatprep.mubr.f32.mxu0 0.0
    %4033 = vmatmul.mubr.f32.gmra.mrb[0].mxu0 %v3957
    %v4034 = vpop.f32.mrb[0].mxu0
    %v4035 = vadd.f32 %v3954, %v4034
    %v4036 = vpop.f32.mrb[0].mxu0
    %4037 = vmatprep.mubr.f32.mxu0 0.0
    %4038 = vmatmul.mubr.f32.gmra.mrb[0].mxu0 %v3960
    %v4039 = vpop.f32.mrb[0].mxu0
    %v4040 = vadd.f32 %v3954, %v4039
    %v4041 = vpop.f32.mrb[0].mxu0
    %4042 = vmatprep.mubr.f32.mxu0 0.0
    %4043 = vmatmul.mubr.f32.gmra.mrb[0].mxu0 %v3963
    %v4044 = vpop.f32.mrb[0].mxu0
    %v4045 = vadd.f32 %v3954, %v4044
    %v4046 = vpop.f32.mrb[0].mxu0
    %4047 = vmatprep.mubr.f32.mxu0 0.0
    %4048 = vmatmul.mubr.f32.gmra.mrb[0].mxu0 %v3966
    %v4049 = vpop.f32.mrb[0].mxu0
    %v4050 = vadd.f32 %v3954, %v4049
    %v4051 = vpop.f32.mrb[0].mxu0
    %4052 = vdwg.mxu0
    %v4054 = vsel %vm241, %v3869, 0
    %v4057 = vsel %vm241, %v4035, 0
    %v4060 = vsel %vm241, %v4040, 0
    %4062 = vmatprep.subr.mxu0 0.0
    %4063 = vmatpush1.xpose.msra.mxu0 %v4057
    %4064 = vmatprep.subr.mxu0 0.0
    %4065 = vmatpush1.xpose.msra.mxu0 %v4060
    %4066 = vmatprep.subr.mxu0 0.0
    %4067 = vmatpush1.xpose.msra.mxu0 0.0
    %4068 = vmatprep.subr.mxu0 0.0
    %4069 = vmatpush1.xpose.msra.mxu0 0.0
    %4070 = vmatprep.subr.mxu0 0.0
    %4071 = vmatpush1.xpose.msra.mxu0 0.0
    %4072 = vmatprep.subr.mxu0 0.0
    %4073 = vmatpush1.xpose.msra.mxu0 0.0
    %4074 = vmatprep.subr.mxu0 0.0
    %4075 = vmatpush1.xpose.msra.mxu0 0.0
    %4076 = vmatprep.subr.mxu0 0.0
    %4077 = vmatpush1.xpose.msra.mxu0 0.0
    %4078 = vmatprep.subr.mxu0 0.0
    %4079 = vmatpush1.xpose.msra.mxu0 0.0
    %4080 = vmatprep.subr.mxu0 0.0
    %4081 = vmatpush1.xpose.msra.mxu0 0.0
    %4082 = vmatprep.subr.mxu0 0.0
    %4083 = vmatpush1.xpose.msra.mxu0 0.0
    %4084 = vmatprep.subr.mxu0 0.0
    %4085 = vmatpush1.xpose.msra.mxu0 0.0
    %4086 = vmatprep.subr.mxu0 0.0
    %4087 = vmatpush1.xpose.msra.mxu0 0.0
    %4088 = vmatprep.subr.mxu0 0.0
    %4089 = vmatpush1.xpose.msra.mxu0 0.0
    %4090 = vmatprep.subr.mxu0 0.0
    %4091 = vmatpush1.xpose.msra.mxu0 0.0
    %4092 = vmatprep.subr.mxu0 0.0
    %4093 = vmatpush1.xpose.msra.mxu0 0.0
    %4094 = vmatprep.subr.mxu0 0.0
    %4095 = vmatpush1.xpose.msra.mxu0 0.0
    %4096 = vmatprep.subr.mxu0 0.0
    %4097 = vmatpush1.xpose.msra.mxu0 0.0
    %4098 = vmatprep.subr.mxu0 0.0
    %4099 = vmatpush1.xpose.msra.mxu0 0.0
    %4100 = vmatprep.subr.mxu0 0.0
    %4101 = vmatpush1.xpose.msra.mxu0 0.0
    %4102 = vmatprep.subr.mxu0 0.0
    %4103 = vmatpush1.xpose.msra.mxu0 0.0
    %4104 = vmatprep.subr.mxu0 0.0
    %4105 = vmatpush1.xpose.msra.mxu0 0.0
    %4106 = vmatprep.subr.mxu0 0.0
    %4107 = vmatpush1.xpose.msra.mxu0 0.0
    %4108 = vmatprep.subr.mxu0 0.0
    %4109 = vmatpush1.xpose.msra.mxu0 0.0
    %4110 = vmatprep.subr.mxu0 0.0
    %4111 = vmatpush1.xpose.msra.mxu0 0.0
    %4112 = vmatprep.subr.mxu0 0.0
    %4113 = vmatpush1.xpose.msra.mxu0 0.0
    %4114 = vmatprep.subr.mxu0 0.0
    %4115 = vmatpush1.xpose.msra.mxu0 0.0
    %4116 = vmatprep.subr.mxu0 0.0
    %4117 = vmatpush1.xpose.msra.mxu0 0.0
    %4118 = vmatprep.subr.mxu0 0.0
    %4119 = vmatpush1.xpose.msra.mxu0 0.0
    %4120 = vmatprep.subr.mxu0 0.0
    %4121 = vmatpush1.xpose.msra.mxu0 0.0
    %4122 = vmatprep.subr.mxu0 0.0
    %4123 = vmatpush1.xpose.msra.mxu0 0.0
    %4124 = vmatprep.subr.mxu0 0.0
    %4125 = vmatpush1.xpose.msra.mxu0 0.0
    %4126 = vmatprep.mubr.f32.mxu0 0.0
    %4127 = vmatmul.mubr.f32.gmra.mrb[0].mxu0 %v4054
    %v4128 = vpop.f32.mrb[0].mxu0
    %v4129 = vadd.f32 0.0, %v4128
    %v4130 = vpop.f32.mrb[0].mxu0
    %4131 = vdwg.mxu0
    %v4133 = vsel %vm241, %v3874, 0
    %v4136 = vsel %vm241, %v4045, 0
    %v4139 = vsel %vm241, %v4050, 0
    %4141 = vmatprep.subr.mxu0 0.0
    %4142 = vmatpush1.xpose.msra.mxu0 %v4136
    %4143 = vmatprep.subr.mxu0 0.0
    %4144 = vmatpush1.xpose.msra.mxu0 %v4139
    %4145 = vmatprep.subr.mxu0 0.0
    %4146 = vmatpush1.xpose.msra.mxu0 0.0
    %4147 = vmatprep.subr.mxu0 0.0
    %4148 = vmatpush1.xpose.msra.mxu0 0.0
    %4149 = vmatprep.subr.mxu0 0.0
    %4150 = vmatpush1.xpose.msra.mxu0 0.0
    %4151 = vmatprep.subr.mxu0 0.0
    %4152 = vmatpush1.xpose.msra.mxu0 0.0
    %4153 = vmatprep.subr.mxu0 0.0
    %4154 = vmatpush1.xpose.msra.mxu0 0.0
    %4155 = vmatprep.subr.mxu0 0.0
    %4156 = vmatpush1.xpose.msra.mxu0 0.0
    %4157 = vmatprep.subr.mxu0 0.0
    %4158 = vmatpush1.xpose.msra.mxu0 0.0
    %4159 = vmatprep.subr.mxu0 0.0
    %4160 = vmatpush1.xpose.msra.mxu0 0.0
    %4161 = vmatprep.subr.mxu0 0.0
    %4162 = vmatpush1.xpose.msra.mxu0 0.0
    %4163 = vmatprep.subr.mxu0 0.0
    %4164 = vmatpush1.xpose.msra.mxu0 0.0
    %4165 = vmatprep.subr.mxu0 0.0
    %4166 = vmatpush1.xpose.msra.mxu0 0.0
    %4167 = vmatprep.subr.mxu0 0.0
    %4168 = vmatpush1.xpose.msra.mxu0 0.0
    %4169 = vmatprep.subr.mxu0 0.0
    %4170 = vmatpush1.xpose.msra.mxu0 0.0
    %4171 = vmatprep.subr.mxu0 0.0
    %4172 = vmatpush1.xpose.msra.mxu0 0.0
    %4173 = vmatprep.subr.mxu0 0.0
    %4174 = vmatpush1.xpose.msra.mxu0 0.0
    %4175 = vmatprep.subr.mxu0 0.0
    %4176 = vmatpush1.xpose.msra.mxu0 0.0
    %4177 = vmatprep.subr.mxu0 0.0
    %4178 = vmatpush1.xpose.msra.mxu0 0.0
    %4179 = vmatprep.subr.mxu0 0.0
    %4180 = vmatpush1.xpose.msra.mxu0 0.0
    %4181 = vmatprep.subr.mxu0 0.0
    %4182 = vmatpush1.xpose.msra.mxu0 0.0
    %4183 = vmatprep.subr.mxu0 0.0
    %4184 = vmatpush1.xpose.msra.mxu0 0.0
    %4185 = vmatprep.subr.mxu0 0.0
    %4186 = vmatpush1.xpose.msra.mxu0 0.0
    %4187 = vmatprep.subr.mxu0 0.0
    %4188 = vmatpush1.xpose.msra.mxu0 0.0
    %4189 = vmatprep.subr.mxu0 0.0
    %4190 = vmatpush1.xpose.msra.mxu0 0.0
    %4191 = vmatprep.subr.mxu0 0.0
    %4192 = vmatpush1.xpose.msra.mxu0 0.0
    %4193 = vmatprep.subr.mxu0 0.0
    %4194 = vmatpush1.xpose.msra.mxu0 0.0
    %4195 = vmatprep.subr.mxu0 0.0
    %4196 = vmatpush1.xpose.msra.mxu0 0.0
    %4197 = vmatprep.subr.mxu0 0.0
    %4198 = vmatpush1.xpose.msra.mxu0 0.0
    %4199 = vmatprep.subr.mxu0 0.0
    %4200 = vmatpush1.xpose.msra.mxu0 0.0
    %4201 = vmatprep.subr.mxu0 0.0
    %4202 = vmatpush1.xpose.msra.mxu0 0.0
    %4203 = vmatprep.subr.mxu0 0.0
    %4204 = vmatpush1.xpose.msra.mxu0 0.0
    %4205 = vmatprep.mubr.f32.mxu0 0.0
    %4206 = vmatmul.mubr.f32.gmra.mrb[0].mxu0 %v4133
    %v4207 = vpop.f32.mrb[0].mxu0
    %v4208 = vadd.f32 0.0, %v4207
    %v4209 = vpop.f32.mrb[0].mxu0
    %4210 = vdwg.mxu0
    %4211 = vrot.lane.b32.xlu0 %v3869, 120
    %v4212 = vpop.permute.xlu0 %4211
    %4213 = vrot.lane.b32.xlu0 %v4035, 120
    %v4214 = vpop.permute.xlu0 %4213
    %4215 = vrot.lane.b32.xlu0 %v4040, 120
    %v4216 = vpop.permute.xlu0 %4215
    %v4217 = vsel %vm241, %v4212, 0
    %v4219 = vsel %vm241, %v4214, 0
    %v4221 = vsel %vm241, %v4216, 0
    %4223 = vmatprep.subr.mxu0 0.0
    %4224 = vmatpush1.xpose.msra.mxu0 %v4219
    %4225 = vmatprep.subr.mxu0 0.0
    %4226 = vmatpush1.xpose.msra.mxu0 %v4221
    %4227 = vmatprep.subr.mxu0 0.0
    %4228 = vmatpush1.xpose.msra.mxu0 0.0
    %4229 = vmatprep.subr.mxu0 0.0
    %4230 = vmatpush1.xpose.msra.mxu0 0.0
    %4231 = vmatprep.subr.mxu0 0.0
    %4232 = vmatpush1.xpose.msra.mxu0 0.0
    %4233 = vmatprep.subr.mxu0 0.0
    %4234 = vmatpush1.xpose.msra.mxu0 0.0
    %4235 = vmatprep.subr.mxu0 0.0
    %4236 = vmatpush1.xpose.msra.mxu0 0.0
    %4237 = vmatprep.subr.mxu0 0.0
    %4238 = vmatpush1.xpose.msra.mxu0 0.0
    %4239 = vmatprep.subr.mxu0 0.0
    %4240 = vmatpush1.xpose.msra.mxu0 0.0
    %4241 = vmatprep.subr.mxu0 0.0
    %4242 = vmatpush1.xpose.msra.mxu0 0.0
    %4243 = vmatprep.subr.mxu0 0.0
    %4244 = vmatpush1.xpose.msra.mxu0 0.0
    %4245 = vmatprep.subr.mxu0 0.0
    %4246 = vmatpush1.xpose.msra.mxu0 0.0
    %4247 = vmatprep.subr.mxu0 0.0
    %4248 = vmatpush1.xpose.msra.mxu0 0.0
    %4249 = vmatprep.subr.mxu0 0.0
    %4250 = vmatpush1.xpose.msra.mxu0 0.0
    %4251 = vmatprep.subr.mxu0 0.0
    %4252 = vmatpush1.xpose.msra.mxu0 0.0
    %4253 = vmatprep.subr.mxu0 0.0
    %4254 = vmatpush1.xpose.msra.mxu0 0.0
    %4255 = vmatprep.subr.mxu0 0.0
    %4256 = vmatpush1.xpose.msra.mxu0 0.0
    %4257 = vmatprep.subr.mxu0 0.0
    %4258 = vmatpush1.xpose.msra.mxu0 0.0
    %4259 = vmatprep.subr.mxu0 0.0
    %4260 = vmatpush1.xpose.msra.mxu0 0.0
    %4261 = vmatprep.subr.mxu0 0.0
    %4262 = vmatpush1.xpose.msra.mxu0 0.0
    %4263 = vmatprep.subr.mxu0 0.0
    %4264 = vmatpush1.xpose.msra.mxu0 0.0
    %4265 = vmatprep.subr.mxu0 0.0
    %4266 = vmatpush1.xpose.msra.mxu0 0.0
    %4267 = vmatprep.subr.mxu0 0.0
    %4268 = vmatpush1.xpose.msra.mxu0 0.0
    %4269 = vmatprep.subr.mxu0 0.0
    %4270 = vmatpush1.xpose.msra.mxu0 0.0
    %4271 = vmatprep.subr.mxu0 0.0
    %4272 = vmatpush1.xpose.msra.mxu0 0.0
    %4273 = vmatprep.subr.mxu0 0.0
    %4274 = vmatpush1.xpose.msra.mxu0 0.0
    %4275 = vmatprep.subr.mxu0 0.0
    %4276 = vmatpush1.xpose.msra.mxu0 0.0
    %4277 = vmatprep.subr.mxu0 0.0
    %4278 = vmatpush1.xpose.msra.mxu0 0.0
    %4279 = vmatprep.subr.mxu0 0.0
    %4280 = vmatpush1.xpose.msra.mxu0 0.0
    %4281 = vmatprep.subr.mxu0 0.0
    %4282 = vmatpush1.xpose.msra.mxu0 0.0
    %4283 = vmatprep.subr.mxu0 0.0
    %4284 = vmatpush1.xpose.msra.mxu0 0.0
    %4285 = vmatprep.subr.mxu0 0.0
    %4286 = vmatpush1.xpose.msra.mxu0 0.0
    %4287 = vmatprep.mubr.f32.mxu0 0.0
    %4288 = vmatmul.mubr.f32.gmra.mrb[0].mxu0 %v4217
    %v4289 = vpop.f32.mrb[0].mxu0
    %v4290 = vadd.f32 0.0, %v4289
    %v4291 = vpop.f32.mrb[0].mxu0
    %4292 = vdwg.mxu0
    %4293 = vrot.lane.b32.xlu0 %v3874, 120
    %v4294 = vpop.permute.xlu0 %4293
    %4295 = vrot.lane.b32.xlu0 %v4045, 120
    %v4296 = vpop.permute.xlu0 %4295
    %4297 = vrot.lane.b32.xlu0 %v4050, 120
    %v4298 = vpop.permute.xlu0 %4297
    %v4299 = vsel %vm241, %v4294, 0
    %v4301 = vsel %vm241, %v4296, 0
    %v4303 = vsel %vm241, %v4298, 0
    %4305 = vmatprep.subr.mxu0 0.0
    %4306 = vmatpush1.xpose.msra.mxu0 %v4301
    %4307 = vmatprep.subr.mxu0 0.0
    %4308 = vmatpush1.xpose.msra.mxu0 %v4303
    %4309 = vmatprep.subr.mxu0 0.0
    %4310 = vmatpush1.xpose.msra.mxu0 0.0
    %4311 = vmatprep.subr.mxu0 0.0
    %4312 = vmatpush1.xpose.msra.mxu0 0.0
    %4313 = vmatprep.subr.mxu0 0.0
    %4314 = vmatpush1.xpose.msra.mxu0 0.0
    %4315 = vmatprep.subr.mxu0 0.0
    %4316 = vmatpush1.xpose.msra.mxu0 0.0
    %4317 = vmatprep.subr.mxu0 0.0
    %4318 = vmatpush1.xpose.msra.mxu0 0.0
    %4319 = vmatprep.subr.mxu0 0.0
    %4320 = vmatpush1.xpose.msra.mxu0 0.0
    %4321 = vmatprep.subr.mxu0 0.0
    %4322 = vmatpush1.xpose.msra.mxu0 0.0
    %4323 = vmatprep.subr.mxu0 0.0
    %4324 = vmatpush1.xpose.msra.mxu0 0.0
    %4325 = vmatprep.subr.mxu0 0.0
    %4326 = vmatpush1.xpose.msra.mxu0 0.0
    %4327 = vmatprep.subr.mxu0 0.0
    %4328 = vmatpush1.xpose.msra.mxu0 0.0
    %4329 = vmatprep.subr.mxu0 0.0
    %4330 = vmatpush1.xpose.msra.mxu0 0.0
    %4331 = vmatprep.subr.mxu0 0.0
    %4332 = vmatpush1.xpose.msra.mxu0 0.0
    %4333 = vmatprep.subr.mxu0 0.0
    %4334 = vmatpush1.xpose.msra.mxu0 0.0
    %4335 = vmatprep.subr.mxu0 0.0
    %4336 = vmatpush1.xpose.msra.mxu0 0.0
    %4337 = vmatprep.subr.mxu0 0.0
    %4338 = vmatpush1.xpose.msra.mxu0 0.0
    %4339 = vmatprep.subr.mxu0 0.0
    %4340 = vmatpush1.xpose.msra.mxu0 0.0
    %4341 = vmatprep.subr.mxu0 0.0
    %4342 = vmatpush1.xpose.msra.mxu0 0.0
    %4343 = vmatprep.subr.mxu0 0.0
    %4344 = vmatpush1.xpose.msra.mxu0 0.0
    %4345 = vmatprep.subr.mxu0 0.0
    %4346 = vmatpush1.xpose.msra.mxu0 0.0
    %4347 = vmatprep.subr.mxu0 0.0
    %4348 = vmatpush1.xpose.msra.mxu0 0.0
    %4349 = vmatprep.subr.mxu0 0.0
    %4350 = vmatpush1.xpose.msra.mxu0 0.0
    %4351 = vmatprep.subr.mxu0 0.0
    %4352 = vmatpush1.xpose.msra.mxu0 0.0
    %4353 = vmatprep.subr.mxu0 0.0
    %4354 = vmatpush1.xpose.msra.mxu0 0.0
    %4355 = vmatprep.subr.mxu0 0.0
    %4356 = vmatpush1.xpose.msra.mxu0 0.0
    %4357 = vmatprep.subr.mxu0 0.0
    %4358 = vmatpush1.xpose.msra.mxu0 0.0
    %4359 = vmatprep.subr.mxu0 0.0
    %4360 = vmatpush1.xpose.msra.mxu0 0.0
    %4361 = vmatprep.subr.mxu0 0.0
    %4362 = vmatpush1.xpose.msra.mxu0 0.0
    %4363 = vmatprep.subr.mxu0 0.0
    %4364 = vmatpush1.xpose.msra.mxu0 0.0
    %4365 = vmatprep.subr.mxu0 0.0
    %4366 = vmatpush1.xpose.msra.mxu0 0.0
    %4367 = vmatprep.subr.mxu0 0.0
    %4368 = vmatpush1.xpose.msra.mxu0 0.0
    %4369 = vmatprep.mubr.f32.mxu0 0.0
    %4370 = vmatmul.mubr.f32.gmra.mrb[0].mxu0 %v4299
    %v4371 = vpop.f32.mrb[0].mxu0
    %v4372 = vadd.f32 0.0, %v4371
    %v4373 = vpop.f32.mrb[0].mxu0
    %4374 = vdwg.mxu0
    %4375 = vrot.lane.b32.xlu0 %v3869, 112
    %v4376 = vpop.permute.xlu0 %4375
    %4377 = vrot.lane.b32.xlu0 %v4035, 112
    %v4378 = vpop.permute.xlu0 %4377
    %4379 = vrot.lane.b32.xlu0 %v4040, 112
    %v4380 = vpop.permute.xlu0 %4379
    %v4381 = vsel %vm241, %v4376, 0
    %v4383 = vsel %vm241, %v4378, 0
    %v4385 = vsel %vm241, %v4380, 0
    %4387 = vmatprep.subr.mxu0 0.0
    %4388 = vmatpush1.xpose.msra.mxu0 %v4383
    %4389 = vmatprep.subr.mxu0 0.0
    %4390 = vmatpush1.xpose.msra.mxu0 %v4385
    %4391 = vmatprep.subr.mxu0 0.0
    %4392 = vmatpush1.xpose.msra.mxu0 0.0
    %4393 = vmatprep.subr.mxu0 0.0
    %4394 = vmatpush1.xpose.msra.mxu0 0.0
    %4395 = vmatprep.subr.mxu0 0.0
    %4396 = vmatpush1.xpose.msra.mxu0 0.0
    %4397 = vmatprep.subr.mxu0 0.0
    %4398 = vmatpush1.xpose.msra.mxu0 0.0
    %4399 = vmatprep.subr.mxu0 0.0
    %4400 = vmatpush1.xpose.msra.mxu0 0.0
    %4401 = vmatprep.subr.mxu0 0.0
    %4402 = vmatpush1.xpose.msra.mxu0 0.0
    %4403 = vmatprep.subr.mxu0 0.0
    %4404 = vmatpush1.xpose.msra.mxu0 0.0
    %4405 = vmatprep.subr.mxu0 0.0
    %4406 = vmatpush1.xpose.msra.mxu0 0.0
    %4407 = vmatprep.subr.mxu0 0.0
    %4408 = vmatpush1.xpose.msra.mxu0 0.0
    %4409 = vmatprep.subr.mxu0 0.0
    %4410 = vmatpush1.xpose.msra.mxu0 0.0
    %4411 = vmatprep.subr.mxu0 0.0
    %4412 = vmatpush1.xpose.msra.mxu0 0.0
    %4413 = vmatprep.subr.mxu0 0.0
    %4414 = vmatpush1.xpose.msra.mxu0 0.0
    %4415 = vmatprep.subr.mxu0 0.0
    %4416 = vmatpush1.xpose.msra.mxu0 0.0
    %4417 = vmatprep.subr.mxu0 0.0
    %4418 = vmatpush1.xpose.msra.mxu0 0.0
    %4419 = vmatprep.subr.mxu0 0.0
    %4420 = vmatpush1.xpose.msra.mxu0 0.0
    %4421 = vmatprep.subr.mxu0 0.0
    %4422 = vmatpush1.xpose.msra.mxu0 0.0
    %4423 = vmatprep.subr.mxu0 0.0
    %4424 = vmatpush1.xpose.msra.mxu0 0.0
    %4425 = vmatprep.subr.mxu0 0.0
    %4426 = vmatpush1.xpose.msra.mxu0 0.0
    %4427 = vmatprep.subr.mxu0 0.0
    %4428 = vmatpush1.xpose.msra.mxu0 0.0
    %4429 = vmatprep.subr.mxu0 0.0
    %4430 = vmatpush1.xpose.msra.mxu0 0.0
    %4431 = vmatprep.subr.mxu0 0.0
    %4432 = vmatpush1.xpose.msra.mxu0 0.0
    %4433 = vmatprep.subr.mxu0 0.0
    %4434 = vmatpush1.xpose.msra.mxu0 0.0
    %4435 = vmatprep.subr.mxu0 0.0
    %4436 = vmatpush1.xpose.msra.mxu0 0.0
    %4437 = vmatprep.subr.mxu0 0.0
    %4438 = vmatpush1.xpose.msra.mxu0 0.0
    %4439 = vmatprep.subr.mxu0 0.0
    %4440 = vmatpush1.xpose.msra.mxu0 0.0
    %4441 = vmatprep.subr.mxu0 0.0
    %4442 = vmatpush1.xpose.msra.mxu0 0.0
    %4443 = vmatprep.subr.mxu0 0.0
    %4444 = vmatpush1.xpose.msra.mxu0 0.0
    %4445 = vmatprep.subr.mxu0 0.0
    %4446 = vmatpush1.xpose.msra.mxu0 0.0
    %4447 = vmatprep.subr.mxu0 0.0
    %4448 = vmatpush1.xpose.msra.mxu0 0.0
    %4449 = vmatprep.subr.mxu0 0.0
    %4450 = vmatpush1.xpose.msra.mxu0 0.0
    %4451 = vmatprep.mubr.f32.mxu0 0.0
    %4452 = vmatmul.mubr.f32.gmra.mrb[0].mxu0 %v4381
    %v4453 = vpop.f32.mrb[0].mxu0
    %v4454 = vadd.f32 0.0, %v4453
    %v4455 = vpop.f32.mrb[0].mxu0
    %4456 = vdwg.mxu0
    %4457 = vrot.lane.b32.xlu0 %v3874, 112
    %v4458 = vpop.permute.xlu0 %4457
    %4459 = vrot.lane.b32.xlu0 %v4045, 112
    %v4460 = vpop.permute.xlu0 %4459
    %4461 = vrot.lane.b32.xlu0 %v4050, 112
    %v4462 = vpop.permute.xlu0 %4461
    %v4463 = vsel %vm241, %v4458, 0
    %v4465 = vsel %vm241, %v4460, 0
    %v4467 = vsel %vm241, %v4462, 0
    %4469 = vmatprep.subr.mxu0 0.0
    %4470 = vmatpush1.xpose.msra.mxu0 %v4465
    %4471 = vmatprep.subr.mxu0 0.0
    %4472 = vmatpush1.xpose.msra.mxu0 %v4467
    %4473 = vmatprep.subr.mxu0 0.0
    %4474 = vmatpush1.xpose.msra.mxu0 0.0
    %4475 = vmatprep.subr.mxu0 0.0
    %4476 = vmatpush1.xpose.msra.mxu0 0.0
    %4477 = vmatprep.subr.mxu0 0.0
    %4478 = vmatpush1.xpose.msra.mxu0 0.0
    %4479 = vmatprep.subr.mxu0 0.0
    %4480 = vmatpush1.xpose.msra.mxu0 0.0
    %4481 = vmatprep.subr.mxu0 0.0
    %4482 = vmatpush1.xpose.msra.mxu0 0.0
    %4483 = vmatprep.subr.mxu0 0.0
    %4484 = vmatpush1.xpose.msra.mxu0 0.0
    %4485 = vmatprep.subr.mxu0 0.0
    %4486 = vmatpush1.xpose.msra.mxu0 0.0
    %4487 = vmatprep.subr.mxu0 0.0
    %4488 = vmatpush1.xpose.msra.mxu0 0.0
    %4489 = vmatprep.subr.mxu0 0.0
    %4490 = vmatpush1.xpose.msra.mxu0 0.0
    %4491 = vmatprep.subr.mxu0 0.0
    %4492 = vmatpush1.xpose.msra.mxu0 0.0
    %4493 = vmatprep.subr.mxu0 0.0
    %4494 = vmatpush1.xpose.msra.mxu0 0.0
    %4495 = vmatprep.subr.mxu0 0.0
    %4496 = vmatpush1.xpose.msra.mxu0 0.0
    %4497 = vmatprep.subr.mxu0 0.0
    %4498 = vmatpush1.xpose.msra.mxu0 0.0
    %4499 = vmatprep.subr.mxu0 0.0
    %4500 = vmatpush1.xpose.msra.mxu0 0.0
    %4501 = vmatprep.subr.mxu0 0.0
    %4502 = vmatpush1.xpose.msra.mxu0 0.0
    %4503 = vmatprep.subr.mxu0 0.0
    %4504 = vmatpush1.xpose.msra.mxu0 0.0
    %4505 = vmatprep.subr.mxu0 0.0
    %4506 = vmatpush1.xpose.msra.mxu0 0.0
    %4507 = vmatprep.subr.mxu0 0.0
    %4508 = vmatpush1.xpose.msra.mxu0 0.0
    %4509 = vmatprep.subr.mxu0 0.0
    %4510 = vmatpush1.xpose.msra.mxu0 0.0
    %4511 = vmatprep.subr.mxu0 0.0
    %4512 = vmatpush1.xpose.msra.mxu0 0.0
    %4513 = vmatprep.subr.mxu0 0.0
    %4514 = vmatpush1.xpose.msra.mxu0 0.0
    %4515 = vmatprep.subr.mxu0 0.0
    %4516 = vmatpush1.xpose.msra.mxu0 0.0
    %4517 = vmatprep.subr.mxu0 0.0
    %4518 = vmatpush1.xpose.msra.mxu0 0.0
    %4519 = vmatprep.subr.mxu0 0.0
    %4520 = vmatpush1.xpose.msra.mxu0 0.0
    %4521 = vmatprep.subr.mxu0 0.0
    %4522 = vmatpush1.xpose.msra.mxu0 0.0
    %4523 = vmatprep.subr.mxu0 0.0
    %4524 = vmatpush1.xpose.msra.mxu0 0.0
    %4525 = vmatprep.subr.mxu0 0.0
    %4526 = vmatpush1.xpose.msra.mxu0 0.0
    %4527 = vmatprep.subr.mxu0 0.0
    %4528 = vmatpush1.xpose.msra.mxu0 0.0
    %4529 = vmatprep.subr.mxu0 0.0
    %4530 = vmatpush1.xpose.msra.mxu0 0.0
    %4531 = vmatprep.subr.mxu0 0.0
    %4532 = vmatpush1.xpose.msra.mxu0 0.0
    %4533 = vmatprep.mubr.f32.mxu0 0.0
    %4534 = vmatmul.mubr.f32.gmra.mrb[0].mxu0 %v4463
    %v4535 = vpop.f32.mrb[0].mxu0
    %v4536 = vadd.f32 0.0, %v4535
    %v4537 = vpop.f32.mrb[0].mxu0
    %4538 = vdwg.mxu0
    %4539 = vrot.lane.b32.xlu0 %v3869, 104
    %v4540 = vpop.permute.xlu0 %4539
    %4541 = vrot.lane.b32.xlu0 %v4035, 104
    %v4542 = vpop.permute.xlu0 %4541
    %4543 = vrot.lane.b32.xlu0 %v4040, 104
    %v4544 = vpop.permute.xlu0 %4543
    %v4545 = vsel %vm241, %v4540, 0
    %v4547 = vsel %vm241, %v4542, 0
    %v4549 = vsel %vm241, %v4544, 0
    %4551 = vmatprep.subr.mxu0 0.0
    %4552 = vmatpush1.xpose.msra.mxu0 %v4547
    %4553 = vmatprep.subr.mxu0 0.0
    %4554 = vmatpush1.xpose.msra.mxu0 %v4549
    %4555 = vmatprep.subr.mxu0 0.0
    %4556 = vmatpush1.xpose.msra.mxu0 0.0
    %4557 = vmatprep.subr.mxu0 0.0
    %4558 = vmatpush1.xpose.msra.mxu0 0.0
    %4559 = vmatprep.subr.mxu0 0.0
    %4560 = vmatpush1.xpose.msra.mxu0 0.0
    %4561 = vmatprep.subr.mxu0 0.0
    %4562 = vmatpush1.xpose.msra.mxu0 0.0
    %4563 = vmatprep.subr.mxu0 0.0
    %4564 = vmatpush1.xpose.msra.mxu0 0.0
    %4565 = vmatprep.subr.mxu0 0.0
    %4566 = vmatpush1.xpose.msra.mxu0 0.0
    %4567 = vmatprep.subr.mxu0 0.0
    %4568 = vmatpush1.xpose.msra.mxu0 0.0
    %4569 = vmatprep.subr.mxu0 0.0
    %4570 = vmatpush1.xpose.msra.mxu0 0.0
    %4571 = vmatprep.subr.mxu0 0.0
    %4572 = vmatpush1.xpose.msra.mxu0 0.0
    %4573 = vmatprep.subr.mxu0 0.0
    %4574 = vmatpush1.xpose.msra.mxu0 0.0
    %4575 = vmatprep.subr.mxu0 0.0
    %4576 = vmatpush1.xpose.msra.mxu0 0.0
    %4577 = vmatprep.subr.mxu0 0.0
    %4578 = vmatpush1.xpose.msra.mxu0 0.0
    %4579 = vmatprep.subr.mxu0 0.0
    %4580 = vmatpush1.xpose.msra.mxu0 0.0
    %4581 = vmatprep.subr.mxu0 0.0
    %4582 = vmatpush1.xpose.msra.mxu0 0.0
    %4583 = vmatprep.subr.mxu0 0.0
    %4584 = vmatpush1.xpose.msra.mxu0 0.0
    %4585 = vmatprep.subr.mxu0 0.0
    %4586 = vmatpush1.xpose.msra.mxu0 0.0
    %4587 = vmatprep.subr.mxu0 0.0
    %4588 = vmatpush1.xpose.msra.mxu0 0.0
    %4589 = vmatprep.subr.mxu0 0.0
    %4590 = vmatpush1.xpose.msra.mxu0 0.0
    %4591 = vmatprep.subr.mxu0 0.0
    %4592 = vmatpush1.xpose.msra.mxu0 0.0
    %4593 = vmatprep.subr.mxu0 0.0
    %4594 = vmatpush1.xpose.msra.mxu0 0.0
    %4595 = vmatprep.subr.mxu0 0.0
    %4596 = vmatpush1.xpose.msra.mxu0 0.0
    %4597 = vmatprep.subr.mxu0 0.0
    %4598 = vmatpush1.xpose.msra.mxu0 0.0
    %4599 = vmatprep.subr.mxu0 0.0
    %4600 = vmatpush1.xpose.msra.mxu0 0.0
    %4601 = vmatprep.subr.mxu0 0.0
    %4602 = vmatpush1.xpose.msra.mxu0 0.0
    %4603 = vmatprep.subr.mxu0 0.0
    %4604 = vmatpush1.xpose.msra.mxu0 0.0
    %4605 = vmatprep.subr.mxu0 0.0
    %4606 = vmatpush1.xpose.msra.mxu0 0.0
    %4607 = vmatprep.subr.mxu0 0.0
    %4608 = vmatpush1.xpose.msra.mxu0 0.0
    %4609 = vmatprep.subr.mxu0 0.0
    %4610 = vmatpush1.xpose.msra.mxu0 0.0
    %4611 = vmatprep.subr.mxu0 0.0
    %4612 = vmatpush1.xpose.msra.mxu0 0.0
    %4613 = vmatprep.subr.mxu0 0.0
    %4614 = vmatpush1.xpose.msra.mxu0 0.0
    %4615 = vmatprep.mubr.f32.mxu0 0.0
    %4616 = vmatmul.mubr.f32.gmra.mrb[0].mxu0 %v4545
    %v4617 = vpop.f32.mrb[0].mxu0
    %v4618 = vadd.f32 0.0, %v4617
    %v4619 = vpop.f32.mrb[0].mxu0
    %4620 = vdwg.mxu0
    %4621 = vrot.lane.b32.xlu0 %v3874, 104
    %v4622 = vpop.permute.xlu0 %4621
    %4623 = vrot.lane.b32.xlu0 %v4045, 104
    %v4624 = vpop.permute.xlu0 %4623
    %4625 = vrot.lane.b32.xlu0 %v4050, 104
    %v4626 = vpop.permute.xlu0 %4625
    %v4627 = vsel %vm241, %v4622, 0
    %v4629 = vsel %vm241, %v4624, 0
    %v4631 = vsel %vm241, %v4626, 0
    %4633 = vmatprep.subr.mxu0 0.0
    %4634 = vmatpush1.xpose.msra.mxu0 %v4629
    %4635 = vmatprep.subr.mxu0 0.0
    %4636 = vmatpush1.xpose.msra.mxu0 %v4631
    %4637 = vmatprep.subr.mxu0 0.0
    %4638 = vmatpush1.xpose.msra.mxu0 0.0
    %4639 = vmatprep.subr.mxu0 0.0
    %4640 = vmatpush1.xpose.msra.mxu0 0.0
    %4641 = vmatprep.subr.mxu0 0.0
    %4642 = vmatpush1.xpose.msra.mxu0 0.0
    %4643 = vmatprep.subr.mxu0 0.0
    %4644 = vmatpush1.xpose.msra.mxu0 0.0
    %4645 = vmatprep.subr.mxu0 0.0
    %4646 = vmatpush1.xpose.msra.mxu0 0.0
    %4647 = vmatprep.subr.mxu0 0.0
    %4648 = vmatpush1.xpose.msra.mxu0 0.0
    %4649 = vmatprep.subr.mxu0 0.0
    %4650 = vmatpush1.xpose.msra.mxu0 0.0
    %4651 = vmatprep.subr.mxu0 0.0
    %4652 = vmatpush1.xpose.msra.mxu0 0.0
    %4653 = vmatprep.subr.mxu0 0.0
    %4654 = vmatpush1.xpose.msra.mxu0 0.0
    %4655 = vmatprep.subr.mxu0 0.0
    %4656 = vmatpush1.xpose.msra.mxu0 0.0
    %4657 = vmatprep.subr.mxu0 0.0
    %4658 = vmatpush1.xpose.msra.mxu0 0.0
    %4659 = vmatprep.subr.mxu0 0.0
    %4660 = vmatpush1.xpose.msra.mxu0 0.0
    %4661 = vmatprep.subr.mxu0 0.0
    %4662 = vmatpush1.xpose.msra.mxu0 0.0
    %4663 = vmatprep.subr.mxu0 0.0
    %4664 = vmatpush1.xpose.msra.mxu0 0.0
    %4665 = vmatprep.subr.mxu0 0.0
    %4666 = vmatpush1.xpose.msra.mxu0 0.0
    %4667 = vmatprep.subr.mxu0 0.0
    %4668 = vmatpush1.xpose.msra.mxu0 0.0
    %4669 = vmatprep.subr.mxu0 0.0
    %4670 = vmatpush1.xpose.msra.mxu0 0.0
    %4671 = vmatprep.subr.mxu0 0.0
    %4672 = vmatpush1.xpose.msra.mxu0 0.0
    %4673 = vmatprep.subr.mxu0 0.0
    %4674 = vmatpush1.xpose.msra.mxu0 0.0
    %4675 = vmatprep.subr.mxu0 0.0
    %4676 = vmatpush1.xpose.msra.mxu0 0.0
    %4677 = vmatprep.subr.mxu0 0.0
    %4678 = vmatpush1.xpose.msra.mxu0 0.0
    %4679 = vmatprep.subr.mxu0 0.0
    %4680 = vmatpush1.xpose.msra.mxu0 0.0
    %4681 = vmatprep.subr.mxu0 0.0
    %4682 = vmatpush1.xpose.msra.mxu0 0.0
    %4683 = vmatprep.subr.mxu0 0.0
    %4684 = vmatpush1.xpose.msra.mxu0 0.0
    %4685 = vmatprep.subr.mxu0 0.0
    %4686 = vmatpush1.xpose.msra.mxu0 0.0
    %4687 = vmatprep.subr.mxu0 0.0
    %4688 = vmatpush1.xpose.msra.mxu0 0.0
    %4689 = vmatprep.subr.mxu0 0.0
    %4690 = vmatpush1.xpose.msra.mxu0 0.0
    %4691 = vmatprep.subr.mxu0 0.0
    %4692 = vmatpush1.xpose.msra.mxu0 0.0
    %4693 = vmatprep.subr.mxu0 0.0
    %4694 = vmatpush1.xpose.msra.mxu0 0.0
    %4695 = vmatprep.subr.mxu0 0.0
    %4696 = vmatpush1.xpose.msra.mxu0 0.0
    %4697 = vmatprep.mubr.f32.mxu0 0.0
    %4698 = vmatmul.mubr.f32.gmra.mrb[0].mxu0 %v4627
    %v4699 = vpop.f32.mrb[0].mxu0
    %v4700 = vadd.f32 0.0, %v4699
    %v4701 = vpop.f32.mrb[0].mxu0
    %4702 = vdwg.mxu0
    %4703 = vrot.lane.b32.xlu0 %v3869, 96
    %v4704 = vpop.permute.xlu0 %4703
    %4705 = vrot.lane.b32.xlu0 %v4035, 96
    %v4706 = vpop.permute.xlu0 %4705
    %4707 = vrot.lane.b32.xlu0 %v4040, 96
    %v4708 = vpop.permute.xlu0 %4707
    %v4709 = vsel %vm241, %v4704, 0
    %v4711 = vsel %vm241, %v4706, 0
    %v4713 = vsel %vm241, %v4708, 0
    %4715 = vmatprep.subr.mxu0 0.0
    %4716 = vmatpush1.xpose.msra.mxu0 %v4711
    %4717 = vmatprep.subr.mxu0 0.0
    %4718 = vmatpush1.xpose.msra.mxu0 %v4713
    %4719 = vmatprep.subr.mxu0 0.0
    %4720 = vmatpush1.xpose.msra.mxu0 0.0
    %4721 = vmatprep.subr.mxu0 0.0
    %4722 = vmatpush1.xpose.msra.mxu0 0.0
    %4723 = vmatprep.subr.mxu0 0.0
    %4724 = vmatpush1.xpose.msra.mxu0 0.0
    %4725 = vmatprep.subr.mxu0 0.0
    %4726 = vmatpush1.xpose.msra.mxu0 0.0
    %4727 = vmatprep.subr.mxu0 0.0
    %4728 = vmatpush1.xpose.msra.mxu0 0.0
    %4729 = vmatprep.subr.mxu0 0.0
    %4730 = vmatpush1.xpose.msra.mxu0 0.0
    %4731 = vmatprep.subr.mxu0 0.0
    %4732 = vmatpush1.xpose.msra.mxu0 0.0
    %4733 = vmatprep.subr.mxu0 0.0
    %4734 = vmatpush1.xpose.msra.mxu0 0.0
    %4735 = vmatprep.subr.mxu0 0.0
    %4736 = vmatpush1.xpose.msra.mxu0 0.0
    %4737 = vmatprep.subr.mxu0 0.0
    %4738 = vmatpush1.xpose.msra.mxu0 0.0
    %4739 = vmatprep.subr.mxu0 0.0
    %4740 = vmatpush1.xpose.msra.mxu0 0.0
    %4741 = vmatprep.subr.mxu0 0.0
    %4742 = vmatpush1.xpose.msra.mxu0 0.0
    %4743 = vmatprep.subr.mxu0 0.0
    %4744 = vmatpush1.xpose.msra.mxu0 0.0
    %4745 = vmatprep.subr.mxu0 0.0
    %4746 = vmatpush1.xpose.msra.mxu0 0.0
    %4747 = vmatprep.subr.mxu0 0.0
    %4748 = vmatpush1.xpose.msra.mxu0 0.0
    %4749 = vmatprep.subr.mxu0 0.0
    %4750 = vmatpush1.xpose.msra.mxu0 0.0
    %4751 = vmatprep.subr.mxu0 0.0
    %4752 = vmatpush1.xpose.msra.mxu0 0.0
    %4753 = vmatprep.subr.mxu0 0.0
    %4754 = vmatpush1.xpose.msra.mxu0 0.0
    %4755 = vmatprep.subr.mxu0 0.0
    %4756 = vmatpush1.xpose.msra.mxu0 0.0
    %4757 = vmatprep.subr.mxu0 0.0
    %4758 = vmatpush1.xpose.msra.mxu0 0.0
    %4759 = vmatprep.subr.mxu0 0.0
    %4760 = vmatpush1.xpose.msra.mxu0 0.0
    %4761 = vmatprep.subr.mxu0 0.0
    %4762 = vmatpush1.xpose.msra.mxu0 0.0
    %4763 = vmatprep.subr.mxu0 0.0
    %4764 = vmatpush1.xpose.msra.mxu0 0.0
    %4765 = vmatprep.subr.mxu0 0.0
    %4766 = vmatpush1.xpose.msra.mxu0 0.0
    %4767 = vmatprep.subr.mxu0 0.0
    %4768 = vmatpush1.xpose.msra.mxu0 0.0
    %4769 = vmatprep.subr.mxu0 0.0
    %4770 = vmatpush1.xpose.msra.mxu0 0.0
    %4771 = vmatprep.subr.mxu0 0.0
    %4772 = vmatpush1.xpose.msra.mxu0 0.0
    %4773 = vmatprep.subr.mxu0 0.0
    %4774 = vmatpush1.xpose.msra.mxu0 0.0
    %4775 = vmatprep.subr.mxu0 0.0
    %4776 = vmatpush1.xpose.msra.mxu0 0.0
    %4777 = vmatprep.subr.mxu0 0.0
    %4778 = vmatpush1.xpose.msra.mxu0 0.0
    %4779 = vmatprep.mubr.f32.mxu0 0.0
    %4780 = vmatmul.mubr.f32.gmra.mrb[0].mxu0 %v4709
    %v4781 = vpop.f32.mrb[0].mxu0
    %v4782 = vadd.f32 0.0, %v4781
    %v4783 = vpop.f32.mrb[0].mxu0
    %4784 = vdwg.mxu0
    %4785 = vrot.lane.b32.xlu0 %v3874, 96
    %v4786 = vpop.permute.xlu0 %4785
    %4787 = vrot.lane.b32.xlu0 %v4045, 96
    %v4788 = vpop.permute.xlu0 %4787
    %4789 = vrot.lane.b32.xlu0 %v4050, 96
    %v4790 = vpop.permute.xlu0 %4789
    %v4791 = vsel %vm241, %v4786, 0
    %v4793 = vsel %vm241, %v4788, 0
    %v4795 = vsel %vm241, %v4790, 0
    %4797 = vmatprep.subr.mxu0 0.0
    %4798 = vmatpush1.xpose.msra.mxu0 %v4793
    %4799 = vmatprep.subr.mxu0 0.0
    %4800 = vmatpush1.xpose.msra.mxu0 %v4795
    %4801 = vmatprep.subr.mxu0 0.0
    %4802 = vmatpush1.xpose.msra.mxu0 0.0
    %4803 = vmatprep.subr.mxu0 0.0
    %4804 = vmatpush1.xpose.msra.mxu0 0.0
    %4805 = vmatprep.subr.mxu0 0.0
    %4806 = vmatpush1.xpose.msra.mxu0 0.0
    %4807 = vmatprep.subr.mxu0 0.0
    %4808 = vmatpush1.xpose.msra.mxu0 0.0
    %4809 = vmatprep.subr.mxu0 0.0
    %4810 = vmatpush1.xpose.msra.mxu0 0.0
    %4811 = vmatprep.subr.mxu0 0.0
    %4812 = vmatpush1.xpose.msra.mxu0 0.0
    %4813 = vmatprep.subr.mxu0 0.0
    %4814 = vmatpush1.xpose.msra.mxu0 0.0
    %4815 = vmatprep.subr.mxu0 0.0
    %4816 = vmatpush1.xpose.msra.mxu0 0.0
    %4817 = vmatprep.subr.mxu0 0.0
    %4818 = vmatpush1.xpose.msra.mxu0 0.0
    %4819 = vmatprep.subr.mxu0 0.0
    %4820 = vmatpush1.xpose.msra.mxu0 0.0
    %4821 = vmatprep.subr.mxu0 0.0
    %4822 = vmatpush1.xpose.msra.mxu0 0.0
    %4823 = vmatprep.subr.mxu0 0.0
    %4824 = vmatpush1.xpose.msra.mxu0 0.0
    %4825 = vmatprep.subr.mxu0 0.0
    %4826 = vmatpush1.xpose.msra.mxu0 0.0
    %4827 = vmatprep.subr.mxu0 0.0
    %4828 = vmatpush1.xpose.msra.mxu0 0.0
    %4829 = vmatprep.subr.mxu0 0.0
    %4830 = vmatpush1.xpose.msra.mxu0 0.0
    %4831 = vmatprep.subr.mxu0 0.0
    %4832 = vmatpush1.xpose.msra.mxu0 0.0
    %4833 = vmatprep.subr.mxu0 0.0
    %4834 = vmatpush1.xpose.msra.mxu0 0.0
    %4835 = vmatprep.subr.mxu0 0.0
    %4836 = vmatpush1.xpose.msra.mxu0 0.0
    %4837 = vmatprep.subr.mxu0 0.0
    %4838 = vmatpush1.xpose.msra.mxu0 0.0
    %4839 = vmatprep.subr.mxu0 0.0
    %4840 = vmatpush1.xpose.msra.mxu0 0.0
    %4841 = vmatprep.subr.mxu0 0.0
    %4842 = vmatpush1.xpose.msra.mxu0 0.0
    %4843 = vmatprep.subr.mxu0 0.0
    %4844 = vmatpush1.xpose.msra.mxu0 0.0
    %4845 = vmatprep.subr.mxu0 0.0
    %4846 = vmatpush1.xpose.msra.mxu0 0.0
    %4847 = vmatprep.subr.mxu0 0.0
    %4848 = vmatpush1.xpose.msra.mxu0 0.0
    %4849 = vmatprep.subr.mxu0 0.0
    %4850 = vmatpush1.xpose.msra.mxu0 0.0
    %4851 = vmatprep.subr.mxu0 0.0
    %4852 = vmatpush1.xpose.msra.mxu0 0.0
    %4853 = vmatprep.subr.mxu0 0.0
    %4854 = vmatpush1.xpose.msra.mxu0 0.0
    %4855 = vmatprep.subr.mxu0 0.0
    %4856 = vmatpush1.xpose.msra.mxu0 0.0
    %4857 = vmatprep.subr.mxu0 0.0
    %4858 = vmatpush1.xpose.msra.mxu0 0.0
    %4859 = vmatprep.subr.mxu0 0.0
    %4860 = vmatpush1.xpose.msra.mxu0 0.0
    %4861 = vmatprep.mubr.f32.mxu0 0.0
    %4862 = vmatmul.mubr.f32.gmra.mrb[0].mxu0 %v4791
    %v4863 = vpop.f32.mrb[0].mxu0
    %v4864 = vadd.f32 0.0, %v4863
    %v4865 = vpop.f32.mrb[0].mxu0
    %4866 = vdwg.mxu0
    %4867 = vrot.lane.b32.xlu0 %v3869, 88
    %v4868 = vpop.permute.xlu0 %4867
    %4869 = vrot.lane.b32.xlu0 %v4035, 88
    %v4870 = vpop.permute.xlu0 %4869
    %4871 = vrot.lane.b32.xlu0 %v4040, 88
    %v4872 = vpop.permute.xlu0 %4871
    %v4873 = vsel %vm241, %v4868, 0
    %v4875 = vsel %vm241, %v4870, 0
    %v4877 = vsel %vm241, %v4872, 0
    %4879 = vmatprep.subr.mxu0 0.0
    %4880 = vmatpush1.xpose.msra.mxu0 %v4875
    %4881 = vmatprep.subr.mxu0 0.0
    %4882 = vmatpush1.xpose.msra.mxu0 %v4877
    %4883 = vmatprep.subr.mxu0 0.0
    %4884 = vmatpush1.xpose.msra.mxu0 0.0
    %4885 = vmatprep.subr.mxu0 0.0
    %4886 = vmatpush1.xpose.msra.mxu0 0.0
    %4887 = vmatprep.subr.mxu0 0.0
    %4888 = vmatpush1.xpose.msra.mxu0 0.0
    %4889 = vmatprep.subr.mxu0 0.0
    %4890 = vmatpush1.xpose.msra.mxu0 0.0
    %4891 = vmatprep.subr.mxu0 0.0
    %4892 = vmatpush1.xpose.msra.mxu0 0.0
    %4893 = vmatprep.subr.mxu0 0.0
    %4894 = vmatpush1.xpose.msra.mxu0 0.0
    %4895 = vmatprep.subr.mxu0 0.0
    %4896 = vmatpush1.xpose.msra.mxu0 0.0
    %4897 = vmatprep.subr.mxu0 0.0
    %4898 = vmatpush1.xpose.msra.mxu0 0.0
    %4899 = vmatprep.subr.mxu0 0.0
    %4900 = vmatpush1.xpose.msra.mxu0 0.0
    %4901 = vmatprep.subr.mxu0 0.0
    %4902 = vmatpush1.xpose.msra.mxu0 0.0
    %4903 = vmatprep.subr.mxu0 0.0
    %4904 = vmatpush1.xpose.msra.mxu0 0.0
    %4905 = vmatprep.subr.mxu0 0.0
    %4906 = vmatpush1.xpose.msra.mxu0 0.0
    %4907 = vmatprep.subr.mxu0 0.0
    %4908 = vmatpush1.xpose.msra.mxu0 0.0
    %4909 = vmatprep.subr.mxu0 0.0
    %4910 = vmatpush1.xpose.msra.mxu0 0.0
    %4911 = vmatprep.subr.mxu0 0.0
    %4912 = vmatpush1.xpose.msra.mxu0 0.0
    %4913 = vmatprep.subr.mxu0 0.0
    %4914 = vmatpush1.xpose.msra.mxu0 0.0
    %4915 = vmatprep.subr.mxu0 0.0
    %4916 = vmatpush1.xpose.msra.mxu0 0.0
    %4917 = vmatprep.subr.mxu0 0.0
    %4918 = vmatpush1.xpose.msra.mxu0 0.0
    %4919 = vmatprep.subr.mxu0 0.0
    %4920 = vmatpush1.xpose.msra.mxu0 0.0
    %4921 = vmatprep.subr.mxu0 0.0
    %4922 = vmatpush1.xpose.msra.mxu0 0.0
    %4923 = vmatprep.subr.mxu0 0.0
    %4924 = vmatpush1.xpose.msra.mxu0 0.0
    %4925 = vmatprep.subr.mxu0 0.0
    %4926 = vmatpush1.xpose.msra.mxu0 0.0
    %4927 = vmatprep.subr.mxu0 0.0
    %4928 = vmatpush1.xpose.msra.mxu0 0.0
    %4929 = vmatprep.subr.mxu0 0.0
    %4930 = vmatpush1.xpose.msra.mxu0 0.0
    %4931 = vmatprep.subr.mxu0 0.0
    %4932 = vmatpush1.xpose.msra.mxu0 0.0
    %4933 = vmatprep.subr.mxu0 0.0
    %4934 = vmatpush1.xpose.msra.mxu0 0.0
    %4935 = vmatprep.subr.mxu0 0.0
    %4936 = vmatpush1.xpose.msra.mxu0 0.0
    %4937 = vmatprep.subr.mxu0 0.0
    %4938 = vmatpush1.xpose.msra.mxu0 0.0
    %4939 = vmatprep.subr.mxu0 0.0
    %4940 = vmatpush1.xpose.msra.mxu0 0.0
    %4941 = vmatprep.subr.mxu0 0.0
    %4942 = vmatpush1.xpose.msra.mxu0 0.0
    %4943 = vmatprep.mubr.f32.mxu0 0.0
    %4944 = vmatmul.mubr.f32.gmra.mrb[0].mxu0 %v4873
    %v4945 = vpop.f32.mrb[0].mxu0
    %v4946 = vadd.f32 0.0, %v4945
    %v4947 = vpop.f32.mrb[0].mxu0
    %4948 = vdwg.mxu0
    %4949 = vrot.lane.b32.xlu0 %v3874, 88
    %v4950 = vpop.permute.xlu0 %4949
    %4951 = vrot.lane.b32.xlu0 %v4045, 88
    %v4952 = vpop.permute.xlu0 %4951
    %4953 = vrot.lane.b32.xlu0 %v4050, 88
    %v4954 = vpop.permute.xlu0 %4953
    %v4955 = vsel %vm241, %v4950, 0
    %v4957 = vsel %vm241, %v4952, 0
    %v4959 = vsel %vm241, %v4954, 0
    %4961 = vmatprep.subr.mxu0 0.0
    %4962 = vmatpush1.xpose.msra.mxu0 %v4957
    %4963 = vmatprep.subr.mxu0 0.0
    %4964 = vmatpush1.xpose.msra.mxu0 %v4959
    %4965 = vmatprep.subr.mxu0 0.0
    %4966 = vmatpush1.xpose.msra.mxu0 0.0
    %4967 = vmatprep.subr.mxu0 0.0
    %4968 = vmatpush1.xpose.msra.mxu0 0.0
    %4969 = vmatprep.subr.mxu0 0.0
    %4970 = vmatpush1.xpose.msra.mxu0 0.0
    %4971 = vmatprep.subr.mxu0 0.0
    %4972 = vmatpush1.xpose.msra.mxu0 0.0
    %4973 = vmatprep.subr.mxu0 0.0
    %4974 = vmatpush1.xpose.msra.mxu0 0.0
    %4975 = vmatprep.subr.mxu0 0.0
    %4976 = vmatpush1.xpose.msra.mxu0 0.0
    %4977 = vmatprep.subr.mxu0 0.0
    %4978 = vmatpush1.xpose.msra.mxu0 0.0
    %4979 = vmatprep.subr.mxu0 0.0
    %4980 = vmatpush1.xpose.msra.mxu0 0.0
    %4981 = vmatprep.subr.mxu0 0.0
    %4982 = vmatpush1.xpose.msra.mxu0 0.0
    %4983 = vmatprep.subr.mxu0 0.0
    %4984 = vmatpush1.xpose.msra.mxu0 0.0
    %4985 = vmatprep.subr.mxu0 0.0
    %4986 = vmatpush1.xpose.msra.mxu0 0.0
    %4987 = vmatprep.subr.mxu0 0.0
    %4988 = vmatpush1.xpose.msra.mxu0 0.0
    %4989 = vmatprep.subr.mxu0 0.0
    %4990 = vmatpush1.xpose.msra.mxu0 0.0
    %4991 = vmatprep.subr.mxu0 0.0
    %4992 = vmatpush1.xpose.msra.mxu0 0.0
    %4993 = vmatprep.subr.mxu0 0.0
    %4994 = vmatpush1.xpose.msra.mxu0 0.0
    %4995 = vmatprep.subr.mxu0 0.0
    %4996 = vmatpush1.xpose.msra.mxu0 0.0
    %4997 = vmatprep.subr.mxu0 0.0
    %4998 = vmatpush1.xpose.msra.mxu0 0.0
    %4999 = vmatprep.subr.mxu0 0.0
    %5000 = vmatpush1.xpose.msra.mxu0 0.0
    %5001 = vmatprep.subr.mxu0 0.0
    %5002 = vmatpush1.xpose.msra.mxu0 0.0
    %5003 = vmatprep.subr.mxu0 0.0
    %5004 = vmatpush1.xpose.msra.mxu0 0.0
    %5005 = vmatprep.subr.mxu0 0.0
    %5006 = vmatpush1.xpose.msra.mxu0 0.0
    %5007 = vmatprep.subr.mxu0 0.0
    %5008 = vmatpush1.xpose.msra.mxu0 0.0
    %5009 = vmatprep.subr.mxu0 0.0
    %5010 = vmatpush1.xpose.msra.mxu0 0.0
    %5011 = vmatprep.subr.mxu0 0.0
    %5012 = vmatpush1.xpose.msra.mxu0 0.0
    %5013 = vmatprep.subr.mxu0 0.0
    %5014 = vmatpush1.xpose.msra.mxu0 0.0
    %5015 = vmatprep.subr.mxu0 0.0
    %5016 = vmatpush1.xpose.msra.mxu0 0.0
    %5017 = vmatprep.subr.mxu0 0.0
    %5018 = vmatpush1.xpose.msra.mxu0 0.0
    %5019 = vmatprep.subr.mxu0 0.0
    %5020 = vmatpush1.xpose.msra.mxu0 0.0
    %5021 = vmatprep.subr.mxu0 0.0
    %5022 = vmatpush1.xpose.msra.mxu0 0.0
    %5023 = vmatprep.subr.mxu0 0.0
    %5024 = vmatpush1.xpose.msra.mxu0 0.0
    %5025 = vmatprep.mubr.f32.mxu0 0.0
    %5026 = vmatmul.mubr.f32.gmra.mrb[0].mxu0 %v4955
    %v5027 = vpop.f32.mrb[0].mxu0
    %v5028 = vadd.f32 0.0, %v5027
    %v5029 = vpop.f32.mrb[0].mxu0
    %5030 = vdwg.mxu0
    %5031 = vrot.lane.b32.xlu0 %v3869, 80
    %v5032 = vpop.permute.xlu0 %5031
    %5033 = vrot.lane.b32.xlu0 %v4035, 80
    %v5034 = vpop.permute.xlu0 %5033
    %5035 = vrot.lane.b32.xlu0 %v4040, 80
    %v5036 = vpop.permute.xlu0 %5035
    %v5037 = vsel %vm241, %v5032, 0
    %v5039 = vsel %vm241, %v5034, 0
    %v5041 = vsel %vm241, %v5036, 0
    %5043 = vmatprep.subr.mxu0 0.0
    %5044 = vmatpush1.xpose.msra.mxu0 %v5039
    %5045 = vmatprep.subr.mxu0 0.0
    %5046 = vmatpush1.xpose.msra.mxu0 %v5041
    %5047 = vmatprep.subr.mxu0 0.0
    %5048 = vmatpush1.xpose.msra.mxu0 0.0
    %5049 = vmatprep.subr.mxu0 0.0
    %5050 = vmatpush1.xpose.msra.mxu0 0.0
    %5051 = vmatprep.subr.mxu0 0.0
    %5052 = vmatpush1.xpose.msra.mxu0 0.0
    %5053 = vmatprep.subr.mxu0 0.0
    %5054 = vmatpush1.xpose.msra.mxu0 0.0
    %5055 = vmatprep.subr.mxu0 0.0
    %5056 = vmatpush1.xpose.msra.mxu0 0.0
    %5057 = vmatprep.subr.mxu0 0.0
    %5058 = vmatpush1.xpose.msra.mxu0 0.0
    %5059 = vmatprep.subr.mxu0 0.0
    %5060 = vmatpush1.xpose.msra.mxu0 0.0
    %5061 = vmatprep.subr.mxu0 0.0
    %5062 = vmatpush1.xpose.msra.mxu0 0.0
    %5063 = vmatprep.subr.mxu0 0.0
    %5064 = vmatpush1.xpose.msra.mxu0 0.0
    %5065 = vmatprep.subr.mxu0 0.0
    %5066 = vmatpush1.xpose.msra.mxu0 0.0
    %5067 = vmatprep.subr.mxu0 0.0
    %5068 = vmatpush1.xpose.msra.mxu0 0.0
    %5069 = vmatprep.subr.mxu0 0.0
    %5070 = vmatpush1.xpose.msra.mxu0 0.0
    %5071 = vmatprep.subr.mxu0 0.0
    %5072 = vmatpush1.xpose.msra.mxu0 0.0
    %5073 = vmatprep.subr.mxu0 0.0
    %5074 = vmatpush1.xpose.msra.mxu0 0.0
    %5075 = vmatprep.subr.mxu0 0.0
    %5076 = vmatpush1.xpose.msra.mxu0 0.0
    %5077 = vmatprep.subr.mxu0 0.0
    %5078 = vmatpush1.xpose.msra.mxu0 0.0
    %5079 = vmatprep.subr.mxu0 0.0
    %5080 = vmatpush1.xpose.msra.mxu0 0.0
    %5081 = vmatprep.subr.mxu0 0.0
    %5082 = vmatpush1.xpose.msra.mxu0 0.0
    %5083 = vmatprep.subr.mxu0 0.0
    %5084 = vmatpush1.xpose.msra.mxu0 0.0
    %5085 = vmatprep.subr.mxu0 0.0
    %5086 = vmatpush1.xpose.msra.mxu0 0.0
    %5087 = vmatprep.subr.mxu0 0.0
    %5088 = vmatpush1.xpose.msra.mxu0 0.0
    %5089 = vmatprep.subr.mxu0 0.0
    %5090 = vmatpush1.xpose.msra.mxu0 0.0
    %5091 = vmatprep.subr.mxu0 0.0
    %5092 = vmatpush1.xpose.msra.mxu0 0.0
    %5093 = vmatprep.subr.mxu0 0.0
    %5094 = vmatpush1.xpose.msra.mxu0 0.0
    %5095 = vmatprep.subr.mxu0 0.0
    %5096 = vmatpush1.xpose.msra.mxu0 0.0
    %5097 = vmatprep.subr.mxu0 0.0
    %5098 = vmatpush1.xpose.msra.mxu0 0.0
    %5099 = vmatprep.subr.mxu0 0.0
    %5100 = vmatpush1.xpose.msra.mxu0 0.0
    %5101 = vmatprep.subr.mxu0 0.0
    %5102 = vmatpush1.xpose.msra.mxu0 0.0
    %5103 = vmatprep.subr.mxu0 0.0
    %5104 = vmatpush1.xpose.msra.mxu0 0.0
    %5105 = vmatprep.subr.mxu0 0.0
    %5106 = vmatpush1.xpose.msra.mxu0 0.0
    %5107 = vmatprep.mubr.f32.mxu0 0.0
    %5108 = vmatmul.mubr.f32.gmra.mrb[0].mxu0 %v5037
    %v5109 = vpop.f32.mrb[0].mxu0
    %v5110 = vadd.f32 0.0, %v5109
    %v5111 = vpop.f32.mrb[0].mxu0
    %5112 = vdwg.mxu0
    %5113 = vrot.lane.b32.xlu0 %v3874, 80
    %v5114 = vpop.permute.xlu0 %5113
    %5115 = vrot.lane.b32.xlu0 %v4045, 80
    %v5116 = vpop.permute.xlu0 %5115
    %5117 = vrot.lane.b32.xlu0 %v4050, 80
    %v5118 = vpop.permute.xlu0 %5117
    %v5119 = vsel %vm241, %v5114, 0
    %v5121 = vsel %vm241, %v5116, 0
    %v5123 = vsel %vm241, %v5118, 0
    %5125 = vmatprep.subr.mxu0 0.0
    %5126 = vmatpush1.xpose.msra.mxu0 %v5121
    %5127 = vmatprep.subr.mxu0 0.0
    %5128 = vmatpush1.xpose.msra.mxu0 %v5123
    %5129 = vmatprep.subr.mxu0 0.0
    %5130 = vmatpush1.xpose.msra.mxu0 0.0
    %5131 = vmatprep.subr.mxu0 0.0
    %5132 = vmatpush1.xpose.msra.mxu0 0.0
    %5133 = vmatprep.subr.mxu0 0.0
    %5134 = vmatpush1.xpose.msra.mxu0 0.0
    %5135 = vmatprep.subr.mxu0 0.0
    %5136 = vmatpush1.xpose.msra.mxu0 0.0
    %5137 = vmatprep.subr.mxu0 0.0
    %5138 = vmatpush1.xpose.msra.mxu0 0.0
    %5139 = vmatprep.subr.mxu0 0.0
    %5140 = vmatpush1.xpose.msra.mxu0 0.0
    %5141 = vmatprep.subr.mxu0 0.0
    %5142 = vmatpush1.xpose.msra.mxu0 0.0
    %5143 = vmatprep.subr.mxu0 0.0
    %5144 = vmatpush1.xpose.msra.mxu0 0.0
    %5145 = vmatprep.subr.mxu0 0.0
    %5146 = vmatpush1.xpose.msra.mxu0 0.0
    %5147 = vmatprep.subr.mxu0 0.0
    %5148 = vmatpush1.xpose.msra.mxu0 0.0
    %5149 = vmatprep.subr.mxu0 0.0
    %5150 = vmatpush1.xpose.msra.mxu0 0.0
    %5151 = vmatprep.subr.mxu0 0.0
    %5152 = vmatpush1.xpose.msra.mxu0 0.0
    %5153 = vmatprep.subr.mxu0 0.0
    %5154 = vmatpush1.xpose.msra.mxu0 0.0
    %5155 = vmatprep.subr.mxu0 0.0
    %5156 = vmatpush1.xpose.msra.mxu0 0.0
    %5157 = vmatprep.subr.mxu0 0.0
    %5158 = vmatpush1.xpose.msra.mxu0 0.0
    %5159 = vmatprep.subr.mxu0 0.0
    %5160 = vmatpush1.xpose.msra.mxu0 0.0
    %5161 = vmatprep.subr.mxu0 0.0
    %5162 = vmatpush1.xpose.msra.mxu0 0.0
    %5163 = vmatprep.subr.mxu0 0.0
    %5164 = vmatpush1.xpose.msra.mxu0 0.0
    %5165 = vmatprep.subr.mxu0 0.0
    %5166 = vmatpush1.xpose.msra.mxu0 0.0
    %5167 = vmatprep.subr.mxu0 0.0
    %5168 = vmatpush1.xpose.msra.mxu0 0.0
    %5169 = vmatprep.subr.mxu0 0.0
    %5170 = vmatpush1.xpose.msra.mxu0 0.0
    %5171 = vmatprep.subr.mxu0 0.0
    %5172 = vmatpush1.xpose.msra.mxu0 0.0
    %5173 = vmatprep.subr.mxu0 0.0
    %5174 = vmatpush1.xpose.msra.mxu0 0.0
    %5175 = vmatprep.subr.mxu0 0.0
    %5176 = vmatpush1.xpose.msra.mxu0 0.0
    %5177 = vmatprep.subr.mxu0 0.0
    %5178 = vmatpush1.xpose.msra.mxu0 0.0
    %5179 = vmatprep.subr.mxu0 0.0
    %5180 = vmatpush1.xpose.msra.mxu0 0.0
    %5181 = vmatprep.subr.mxu0 0.0
    %5182 = vmatpush1.xpose.msra.mxu0 0.0
    %5183 = vmatprep.subr.mxu0 0.0
    %5184 = vmatpush1.xpose.msra.mxu0 0.0
    %5185 = vmatprep.subr.mxu0 0.0
    %5186 = vmatpush1.xpose.msra.mxu0 0.0
    %5187 = vmatprep.subr.mxu0 0.0
    %5188 = vmatpush1.xpose.msra.mxu0 0.0
    %5189 = vmatprep.mubr.f32.mxu0 0.0
    %5190 = vmatmul.mubr.f32.gmra.mrb[0].mxu0 %v5119
    %v5191 = vpop.f32.mrb[0].mxu0
    %v5192 = vadd.f32 0.0, %v5191
    %v5193 = vpop.f32.mrb[0].mxu0
    %5194 = vdwg.mxu0
    %5195 = vrot.lane.b32.xlu0 %v3869, 72
    %v5196 = vpop.permute.xlu0 %5195
    %5197 = vrot.lane.b32.xlu0 %v4035, 72
    %v5198 = vpop.permute.xlu0 %5197
    %5199 = vrot.lane.b32.xlu0 %v4040, 72
    %v5200 = vpop.permute.xlu0 %5199
    %v5201 = vsel %vm241, %v5196, 0
    %v5203 = vsel %vm241, %v5198, 0
    %v5205 = vsel %vm241, %v5200, 0
    %5207 = vmatprep.subr.mxu0 0.0
    %5208 = vmatpush1.xpose.msra.mxu0 %v5203
    %5209 = vmatprep.subr.mxu0 0.0
    %5210 = vmatpush1.xpose.msra.mxu0 %v5205
    %5211 = vmatprep.subr.mxu0 0.0
    %5212 = vmatpush1.xpose.msra.mxu0 0.0
    %5213 = vmatprep.subr.mxu0 0.0
    %5214 = vmatpush1.xpose.msra.mxu0 0.0
    %5215 = vmatprep.subr.mxu0 0.0
    %5216 = vmatpush1.xpose.msra.mxu0 0.0
    %5217 = vmatprep.subr.mxu0 0.0
    %5218 = vmatpush1.xpose.msra.mxu0 0.0
    %5219 = vmatprep.subr.mxu0 0.0
    %5220 = vmatpush1.xpose.msra.mxu0 0.0
    %5221 = vmatprep.subr.mxu0 0.0
    %5222 = vmatpush1.xpose.msra.mxu0 0.0
    %5223 = vmatprep.subr.mxu0 0.0
    %5224 = vmatpush1.xpose.msra.mxu0 0.0
    %5225 = vmatprep.subr.mxu0 0.0
    %5226 = vmatpush1.xpose.msra.mxu0 0.0
    %5227 = vmatprep.subr.mxu0 0.0
    %5228 = vmatpush1.xpose.msra.mxu0 0.0
    %5229 = vmatprep.subr.mxu0 0.0
    %5230 = vmatpush1.xpose.msra.mxu0 0.0
    %5231 = vmatprep.subr.mxu0 0.0
    %5232 = vmatpush1.xpose.msra.mxu0 0.0
    %5233 = vmatprep.subr.mxu0 0.0
    %5234 = vmatpush1.xpose.msra.mxu0 0.0
    %5235 = vmatprep.subr.mxu0 0.0
    %5236 = vmatpush1.xpose.msra.mxu0 0.0
    %5237 = vmatprep.subr.mxu0 0.0
    %5238 = vmatpush1.xpose.msra.mxu0 0.0
    %5239 = vmatprep.subr.mxu0 0.0
    %5240 = vmatpush1.xpose.msra.mxu0 0.0
    %5241 = vmatprep.subr.mxu0 0.0
    %5242 = vmatpush1.xpose.msra.mxu0 0.0
    %5243 = vmatprep.subr.mxu0 0.0
    %5244 = vmatpush1.xpose.msra.mxu0 0.0
    %5245 = vmatprep.subr.mxu0 0.0
    %5246 = vmatpush1.xpose.msra.mxu0 0.0
    %5247 = vmatprep.subr.mxu0 0.0
    %5248 = vmatpush1.xpose.msra.mxu0 0.0
    %5249 = vmatprep.subr.mxu0 0.0
    %5250 = vmatpush1.xpose.msra.mxu0 0.0
    %5251 = vmatprep.subr.mxu0 0.0
    %5252 = vmatpush1.xpose.msra.mxu0 0.0
    %5253 = vmatprep.subr.mxu0 0.0
    %5254 = vmatpush1.xpose.msra.mxu0 0.0
    %5255 = vmatprep.subr.mxu0 0.0
    %5256 = vmatpush1.xpose.msra.mxu0 0.0
    %5257 = vmatprep.subr.mxu0 0.0
    %5258 = vmatpush1.xpose.msra.mxu0 0.0
    %5259 = vmatprep.subr.mxu0 0.0
    %5260 = vmatpush1.xpose.msra.mxu0 0.0
    %5261 = vmatprep.subr.mxu0 0.0
    %5262 = vmatpush1.xpose.msra.mxu0 0.0
    %5263 = vmatprep.subr.mxu0 0.0
    %5264 = vmatpush1.xpose.msra.mxu0 0.0
    %5265 = vmatprep.subr.mxu0 0.0
    %5266 = vmatpush1.xpose.msra.mxu0 0.0
    %5267 = vmatprep.subr.mxu0 0.0
    %5268 = vmatpush1.xpose.msra.mxu0 0.0
    %5269 = vmatprep.subr.mxu0 0.0
    %5270 = vmatpush1.xpose.msra.mxu0 0.0
    %5271 = vmatprep.mubr.f32.mxu0 0.0
    %5272 = vmatmul.mubr.f32.gmra.mrb[0].mxu0 %v5201
    %v5273 = vpop.f32.mrb[0].mxu0
    %v5274 = vadd.f32 0.0, %v5273
    %v5275 = vpop.f32.mrb[0].mxu0
    %5276 = vdwg.mxu0
    %5277 = vrot.lane.b32.xlu0 %v3874, 72
    %v5278 = vpop.permute.xlu0 %5277
    %5279 = vrot.lane.b32.xlu0 %v4045, 72
    %v5280 = vpop.permute.xlu0 %5279
    %5281 = vrot.lane.b32.xlu0 %v4050, 72
    %v5282 = vpop.permute.xlu0 %5281
    %v5283 = vsel %vm241, %v5278, 0
    %v5285 = vsel %vm241, %v5280, 0
    %v5287 = vsel %vm241, %v5282, 0
    %5289 = vmatprep.subr.mxu0 0.0
    %5290 = vmatpush1.xpose.msra.mxu0 %v5285
    %5291 = vmatprep.subr.mxu0 0.0
    %5292 = vmatpush1.xpose.msra.mxu0 %v5287
    %5293 = vmatprep.subr.mxu0 0.0
    %5294 = vmatpush1.xpose.msra.mxu0 0.0
    %5295 = vmatprep.subr.mxu0 0.0
    %5296 = vmatpush1.xpose.msra.mxu0 0.0
    %5297 = vmatprep.subr.mxu0 0.0
    %5298 = vmatpush1.xpose.msra.mxu0 0.0
    %5299 = vmatprep.subr.mxu0 0.0
    %5300 = vmatpush1.xpose.msra.mxu0 0.0
    %5301 = vmatprep.subr.mxu0 0.0
    %5302 = vmatpush1.xpose.msra.mxu0 0.0
    %5303 = vmatprep.subr.mxu0 0.0
    %5304 = vmatpush1.xpose.msra.mxu0 0.0
    %5305 = vmatprep.subr.mxu0 0.0
    %5306 = vmatpush1.xpose.msra.mxu0 0.0
    %5307 = vmatprep.subr.mxu0 0.0
    %5308 = vmatpush1.xpose.msra.mxu0 0.0
    %5309 = vmatprep.subr.mxu0 0.0
    %5310 = vmatpush1.xpose.msra.mxu0 0.0
    %5311 = vmatprep.subr.mxu0 0.0
    %5312 = vmatpush1.xpose.msra.mxu0 0.0
    %5313 = vmatprep.subr.mxu0 0.0
    %5314 = vmatpush1.xpose.msra.mxu0 0.0
    %5315 = vmatprep.subr.mxu0 0.0
    %5316 = vmatpush1.xpose.msra.mxu0 0.0
    %5317 = vmatprep.subr.mxu0 0.0
    %5318 = vmatpush1.xpose.msra.mxu0 0.0
    %5319 = vmatprep.subr.mxu0 0.0
    %5320 = vmatpush1.xpose.msra.mxu0 0.0
    %5321 = vmatprep.subr.mxu0 0.0
    %5322 = vmatpush1.xpose.msra.mxu0 0.0
    %5323 = vmatprep.subr.mxu0 0.0
    %5324 = vmatpush1.xpose.msra.mxu0 0.0
    %5325 = vmatprep.subr.mxu0 0.0
    %5326 = vmatpush1.xpose.msra.mxu0 0.0
    %5327 = vmatprep.subr.mxu0 0.0
    %5328 = vmatpush1.xpose.msra.mxu0 0.0
    %5329 = vmatprep.subr.mxu0 0.0
    %5330 = vmatpush1.xpose.msra.mxu0 0.0
    %5331 = vmatprep.subr.mxu0 0.0
    %5332 = vmatpush1.xpose.msra.mxu0 0.0
    %5333 = vmatprep.subr.mxu0 0.0
    %5334 = vmatpush1.xpose.msra.mxu0 0.0
    %5335 = vmatprep.subr.mxu0 0.0
    %5336 = vmatpush1.xpose.msra.mxu0 0.0
    %5337 = vmatprep.subr.mxu0 0.0
    %5338 = vmatpush1.xpose.msra.mxu0 0.0
    %5339 = vmatprep.subr.mxu0 0.0
    %5340 = vmatpush1.xpose.msra.mxu0 0.0
    %5341 = vmatprep.subr.mxu0 0.0
    %5342 = vmatpush1.xpose.msra.mxu0 0.0
    %5343 = vmatprep.subr.mxu0 0.0
    %5344 = vmatpush1.xpose.msra.mxu0 0.0
    %5345 = vmatprep.subr.mxu0 0.0
    %5346 = vmatpush1.xpose.msra.mxu0 0.0
    %5347 = vmatprep.subr.mxu0 0.0
    %5348 = vmatpush1.xpose.msra.mxu0 0.0
    %5349 = vmatprep.subr.mxu0 0.0
    %5350 = vmatpush1.xpose.msra.mxu0 0.0
    %5351 = vmatprep.subr.mxu0 0.0
    %5352 = vmatpush1.xpose.msra.mxu0 0.0
    %5353 = vmatprep.mubr.f32.mxu0 0.0
    %5354 = vmatmul.mubr.f32.gmra.mrb[0].mxu0 %v5283
    %v5355 = vpop.f32.mrb[0].mxu0
    %v5356 = vadd.f32 0.0, %v5355
    %v5357 = vpop.f32.mrb[0].mxu0
    %5358 = vdwg.mxu0
    %vm5359 = vcmask 130048
    %v5360 = vsel %vm5359, %v4129, -inf
    %5361 = vmax.xlane.f32.xlu0 %v5360
    %v5362 = vpop.xlane.xlu0 %5361
    %v5363 = vsel %vm5359, %v4208, -inf
    %5364 = vmax.xlane.f32.xlu0 %v5363
    %v5365 = vpop.xlane.xlu0 %5364
    %v5366 = vsel %vm5359, %v4290, -inf
    %5367 = vmax.xlane.f32.xlu0 %v5366
    %v5368 = vpop.xlane.xlu0 %5367
    %v5369 = vsel %vm5359, %v4372, -inf
    %5370 = vmax.xlane.f32.xlu0 %v5369
    %v5371 = vpop.xlane.xlu0 %5370
    %v5372 = vsel %vm5359, %v4454, -inf
    %5373 = vmax.xlane.f32.xlu0 %v5372
    %v5374 = vpop.xlane.xlu0 %5373
    %v5375 = vsel %vm5359, %v4536, -inf
    %5376 = vmax.xlane.f32.xlu0 %v5375
    %v5377 = vpop.xlane.xlu0 %5376
    %v5378 = vsel %vm5359, %v4618, -inf
    %5379 = vmax.xlane.f32.xlu0 %v5378
    %v5380 = vpop.xlane.xlu0 %5379
    %v5381 = vsel %vm5359, %v4700, -inf
    %5382 = vmax.xlane.f32.xlu0 %v5381
    %v5383 = vpop.xlane.xlu0 %5382
    %v5384 = vsel %vm5359, %v4782, -inf
    %5385 = vmax.xlane.f32.xlu0 %v5384
    %v5386 = vpop.xlane.xlu0 %5385
    %v5387 = vsel %vm5359, %v4864, -inf
    %5388 = vmax.xlane.f32.xlu0 %v5387
    %v5389 = vpop.xlane.xlu0 %5388
    %v5390 = vsel %vm5359, %v4946, -inf
    %5391 = vmax.xlane.f32.xlu0 %v5390
    %v5392 = vpop.xlane.xlu0 %5391
    %v5393 = vsel %vm5359, %v5028, -inf
    %5394 = vmax.xlane.f32.xlu0 %v5393
    %v5395 = vpop.xlane.xlu0 %5394
    %v5396 = vsel %vm5359, %v5110, -inf
    %5397 = vmax.xlane.f32.xlu0 %v5396
    %v5398 = vpop.xlane.xlu0 %5397
    %v5399 = vsel %vm5359, %v5192, -inf
    %5400 = vmax.xlane.f32.xlu0 %v5399
    %v5401 = vpop.xlane.xlu0 %5400
    %v5402 = vsel %vm5359, %v5274, -inf
    %5403 = vmax.xlane.f32.xlu0 %v5402
    %v5404 = vpop.xlane.xlu0 %5403
    %v5405 = vsel %vm5359, %v5356, -inf
    %5406 = vmax.xlane.f32.xlu0 %v5405
    %v5407 = vpop.xlane.xlu0 %5406
    %v5408 = vsub.f32 %v4129, %v5362
    %v5409 = vsub.f32 %v4208, %v5365
    %v5410 = vsub.f32 %v4290, %v5368
    %v5411 = vsub.f32 %v4372, %v5371
    %v5412 = vsub.f32 %v4454, %v5374
    %v5413 = vsub.f32 %v4536, %v5377
    %v5414 = vsub.f32 %v4618, %v5380
    %v5415 = vsub.f32 %v4700, %v5383
    %v5416 = vsub.f32 %v4782, %v5386
    %v5417 = vsub.f32 %v4864, %v5389
    %v5418 = vsub.f32 %v4946, %v5392
    %v5419 = vsub.f32 %v5028, %v5395
    %v5420 = vsub.f32 %v5110, %v5398
    %v5421 = vsub.f32 %v5192, %v5401
    %v5422 = vsub.f32 %v5274, %v5404
    %v5423 = vsub.f32 %v5356, %v5407
    %v5424 = vmul.f32 %v5408, 1.442695
    %v5425 = vpow.pop %v5424
    %v5426 = vmul.f32 %v5409, 1.442695
    %v5427 = vpow.pop %v5426
    %v5428 = vmul.f32 %v5410, 1.442695
    %v5429 = vpow.pop %v5428
    %v5430 = vmul.f32 %v5411, 1.442695
    %v5431 = vpow.pop %v5430
    %v5432 = vmul.f32 %v5412, 1.442695
    %v5433 = vpow.pop %v5432
    %v5434 = vmul.f32 %v5413, 1.442695
    %v5435 = vpow.pop %v5434
    %v5436 = vmul.f32 %v5414, 1.442695
    %v5437 = vpow.pop %v5436
    %v5438 = vmul.f32 %v5415, 1.442695
    %v5439 = vpow.pop %v5438
    %v5440 = vmul.f32 %v5416, 1.442695
    %v5441 = vpow.pop %v5440
    %v5442 = vmul.f32 %v5417, 1.442695
    %v5443 = vpow.pop %v5442
    %v5444 = vmul.f32 %v5418, 1.442695
    %v5445 = vpow.pop %v5444
    %v5446 = vmul.f32 %v5419, 1.442695
    %v5447 = vpow.pop %v5446
    %v5448 = vmul.f32 %v5420, 1.442695
    %v5449 = vpow.pop %v5448
    %v5450 = vmul.f32 %v5421, 1.442695
    %v5451 = vpow.pop %v5450
    %v5452 = vmul.f32 %v5422, 1.442695
    %v5453 = vpow.pop %v5452
    %v5454 = vmul.f32 %v5423, 1.442695
    %v5455 = vpow.pop %v5454
    %v5456 = vsel %vm5359, %v5425, 0.0
    %5457 = vadd.xlane.f32.xlu0 %v5456
    %v5458 = vpop.xlane.xlu0 %5457
    %v5459 = vsel %vm5359, %v5427, 0.0
    %5460 = vadd.xlane.f32.xlu0 %v5459
    %v5461 = vpop.xlane.xlu0 %5460
    %v5462 = vsel %vm5359, %v5429, 0.0
    %5463 = vadd.xlane.f32.xlu0 %v5462
    %v5464 = vpop.xlane.xlu0 %5463
    %v5465 = vsel %vm5359, %v5431, 0.0
    %5466 = vadd.xlane.f32.xlu0 %v5465
    %v5467 = vpop.xlane.xlu0 %5466
    %v5468 = vsel %vm5359, %v5433, 0.0
    %5469 = vadd.xlane.f32.xlu0 %v5468
    %v5470 = vpop.xlane.xlu0 %5469
    %v5471 = vsel %vm5359, %v5435, 0.0
    %5472 = vadd.xlane.f32.xlu0 %v5471
    %v5473 = vpop.xlane.xlu0 %5472
    %v5474 = vsel %vm5359, %v5437, 0.0
    %5475 = vadd.xlane.f32.xlu0 %v5474
    %v5476 = vpop.xlane.xlu0 %5475
    %v5477 = vsel %vm5359, %v5439, 0.0
    %5478 = vadd.xlane.f32.xlu0 %v5477
    %v5479 = vpop.xlane.xlu0 %5478
    %v5480 = vsel %vm5359, %v5441, 0.0
    %5481 = vadd.xlane.f32.xlu0 %v5480
    %v5482 = vpop.xlane.xlu0 %5481
    %v5483 = vsel %vm5359, %v5443, 0.0
    %5484 = vadd.xlane.f32.xlu0 %v5483
    %v5485 = vpop.xlane.xlu0 %5484
    %v5486 = vsel %vm5359, %v5445, 0.0
    %5487 = vadd.xlane.f32.xlu0 %v5486
    %v5488 = vpop.xlane.xlu0 %5487
    %v5489 = vsel %vm5359, %v5447, 0.0
    %5490 = vadd.xlane.f32.xlu0 %v5489
    %v5491 = vpop.xlane.xlu0 %5490
    %v5492 = vsel %vm5359, %v5449, 0.0
    %5493 = vadd.xlane.f32.xlu0 %v5492
    %v5494 = vpop.xlane.xlu0 %5493
    %v5495 = vsel %vm5359, %v5451, 0.0
    %5496 = vadd.xlane.f32.xlu0 %v5495
    %v5497 = vpop.xlane.xlu0 %5496
    %v5498 = vsel %vm5359, %v5453, 0.0
    %5499 = vadd.xlane.f32.xlu0 %v5498
    %v5500 = vpop.xlane.xlu0 %5499
    %v5501 = vsel %vm5359, %v5455, 0.0
    %5502 = vadd.xlane.f32.xlu0 %v5501
    %v5503 = vpop.xlane.xlu0 %5502
    %v5504 = vrcp.pop %v5458
    %v5505 = vrcp.pop %v5461
    %v5506 = vrcp.pop %v5464
    %v5507 = vrcp.pop %v5467
    %v5508 = vrcp.pop %v5470
    %v5509 = vrcp.pop %v5473
    %v5510 = vrcp.pop %v5476
    %v5511 = vrcp.pop %v5479
    %v5512 = vrcp.pop %v5482
    %v5513 = vrcp.pop %v5485
    %v5514 = vrcp.pop %v5488
    %v5515 = vrcp.pop %v5491
    %v5516 = vrcp.pop %v5494
    %v5517 = vrcp.pop %v5497
    %v5518 = vrcp.pop %v5500
    %v5519 = vrcp.pop %v5503
    %v5520 = vmul.f32 %v5425, %v5504
    %v5521 = vmul.f32 %v5427, %v5505
    %v5522 = vmul.f32 %v5429, %v5506
    %v5523 = vmul.f32 %v5431, %v5507
    %v5524 = vmul.f32 %v5433, %v5508
    %v5525 = vmul.f32 %v5435, %v5509
    %v5526 = vmul.f32 %v5437, %v5510
    %v5527 = vmul.f32 %v5439, %v5511
    %v5528 = vmul.f32 %v5441, %v5512
    %v5529 = vmul.f32 %v5443, %v5513
    %v5530 = vmul.f32 %v5445, %v5514
    %v5531 = vmul.f32 %v5447, %v5515
    %v5532 = vmul.f32 %v5449, %v5516
    %v5533 = vmul.f32 %v5451, %v5517
    %v5534 = vmul.f32 %v5453, %v5518
    %v5535 = vmul.f32 %v5455, %v5519
    %5536 = vrot.lane.b32.xlu0 %v4035, 64
    %v5537 = vpop.permute.xlu0 %5536
    %5538 = vrot.lane.b32.xlu0 %v4040, 64
    %v5539 = vpop.permute.xlu0 %5538
    %v5543 = vsel %vm5359, %v5520, 0
    %5545 = vmatprep.subr.mxu0 0.0
    %5546 = vmatpush1.msra.mxu0 %v5537
    %5547 = vmatprep.subr.mxu0 0.0
    %5548 = vmatpush1.msra.mxu0 %v5539
    %5549 = vmatprep.subr.mxu0 0.0
    %5550 = vmatpush1.msra.mxu0 0.0
    %5551 = vmatprep.subr.mxu0 0.0
    %5552 = vmatpush1.msra.mxu0 0.0
    %5553 = vmatprep.subr.mxu0 0.0
    %5554 = vmatpush1.msra.mxu0 0.0
    %5555 = vmatprep.subr.mxu0 0.0
    %5556 = vmatpush1.msra.mxu0 0.0
    %5557 = vmatprep.subr.mxu0 0.0
    %5558 = vmatpush1.msra.mxu0 0.0
    %5559 = vmatprep.subr.mxu0 0.0
    %5560 = vmatpush1.msra.mxu0 0.0
    %5561 = vmatprep.subr.mxu0 0.0
    %5562 = vmatpush1.msra.mxu0 0.0
    %5563 = vmatprep.subr.mxu0 0.0
    %5564 = vmatpush1.msra.mxu0 0.0
    %5565 = vmatprep.subr.mxu0 0.0
    %5566 = vmatpush1.msra.mxu0 0.0
    %5567 = vmatprep.subr.mxu0 0.0
    %5568 = vmatpush1.msra.mxu0 0.0
    %5569 = vmatprep.subr.mxu0 0.0
    %5570 = vmatpush1.msra.mxu0 0.0
    %5571 = vmatprep.subr.mxu0 0.0
    %5572 = vmatpush1.msra.mxu0 0.0
    %5573 = vmatprep.subr.mxu0 0.0
    %5574 = vmatpush1.msra.mxu0 0.0
    %5575 = vmatprep.subr.mxu0 0.0
    %5576 = vmatpush1.msra.mxu0 0.0
    %5577 = vmatprep.subr.mxu0 0.0
    %5578 = vmatpush1.msra.mxu0 0.0
    %5579 = vmatprep.subr.mxu0 0.0
    %5580 = vmatpush1.msra.mxu0 0.0
    %5581 = vmatprep.subr.mxu0 0.0
    %5582 = vmatpush1.msra.mxu0 0.0
    %5583 = vmatprep.subr.mxu0 0.0
    %5584 = vmatpush1.msra.mxu0 0.0
    %5585 = vmatprep.subr.mxu0 0.0
    %5586 = vmatpush1.msra.mxu0 0.0
    %5587 = vmatprep.subr.mxu0 0.0
    %5588 = vmatpush1.msra.mxu0 0.0
    %5589 = vmatprep.subr.mxu0 0.0
    %5590 = vmatpush1.msra.mxu0 0.0
    %5591 = vmatprep.subr.mxu0 0.0
    %5592 = vmatpush1.msra.mxu0 0.0
    %5593 = vmatprep.subr.mxu0 0.0
    %5594 = vmatpush1.msra.mxu0 0.0
    %5595 = vmatprep.subr.mxu0 0.0
    %5596 = vmatpush1.msra.mxu0 0.0
    %5597 = vmatprep.subr.mxu0 0.0
    %5598 = vmatpush1.msra.mxu0 0.0
    %5599 = vmatprep.subr.mxu0 0.0
    %5600 = vmatpush1.msra.mxu0 0.0
    %5601 = vmatprep.subr.mxu0 0.0
    %5602 = vmatpush1.msra.mxu0 0.0
    %5603 = vmatprep.subr.mxu0 0.0
    %5604 = vmatpush1.msra.mxu0 0.0
    %5605 = vmatprep.subr.mxu0 0.0
    %5606 = vmatpush1.msra.mxu0 0.0
    %5607 = vmatprep.subr.mxu0 0.0
    %5608 = vmatpush1.msra.mxu0 0.0
    %5609 = vmatprep.mubr.f32.mxu0 0.0
    %5610 = vmatmul.mubr.f32.gmra.mrb[0].mxu0 %v5543
    %v5611 = vpop.f32.mrb[0].mxu0
    %v5612 = vadd.f32 0.0, %v5611
    %v5613 = vpop.f32.mrb[0].mxu0
    %5614 = vdwg.mxu0
    %5615 = vrot.lane.b32.xlu0 %v4045, 64
    %v5616 = vpop.permute.xlu0 %5615
    %5617 = vrot.lane.b32.xlu0 %v4050, 64
    %v5618 = vpop.permute.xlu0 %5617
    %v5622 = vsel %vm5359, %v5521, 0
    %5624 = vmatprep.subr.mxu0 0.0
    %5625 = vmatpush1.msra.mxu0 %v5616
    %5626 = vmatprep.subr.mxu0 0.0
    %5627 = vmatpush1.msra.mxu0 %v5618
    %5628 = vmatprep.subr.mxu0 0.0
    %5629 = vmatpush1.msra.mxu0 0.0
    %5630 = vmatprep.subr.mxu0 0.0
    %5631 = vmatpush1.msra.mxu0 0.0
    %5632 = vmatprep.subr.mxu0 0.0
    %5633 = vmatpush1.msra.mxu0 0.0
    %5634 = vmatprep.subr.mxu0 0.0
    %5635 = vmatpush1.msra.mxu0 0.0
    %5636 = vmatprep.subr.mxu0 0.0
    %5637 = vmatpush1.msra.mxu0 0.0
    %5638 = vmatprep.subr.mxu0 0.0
    %5639 = vmatpush1.msra.mxu0 0.0
    %5640 = vmatprep.subr.mxu0 0.0
    %5641 = vmatpush1.msra.mxu0 0.0
    %5642 = vmatprep.subr.mxu0 0.0
    %5643 = vmatpush1.msra.mxu0 0.0
    %5644 = vmatprep.subr.mxu0 0.0
    %5645 = vmatpush1.msra.mxu0 0.0
    %5646 = vmatprep.subr.mxu0 0.0
    %5647 = vmatpush1.msra.mxu0 0.0
    %5648 = vmatprep.subr.mxu0 0.0
    %5649 = vmatpush1.msra.mxu0 0.0
    %5650 = vmatprep.subr.mxu0 0.0
    %5651 = vmatpush1.msra.mxu0 0.0
    %5652 = vmatprep.subr.mxu0 0.0
    %5653 = vmatpush1.msra.mxu0 0.0
    %5654 = vmatprep.subr.mxu0 0.0
    %5655 = vmatpush1.msra.mxu0 0.0
    %5656 = vmatprep.subr.mxu0 0.0
    %5657 = vmatpush1.msra.mxu0 0.0
    %5658 = vmatprep.subr.mxu0 0.0
    %5659 = vmatpush1.msra.mxu0 0.0
    %5660 = vmatprep.subr.mxu0 0.0
    %5661 = vmatpush1.msra.mxu0 0.0
    %5662 = vmatprep.subr.mxu0 0.0
    %5663 = vmatpush1.msra.mxu0 0.0
    %5664 = vmatprep.subr.mxu0 0.0
    %5665 = vmatpush1.msra.mxu0 0.0
    %5666 = vmatprep.subr.mxu0 0.0
    %5667 = vmatpush1.msra.mxu0 0.0
    %5668 = vmatprep.subr.mxu0 0.0
    %5669 = vmatpush1.msra.mxu0 0.0
    %5670 = vmatprep.subr.mxu0 0.0
    %5671 = vmatpush1.msra.mxu0 0.0
    %5672 = vmatprep.subr.mxu0 0.0
    %5673 = vmatpush1.msra.mxu0 0.0
    %5674 = vmatprep.subr.mxu0 0.0
    %5675 = vmatpush1.msra.mxu0 0.0
    %5676 = vmatprep.subr.mxu0 0.0
    %5677 = vmatpush1.msra.mxu0 0.0
    %5678 = vmatprep.subr.mxu0 0.0
    %5679 = vmatpush1.msra.mxu0 0.0
    %5680 = vmatprep.subr.mxu0 0.0
    %5681 = vmatpush1.msra.mxu0 0.0
    %5682 = vmatprep.subr.mxu0 0.0
    %5683 = vmatpush1.msra.mxu0 0.0
    %5684 = vmatprep.subr.mxu0 0.0
    %5685 = vmatpush1.msra.mxu0 0.0
    %5686 = vmatprep.subr.mxu0 0.0
    %5687 = vmatpush1.msra.mxu0 0.0
    %5688 = vmatprep.mubr.f32.mxu0 0.0
    %5689 = vmatmul.mubr.f32.gmra.mrb[0].mxu0 %v5622
    %v5690 = vpop.f32.mrb[0].mxu0
    %v5691 = vadd.f32 0.0, %v5690
    %v5692 = vpop.f32.mrb[0].mxu0
    %5693 = vdwg.mxu0
    %5694 = vrot.lane.b32.xlu0 %v4214, 64
    %v5695 = vpop.permute.xlu0 %5694
    %5696 = vrot.lane.b32.xlu0 %v4216, 64
    %v5697 = vpop.permute.xlu0 %5696
    %v5701 = vsel %vm5359, %v5522, 0
    %5703 = vmatprep.subr.mxu0 0.0
    %5704 = vmatpush1.msra.mxu0 %v5695
    %5705 = vmatprep.subr.mxu0 0.0
    %5706 = vmatpush1.msra.mxu0 %v5697
    %5707 = vmatprep.subr.mxu0 0.0
    %5708 = vmatpush1.msra.mxu0 0.0
    %5709 = vmatprep.subr.mxu0 0.0
    %5710 = vmatpush1.msra.mxu0 0.0
    %5711 = vmatprep.subr.mxu0 0.0
    %5712 = vmatpush1.msra.mxu0 0.0
    %5713 = vmatprep.subr.mxu0 0.0
    %5714 = vmatpush1.msra.mxu0 0.0
    %5715 = vmatprep.subr.mxu0 0.0
    %5716 = vmatpush1.msra.mxu0 0.0
    %5717 = vmatprep.subr.mxu0 0.0
    %5718 = vmatpush1.msra.mxu0 0.0
    %5719 = vmatprep.subr.mxu0 0.0
    %5720 = vmatpush1.msra.mxu0 0.0
    %5721 = vmatprep.subr.mxu0 0.0
    %5722 = vmatpush1.msra.mxu0 0.0
    %5723 = vmatprep.subr.mxu0 0.0
    %5724 = vmatpush1.msra.mxu0 0.0
    %5725 = vmatprep.subr.mxu0 0.0
    %5726 = vmatpush1.msra.mxu0 0.0
    %5727 = vmatprep.subr.mxu0 0.0
    %5728 = vmatpush1.msra.mxu0 0.0
    %5729 = vmatprep.subr.mxu0 0.0
    %5730 = vmatpush1.msra.mxu0 0.0
    %5731 = vmatprep.subr.mxu0 0.0
    %5732 = vmatpush1.msra.mxu0 0.0
    %5733 = vmatprep.subr.mxu0 0.0
    %5734 = vmatpush1.msra.mxu0 0.0
    %5735 = vmatprep.subr.mxu0 0.0
    %5736 = vmatpush1.msra.mxu0 0.0
    %5737 = vmatprep.subr.mxu0 0.0
    %5738 = vmatpush1.msra.mxu0 0.0
    %5739 = vmatprep.subr.mxu0 0.0
    %5740 = vmatpush1.msra.mxu0 0.0
    %5741 = vmatprep.subr.mxu0 0.0
    %5742 = vmatpush1.msra.mxu0 0.0
    %5743 = vmatprep.subr.mxu0 0.0
    %5744 = vmatpush1.msra.mxu0 0.0
    %5745 = vmatprep.subr.mxu0 0.0
    %5746 = vmatpush1.msra.mxu0 0.0
    %5747 = vmatprep.subr.mxu0 0.0
    %5748 = vmatpush1.msra.mxu0 0.0
    %5749 = vmatprep.subr.mxu0 0.0
    %5750 = vmatpush1.msra.mxu0 0.0
    %5751 = vmatprep.subr.mxu0 0.0
    %5752 = vmatpush1.msra.mxu0 0.0
    %5753 = vmatprep.subr.mxu0 0.0
    %5754 = vmatpush1.msra.mxu0 0.0
    %5755 = vmatprep.subr.mxu0 0.0
    %5756 = vmatpush1.msra.mxu0 0.0
    %5757 = vmatprep.subr.mxu0 0.0
    %5758 = vmatpush1.msra.mxu0 0.0
    %5759 = vmatprep.subr.mxu0 0.0
    %5760 = vmatpush1.msra.mxu0 0.0
    %5761 = vmatprep.subr.mxu0 0.0
    %5762 = vmatpush1.msra.mxu0 0.0
    %5763 = vmatprep.subr.mxu0 0.0
    %5764 = vmatpush1.msra.mxu0 0.0
    %5765 = vmatprep.subr.mxu0 0.0
    %5766 = vmatpush1.msra.mxu0 0.0
    %5767 = vmatprep.mubr.f32.mxu0 0.0
    %5768 = vmatmul.mubr.f32.gmra.mrb[0].mxu0 %v5701
    %v5769 = vpop.f32.mrb[0].mxu0
    %v5770 = vadd.f32 0.0, %v5769
    %v5771 = vpop.f32.mrb[0].mxu0
    %5772 = vdwg.mxu0
    %5773 = vrot.lane.b32.xlu0 %v4296, 64
    %v5774 = vpop.permute.xlu0 %5773
    %5775 = vrot.lane.b32.xlu0 %v4298, 64
    %v5776 = vpop.permute.xlu0 %5775
    %v5780 = vsel %vm5359, %v5523, 0
    %5782 = vmatprep.subr.mxu0 0.0
    %5783 = vmatpush1.msra.mxu0 %v5774
    %5784 = vmatprep.subr.mxu0 0.0
    %5785 = vmatpush1.msra.mxu0 %v5776
    %5786 = vmatprep.subr.mxu0 0.0
    %5787 = vmatpush1.msra.mxu0 0.0
    %5788 = vmatprep.subr.mxu0 0.0
    %5789 = vmatpush1.msra.mxu0 0.0
    %5790 = vmatprep.subr.mxu0 0.0
    %5791 = vmatpush1.msra.mxu0 0.0
    %5792 = vmatprep.subr.mxu0 0.0
    %5793 = vmatpush1.msra.mxu0 0.0
    %5794 = vmatprep.subr.mxu0 0.0
    %5795 = vmatpush1.msra.mxu0 0.0
    %5796 = vmatprep.subr.mxu0 0.0
    %5797 = vmatpush1.msra.mxu0 0.0
    %5798 = vmatprep.subr.mxu0 0.0
    %5799 = vmatpush1.msra.mxu0 0.0
    %5800 = vmatprep.subr.mxu0 0.0
    %5801 = vmatpush1.msra.mxu0 0.0
    %5802 = vmatprep.subr.mxu0 0.0
    %5803 = vmatpush1.msra.mxu0 0.0
    %5804 = vmatprep.subr.mxu0 0.0
    %5805 = vmatpush1.msra.mxu0 0.0
    %5806 = vmatprep.subr.mxu0 0.0
    %5807 = vmatpush1.msra.mxu0 0.0
    %5808 = vmatprep.subr.mxu0 0.0
    %5809 = vmatpush1.msra.mxu0 0.0
    %5810 = vmatprep.subr.mxu0 0.0
    %5811 = vmatpush1.msra.mxu0 0.0
    %5812 = vmatprep.subr.mxu0 0.0
    %5813 = vmatpush1.msra.mxu0 0.0
    %5814 = vmatprep.subr.mxu0 0.0
    %5815 = vmatpush1.msra.mxu0 0.0
    %5816 = vmatprep.subr.mxu0 0.0
    %5817 = vmatpush1.msra.mxu0 0.0
    %5818 = vmatprep.subr.mxu0 0.0
    %5819 = vmatpush1.msra.mxu0 0.0
    %5820 = vmatprep.subr.mxu0 0.0
    %5821 = vmatpush1.msra.mxu0 0.0
    %5822 = vmatprep.subr.mxu0 0.0
    %5823 = vmatpush1.msra.mxu0 0.0
    %5824 = vmatprep.subr.mxu0 0.0
    %5825 = vmatpush1.msra.mxu0 0.0
    %5826 = vmatprep.subr.mxu0 0.0
    %5827 = vmatpush1.msra.mxu0 0.0
    %5828 = vmatprep.subr.mxu0 0.0
    %5829 = vmatpush1.msra.mxu0 0.0
    %5830 = vmatprep.subr.mxu0 0.0
    %5831 = vmatpush1.msra.mxu0 0.0
    %5832 = vmatprep.subr.mxu0 0.0
    %5833 = vmatpush1.msra.mxu0 0.0
    %5834 = vmatprep.subr.mxu0 0.0
    %5835 = vmatpush1.msra.mxu0 0.0
    %5836 = vmatprep.subr.mxu0 0.0
    %5837 = vmatpush1.msra.mxu0 0.0
    %5838 = vmatprep.subr.mxu0 0.0
    %5839 = vmatpush1.msra.mxu0 0.0
    %5840 = vmatprep.subr.mxu0 0.0
    %5841 = vmatpush1.msra.mxu0 0.0
    %5842 = vmatprep.subr.mxu0 0.0
    %5843 = vmatpush1.msra.mxu0 0.0
    %5844 = vmatprep.subr.mxu0 0.0
    %5845 = vmatpush1.msra.mxu0 0.0
    %5846 = vmatprep.mubr.f32.mxu0 0.0
    %5847 = vmatmul.mubr.f32.gmra.mrb[0].mxu0 %v5780
    %v5848 = vpop.f32.mrb[0].mxu0
    %v5849 = vadd.f32 0.0, %v5848
    %v5850 = vpop.f32.mrb[0].mxu0
    %5851 = vdwg.mxu0
    %5852 = vrot.lane.b32.xlu0 %v4378, 64
    %v5853 = vpop.permute.xlu0 %5852
    %5854 = vrot.lane.b32.xlu0 %v4380, 64
    %v5855 = vpop.permute.xlu0 %5854
    %v5859 = vsel %vm5359, %v5524, 0
    %5861 = vmatprep.subr.mxu0 0.0
    %5862 = vmatpush1.msra.mxu0 %v5853
    %5863 = vmatprep.subr.mxu0 0.0
    %5864 = vmatpush1.msra.mxu0 %v5855
    %5865 = vmatprep.subr.mxu0 0.0
    %5866 = vmatpush1.msra.mxu0 0.0
    %5867 = vmatprep.subr.mxu0 0.0
    %5868 = vmatpush1.msra.mxu0 0.0
    %5869 = vmatprep.subr.mxu0 0.0
    %5870 = vmatpush1.msra.mxu0 0.0
    %5871 = vmatprep.subr.mxu0 0.0
    %5872 = vmatpush1.msra.mxu0 0.0
    %5873 = vmatprep.subr.mxu0 0.0
    %5874 = vmatpush1.msra.mxu0 0.0
    %5875 = vmatprep.subr.mxu0 0.0
    %5876 = vmatpush1.msra.mxu0 0.0
    %5877 = vmatprep.subr.mxu0 0.0
    %5878 = vmatpush1.msra.mxu0 0.0
    %5879 = vmatprep.subr.mxu0 0.0
    %5880 = vmatpush1.msra.mxu0 0.0
    %5881 = vmatprep.subr.mxu0 0.0
    %5882 = vmatpush1.msra.mxu0 0.0
    %5883 = vmatprep.subr.mxu0 0.0
    %5884 = vmatpush1.msra.mxu0 0.0
    %5885 = vmatprep.subr.mxu0 0.0
    %5886 = vmatpush1.msra.mxu0 0.0
    %5887 = vmatprep.subr.mxu0 0.0
    %5888 = vmatpush1.msra.mxu0 0.0
    %5889 = vmatprep.subr.mxu0 0.0
    %5890 = vmatpush1.msra.mxu0 0.0
    %5891 = vmatprep.subr.mxu0 0.0
    %5892 = vmatpush1.msra.mxu0 0.0
    %5893 = vmatprep.subr.mxu0 0.0
    %5894 = vmatpush1.msra.mxu0 0.0
    %5895 = vmatprep.subr.mxu0 0.0
    %5896 = vmatpush1.msra.mxu0 0.0
    %5897 = vmatprep.subr.mxu0 0.0
    %5898 = vmatpush1.msra.mxu0 0.0
    %5899 = vmatprep.subr.mxu0 0.0
    %5900 = vmatpush1.msra.mxu0 0.0
    %5901 = vmatprep.subr.mxu0 0.0
    %5902 = vmatpush1.msra.mxu0 0.0
    %5903 = vmatprep.subr.mxu0 0.0
    %5904 = vmatpush1.msra.mxu0 0.0
    %5905 = vmatprep.subr.mxu0 0.0
    %5906 = vmatpush1.msra.mxu0 0.0
    %5907 = vmatprep.subr.mxu0 0.0
    %5908 = vmatpush1.msra.mxu0 0.0
    %5909 = vmatprep.subr.mxu0 0.0
    %5910 = vmatpush1.msra.mxu0 0.0
    %5911 = vmatprep.subr.mxu0 0.0
    %5912 = vmatpush1.msra.mxu0 0.0
    %5913 = vmatprep.subr.mxu0 0.0
    %5914 = vmatpush1.msra.mxu0 0.0
    %5915 = vmatprep.subr.mxu0 0.0
    %5916 = vmatpush1.msra.mxu0 0.0
    %5917 = vmatprep.subr.mxu0 0.0
    %5918 = vmatpush1.msra.mxu0 0.0
    %5919 = vmatprep.subr.mxu0 0.0
    %5920 = vmatpush1.msra.mxu0 0.0
    %5921 = vmatprep.subr.mxu0 0.0
    %5922 = vmatpush1.msra.mxu0 0.0
    %5923 = vmatprep.subr.mxu0 0.0
    %5924 = vmatpush1.msra.mxu0 0.0
    %5925 = vmatprep.mubr.f32.mxu0 0.0
    %5926 = vmatmul.mubr.f32.gmra.mrb[0].mxu0 %v5859
    %v5927 = vpop.f32.mrb[0].mxu0
    %v5928 = vadd.f32 0.0, %v5927
    %v5929 = vpop.f32.mrb[0].mxu0
    %5930 = vdwg.mxu0
    %5931 = vrot.lane.b32.xlu0 %v4460, 64
    %v5932 = vpop.permute.xlu0 %5931
    %5933 = vrot.lane.b32.xlu0 %v4462, 64
    %v5934 = vpop.permute.xlu0 %5933
    %v5938 = vsel %vm5359, %v5525, 0
    %5940 = vmatprep.subr.mxu0 0.0
    %5941 = vmatpush1.msra.mxu0 %v5932
    %5942 = vmatprep.subr.mxu0 0.0
    %5943 = vmatpush1.msra.mxu0 %v5934
    %5944 = vmatprep.subr.mxu0 0.0
    %5945 = vmatpush1.msra.mxu0 0.0
    %5946 = vmatprep.subr.mxu0 0.0
    %5947 = vmatpush1.msra.mxu0 0.0
    %5948 = vmatprep.subr.mxu0 0.0
    %5949 = vmatpush1.msra.mxu0 0.0
    %5950 = vmatprep.subr.mxu0 0.0
    %5951 = vmatpush1.msra.mxu0 0.0
    %5952 = vmatprep.subr.mxu0 0.0
    %5953 = vmatpush1.msra.mxu0 0.0
    %5954 = vmatprep.subr.mxu0 0.0
    %5955 = vmatpush1.msra.mxu0 0.0
    %5956 = vmatprep.subr.mxu0 0.0
    %5957 = vmatpush1.msra.mxu0 0.0
    %5958 = vmatprep.subr.mxu0 0.0
    %5959 = vmatpush1.msra.mxu0 0.0
    %5960 = vmatprep.subr.mxu0 0.0
    %5961 = vmatpush1.msra.mxu0 0.0
    %5962 = vmatprep.subr.mxu0 0.0
    %5963 = vmatpush1.msra.mxu0 0.0
    %5964 = vmatprep.subr.mxu0 0.0
    %5965 = vmatpush1.msra.mxu0 0.0
    %5966 = vmatprep.subr.mxu0 0.0
    %5967 = vmatpush1.msra.mxu0 0.0
    %5968 = vmatprep.subr.mxu0 0.0
    %5969 = vmatpush1.msra.mxu0 0.0
    %5970 = vmatprep.subr.mxu0 0.0
    %5971 = vmatpush1.msra.mxu0 0.0
    %5972 = vmatprep.subr.mxu0 0.0
    %5973 = vmatpush1.msra.mxu0 0.0
    %5974 = vmatprep.subr.mxu0 0.0
    %5975 = vmatpush1.msra.mxu0 0.0
    %5976 = vmatprep.subr.mxu0 0.0
    %5977 = vmatpush1.msra.mxu0 0.0
    %5978 = vmatprep.subr.mxu0 0.0
    %5979 = vmatpush1.msra.mxu0 0.0
    %5980 = vmatprep.subr.mxu0 0.0
    %5981 = vmatpush1.msra.mxu0 0.0
    %5982 = vmatprep.subr.mxu0 0.0
    %5983 = vmatpush1.msra.mxu0 0.0
    %5984 = vmatprep.subr.mxu0 0.0
    %5985 = vmatpush1.msra.mxu0 0.0
    %5986 = vmatprep.subr.mxu0 0.0
    %5987 = vmatpush1.msra.mxu0 0.0
    %5988 = vmatprep.subr.mxu0 0.0
    %5989 = vmatpush1.msra.mxu0 0.0
    %5990 = vmatprep.subr.mxu0 0.0
    %5991 = vmatpush1.msra.mxu0 0.0
    %5992 = vmatprep.subr.mxu0 0.0
    %5993 = vmatpush1.msra.mxu0 0.0
    %5994 = vmatprep.subr.mxu0 0.0
    %5995 = vmatpush1.msra.mxu0 0.0
    %5996 = vmatprep.subr.mxu0 0.0
    %5997 = vmatpush1.msra.mxu0 0.0
    %5998 = vmatprep.subr.mxu0 0.0
    %5999 = vmatpush1.msra.mxu0 0.0
    %6000 = vmatprep.subr.mxu0 0.0
    %6001 = vmatpush1.msra.mxu0 0.0
    %6002 = vmatprep.subr.mxu0 0.0
    %6003 = vmatpush1.msra.mxu0 0.0
    %6004 = vmatprep.mubr.f32.mxu0 0.0
    %6005 = vmatmul.mubr.f32.gmra.mrb[0].mxu0 %v5938
    %v6006 = vpop.f32.mrb[0].mxu0
    %v6007 = vadd.f32 0.0, %v6006
    %v6008 = vpop.f32.mrb[0].mxu0
    %6009 = vdwg.mxu0
    %6010 = vrot.lane.b32.xlu0 %v4542, 64
    %v6011 = vpop.permute.xlu0 %6010
    %6012 = vrot.lane.b32.xlu0 %v4544, 64
    %v6013 = vpop.permute.xlu0 %6012
    %v6017 = vsel %vm5359, %v5526, 0
    %6019 = vmatprep.subr.mxu0 0.0
    %6020 = vmatpush1.msra.mxu0 %v6011
    %6021 = vmatprep.subr.mxu0 0.0
    %6022 = vmatpush1.msra.mxu0 %v6013
    %6023 = vmatprep.subr.mxu0 0.0
    %6024 = vmatpush1.msra.mxu0 0.0
    %6025 = vmatprep.subr.mxu0 0.0
    %6026 = vmatpush1.msra.mxu0 0.0
    %6027 = vmatprep.subr.mxu0 0.0
    %6028 = vmatpush1.msra.mxu0 0.0
    %6029 = vmatprep.subr.mxu0 0.0
    %6030 = vmatpush1.msra.mxu0 0.0
    %6031 = vmatprep.subr.mxu0 0.0
    %6032 = vmatpush1.msra.mxu0 0.0
    %6033 = vmatprep.subr.mxu0 0.0
    %6034 = vmatpush1.msra.mxu0 0.0
    %6035 = vmatprep.subr.mxu0 0.0
    %6036 = vmatpush1.msra.mxu0 0.0
    %6037 = vmatprep.subr.mxu0 0.0
    %6038 = vmatpush1.msra.mxu0 0.0
    %6039 = vmatprep.subr.mxu0 0.0
    %6040 = vmatpush1.msra.mxu0 0.0
    %6041 = vmatprep.subr.mxu0 0.0
    %6042 = vmatpush1.msra.mxu0 0.0
    %6043 = vmatprep.subr.mxu0 0.0
    %6044 = vmatpush1.msra.mxu0 0.0
    %6045 = vmatprep.subr.mxu0 0.0
    %6046 = vmatpush1.msra.mxu0 0.0
    %6047 = vmatprep.subr.mxu0 0.0
    %6048 = vmatpush1.msra.mxu0 0.0
    %6049 = vmatprep.subr.mxu0 0.0
    %6050 = vmatpush1.msra.mxu0 0.0
    %6051 = vmatprep.subr.mxu0 0.0
    %6052 = vmatpush1.msra.mxu0 0.0
    %6053 = vmatprep.subr.mxu0 0.0
    %6054 = vmatpush1.msra.mxu0 0.0
    %6055 = vmatprep.subr.mxu0 0.0
    %6056 = vmatpush1.msra.mxu0 0.0
    %6057 = vmatprep.subr.mxu0 0.0
    %6058 = vmatpush1.msra.mxu0 0.0
    %6059 = vmatprep.subr.mxu0 0.0
    %6060 = vmatpush1.msra.mxu0 0.0
    %6061 = vmatprep.subr.mxu0 0.0
    %6062 = vmatpush1.msra.mxu0 0.0
    %6063 = vmatprep.subr.mxu0 0.0
    %6064 = vmatpush1.msra.mxu0 0.0
    %6065 = vmatprep.subr.mxu0 0.0
    %6066 = vmatpush1.msra.mxu0 0.0
    %6067 = vmatprep.subr.mxu0 0.0
    %6068 = vmatpush1.msra.mxu0 0.0
    %6069 = vmatprep.subr.mxu0 0.0
    %6070 = vmatpush1.msra.mxu0 0.0
    %6071 = vmatprep.subr.mxu0 0.0
    %6072 = vmatpush1.msra.mxu0 0.0
    %6073 = vmatprep.subr.mxu0 0.0
    %6074 = vmatpush1.msra.mxu0 0.0
    %6075 = vmatprep.subr.mxu0 0.0
    %6076 = vmatpush1.msra.mxu0 0.0
    %6077 = vmatprep.subr.mxu0 0.0
    %6078 = vmatpush1.msra.mxu0 0.0
    %6079 = vmatprep.subr.mxu0 0.0
    %6080 = vmatpush1.msra.mxu0 0.0
    %6081 = vmatprep.subr.mxu0 0.0
    %6082 = vmatpush1.msra.mxu0 0.0
    %6083 = vmatprep.mubr.f32.mxu0 0.0
    %6084 = vmatmul.mubr.f32.gmra.mrb[0].mxu0 %v6017
    %v6085 = vpop.f32.mrb[0].mxu0
    %v6086 = vadd.f32 0.0, %v6085
    %v6087 = vpop.f32.mrb[0].mxu0
    %6088 = vdwg.mxu0
    %6089 = vrot.lane.b32.xlu0 %v4624, 64
    %v6090 = vpop.permute.xlu0 %6089
    %6091 = vrot.lane.b32.xlu0 %v4626, 64
    %v6092 = vpop.permute.xlu0 %6091
    %v6096 = vsel %vm5359, %v5527, 0
    %6098 = vmatprep.subr.mxu0 0.0
    %6099 = vmatpush1.msra.mxu0 %v6090
    %6100 = vmatprep.subr.mxu0 0.0
    %6101 = vmatpush1.msra.mxu0 %v6092
    %6102 = vmatprep.subr.mxu0 0.0
    %6103 = vmatpush1.msra.mxu0 0.0
    %6104 = vmatprep.subr.mxu0 0.0
    %6105 = vmatpush1.msra.mxu0 0.0
    %6106 = vmatprep.subr.mxu0 0.0
    %6107 = vmatpush1.msra.mxu0 0.0
    %6108 = vmatprep.subr.mxu0 0.0
    %6109 = vmatpush1.msra.mxu0 0.0
    %6110 = vmatprep.subr.mxu0 0.0
    %6111 = vmatpush1.msra.mxu0 0.0
    %6112 = vmatprep.subr.mxu0 0.0
    %6113 = vmatpush1.msra.mxu0 0.0
    %6114 = vmatprep.subr.mxu0 0.0
    %6115 = vmatpush1.msra.mxu0 0.0
    %6116 = vmatprep.subr.mxu0 0.0
    %6117 = vmatpush1.msra.mxu0 0.0
    %6118 = vmatprep.subr.mxu0 0.0
    %6119 = vmatpush1.msra.mxu0 0.0
    %6120 = vmatprep.subr.mxu0 0.0
    %6121 = vmatpush1.msra.mxu0 0.0
    %6122 = vmatprep.subr.mxu0 0.0
    %6123 = vmatpush1.msra.mxu0 0.0
    %6124 = vmatprep.subr.mxu0 0.0
    %6125 = vmatpush1.msra.mxu0 0.0
    %6126 = vmatprep.subr.mxu0 0.0
    %6127 = vmatpush1.msra.mxu0 0.0
    %6128 = vmatprep.subr.mxu0 0.0
    %6129 = vmatpush1.msra.mxu0 0.0
    %6130 = vmatprep.subr.mxu0 0.0
    %6131 = vmatpush1.msra.mxu0 0.0
    %6132 = vmatprep.subr.mxu0 0.0
    %6133 = vmatpush1.msra.mxu0 0.0
    %6134 = vmatprep.subr.mxu0 0.0
    %6135 = vmatpush1.msra.mxu0 0.0
    %6136 = vmatprep.subr.mxu0 0.0
    %6137 = vmatpush1.msra.mxu0 0.0
    %6138 = vmatprep.subr.mxu0 0.0
    %6139 = vmatpush1.msra.mxu0 0.0
    %6140 = vmatprep.subr.mxu0 0.0
    %6141 = vmatpush1.msra.mxu0 0.0
    %6142 = vmatprep.subr.mxu0 0.0
    %6143 = vmatpush1.msra.mxu0 0.0
    %6144 = vmatprep.subr.mxu0 0.0
    %6145 = vmatpush1.msra.mxu0 0.0
    %6146 = vmatprep.subr.mxu0 0.0
    %6147 = vmatpush1.msra.mxu0 0.0
    %6148 = vmatprep.subr.mxu0 0.0
    %6149 = vmatpush1.msra.mxu0 0.0
    %6150 = vmatprep.subr.mxu0 0.0
    %6151 = vmatpush1.msra.mxu0 0.0
    %6152 = vmatprep.subr.mxu0 0.0
    %6153 = vmatpush1.msra.mxu0 0.0
    %6154 = vmatprep.subr.mxu0 0.0
    %6155 = vmatpush1.msra.mxu0 0.0
    %6156 = vmatprep.subr.mxu0 0.0
    %6157 = vmatpush1.msra.mxu0 0.0
    %6158 = vmatprep.subr.mxu0 0.0
    %6159 = vmatpush1.msra.mxu0 0.0
    %6160 = vmatprep.subr.mxu0 0.0
    %6161 = vmatpush1.msra.mxu0 0.0
    %6162 = vmatprep.mubr.f32.mxu0 0.0
    %6163 = vmatmul.mubr.f32.gmra.mrb[0].mxu0 %v6096
    %v6164 = vpop.f32.mrb[0].mxu0
    %v6165 = vadd.f32 0.0, %v6164
    %v6166 = vpop.f32.mrb[0].mxu0
    %6167 = vdwg.mxu0
    %6168 = vrot.lane.b32.xlu0 %v4706, 64
    %v6169 = vpop.permute.xlu0 %6168
    %6170 = vrot.lane.b32.xlu0 %v4708, 64
    %v6171 = vpop.permute.xlu0 %6170
    %v6175 = vsel %vm5359, %v5528, 0
    %6177 = vmatprep.subr.mxu0 0.0
    %6178 = vmatpush1.msra.mxu0 %v6169
    %6179 = vmatprep.subr.mxu0 0.0
    %6180 = vmatpush1.msra.mxu0 %v6171
    %6181 = vmatprep.subr.mxu0 0.0
    %6182 = vmatpush1.msra.mxu0 0.0
    %6183 = vmatprep.subr.mxu0 0.0
    %6184 = vmatpush1.msra.mxu0 0.0
    %6185 = vmatprep.subr.mxu0 0.0
    %6186 = vmatpush1.msra.mxu0 0.0
    %6187 = vmatprep.subr.mxu0 0.0
    %6188 = vmatpush1.msra.mxu0 0.0
    %6189 = vmatprep.subr.mxu0 0.0
    %6190 = vmatpush1.msra.mxu0 0.0
    %6191 = vmatprep.subr.mxu0 0.0
    %6192 = vmatpush1.msra.mxu0 0.0
    %6193 = vmatprep.subr.mxu0 0.0
    %6194 = vmatpush1.msra.mxu0 0.0
    %6195 = vmatprep.subr.mxu0 0.0
    %6196 = vmatpush1.msra.mxu0 0.0
    %6197 = vmatprep.subr.mxu0 0.0
    %6198 = vmatpush1.msra.mxu0 0.0
    %6199 = vmatprep.subr.mxu0 0.0
    %6200 = vmatpush1.msra.mxu0 0.0
    %6201 = vmatprep.subr.mxu0 0.0
    %6202 = vmatpush1.msra.mxu0 0.0
    %6203 = vmatprep.subr.mxu0 0.0
    %6204 = vmatpush1.msra.mxu0 0.0
    %6205 = vmatprep.subr.mxu0 0.0
    %6206 = vmatpush1.msra.mxu0 0.0
    %6207 = vmatprep.subr.mxu0 0.0
    %6208 = vmatpush1.msra.mxu0 0.0
    %6209 = vmatprep.subr.mxu0 0.0
    %6210 = vmatpush1.msra.mxu0 0.0
    %6211 = vmatprep.subr.mxu0 0.0
    %6212 = vmatpush1.msra.mxu0 0.0
    %6213 = vmatprep.subr.mxu0 0.0
    %6214 = vmatpush1.msra.mxu0 0.0
    %6215 = vmatprep.subr.mxu0 0.0
    %6216 = vmatpush1.msra.mxu0 0.0
    %6217 = vmatprep.subr.mxu0 0.0
    %6218 = vmatpush1.msra.mxu0 0.0
    %6219 = vmatprep.subr.mxu0 0.0
    %6220 = vmatpush1.msra.mxu0 0.0
    %6221 = vmatprep.subr.mxu0 0.0
    %6222 = vmatpush1.msra.mxu0 0.0
    %6223 = vmatprep.subr.mxu0 0.0
    %6224 = vmatpush1.msra.mxu0 0.0
    %6225 = vmatprep.subr.mxu0 0.0
    %6226 = vmatpush1.msra.mxu0 0.0
    %6227 = vmatprep.subr.mxu0 0.0
    %6228 = vmatpush1.msra.mxu0 0.0
    %6229 = vmatprep.subr.mxu0 0.0
    %6230 = vmatpush1.msra.mxu0 0.0
    %6231 = vmatprep.subr.mxu0 0.0
    %6232 = vmatpush1.msra.mxu0 0.0
    %6233 = vmatprep.subr.mxu0 0.0
    %6234 = vmatpush1.msra.mxu0 0.0
    %6235 = vmatprep.subr.mxu0 0.0
    %6236 = vmatpush1.msra.mxu0 0.0
    %6237 = vmatprep.subr.mxu0 0.0
    %6238 = vmatpush1.msra.mxu0 0.0
    %6239 = vmatprep.subr.mxu0 0.0
    %6240 = vmatpush1.msra.mxu0 0.0
    %6241 = vmatprep.mubr.f32.mxu0 0.0
    %6242 = vmatmul.mubr.f32.gmra.mrb[0].mxu0 %v6175
    %v6243 = vpop.f32.mrb[0].mxu0
    %v6244 = vadd.f32 0.0, %v6243
    %v6245 = vpop.f32.mrb[0].mxu0
    %6246 = vdwg.mxu0
    %6247 = vrot.lane.b32.xlu0 %v4788, 64
    %v6248 = vpop.permute.xlu0 %6247
    %6249 = vrot.lane.b32.xlu0 %v4790, 64
    %v6250 = vpop.permute.xlu0 %6249
    %v6254 = vsel %vm5359, %v5529, 0
    %6256 = vmatprep.subr.mxu0 0.0
    %6257 = vmatpush1.msra.mxu0 %v6248
    %6258 = vmatprep.subr.mxu0 0.0
    %6259 = vmatpush1.msra.mxu0 %v6250
    %6260 = vmatprep.subr.mxu0 0.0
    %6261 = vmatpush1.msra.mxu0 0.0
    %6262 = vmatprep.subr.mxu0 0.0
    %6263 = vmatpush1.msra.mxu0 0.0
    %6264 = vmatprep.subr.mxu0 0.0
    %6265 = vmatpush1.msra.mxu0 0.0
    %6266 = vmatprep.subr.mxu0 0.0
    %6267 = vmatpush1.msra.mxu0 0.0
    %6268 = vmatprep.subr.mxu0 0.0
    %6269 = vmatpush1.msra.mxu0 0.0
    %6270 = vmatprep.subr.mxu0 0.0
    %6271 = vmatpush1.msra.mxu0 0.0
    %6272 = vmatprep.subr.mxu0 0.0
    %6273 = vmatpush1.msra.mxu0 0.0
    %6274 = vmatprep.subr.mxu0 0.0
    %6275 = vmatpush1.msra.mxu0 0.0
    %6276 = vmatprep.subr.mxu0 0.0
    %6277 = vmatpush1.msra.mxu0 0.0
    %6278 = vmatprep.subr.mxu0 0.0
    %6279 = vmatpush1.msra.mxu0 0.0
    %6280 = vmatprep.subr.mxu0 0.0
    %6281 = vmatpush1.msra.mxu0 0.0
    %6282 = vmatprep.subr.mxu0 0.0
    %6283 = vmatpush1.msra.mxu0 0.0
    %6284 = vmatprep.subr.mxu0 0.0
    %6285 = vmatpush1.msra.mxu0 0.0
    %6286 = vmatprep.subr.mxu0 0.0
    %6287 = vmatpush1.msra.mxu0 0.0
    %6288 = vmatprep.subr.mxu0 0.0
    %6289 = vmatpush1.msra.mxu0 0.0
    %6290 = vmatprep.subr.mxu0 0.0
    %6291 = vmatpush1.msra.mxu0 0.0
    %6292 = vmatprep.subr.mxu0 0.0
    %6293 = vmatpush1.msra.mxu0 0.0
    %6294 = vmatprep.subr.mxu0 0.0
    %6295 = vmatpush1.msra.mxu0 0.0
    %6296 = vmatprep.subr.mxu0 0.0
    %6297 = vmatpush1.msra.mxu0 0.0
    %6298 = vmatprep.subr.mxu0 0.0
    %6299 = vmatpush1.msra.mxu0 0.0
    %6300 = vmatprep.subr.mxu0 0.0
    %6301 = vmatpush1.msra.mxu0 0.0
    %6302 = vmatprep.subr.mxu0 0.0
    %6303 = vmatpush1.msra.mxu0 0.0
    %6304 = vmatprep.subr.mxu0 0.0
    %6305 = vmatpush1.msra.mxu0 0.0
    %6306 = vmatprep.subr.mxu0 0.0
    %6307 = vmatpush1.msra.mxu0 0.0
    %6308 = vmatprep.subr.mxu0 0.0
    %6309 = vmatpush1.msra.mxu0 0.0
    %6310 = vmatprep.subr.mxu0 0.0
    %6311 = vmatpush1.msra.mxu0 0.0
    %6312 = vmatprep.subr.mxu0 0.0
    %6313 = vmatpush1.msra.mxu0 0.0
    %6314 = vmatprep.subr.mxu0 0.0
    %6315 = vmatpush1.msra.mxu0 0.0
    %6316 = vmatprep.subr.mxu0 0.0
    %6317 = vmatpush1.msra.mxu0 0.0
    %6318 = vmatprep.subr.mxu0 0.0
    %6319 = vmatpush1.msra.mxu0 0.0
    %6320 = vmatprep.mubr.f32.mxu0 0.0
    %6321 = vmatmul.mubr.f32.gmra.mrb[0].mxu0 %v6254
    %v6322 = vpop.f32.mrb[0].mxu0
    %v6323 = vadd.f32 0.0, %v6322
    %v6324 = vpop.f32.mrb[0].mxu0
    %6325 = vdwg.mxu0
    %6326 = vrot.lane.b32.xlu0 %v4870, 64
    %v6327 = vpop.permute.xlu0 %6326
    %6328 = vrot.lane.b32.xlu0 %v4872, 64
    %v6329 = vpop.permute.xlu0 %6328
    %v6333 = vsel %vm5359, %v5530, 0
    %6335 = vmatprep.subr.mxu0 0.0
    %6336 = vmatpush1.msra.mxu0 %v6327
    %6337 = vmatprep.subr.mxu0 0.0
    %6338 = vmatpush1.msra.mxu0 %v6329
    %6339 = vmatprep.subr.mxu0 0.0
    %6340 = vmatpush1.msra.mxu0 0.0
    %6341 = vmatprep.subr.mxu0 0.0
    %6342 = vmatpush1.msra.mxu0 0.0
    %6343 = vmatprep.subr.mxu0 0.0
    %6344 = vmatpush1.msra.mxu0 0.0
    %6345 = vmatprep.subr.mxu0 0.0
    %6346 = vmatpush1.msra.mxu0 0.0
    %6347 = vmatprep.subr.mxu0 0.0
    %6348 = vmatpush1.msra.mxu0 0.0
    %6349 = vmatprep.subr.mxu0 0.0
    %6350 = vmatpush1.msra.mxu0 0.0
    %6351 = vmatprep.subr.mxu0 0.0
    %6352 = vmatpush1.msra.mxu0 0.0
    %6353 = vmatprep.subr.mxu0 0.0
    %6354 = vmatpush1.msra.mxu0 0.0
    %6355 = vmatprep.subr.mxu0 0.0
    %6356 = vmatpush1.msra.mxu0 0.0
    %6357 = vmatprep.subr.mxu0 0.0
    %6358 = vmatpush1.msra.mxu0 0.0
    %6359 = vmatprep.subr.mxu0 0.0
    %6360 = vmatpush1.msra.mxu0 0.0
    %6361 = vmatprep.subr.mxu0 0.0
    %6362 = vmatpush1.msra.mxu0 0.0
    %6363 = vmatprep.subr.mxu0 0.0
    %6364 = vmatpush1.msra.mxu0 0.0
    %6365 = vmatprep.subr.mxu0 0.0
    %6366 = vmatpush1.msra.mxu0 0.0
    %6367 = vmatprep.subr.mxu0 0.0
    %6368 = vmatpush1.msra.mxu0 0.0
    %6369 = vmatprep.subr.mxu0 0.0
    %6370 = vmatpush1.msra.mxu0 0.0
    %6371 = vmatprep.subr.mxu0 0.0
    %6372 = vmatpush1.msra.mxu0 0.0
    %6373 = vmatprep.subr.mxu0 0.0
    %6374 = vmatpush1.msra.mxu0 0.0
    %6375 = vmatprep.subr.mxu0 0.0
    %6376 = vmatpush1.msra.mxu0 0.0
    %6377 = vmatprep.subr.mxu0 0.0
    %6378 = vmatpush1.msra.mxu0 0.0
    %6379 = vmatprep.subr.mxu0 0.0
    %6380 = vmatpush1.msra.mxu0 0.0
    %6381 = vmatprep.subr.mxu0 0.0
    %6382 = vmatpush1.msra.mxu0 0.0
    %6383 = vmatprep.subr.mxu0 0.0
    %6384 = vmatpush1.msra.mxu0 0.0
    %6385 = vmatprep.subr.mxu0 0.0
    %6386 = vmatpush1.msra.mxu0 0.0
    %6387 = vmatprep.subr.mxu0 0.0
    %6388 = vmatpush1.msra.mxu0 0.0
    %6389 = vmatprep.subr.mxu0 0.0
    %6390 = vmatpush1.msra.mxu0 0.0
    %6391 = vmatprep.subr.mxu0 0.0
    %6392 = vmatpush1.msra.mxu0 0.0
    %6393 = vmatprep.subr.mxu0 0.0
    %6394 = vmatpush1.msra.mxu0 0.0
    %6395 = vmatprep.subr.mxu0 0.0
    %6396 = vmatpush1.msra.mxu0 0.0
    %6397 = vmatprep.subr.mxu0 0.0
    %6398 = vmatpush1.msra.mxu0 0.0
    %6399 = vmatprep.mubr.f32.mxu0 0.0
    %6400 = vmatmul.mubr.f32.gmra.mrb[0].mxu0 %v6333
    %v6401 = vpop.f32.mrb[0].mxu0
    %v6402 = vadd.f32 0.0, %v6401
    %v6403 = vpop.f32.mrb[0].mxu0
    %6404 = vdwg.mxu0
    %6405 = vrot.lane.b32.xlu0 %v4952, 64
    %v6406 = vpop.permute.xlu0 %6405
    %6407 = vrot.lane.b32.xlu0 %v4954, 64
    %v6408 = vpop.permute.xlu0 %6407
    %v6412 = vsel %vm5359, %v5531, 0
    %6414 = vmatprep.subr.mxu0 0.0
    %6415 = vmatpush1.msra.mxu0 %v6406
    %6416 = vmatprep.subr.mxu0 0.0
    %6417 = vmatpush1.msra.mxu0 %v6408
    %6418 = vmatprep.subr.mxu0 0.0
    %6419 = vmatpush1.msra.mxu0 0.0
    %6420 = vmatprep.subr.mxu0 0.0
    %6421 = vmatpush1.msra.mxu0 0.0
    %6422 = vmatprep.subr.mxu0 0.0
    %6423 = vmatpush1.msra.mxu0 0.0
    %6424 = vmatprep.subr.mxu0 0.0
    %6425 = vmatpush1.msra.mxu0 0.0
    %6426 = vmatprep.subr.mxu0 0.0
    %6427 = vmatpush1.msra.mxu0 0.0
    %6428 = vmatprep.subr.mxu0 0.0
    %6429 = vmatpush1.msra.mxu0 0.0
    %6430 = vmatprep.subr.mxu0 0.0
    %6431 = vmatpush1.msra.mxu0 0.0
    %6432 = vmatprep.subr.mxu0 0.0
    %6433 = vmatpush1.msra.mxu0 0.0
    %6434 = vmatprep.subr.mxu0 0.0
    %6435 = vmatpush1.msra.mxu0 0.0
    %6436 = vmatprep.subr.mxu0 0.0
    %6437 = vmatpush1.msra.mxu0 0.0
    %6438 = vmatprep.subr.mxu0 0.0
    %6439 = vmatpush1.msra.mxu0 0.0
    %6440 = vmatprep.subr.mxu0 0.0
    %6441 = vmatpush1.msra.mxu0 0.0
    %6442 = vmatprep.subr.mxu0 0.0
    %6443 = vmatpush1.msra.mxu0 0.0
    %6444 = vmatprep.subr.mxu0 0.0
    %6445 = vmatpush1.msra.mxu0 0.0
    %6446 = vmatprep.subr.mxu0 0.0
    %6447 = vmatpush1.msra.mxu0 0.0
    %6448 = vmatprep.subr.mxu0 0.0
    %6449 = vmatpush1.msra.mxu0 0.0
    %6450 = vmatprep.subr.mxu0 0.0
    %6451 = vmatpush1.msra.mxu0 0.0
    %6452 = vmatprep.subr.mxu0 0.0
    %6453 = vmatpush1.msra.mxu0 0.0
    %6454 = vmatprep.subr.mxu0 0.0
    %6455 = vmatpush1.msra.mxu0 0.0
    %6456 = vmatprep.subr.mxu0 0.0
    %6457 = vmatpush1.msra.mxu0 0.0
    %6458 = vmatprep.subr.mxu0 0.0
    %6459 = vmatpush1.msra.mxu0 0.0
    %6460 = vmatprep.subr.mxu0 0.0
    %6461 = vmatpush1.msra.mxu0 0.0
    %6462 = vmatprep.subr.mxu0 0.0
    %6463 = vmatpush1.msra.mxu0 0.0
    %6464 = vmatprep.subr.mxu0 0.0
    %6465 = vmatpush1.msra.mxu0 0.0
    %6466 = vmatprep.subr.mxu0 0.0
    %6467 = vmatpush1.msra.mxu0 0.0
    %6468 = vmatprep.subr.mxu0 0.0
    %6469 = vmatpush1.msra.mxu0 0.0
    %6470 = vmatprep.subr.mxu0 0.0
    %6471 = vmatpush1.msra.mxu0 0.0
    %6472 = vmatprep.subr.mxu0 0.0
    %6473 = vmatpush1.msra.mxu0 0.0
    %6474 = vmatprep.subr.mxu0 0.0
    %6475 = vmatpush1.msra.mxu0 0.0
    %6476 = vmatprep.subr.mxu0 0.0
    %6477 = vmatpush1.msra.mxu0 0.0
    %6478 = vmatprep.mubr.f32.mxu0 0.0
    %6479 = vmatmul.mubr.f32.gmra.mrb[0].mxu0 %v6412
    %v6480 = vpop.f32.mrb[0].mxu0
    %v6481 = vadd.f32 0.0, %v6480
    %v6482 = vpop.f32.mrb[0].mxu0
    %6483 = vdwg.mxu0
    %6484 = vrot.lane.b32.xlu0 %v5034, 64
    %v6485 = vpop.permute.xlu0 %6484
    %6486 = vrot.lane.b32.xlu0 %v5036, 64
    %v6487 = vpop.permute.xlu0 %6486
    %v6491 = vsel %vm5359, %v5532, 0
    %6493 = vmatprep.subr.mxu0 0.0
    %6494 = vmatpush1.msra.mxu0 %v6485
    %6495 = vmatprep.subr.mxu0 0.0
    %6496 = vmatpush1.msra.mxu0 %v6487
    %6497 = vmatprep.subr.mxu0 0.0
    %6498 = vmatpush1.msra.mxu0 0.0
    %6499 = vmatprep.subr.mxu0 0.0
    %6500 = vmatpush1.msra.mxu0 0.0
    %6501 = vmatprep.subr.mxu0 0.0
    %6502 = vmatpush1.msra.mxu0 0.0
    %6503 = vmatprep.subr.mxu0 0.0
    %6504 = vmatpush1.msra.mxu0 0.0
    %6505 = vmatprep.subr.mxu0 0.0
    %6506 = vmatpush1.msra.mxu0 0.0
    %6507 = vmatprep.subr.mxu0 0.0
    %6508 = vmatpush1.msra.mxu0 0.0
    %6509 = vmatprep.subr.mxu0 0.0
    %6510 = vmatpush1.msra.mxu0 0.0
    %6511 = vmatprep.subr.mxu0 0.0
    %6512 = vmatpush1.msra.mxu0 0.0
    %6513 = vmatprep.subr.mxu0 0.0
    %6514 = vmatpush1.msra.mxu0 0.0
    %6515 = vmatprep.subr.mxu0 0.0
    %6516 = vmatpush1.msra.mxu0 0.0
    %6517 = vmatprep.subr.mxu0 0.0
    %6518 = vmatpush1.msra.mxu0 0.0
    %6519 = vmatprep.subr.mxu0 0.0
    %6520 = vmatpush1.msra.mxu0 0.0
    %6521 = vmatprep.subr.mxu0 0.0
    %6522 = vmatpush1.msra.mxu0 0.0
    %6523 = vmatprep.subr.mxu0 0.0
    %6524 = vmatpush1.msra.mxu0 0.0
    %6525 = vmatprep.subr.mxu0 0.0
    %6526 = vmatpush1.msra.mxu0 0.0
    %6527 = vmatprep.subr.mxu0 0.0
    %6528 = vmatpush1.msra.mxu0 0.0
    %6529 = vmatprep.subr.mxu0 0.0
    %6530 = vmatpush1.msra.mxu0 0.0
    %6531 = vmatprep.subr.mxu0 0.0
    %6532 = vmatpush1.msra.mxu0 0.0
    %6533 = vmatprep.subr.mxu0 0.0
    %6534 = vmatpush1.msra.mxu0 0.0
    %6535 = vmatprep.subr.mxu0 0.0
    %6536 = vmatpush1.msra.mxu0 0.0
    %6537 = vmatprep.subr.mxu0 0.0
    %6538 = vmatpush1.msra.mxu0 0.0
    %6539 = vmatprep.subr.mxu0 0.0
    %6540 = vmatpush1.msra.mxu0 0.0
    %6541 = vmatprep.subr.mxu0 0.0
    %6542 = vmatpush1.msra.mxu0 0.0
    %6543 = vmatprep.subr.mxu0 0.0
    %6544 = vmatpush1.msra.mxu0 0.0
    %6545 = vmatprep.subr.mxu0 0.0
    %6546 = vmatpush1.msra.mxu0 0.0
    %6547 = vmatprep.subr.mxu0 0.0
    %6548 = vmatpush1.msra.mxu0 0.0
    %6549 = vmatprep.subr.mxu0 0.0
    %6550 = vmatpush1.msra.mxu0 0.0
    %6551 = vmatprep.subr.mxu0 0.0
    %6552 = vmatpush1.msra.mxu0 0.0
    %6553 = vmatprep.subr.mxu0 0.0
    %6554 = vmatpush1.msra.mxu0 0.0
    %6555 = vmatprep.subr.mxu0 0.0
    %6556 = vmatpush1.msra.mxu0 0.0
    %6557 = vmatprep.mubr.f32.mxu0 0.0
    %6558 = vmatmul.mubr.f32.gmra.mrb[0].mxu0 %v6491
    %v6559 = vpop.f32.mrb[0].mxu0
    %v6560 = vadd.f32 0.0, %v6559
    %v6561 = vpop.f32.mrb[0].mxu0
    %6562 = vdwg.mxu0
    %6563 = vrot.lane.b32.xlu0 %v5116, 64
    %v6564 = vpop.permute.xlu0 %6563
    %6565 = vrot.lane.b32.xlu0 %v5118, 64
    %v6566 = vpop.permute.xlu0 %6565
    %v6570 = vsel %vm5359, %v5533, 0
    %6572 = vmatprep.subr.mxu0 0.0
    %6573 = vmatpush1.msra.mxu0 %v6564
    %6574 = vmatprep.subr.mxu0 0.0
    %6575 = vmatpush1.msra.mxu0 %v6566
    %6576 = vmatprep.subr.mxu0 0.0
    %6577 = vmatpush1.msra.mxu0 0.0
    %6578 = vmatprep.subr.mxu0 0.0
    %6579 = vmatpush1.msra.mxu0 0.0
    %6580 = vmatprep.subr.mxu0 0.0
    %6581 = vmatpush1.msra.mxu0 0.0
    %6582 = vmatprep.subr.mxu0 0.0
    %6583 = vmatpush1.msra.mxu0 0.0
    %6584 = vmatprep.subr.mxu0 0.0
    %6585 = vmatpush1.msra.mxu0 0.0
    %6586 = vmatprep.subr.mxu0 0.0
    %6587 = vmatpush1.msra.mxu0 0.0
    %6588 = vmatprep.subr.mxu0 0.0
    %6589 = vmatpush1.msra.mxu0 0.0
    %6590 = vmatprep.subr.mxu0 0.0
    %6591 = vmatpush1.msra.mxu0 0.0
    %6592 = vmatprep.subr.mxu0 0.0
    %6593 = vmatpush1.msra.mxu0 0.0
    %6594 = vmatprep.subr.mxu0 0.0
    %6595 = vmatpush1.msra.mxu0 0.0
    %6596 = vmatprep.subr.mxu0 0.0
    %6597 = vmatpush1.msra.mxu0 0.0
    %6598 = vmatprep.subr.mxu0 0.0
    %6599 = vmatpush1.msra.mxu0 0.0
    %6600 = vmatprep.subr.mxu0 0.0
    %6601 = vmatpush1.msra.mxu0 0.0
    %6602 = vmatprep.subr.mxu0 0.0
    %6603 = vmatpush1.msra.mxu0 0.0
    %6604 = vmatprep.subr.mxu0 0.0
    %6605 = vmatpush1.msra.mxu0 0.0
    %6606 = vmatprep.subr.mxu0 0.0
    %6607 = vmatpush1.msra.mxu0 0.0
    %6608 = vmatprep.subr.mxu0 0.0
    %6609 = vmatpush1.msra.mxu0 0.0
    %6610 = vmatprep.subr.mxu0 0.0
    %6611 = vmatpush1.msra.mxu0 0.0
    %6612 = vmatprep.subr.mxu0 0.0
    %6613 = vmatpush1.msra.mxu0 0.0
    %6614 = vmatprep.subr.mxu0 0.0
    %6615 = vmatpush1.msra.mxu0 0.0
    %6616 = vmatprep.subr.mxu0 0.0
    %6617 = vmatpush1.msra.mxu0 0.0
    %6618 = vmatprep.subr.mxu0 0.0
    %6619 = vmatpush1.msra.mxu0 0.0
    %6620 = vmatprep.subr.mxu0 0.0
    %6621 = vmatpush1.msra.mxu0 0.0
    %6622 = vmatprep.subr.mxu0 0.0
    %6623 = vmatpush1.msra.mxu0 0.0
    %6624 = vmatprep.subr.mxu0 0.0
    %6625 = vmatpush1.msra.mxu0 0.0
    %6626 = vmatprep.subr.mxu0 0.0
    %6627 = vmatpush1.msra.mxu0 0.0
    %6628 = vmatprep.subr.mxu0 0.0
    %6629 = vmatpush1.msra.mxu0 0.0
    %6630 = vmatprep.subr.mxu0 0.0
    %6631 = vmatpush1.msra.mxu0 0.0
    %6632 = vmatprep.subr.mxu0 0.0
    %6633 = vmatpush1.msra.mxu0 0.0
    %6634 = vmatprep.subr.mxu0 0.0
    %6635 = vmatpush1.msra.mxu0 0.0
    %6636 = vmatprep.mubr.f32.mxu0 0.0
    %6637 = vmatmul.mubr.f32.gmra.mrb[0].mxu0 %v6570
    %v6638 = vpop.f32.mrb[0].mxu0
    %v6639 = vadd.f32 0.0, %v6638
    %v6640 = vpop.f32.mrb[0].mxu0
    %6641 = vdwg.mxu0
    %6642 = vrot.lane.b32.xlu0 %v5198, 64
    %v6643 = vpop.permute.xlu0 %6642
    %6644 = vrot.lane.b32.xlu0 %v5200, 64
    %v6645 = vpop.permute.xlu0 %6644
    %v6649 = vsel %vm5359, %v5534, 0
    %6651 = vmatprep.subr.mxu0 0.0
    %6652 = vmatpush1.msra.mxu0 %v6643
    %6653 = vmatprep.subr.mxu0 0.0
    %6654 = vmatpush1.msra.mxu0 %v6645
    %6655 = vmatprep.subr.mxu0 0.0
    %6656 = vmatpush1.msra.mxu0 0.0
    %6657 = vmatprep.subr.mxu0 0.0
    %6658 = vmatpush1.msra.mxu0 0.0
    %6659 = vmatprep.subr.mxu0 0.0
    %6660 = vmatpush1.msra.mxu0 0.0
    %6661 = vmatprep.subr.mxu0 0.0
    %6662 = vmatpush1.msra.mxu0 0.0
    %6663 = vmatprep.subr.mxu0 0.0
    %6664 = vmatpush1.msra.mxu0 0.0
    %6665 = vmatprep.subr.mxu0 0.0
    %6666 = vmatpush1.msra.mxu0 0.0
    %6667 = vmatprep.subr.mxu0 0.0
    %6668 = vmatpush1.msra.mxu0 0.0
    %6669 = vmatprep.subr.mxu0 0.0
    %6670 = vmatpush1.msra.mxu0 0.0
    %6671 = vmatprep.subr.mxu0 0.0
    %6672 = vmatpush1.msra.mxu0 0.0
    %6673 = vmatprep.subr.mxu0 0.0
    %6674 = vmatpush1.msra.mxu0 0.0
    %6675 = vmatprep.subr.mxu0 0.0
    %6676 = vmatpush1.msra.mxu0 0.0
    %6677 = vmatprep.subr.mxu0 0.0
    %6678 = vmatpush1.msra.mxu0 0.0
    %6679 = vmatprep.subr.mxu0 0.0
    %6680 = vmatpush1.msra.mxu0 0.0
    %6681 = vmatprep.subr.mxu0 0.0
    %6682 = vmatpush1.msra.mxu0 0.0
    %6683 = vmatprep.subr.mxu0 0.0
    %6684 = vmatpush1.msra.mxu0 0.0
    %6685 = vmatprep.subr.mxu0 0.0
    %6686 = vmatpush1.msra.mxu0 0.0
    %6687 = vmatprep.subr.mxu0 0.0
    %6688 = vmatpush1.msra.mxu0 0.0
    %6689 = vmatprep.subr.mxu0 0.0
    %6690 = vmatpush1.msra.mxu0 0.0
    %6691 = vmatprep.subr.mxu0 0.0
    %6692 = vmatpush1.msra.mxu0 0.0
    %6693 = vmatprep.subr.mxu0 0.0
    %6694 = vmatpush1.msra.mxu0 0.0
    %6695 = vmatprep.subr.mxu0 0.0
    %6696 = vmatpush1.msra.mxu0 0.0
    %6697 = vmatprep.subr.mxu0 0.0
    %6698 = vmatpush1.msra.mxu0 0.0
    %6699 = vmatprep.subr.mxu0 0.0
    %6700 = vmatpush1.msra.mxu0 0.0
    %6701 = vmatprep.subr.mxu0 0.0
    %6702 = vmatpush1.msra.mxu0 0.0
    %6703 = vmatprep.subr.mxu0 0.0
    %6704 = vmatpush1.msra.mxu0 0.0
    %6705 = vmatprep.subr.mxu0 0.0
    %6706 = vmatpush1.msra.mxu0 0.0
    %6707 = vmatprep.subr.mxu0 0.0
    %6708 = vmatpush1.msra.mxu0 0.0
    %6709 = vmatprep.subr.mxu0 0.0
    %6710 = vmatpush1.msra.mxu0 0.0
    %6711 = vmatprep.subr.mxu0 0.0
    %6712 = vmatpush1.msra.mxu0 0.0
    %6713 = vmatprep.subr.mxu0 0.0
    %6714 = vmatpush1.msra.mxu0 0.0
    %6715 = vmatprep.mubr.f32.mxu0 0.0
    %6716 = vmatmul.mubr.f32.gmra.mrb[0].mxu0 %v6649
    %v6717 = vpop.f32.mrb[0].mxu0
    %v6718 = vadd.f32 0.0, %v6717
    %v6719 = vpop.f32.mrb[0].mxu0
    %6720 = vdwg.mxu0
    %6721 = vrot.lane.b32.xlu0 %v5280, 64
    %v6722 = vpop.permute.xlu0 %6721
    %6723 = vrot.lane.b32.xlu0 %v5282, 64
    %v6724 = vpop.permute.xlu0 %6723
    %v6728 = vsel %vm5359, %v5535, 0
    %6730 = vmatprep.subr.mxu0 0.0
    %6731 = vmatpush1.msra.mxu0 %v6722
    %6732 = vmatprep.subr.mxu0 0.0
    %6733 = vmatpush1.msra.mxu0 %v6724
    %6734 = vmatprep.subr.mxu0 0.0
    %6735 = vmatpush1.msra.mxu0 0.0
    %6736 = vmatprep.subr.mxu0 0.0
    %6737 = vmatpush1.msra.mxu0 0.0
    %6738 = vmatprep.subr.mxu0 0.0
    %6739 = vmatpush1.msra.mxu0 0.0
    %6740 = vmatprep.subr.mxu0 0.0
    %6741 = vmatpush1.msra.mxu0 0.0
    %6742 = vmatprep.subr.mxu0 0.0
    %6743 = vmatpush1.msra.mxu0 0.0
    %6744 = vmatprep.subr.mxu0 0.0
    %6745 = vmatpush1.msra.mxu0 0.0
    %6746 = vmatprep.subr.mxu0 0.0
    %6747 = vmatpush1.msra.mxu0 0.0
    %6748 = vmatprep.subr.mxu0 0.0
    %6749 = vmatpush1.msra.mxu0 0.0
    %6750 = vmatprep.subr.mxu0 0.0
    %6751 = vmatpush1.msra.mxu0 0.0
    %6752 = vmatprep.subr.mxu0 0.0
    %6753 = vmatpush1.msra.mxu0 0.0
    %6754 = vmatprep.subr.mxu0 0.0
    %6755 = vmatpush1.msra.mxu0 0.0
    %6756 = vmatprep.subr.mxu0 0.0
    %6757 = vmatpush1.msra.mxu0 0.0
    %6758 = vmatprep.subr.mxu0 0.0
    %6759 = vmatpush1.msra.mxu0 0.0
    %6760 = vmatprep.subr.mxu0 0.0
    %6761 = vmatpush1.msra.mxu0 0.0
    %6762 = vmatprep.subr.mxu0 0.0
    %6763 = vmatpush1.msra.mxu0 0.0
    %6764 = vmatprep.subr.mxu0 0.0
    %6765 = vmatpush1.msra.mxu0 0.0
    %6766 = vmatprep.subr.mxu0 0.0
    %6767 = vmatpush1.msra.mxu0 0.0
    %6768 = vmatprep.subr.mxu0 0.0
    %6769 = vmatpush1.msra.mxu0 0.0
    %6770 = vmatprep.subr.mxu0 0.0
    %6771 = vmatpush1.msra.mxu0 0.0
    %6772 = vmatprep.subr.mxu0 0.0
    %6773 = vmatpush1.msra.mxu0 0.0
    %6774 = vmatprep.subr.mxu0 0.0
    %6775 = vmatpush1.msra.mxu0 0.0
    %6776 = vmatprep.subr.mxu0 0.0
    %6777 = vmatpush1.msra.mxu0 0.0
    %6778 = vmatprep.subr.mxu0 0.0
    %6779 = vmatpush1.msra.mxu0 0.0
    %6780 = vmatprep.subr.mxu0 0.0
    %6781 = vmatpush1.msra.mxu0 0.0
    %6782 = vmatprep.subr.mxu0 0.0
    %6783 = vmatpush1.msra.mxu0 0.0
    %6784 = vmatprep.subr.mxu0 0.0
    %6785 = vmatpush1.msra.mxu0 0.0
    %6786 = vmatprep.subr.mxu0 0.0
    %6787 = vmatpush1.msra.mxu0 0.0
    %6788 = vmatprep.subr.mxu0 0.0
    %6789 = vmatpush1.msra.mxu0 0.0
    %6790 = vmatprep.subr.mxu0 0.0
    %6791 = vmatpush1.msra.mxu0 0.0
    %6792 = vmatprep.subr.mxu0 0.0
    %6793 = vmatpush1.msra.mxu0 0.0
    %6794 = vmatprep.mubr.f32.mxu0 0.0
    %6795 = vmatmul.mubr.f32.gmra.mrb[0].mxu0 %v6728
    %v6796 = vpop.f32.mrb[0].mxu0
    %v6797 = vadd.f32 0.0, %v6796
    %v6798 = vpop.f32.mrb[0].mxu0
    %6799 = vdwg.mxu0
    %v6802 = vsel %vm241, %v5770, 0
    %v6805 = vsel %vm241, %v5849, 0
    %6807 = vmatprep.subr.mxu0 0.0
    %6808 = vmatpush1.msra.mxu0 %v3909
    %6809 = vmatprep.subr.mxu0 0.0
    %6810 = vmatpush1.msra.mxu0 0.0
    %6811 = vmatprep.subr.mxu0 0.0
    %6812 = vmatpush1.msra.mxu0 0.0
    %6813 = vmatprep.subr.mxu0 0.0
    %6814 = vmatpush1.msra.mxu0 0.0
    %6815 = vmatprep.subr.mxu0 0.0
    %6816 = vmatpush1.msra.mxu0 0.0
    %6817 = vmatprep.subr.mxu0 0.0
    %6818 = vmatpush1.msra.mxu0 0.0
    %6819 = vmatprep.subr.mxu0 0.0
    %6820 = vmatpush1.msra.mxu0 0.0
    %6821 = vmatprep.subr.mxu0 0.0
    %6822 = vmatpush1.msra.mxu0 0.0
    %6823 = vmatprep.subr.mxu0 0.0
    %6824 = vmatpush1.msra.mxu0 0.0
    %6825 = vmatprep.subr.mxu0 0.0
    %6826 = vmatpush1.msra.mxu0 0.0
    %6827 = vmatprep.subr.mxu0 0.0
    %6828 = vmatpush1.msra.mxu0 0.0
    %6829 = vmatprep.subr.mxu0 0.0
    %6830 = vmatpush1.msra.mxu0 0.0
    %6831 = vmatprep.subr.mxu0 0.0
    %6832 = vmatpush1.msra.mxu0 0.0
    %6833 = vmatprep.subr.mxu0 0.0
    %6834 = vmatpush1.msra.mxu0 0.0
    %6835 = vmatprep.subr.mxu0 0.0
    %6836 = vmatpush1.msra.mxu0 0.0
    %6837 = vmatprep.subr.mxu0 0.0
    %6838 = vmatpush1.msra.mxu0 0.0
    %6839 = vmatprep.subr.mxu0 0.0
    %6840 = vmatpush1.msra.mxu0 0.0
    %6841 = vmatprep.subr.mxu0 0.0
    %6842 = vmatpush1.msra.mxu0 0.0
    %6843 = vmatprep.subr.mxu0 0.0
    %6844 = vmatpush1.msra.mxu0 0.0
    %6845 = vmatprep.subr.mxu0 0.0
    %6846 = vmatpush1.msra.mxu0 0.0
    %6847 = vmatprep.subr.mxu0 0.0
    %6848 = vmatpush1.msra.mxu0 0.0
    %6849 = vmatprep.subr.mxu0 0.0
    %6850 = vmatpush1.msra.mxu0 0.0
    %6851 = vmatprep.subr.mxu0 0.0
    %6852 = vmatpush1.msra.mxu0 0.0
    %6853 = vmatprep.subr.mxu0 0.0
    %6854 = vmatpush1.msra.mxu0 0.0
    %6855 = vmatprep.subr.mxu0 0.0
    %6856 = vmatpush1.msra.mxu0 0.0
    %6857 = vmatprep.subr.mxu0 0.0
    %6858 = vmatpush1.msra.mxu0 0.0
    %6859 = vmatprep.subr.mxu0 0.0
    %6860 = vmatpush1.msra.mxu0 0.0
    %6861 = vmatprep.subr.mxu0 0.0
    %6862 = vmatpush1.msra.mxu0 0.0
    %6863 = vmatprep.subr.mxu0 0.0
    %6864 = vmatpush1.msra.mxu0 0.0
    %6865 = vmatprep.subr.mxu0 0.0
    %6866 = vmatpush1.msra.mxu0 0.0
    %6867 = vmatprep.subr.mxu0 0.0
    %6868 = vmatpush1.msra.mxu0 0.0
    %6869 = vmatprep.subr.mxu0 0.0
    %6870 = vmatpush1.msra.mxu0 0.0
    %6871 = vmatprep.mubr.f32.mxu0 0.0
    %6872 = vmatmul.mubr.f32.gmra.mrb[0].mxu0 %v6802
    %v6873 = vpop.f32.mrb[0].mxu0
    %v6874 = vadd.f32 0.0, %v6873
    %v6875 = vpop.f32.mrb[0].mxu0
    %6876 = vmatprep.mubr.f32.mxu0 0.0
    %6877 = vmatmul.mubr.f32.gmra.mrb[0].mxu0 %v6805
    %v6878 = vpop.f32.mrb[0].mxu0
    %v6879 = vadd.f32 0.0, %v6878
    %v6880 = vpop.f32.mrb[0].mxu0
    %6881 = vdwg.mxu0
    %v6884 = vsel %vm241, %v5612, 0
    %v6887 = vsel %vm241, %v5691, 0
    %6889 = vmatprep.subr.mxu0 0.0
    %6890 = vmatpush1.msra.mxu0 %v3905
    %6891 = vmatprep.subr.mxu0 0.0
    %6892 = vmatpush1.msra.mxu0 0.0
    %6893 = vmatprep.subr.mxu0 0.0
    %6894 = vmatpush1.msra.mxu0 0.0
    %6895 = vmatprep.subr.mxu0 0.0
    %6896 = vmatpush1.msra.mxu0 0.0
    %6897 = vmatprep.subr.mxu0 0.0
    %6898 = vmatpush1.msra.mxu0 0.0
    %6899 = vmatprep.subr.mxu0 0.0
    %6900 = vmatpush1.msra.mxu0 0.0
    %6901 = vmatprep.subr.mxu0 0.0
    %6902 = vmatpush1.msra.mxu0 0.0
    %6903 = vmatprep.subr.mxu0 0.0
    %6904 = vmatpush1.msra.mxu0 0.0
    %6905 = vmatprep.subr.mxu0 0.0
    %6906 = vmatpush1.msra.mxu0 0.0
    %6907 = vmatprep.subr.mxu0 0.0
    %6908 = vmatpush1.msra.mxu0 0.0
    %6909 = vmatprep.subr.mxu0 0.0
    %6910 = vmatpush1.msra.mxu0 0.0
    %6911 = vmatprep.subr.mxu0 0.0
    %6912 = vmatpush1.msra.mxu0 0.0
    %6913 = vmatprep.subr.mxu0 0.0
    %6914 = vmatpush1.msra.mxu0 0.0
    %6915 = vmatprep.subr.mxu0 0.0
    %6916 = vmatpush1.msra.mxu0 0.0
    %6917 = vmatprep.subr.mxu0 0.0
    %6918 = vmatpush1.msra.mxu0 0.0
    %6919 = vmatprep.subr.mxu0 0.0
    %6920 = vmatpush1.msra.mxu0 0.0
    %6921 = vmatprep.subr.mxu0 0.0
    %6922 = vmatpush1.msra.mxu0 0.0
    %6923 = vmatprep.subr.mxu0 0.0
    %6924 = vmatpush1.msra.mxu0 0.0
    %6925 = vmatprep.subr.mxu0 0.0
    %6926 = vmatpush1.msra.mxu0 0.0
    %6927 = vmatprep.subr.mxu0 0.0
    %6928 = vmatpush1.msra.mxu0 0.0
    %6929 = vmatprep.subr.mxu0 0.0
    %6930 = vmatpush1.msra.mxu0 0.0
    %6931 = vmatprep.subr.mxu0 0.0
    %6932 = vmatpush1.msra.mxu0 0.0
    %6933 = vmatprep.subr.mxu0 0.0
    %6934 = vmatpush1.msra.mxu0 0.0
    %6935 = vmatprep.subr.mxu0 0.0
    %6936 = vmatpush1.msra.mxu0 0.0
    %6937 = vmatprep.subr.mxu0 0.0
    %6938 = vmatpush1.msra.mxu0 0.0
    %6939 = vmatprep.subr.mxu0 0.0
    %6940 = vmatpush1.msra.mxu0 0.0
    %6941 = vmatprep.subr.mxu0 0.0
    %6942 = vmatpush1.msra.mxu0 0.0
    %6943 = vmatprep.subr.mxu0 0.0
    %6944 = vmatpush1.msra.mxu0 0.0
    %6945 = vmatprep.subr.mxu0 0.0
    %6946 = vmatpush1.msra.mxu0 0.0
    %6947 = vmatprep.subr.mxu0 0.0
    %6948 = vmatpush1.msra.mxu0 0.0
    %6949 = vmatprep.subr.mxu0 0.0
    %6950 = vmatpush1.msra.mxu0 0.0
    %6951 = vmatprep.subr.mxu0 0.0
    %6952 = vmatpush1.msra.mxu0 0.0
    %6953 = vmatprep.mubr.f32.mxu0 0.0
    %6954 = vmatmul.mubr.f32.gmra.mrb[0].mxu0 %v6884
    %v6955 = vpop.f32.mrb[0].mxu0
    %v6956 = vadd.f32 %v6874, %v6955
    %v6957 = vpop.f32.mrb[0].mxu0
    %6958 = vmatprep.mubr.f32.mxu0 0.0
    %6959 = vmatmul.mubr.f32.gmra.mrb[0].mxu0 %v6887
    %v6960 = vpop.f32.mrb[0].mxu0
    %v6961 = vadd.f32 %v6879, %v6960
    %v6962 = vpop.f32.mrb[0].mxu0
    %6963 = vdwg.mxu0
    %v6966 = vsel %vm241, %v5928, 0
    %v6969 = vsel %vm241, %v6007, 0
    %6971 = vmatprep.subr.mxu0 0.0
    %6972 = vmatpush1.msra.mxu0 %v3913
    %6973 = vmatprep.subr.mxu0 0.0
    %6974 = vmatpush1.msra.mxu0 0.0
    %6975 = vmatprep.subr.mxu0 0.0
    %6976 = vmatpush1.msra.mxu0 0.0
    %6977 = vmatprep.subr.mxu0 0.0
    %6978 = vmatpush1.msra.mxu0 0.0
    %6979 = vmatprep.subr.mxu0 0.0
    %6980 = vmatpush1.msra.mxu0 0.0
    %6981 = vmatprep.subr.mxu0 0.0
    %6982 = vmatpush1.msra.mxu0 0.0
    %6983 = vmatprep.subr.mxu0 0.0
    %6984 = vmatpush1.msra.mxu0 0.0
    %6985 = vmatprep.subr.mxu0 0.0
    %6986 = vmatpush1.msra.mxu0 0.0
    %6987 = vmatprep.subr.mxu0 0.0
    %6988 = vmatpush1.msra.mxu0 0.0
    %6989 = vmatprep.subr.mxu0 0.0
    %6990 = vmatpush1.msra.mxu0 0.0
    %6991 = vmatprep.subr.mxu0 0.0
    %6992 = vmatpush1.msra.mxu0 0.0
    %6993 = vmatprep.subr.mxu0 0.0
    %6994 = vmatpush1.msra.mxu0 0.0
    %6995 = vmatprep.subr.mxu0 0.0
    %6996 = vmatpush1.msra.mxu0 0.0
    %6997 = vmatprep.subr.mxu0 0.0
    %6998 = vmatpush1.msra.mxu0 0.0
    %6999 = vmatprep.subr.mxu0 0.0
    %7000 = vmatpush1.msra.mxu0 0.0
    %7001 = vmatprep.subr.mxu0 0.0
    %7002 = vmatpush1.msra.mxu0 0.0
    %7003 = vmatprep.subr.mxu0 0.0
    %7004 = vmatpush1.msra.mxu0 0.0
    %7005 = vmatprep.subr.mxu0 0.0
    %7006 = vmatpush1.msra.mxu0 0.0
    %7007 = vmatprep.subr.mxu0 0.0
    %7008 = vmatpush1.msra.mxu0 0.0
    %7009 = vmatprep.subr.mxu0 0.0
    %7010 = vmatpush1.msra.mxu0 0.0
    %7011 = vmatprep.subr.mxu0 0.0
    %7012 = vmatpush1.msra.mxu0 0.0
    %7013 = vmatprep.subr.mxu0 0.0
    %7014 = vmatpush1.msra.mxu0 0.0
    %7015 = vmatprep.subr.mxu0 0.0
    %7016 = vmatpush1.msra.mxu0 0.0
    %7017 = vmatprep.subr.mxu0 0.0
    %7018 = vmatpush1.msra.mxu0 0.0
    %7019 = vmatprep.subr.mxu0 0.0
    %7020 = vmatpush1.msra.mxu0 0.0
    %7021 = vmatprep.subr.mxu0 0.0
    %7022 = vmatpush1.msra.mxu0 0.0
    %7023 = vmatprep.subr.mxu0 0.0
    %7024 = vmatpush1.msra.mxu0 0.0
    %7025 = vmatprep.subr.mxu0 0.0
    %7026 = vmatpush1.msra.mxu0 0.0
    %7027 = vmatprep.subr.mxu0 0.0
    %7028 = vmatpush1.msra.mxu0 0.0
    %7029 = vmatprep.subr.mxu0 0.0
    %7030 = vmatpush1.msra.mxu0 0.0
    %7031 = vmatprep.subr.mxu0 0.0
    %7032 = vmatpush1.msra.mxu0 0.0
    %7033 = vmatprep.subr.mxu0 0.0
    %7034 = vmatpush1.msra.mxu0 0.0
    %7035 = vmatprep.mubr.f32.mxu0 0.0
    %7036 = vmatmul.mubr.f32.gmra.mrb[0].mxu0 %v6966
    %v7037 = vpop.f32.mrb[0].mxu0
    %v7038 = vadd.f32 0.0, %v7037
    %v7039 = vpop.f32.mrb[0].mxu0
    %7040 = vmatprep.mubr.f32.mxu0 0.0
    %7041 = vmatmul.mubr.f32.gmra.mrb[0].mxu0 %v6969
    %v7042 = vpop.f32.mrb[0].mxu0
    %v7043 = vadd.f32 0.0, %v7042
    %v7044 = vpop.f32.mrb[0].mxu0
    %7045 = vdwg.mxu0
    %v7046 = vadd.f32 %v6956, %v7038
    %v7047 = vadd.f32 %v6961, %v7043
    %v7050 = vsel %vm241, %v6086, 0
    %v7053 = vsel %vm241, %v6165, 0
    %7055 = vmatprep.subr.mxu0 0.0
    %7056 = vmatpush1.msra.mxu0 %v3917
    %7057 = vmatprep.subr.mxu0 0.0
    %7058 = vmatpush1.msra.mxu0 0.0
    %7059 = vmatprep.subr.mxu0 0.0
    %7060 = vmatpush1.msra.mxu0 0.0
    %7061 = vmatprep.subr.mxu0 0.0
    %7062 = vmatpush1.msra.mxu0 0.0
    %7063 = vmatprep.subr.mxu0 0.0
    %7064 = vmatpush1.msra.mxu0 0.0
    %7065 = vmatprep.subr.mxu0 0.0
    %7066 = vmatpush1.msra.mxu0 0.0
    %7067 = vmatprep.subr.mxu0 0.0
    %7068 = vmatpush1.msra.mxu0 0.0
    %7069 = vmatprep.subr.mxu0 0.0
    %7070 = vmatpush1.msra.mxu0 0.0
    %7071 = vmatprep.subr.mxu0 0.0
    %7072 = vmatpush1.msra.mxu0 0.0
    %7073 = vmatprep.subr.mxu0 0.0
    %7074 = vmatpush1.msra.mxu0 0.0
    %7075 = vmatprep.subr.mxu0 0.0
    %7076 = vmatpush1.msra.mxu0 0.0
    %7077 = vmatprep.subr.mxu0 0.0
    %7078 = vmatpush1.msra.mxu0 0.0
    %7079 = vmatprep.subr.mxu0 0.0
    %7080 = vmatpush1.msra.mxu0 0.0
    %7081 = vmatprep.subr.mxu0 0.0
    %7082 = vmatpush1.msra.mxu0 0.0
    %7083 = vmatprep.subr.mxu0 0.0
    %7084 = vmatpush1.msra.mxu0 0.0
    %7085 = vmatprep.subr.mxu0 0.0
    %7086 = vmatpush1.msra.mxu0 0.0
    %7087 = vmatprep.subr.mxu0 0.0
    %7088 = vmatpush1.msra.mxu0 0.0
    %7089 = vmatprep.subr.mxu0 0.0
    %7090 = vmatpush1.msra.mxu0 0.0
    %7091 = vmatprep.subr.mxu0 0.0
    %7092 = vmatpush1.msra.mxu0 0.0
    %7093 = vmatprep.subr.mxu0 0.0
    %7094 = vmatpush1.msra.mxu0 0.0
    %7095 = vmatprep.subr.mxu0 0.0
    %7096 = vmatpush1.msra.mxu0 0.0
    %7097 = vmatprep.subr.mxu0 0.0
    %7098 = vmatpush1.msra.mxu0 0.0
    %7099 = vmatprep.subr.mxu0 0.0
    %7100 = vmatpush1.msra.mxu0 0.0
    %7101 = vmatprep.subr.mxu0 0.0
    %7102 = vmatpush1.msra.mxu0 0.0
    %7103 = vmatprep.subr.mxu0 0.0
    %7104 = vmatpush1.msra.mxu0 0.0
    %7105 = vmatprep.subr.mxu0 0.0
    %7106 = vmatpush1.msra.mxu0 0.0
    %7107 = vmatprep.subr.mxu0 0.0
    %7108 = vmatpush1.msra.mxu0 0.0
    %7109 = vmatprep.subr.mxu0 0.0
    %7110 = vmatpush1.msra.mxu0 0.0
    %7111 = vmatprep.subr.mxu0 0.0
    %7112 = vmatpush1.msra.mxu0 0.0
    %7113 = vmatprep.subr.mxu0 0.0
    %7114 = vmatpush1.msra.mxu0 0.0
    %7115 = vmatprep.subr.mxu0 0.0
    %7116 = vmatpush1.msra.mxu0 0.0
    %7117 = vmatprep.subr.mxu0 0.0
    %7118 = vmatpush1.msra.mxu0 0.0
    %7119 = vmatprep.mubr.f32.mxu0 0.0
    %7120 = vmatmul.mubr.f32.gmra.mrb[0].mxu0 %v7050
    %v7121 = vpop.f32.mrb[0].mxu0
    %v7122 = vadd.f32 0.0, %v7121
    %v7123 = vpop.f32.mrb[0].mxu0
    %7124 = vmatprep.mubr.f32.mxu0 0.0
    %7125 = vmatmul.mubr.f32.gmra.mrb[0].mxu0 %v7053
    %v7126 = vpop.f32.mrb[0].mxu0
    %v7127 = vadd.f32 0.0, %v7126
    %v7128 = vpop.f32.mrb[0].mxu0
    %7129 = vdwg.mxu0
    %v7130 = vadd.f32 %v7046, %v7122
    %v7131 = vadd.f32 %v7047, %v7127
    %v7134 = vsel %vm241, %v6244, 0
    %v7137 = vsel %vm241, %v6323, 0
    %7139 = vmatprep.subr.mxu0 0.0
    %7140 = vmatpush1.msra.mxu0 %v3921
    %7141 = vmatprep.subr.mxu0 0.0
    %7142 = vmatpush1.msra.mxu0 0.0
    %7143 = vmatprep.subr.mxu0 0.0
    %7144 = vmatpush1.msra.mxu0 0.0
    %7145 = vmatprep.subr.mxu0 0.0
    %7146 = vmatpush1.msra.mxu0 0.0
    %7147 = vmatprep.subr.mxu0 0.0
    %7148 = vmatpush1.msra.mxu0 0.0
    %7149 = vmatprep.subr.mxu0 0.0
    %7150 = vmatpush1.msra.mxu0 0.0
    %7151 = vmatprep.subr.mxu0 0.0
    %7152 = vmatpush1.msra.mxu0 0.0
    %7153 = vmatprep.subr.mxu0 0.0
    %7154 = vmatpush1.msra.mxu0 0.0
    %7155 = vmatprep.subr.mxu0 0.0
    %7156 = vmatpush1.msra.mxu0 0.0
    %7157 = vmatprep.subr.mxu0 0.0
    %7158 = vmatpush1.msra.mxu0 0.0
    %7159 = vmatprep.subr.mxu0 0.0
    %7160 = vmatpush1.msra.mxu0 0.0
    %7161 = vmatprep.subr.mxu0 0.0
    %7162 = vmatpush1.msra.mxu0 0.0
    %7163 = vmatprep.subr.mxu0 0.0
    %7164 = vmatpush1.msra.mxu0 0.0
    %7165 = vmatprep.subr.mxu0 0.0
    %7166 = vmatpush1.msra.mxu0 0.0
    %7167 = vmatprep.subr.mxu0 0.0
    %7168 = vmatpush1.msra.mxu0 0.0
    %7169 = vmatprep.subr.mxu0 0.0
    %7170 = vmatpush1.msra.mxu0 0.0
    %7171 = vmatprep.subr.mxu0 0.0
    %7172 = vmatpush1.msra.mxu0 0.0
    %7173 = vmatprep.subr.mxu0 0.0
    %7174 = vmatpush1.msra.mxu0 0.0
    %7175 = vmatprep.subr.mxu0 0.0
    %7176 = vmatpush1.msra.mxu0 0.0
    %7177 = vmatprep.subr.mxu0 0.0
    %7178 = vmatpush1.msra.mxu0 0.0
    %7179 = vmatprep.subr.mxu0 0.0
    %7180 = vmatpush1.msra.mxu0 0.0
    %7181 = vmatprep.subr.mxu0 0.0
    %7182 = vmatpush1.msra.mxu0 0.0
    %7183 = vmatprep.subr.mxu0 0.0
    %7184 = vmatpush1.msra.mxu0 0.0
    %7185 = vmatprep.subr.mxu0 0.0
    %7186 = vmatpush1.msra.mxu0 0.0
    %7187 = vmatprep.subr.mxu0 0.0
    %7188 = vmatpush1.msra.mxu0 0.0
    %7189 = vmatprep.subr.mxu0 0.0
    %7190 = vmatpush1.msra.mxu0 0.0
    %7191 = vmatprep.subr.mxu0 0.0
    %7192 = vmatpush1.msra.mxu0 0.0
    %7193 = vmatprep.subr.mxu0 0.0
    %7194 = vmatpush1.msra.mxu0 0.0
    %7195 = vmatprep.subr.mxu0 0.0
    %7196 = vmatpush1.msra.mxu0 0.0
    %7197 = vmatprep.subr.mxu0 0.0
    %7198 = vmatpush1.msra.mxu0 0.0
    %7199 = vmatprep.subr.mxu0 0.0
    %7200 = vmatpush1.msra.mxu0 0.0
    %7201 = vmatprep.subr.mxu0 0.0
    %7202 = vmatpush1.msra.mxu0 0.0
    %7203 = vmatprep.mubr.f32.mxu0 0.0
    %7204 = vmatmul.mubr.f32.gmra.mrb[0].mxu0 %v7134
    %v7205 = vpop.f32.mrb[0].mxu0
    %v7206 = vadd.f32 0.0, %v7205
    %v7207 = vpop.f32.mrb[0].mxu0
    %7208 = vmatprep.mubr.f32.mxu0 0.0
    %7209 = vmatmul.mubr.f32.gmra.mrb[0].mxu0 %v7137
    %v7210 = vpop.f32.mrb[0].mxu0
    %v7211 = vadd.f32 0.0, %v7210
    %v7212 = vpop.f32.mrb[0].mxu0
    %7213 = vdwg.mxu0
    %v7214 = vadd.f32 %v7130, %v7206
    %v7215 = vadd.f32 %v7131, %v7211
    %v7218 = vsel %vm241, %v6402, 0
    %v7221 = vsel %vm241, %v6481, 0
    %7223 = vmatprep.subr.mxu0 0.0
    %7224 = vmatpush1.msra.mxu0 %v3925
    %7225 = vmatprep.subr.mxu0 0.0
    %7226 = vmatpush1.msra.mxu0 0.0
    %7227 = vmatprep.subr.mxu0 0.0
    %7228 = vmatpush1.msra.mxu0 0.0
    %7229 = vmatprep.subr.mxu0 0.0
    %7230 = vmatpush1.msra.mxu0 0.0
    %7231 = vmatprep.subr.mxu0 0.0
    %7232 = vmatpush1.msra.mxu0 0.0
    %7233 = vmatprep.subr.mxu0 0.0
    %7234 = vmatpush1.msra.mxu0 0.0
    %7235 = vmatprep.subr.mxu0 0.0
    %7236 = vmatpush1.msra.mxu0 0.0
    %7237 = vmatprep.subr.mxu0 0.0
    %7238 = vmatpush1.msra.mxu0 0.0
    %7239 = vmatprep.subr.mxu0 0.0
    %7240 = vmatpush1.msra.mxu0 0.0
    %7241 = vmatprep.subr.mxu0 0.0
    %7242 = vmatpush1.msra.mxu0 0.0
    %7243 = vmatprep.subr.mxu0 0.0
    %7244 = vmatpush1.msra.mxu0 0.0
    %7245 = vmatprep.subr.mxu0 0.0
    %7246 = vmatpush1.msra.mxu0 0.0
    %7247 = vmatprep.subr.mxu0 0.0
    %7248 = vmatpush1.msra.mxu0 0.0
    %7249 = vmatprep.subr.mxu0 0.0
    %7250 = vmatpush1.msra.mxu0 0.0
    %7251 = vmatprep.subr.mxu0 0.0
    %7252 = vmatpush1.msra.mxu0 0.0
    %7253 = vmatprep.subr.mxu0 0.0
    %7254 = vmatpush1.msra.mxu0 0.0
    %7255 = vmatprep.subr.mxu0 0.0
    %7256 = vmatpush1.msra.mxu0 0.0
    %7257 = vmatprep.subr.mxu0 0.0
    %7258 = vmatpush1.msra.mxu0 0.0
    %7259 = vmatprep.subr.mxu0 0.0
    %7260 = vmatpush1.msra.mxu0 0.0
    %7261 = vmatprep.subr.mxu0 0.0
    %7262 = vmatpush1.msra.mxu0 0.0
    %7263 = vmatprep.subr.mxu0 0.0
    %7264 = vmatpush1.msra.mxu0 0.0
    %7265 = vmatprep.subr.mxu0 0.0
    %7266 = vmatpush1.msra.mxu0 0.0
    %7267 = vmatprep.subr.mxu0 0.0
    %7268 = vmatpush1.msra.mxu0 0.0
    %7269 = vmatprep.subr.mxu0 0.0
    %7270 = vmatpush1.msra.mxu0 0.0
    %7271 = vmatprep.subr.mxu0 0.0
    %7272 = vmatpush1.msra.mxu0 0.0
    %7273 = vmatprep.subr.mxu0 0.0
    %7274 = vmatpush1.msra.mxu0 0.0
    %7275 = vmatprep.subr.mxu0 0.0
    %7276 = vmatpush1.msra.mxu0 0.0
    %7277 = vmatprep.subr.mxu0 0.0
    %7278 = vmatpush1.msra.mxu0 0.0
    %7279 = vmatprep.subr.mxu0 0.0
    %7280 = vmatpush1.msra.mxu0 0.0
    %7281 = vmatprep.subr.mxu0 0.0
    %7282 = vmatpush1.msra.mxu0 0.0
    %7283 = vmatprep.subr.mxu0 0.0
    %7284 = vmatpush1.msra.mxu0 0.0
    %7285 = vmatprep.subr.mxu0 0.0
    %7286 = vmatpush1.msra.mxu0 0.0
    %7287 = vmatprep.mubr.f32.mxu0 0.0
    %7288 = vmatmul.mubr.f32.gmra.mrb[0].mxu0 %v7218
    %v7289 = vpop.f32.mrb[0].mxu0
    %v7290 = vadd.f32 0.0, %v7289
    %v7291 = vpop.f32.mrb[0].mxu0
    %7292 = vmatprep.mubr.f32.mxu0 0.0
    %7293 = vmatmul.mubr.f32.gmra.mrb[0].mxu0 %v7221
    %v7294 = vpop.f32.mrb[0].mxu0
    %v7295 = vadd.f32 0.0, %v7294
    %v7296 = vpop.f32.mrb[0].mxu0
    %7297 = vdwg.mxu0
    %v7298 = vadd.f32 %v7214, %v7290
    %v7299 = vadd.f32 %v7215, %v7295
    %v7302 = vsel %vm241, %v6560, 0
    %v7305 = vsel %vm241, %v6639, 0
    %7307 = vmatprep.subr.mxu0 0.0
    %7308 = vmatpush1.msra.mxu0 %v3929
    %7309 = vmatprep.subr.mxu0 0.0
    %7310 = vmatpush1.msra.mxu0 0.0
    %7311 = vmatprep.subr.mxu0 0.0
    %7312 = vmatpush1.msra.mxu0 0.0
    %7313 = vmatprep.subr.mxu0 0.0
    %7314 = vmatpush1.msra.mxu0 0.0
    %7315 = vmatprep.subr.mxu0 0.0
    %7316 = vmatpush1.msra.mxu0 0.0
    %7317 = vmatprep.subr.mxu0 0.0
    %7318 = vmatpush1.msra.mxu0 0.0
    %7319 = vmatprep.subr.mxu0 0.0
    %7320 = vmatpush1.msra.mxu0 0.0
    %7321 = vmatprep.subr.mxu0 0.0
    %7322 = vmatpush1.msra.mxu0 0.0
    %7323 = vmatprep.subr.mxu0 0.0
    %7324 = vmatpush1.msra.mxu0 0.0
    %7325 = vmatprep.subr.mxu0 0.0
    %7326 = vmatpush1.msra.mxu0 0.0
    %7327 = vmatprep.subr.mxu0 0.0
    %7328 = vmatpush1.msra.mxu0 0.0
    %7329 = vmatprep.subr.mxu0 0.0
    %7330 = vmatpush1.msra.mxu0 0.0
    %7331 = vmatprep.subr.mxu0 0.0
    %7332 = vmatpush1.msra.mxu0 0.0
    %7333 = vmatprep.subr.mxu0 0.0
    %7334 = vmatpush1.msra.mxu0 0.0
    %7335 = vmatprep.subr.mxu0 0.0
    %7336 = vmatpush1.msra.mxu0 0.0
    %7337 = vmatprep.subr.mxu0 0.0
    %7338 = vmatpush1.msra.mxu0 0.0
    %7339 = vmatprep.subr.mxu0 0.0
    %7340 = vmatpush1.msra.mxu0 0.0
    %7341 = vmatprep.subr.mxu0 0.0
    %7342 = vmatpush1.msra.mxu0 0.0
    %7343 = vmatprep.subr.mxu0 0.0
    %7344 = vmatpush1.msra.mxu0 0.0
    %7345 = vmatprep.subr.mxu0 0.0
    %7346 = vmatpush1.msra.mxu0 0.0
    %7347 = vmatprep.subr.mxu0 0.0
    %7348 = vmatpush1.msra.mxu0 0.0
    %7349 = vmatprep.subr.mxu0 0.0
    %7350 = vmatpush1.msra.mxu0 0.0
    %7351 = vmatprep.subr.mxu0 0.0
    %7352 = vmatpush1.msra.mxu0 0.0
    %7353 = vmatprep.subr.mxu0 0.0
    %7354 = vmatpush1.msra.mxu0 0.0
    %7355 = vmatprep.subr.mxu0 0.0
    %7356 = vmatpush1.msra.mxu0 0.0
    %7357 = vmatprep.subr.mxu0 0.0
    %7358 = vmatpush1.msra.mxu0 0.0
    %7359 = vmatprep.subr.mxu0 0.0
    %7360 = vmatpush1.msra.mxu0 0.0
    %7361 = vmatprep.subr.mxu0 0.0
    %7362 = vmatpush1.msra.mxu0 0.0
    %7363 = vmatprep.subr.mxu0 0.0
    %7364 = vmatpush1.msra.mxu0 0.0
    %7365 = vmatprep.subr.mxu0 0.0
    %7366 = vmatpush1.msra.mxu0 0.0
    %7367 = vmatprep.subr.mxu0 0.0
    %7368 = vmatpush1.msra.mxu0 0.0
    %7369 = vmatprep.subr.mxu0 0.0
    %7370 = vmatpush1.msra.mxu0 0.0
    %7371 = vmatprep.mubr.f32.mxu0 0.0
    %7372 = vmatmul.mubr.f32.gmra.mrb[0].mxu0 %v7302
    %v7373 = vpop.f32.mrb[0].mxu0
    %v7374 = vadd.f32 0.0, %v7373
    %v7375 = vpop.f32.mrb[0].mxu0
    %7376 = vmatprep.mubr.f32.mxu0 0.0
    %7377 = vmatmul.mubr.f32.gmra.mrb[0].mxu0 %v7305
    %v7378 = vpop.f32.mrb[0].mxu0
    %v7379 = vadd.f32 0.0, %v7378
    %v7380 = vpop.f32.mrb[0].mxu0
    %7381 = vdwg.mxu0
    %v7382 = vadd.f32 %v7298, %v7374
    %v7383 = vadd.f32 %v7299, %v7379
    %v7386 = vsel %vm241, %v6718, 0
    %v7389 = vsel %vm241, %v6797, 0
    %7391 = vmatprep.subr.mxu0 0.0
    %7392 = vmatpush1.msra.mxu0 %v3933
    %7393 = vmatprep.subr.mxu0 0.0
    %7394 = vmatpush1.msra.mxu0 0.0
    %7395 = vmatprep.subr.mxu0 0.0
    %7396 = vmatpush1.msra.mxu0 0.0
    %7397 = vmatprep.subr.mxu0 0.0
    %7398 = vmatpush1.msra.mxu0 0.0
    %7399 = vmatprep.subr.mxu0 0.0
    %7400 = vmatpush1.msra.mxu0 0.0
    %7401 = vmatprep.subr.mxu0 0.0
    %7402 = vmatpush1.msra.mxu0 0.0
    %7403 = vmatprep.subr.mxu0 0.0
    %7404 = vmatpush1.msra.mxu0 0.0
    %7405 = vmatprep.subr.mxu0 0.0
    %7406 = vmatpush1.msra.mxu0 0.0
    %7407 = vmatprep.subr.mxu0 0.0
    %7408 = vmatpush1.msra.mxu0 0.0
    %7409 = vmatprep.subr.mxu0 0.0
    %7410 = vmatpush1.msra.mxu0 0.0
    %7411 = vmatprep.subr.mxu0 0.0
    %7412 = vmatpush1.msra.mxu0 0.0
    %7413 = vmatprep.subr.mxu0 0.0
    %7414 = vmatpush1.msra.mxu0 0.0
    %7415 = vmatprep.subr.mxu0 0.0
    %7416 = vmatpush1.msra.mxu0 0.0
    %7417 = vmatprep.subr.mxu0 0.0
    %7418 = vmatpush1.msra.mxu0 0.0
    %7419 = vmatprep.subr.mxu0 0.0
    %7420 = vmatpush1.msra.mxu0 0.0
    %7421 = vmatprep.subr.mxu0 0.0
    %7422 = vmatpush1.msra.mxu0 0.0
    %7423 = vmatprep.subr.mxu0 0.0
    %7424 = vmatpush1.msra.mxu0 0.0
    %7425 = vmatprep.subr.mxu0 0.0
    %7426 = vmatpush1.msra.mxu0 0.0
    %7427 = vmatprep.subr.mxu0 0.0
    %7428 = vmatpush1.msra.mxu0 0.0
    %7429 = vmatprep.subr.mxu0 0.0
    %7430 = vmatpush1.msra.mxu0 0.0
    %7431 = vmatprep.subr.mxu0 0.0
    %7432 = vmatpush1.msra.mxu0 0.0
    %7433 = vmatprep.subr.mxu0 0.0
    %7434 = vmatpush1.msra.mxu0 0.0
    %7435 = vmatprep.subr.mxu0 0.0
    %7436 = vmatpush1.msra.mxu0 0.0
    %7437 = vmatprep.subr.mxu0 0.0
    %7438 = vmatpush1.msra.mxu0 0.0
    %7439 = vmatprep.subr.mxu0 0.0
    %7440 = vmatpush1.msra.mxu0 0.0
    %7441 = vmatprep.subr.mxu0 0.0
    %7442 = vmatpush1.msra.mxu0 0.0
    %7443 = vmatprep.subr.mxu0 0.0
    %7444 = vmatpush1.msra.mxu0 0.0
    %7445 = vmatprep.subr.mxu0 0.0
    %7446 = vmatpush1.msra.mxu0 0.0
    %7447 = vmatprep.subr.mxu0 0.0
    %7448 = vmatpush1.msra.mxu0 0.0
    %7449 = vmatprep.subr.mxu0 0.0
    %7450 = vmatpush1.msra.mxu0 0.0
    %7451 = vmatprep.subr.mxu0 0.0
    %7452 = vmatpush1.msra.mxu0 0.0
    %7453 = vmatprep.subr.mxu0 0.0
    %7454 = vmatpush1.msra.mxu0 0.0
    %7455 = vmatprep.mubr.f32.mxu0 0.0
    %7456 = vmatmul.mubr.f32.gmra.mrb[0].mxu0 %v7386
    %v7457 = vpop.f32.mrb[0].mxu0
    %v7458 = vadd.f32 0.0, %v7457
    %v7459 = vpop.f32.mrb[0].mxu0
    %7460 = vmatprep.mubr.f32.mxu0 0.0
    %7461 = vmatmul.mubr.f32.gmra.mrb[0].mxu0 %v7389
    %v7462 = vpop.f32.mrb[0].mxu0
    %v7463 = vadd.f32 0.0, %v7462
    %v7464 = vpop.f32.mrb[0].mxu0
    %7465 = vdwg.mxu0
    %v7466 = vadd.f32 %v7382, %v7458
    %v7467 = vadd.f32 %v7383, %v7463
    %v7469 = vlaneseq
    %v7470 = vshrl.u32 %v7469, 7
    %v7471 = vsub.s32 0, %v7470
    %v7472 = vrot.slane %v134, %v7471
    %7473 = vrot.lane.b32.xlu0 %v7472, 64
    %v7474 = vpop.permute.xlu0 %7473
    %v7476 = vadd.f32 %v7466, %v7474
    %v7477 = vadd.f32 %v7467, %v7474
    %v7478 = vadd.f32 %v3788, %v7476
    %v7479 = vadd.f32 %v3789, %v7477
    %v7481 = vsel %vm154, %v7478, 0
    %v7484 = vsel %vm154, %v7479, 0
    %7486 = vmatprep.subr.mxu0 0.0
    %7487 = vmatpush1.msra.mxu0 1.0
    %7488 = vmatprep.subr.mxu0 0.0
    %7489 = vmatpush1.msra.mxu0 1.0
    %7490 = vmatprep.subr.mxu0 0.0
    %7491 = vmatpush1.msra.mxu0 1.0
    %7492 = vmatprep.subr.mxu0 0.0
    %7493 = vmatpush1.msra.mxu0 1.0
    %7494 = vmatprep.subr.mxu0 0.0
    %7495 = vmatpush1.msra.mxu0 1.0
    %7496 = vmatprep.subr.mxu0 0.0
    %7497 = vmatpush1.msra.mxu0 1.0
    %7498 = vmatprep.subr.mxu0 0.0
    %7499 = vmatpush1.msra.mxu0 1.0
    %7500 = vmatprep.subr.mxu0 0.0
    %7501 = vmatpush1.msra.mxu0 1.0
    %7502 = vmatprep.subr.mxu0 0.0
    %7503 = vmatpush1.msra.mxu0 0.0
    %7504 = vmatprep.subr.mxu0 0.0
    %7505 = vmatpush1.msra.mxu0 0.0
    %7506 = vmatprep.subr.mxu0 0.0
    %7507 = vmatpush1.msra.mxu0 0.0
    %7508 = vmatprep.subr.mxu0 0.0
    %7509 = vmatpush1.msra.mxu0 0.0
    %7510 = vmatprep.subr.mxu0 0.0
    %7511 = vmatpush1.msra.mxu0 0.0
    %7512 = vmatprep.subr.mxu0 0.0
    %7513 = vmatpush1.msra.mxu0 0.0
    %7514 = vmatprep.subr.mxu0 0.0
    %7515 = vmatpush1.msra.mxu0 0.0
    %7516 = vmatprep.subr.mxu0 0.0
    %7517 = vmatpush1.msra.mxu0 0.0
    %7518 = vmatprep.subr.mxu0 0.0
    %7519 = vmatpush1.msra.mxu0 0.0
    %7520 = vmatprep.subr.mxu0 0.0
    %7521 = vmatpush1.msra.mxu0 0.0
    %7522 = vmatprep.subr.mxu0 0.0
    %7523 = vmatpush1.msra.mxu0 0.0
    %7524 = vmatprep.subr.mxu0 0.0
    %7525 = vmatpush1.msra.mxu0 0.0
    %7526 = vmatprep.subr.mxu0 0.0
    %7527 = vmatpush1.msra.mxu0 0.0
    %7528 = vmatprep.subr.mxu0 0.0
    %7529 = vmatpush1.msra.mxu0 0.0
    %7530 = vmatprep.subr.mxu0 0.0
    %7531 = vmatpush1.msra.mxu0 0.0
    %7532 = vmatprep.subr.mxu0 0.0
    %7533 = vmatpush1.msra.mxu0 0.0
    %7534 = vmatprep.subr.mxu0 0.0
    %7535 = vmatpush1.msra.mxu0 0.0
    %7536 = vmatprep.subr.mxu0 0.0
    %7537 = vmatpush1.msra.mxu0 0.0
    %7538 = vmatprep.subr.mxu0 0.0
    %7539 = vmatpush1.msra.mxu0 0.0
    %7540 = vmatprep.subr.mxu0 0.0
    %7541 = vmatpush1.msra.mxu0 0.0
    %7542 = vmatprep.subr.mxu0 0.0
    %7543 = vmatpush1.msra.mxu0 0.0
    %7544 = vmatprep.subr.mxu0 0.0
    %7545 = vmatpush1.msra.mxu0 0.0
    %7546 = vmatprep.subr.mxu0 0.0
    %7547 = vmatpush1.msra.mxu0 0.0
    %7548 = vmatprep.subr.mxu0 0.0
    %7549 = vmatpush1.msra.mxu0 0.0
    %7550 = vmatprep.mubr.f32.mxu0 0.0
    %7551 = vmatmul.mubr.f32.gmra.mrb[0].mxu0 %v7481
    %v7552 = vpop.f32.mrb[0].mxu0
    %v7553 = vadd.f32 0.0, %v7552
    %v7554 = vpop.f32.mrb[0].mxu0
    %7555 = vmatprep.mubr.f32.mxu0 0.0
    %7556 = vmatmul.mubr.f32.gmra.mrb[0].mxu0 %v7484
    %v7557 = vpop.f32.mrb[0].mxu0
    %v7558 = vadd.f32 0.0, %v7557
    %v7559 = vpop.f32.mrb[0].mxu0
    %7560 = vdwg.mxu0
    %v7561 = vmul.f32 %v7553, 0.015625
    %v7562 = vmul.f32 %v7558, 0.015625
    %v7563 = vmul.f32 %v7478, %v7478
    %v7564 = vmul.f32 %v7479, %v7479
    %v7566 = vsel %vm154, %v7563, 0
    %v7569 = vsel %vm154, %v7564, 0
    %7571 = vmatprep.subr.mxu0 0.0
    %7572 = vmatpush1.msra.mxu0 1.0
    %7573 = vmatprep.subr.mxu0 0.0
    %7574 = vmatpush1.msra.mxu0 1.0
    %7575 = vmatprep.subr.mxu0 0.0
    %7576 = vmatpush1.msra.mxu0 1.0
    %7577 = vmatprep.subr.mxu0 0.0
    %7578 = vmatpush1.msra.mxu0 1.0
    %7579 = vmatprep.subr.mxu0 0.0
    %7580 = vmatpush1.msra.mxu0 1.0
    %7581 = vmatprep.subr.mxu0 0.0
    %7582 = vmatpush1.msra.mxu0 1.0
    %7583 = vmatprep.subr.mxu0 0.0
    %7584 = vmatpush1.msra.mxu0 1.0
    %7585 = vmatprep.subr.mxu0 0.0
    %7586 = vmatpush1.msra.mxu0 1.0
    %7587 = vmatprep.subr.mxu0 0.0
    %7588 = vmatpush1.msra.mxu0 0.0
    %7589 = vmatprep.subr.mxu0 0.0
    %7590 = vmatpush1.msra.mxu0 0.0
    %7591 = vmatprep.subr.mxu0 0.0
    %7592 = vmatpush1.msra.mxu0 0.0
    %7593 = vmatprep.subr.mxu0 0.0
    %7594 = vmatpush1.msra.mxu0 0.0
    %7595 = vmatprep.subr.mxu0 0.0
    %7596 = vmatpush1.msra.mxu0 0.0
    %7597 = vmatprep.subr.mxu0 0.0
    %7598 = vmatpush1.msra.mxu0 0.0
    %7599 = vmatprep.subr.mxu0 0.0
    %7600 = vmatpush1.msra.mxu0 0.0
    %7601 = vmatprep.subr.mxu0 0.0
    %7602 = vmatpush1.msra.mxu0 0.0
    %7603 = vmatprep.subr.mxu0 0.0
    %7604 = vmatpush1.msra.mxu0 0.0
    %7605 = vmatprep.subr.mxu0 0.0
    %7606 = vmatpush1.msra.mxu0 0.0
    %7607 = vmatprep.subr.mxu0 0.0
    %7608 = vmatpush1.msra.mxu0 0.0
    %7609 = vmatprep.subr.mxu0 0.0
    %7610 = vmatpush1.msra.mxu0 0.0
    %7611 = vmatprep.subr.mxu0 0.0
    %7612 = vmatpush1.msra.mxu0 0.0
    %7613 = vmatprep.subr.mxu0 0.0
    %7614 = vmatpush1.msra.mxu0 0.0
    %7615 = vmatprep.subr.mxu0 0.0
    %7616 = vmatpush1.msra.mxu0 0.0
    %7617 = vmatprep.subr.mxu0 0.0
    %7618 = vmatpush1.msra.mxu0 0.0
    %7619 = vmatprep.subr.mxu0 0.0
    %7620 = vmatpush1.msra.mxu0 0.0
    %7621 = vmatprep.subr.mxu0 0.0
    %7622 = vmatpush1.msra.mxu0 0.0
    %7623 = vmatprep.subr.mxu0 0.0
    %7624 = vmatpush1.msra.mxu0 0.0
    %7625 = vmatprep.subr.mxu0 0.0
    %7626 = vmatpush1.msra.mxu0 0.0
    %7627 = vmatprep.subr.mxu0 0.0
    %7628 = vmatpush1.msra.mxu0 0.0
    %7629 = vmatprep.subr.mxu0 0.0
    %7630 = vmatpush1.msra.mxu0 0.0
    %7631 = vmatprep.subr.mxu0 0.0
    %7632 = vmatpush1.msra.mxu0 0.0
    %7633 = vmatprep.subr.mxu0 0.0
    %7634 = vmatpush1.msra.mxu0 0.0
    %7635 = vmatprep.mubr.f32.mxu0 0.0
    %7636 = vmatmul.mubr.f32.gmra.mrb[0].mxu0 %v7566
    %v7637 = vpop.f32.mrb[0].mxu0
    %v7638 = vadd.f32 0.0, %v7637
    %v7639 = vpop.f32.mrb[0].mxu0
    %7640 = vmatprep.mubr.f32.mxu0 0.0
    %7641 = vmatmul.mubr.f32.gmra.mrb[0].mxu0 %v7569
    %v7642 = vpop.f32.mrb[0].mxu0
    %v7643 = vadd.f32 0.0, %v7642
    %v7644 = vpop.f32.mrb[0].mxu0
    %7645 = vdwg.mxu0
    %v7646 = vmul.f32 %v7638, 0.015625
    %v7647 = vmul.f32 %v7643, 0.015625
    %v7648 = vmul.f32 %v7561, %v7561
    %v7649 = vmul.f32 %v7562, %v7562
    %v7650 = vsub.f32 %v7646, %v7648
    %v7651 = vsub.f32 %v7647, %v7649
    %7653 = vset.pattern.permute.xlu0 0
    %7654 = vperm.xlu0 %7653, %v7561
    %v7655 = vpop.permute.xlu0 %7654
    %7658 = vset.pattern.permute.xlu0 0
    %7659 = vperm.xlu0 %7658, %v7562
    %v7660 = vpop.permute.xlu0 %7659
    %v7662 = vsub.f32 %v7478, %v7655
    %v7663 = vsub.f32 %v7479, %v7660
    %v7664 = vadd.f32 %v7650, 1e-05
    %v7665 = vadd.f32 %v7651, 1e-05
    %v7666 = vrsqrt.pop %v7664
    %v7667 = vrsqrt.pop %v7665
    %7669 = vset.pattern.permute.xlu0 0
    %7670 = vperm.xlu0 %7669, %v7666
    %v7671 = vpop.permute.xlu0 %7670
    %7674 = vset.pattern.permute.xlu0 0
    %7675 = vperm.xlu0 %7674, %v7667
    %v7676 = vpop.permute.xlu0 %7675
    %v7678 = vmul.f32 %v7662, %v7671
    %v7679 = vmul.f32 %v7663, %v7676
    %v7680 = vmul.f32 %v7678, %v3781
    %v7681 = vmul.f32 %v7679, %v3781
    %v7682 = vadd.f32 %v7680, %v3786
    %v7683 = vadd.f32 %v7681, %v3786
    %v7685 = vlaneseq
    %v7686 = vshrl.u32 %v7685, 7
    %v7687 = vsub.s32 0, %v7686
    %v7688 = vrot.slane %v135, %v7687
    %v7689 = vlaneseq
    %v7690 = vshrl.u32 %v7689, 7
    %v7691 = vsub.s32 1, %v7690
    %v7692 = vrot.slane %v135, %v7691
    %v7696 = vsel %vm154, %v7682, 0
    %v7699 = vsel %vm154, %v7683, 0
    %7701 = vmatprep.subr.mxu0 %v82
    %7702 = vmatpush1.msra.mxu0 %v81
    %7703 = vmatprep.subr.mxu0 %v84
    %7704 = vmatpush1.msra.mxu0 %v83
    %7705 = vmatprep.subr.mxu0 %v86
    %7706 = vmatpush1.msra.mxu0 %v85
    %7707 = vmatprep.subr.mxu0 %v88
    %7708 = vmatpush1.msra.mxu0 %v87
    %7709 = vmatprep.subr.mxu0 %v90
    %7710 = vmatpush1.msra.mxu0 %v89
    %7711 = vmatprep.subr.mxu0 %v92
    %7712 = vmatpush1.msra.mxu0 %v91
    %7713 = vmatprep.subr.mxu0 %v94
    %7714 = vmatpush1.msra.mxu0 %v93
    %7715 = vmatprep.subr.mxu0 %v96
    %7716 = vmatpush1.msra.mxu0 %v95
    %7717 = vmatprep.subr.mxu0 0.0
    %7718 = vmatpush1.msra.mxu0 0.0
    %7719 = vmatprep.subr.mxu0 0.0
    %7720 = vmatpush1.msra.mxu0 0.0
    %7721 = vmatprep.subr.mxu0 0.0
    %7722 = vmatpush1.msra.mxu0 0.0
    %7723 = vmatprep.subr.mxu0 0.0
    %7724 = vmatpush1.msra.mxu0 0.0
    %7725 = vmatprep.subr.mxu0 0.0
    %7726 = vmatpush1.msra.mxu0 0.0
    %7727 = vmatprep.subr.mxu0 0.0
    %7728 = vmatpush1.msra.mxu0 0.0
    %7729 = vmatprep.subr.mxu0 0.0
    %7730 = vmatpush1.msra.mxu0 0.0
    %7731 = vmatprep.subr.mxu0 0.0
    %7732 = vmatpush1.msra.mxu0 0.0
    %7733 = vmatprep.subr.mxu0 0.0
    %7734 = vmatpush1.msra.mxu0 0.0
    %7735 = vmatprep.subr.mxu0 0.0
    %7736 = vmatpush1.msra.mxu0 0.0
    %7737 = vmatprep.subr.mxu0 0.0
    %7738 = vmatpush1.msra.mxu0 0.0
    %7739 = vmatprep.subr.mxu0 0.0
    %7740 = vmatpush1.msra.mxu0 0.0
    %7741 = vmatprep.subr.mxu0 0.0
    %7742 = vmatpush1.msra.mxu0 0.0
    %7743 = vmatprep.subr.mxu0 0.0
    %7744 = vmatpush1.msra.mxu0 0.0
    %7745 = vmatprep.subr.mxu0 0.0
    %7746 = vmatpush1.msra.mxu0 0.0
    %7747 = vmatprep.subr.mxu0 0.0
    %7748 = vmatpush1.msra.mxu0 0.0
    %7749 = vmatprep.subr.mxu0 0.0
    %7750 = vmatpush1.msra.mxu0 0.0
    %7751 = vmatprep.subr.mxu0 0.0
    %7752 = vmatpush1.msra.mxu0 0.0
    %7753 = vmatprep.subr.mxu0 0.0
    %7754 = vmatpush1.msra.mxu0 0.0
    %7755 = vmatprep.subr.mxu0 0.0
    %7756 = vmatpush1.msra.mxu0 0.0
    %7757 = vmatprep.subr.mxu0 0.0
    %7758 = vmatpush1.msra.mxu0 0.0
    %7759 = vmatprep.subr.mxu0 0.0
    %7760 = vmatpush1.msra.mxu0 0.0
    %7761 = vmatprep.subr.mxu0 0.0
    %7762 = vmatpush1.msra.mxu0 0.0
    %7763 = vmatprep.subr.mxu0 0.0
    %7764 = vmatpush1.msra.mxu0 0.0
    %7765 = vmatprep.mubr.f32.mxu0 0.0
    %7766 = vmatmul.mubr.f32.gmra.mrb[0].mxu0 %v7696
    %v7767 = vpop.f32.mrb[0].mxu0
    %v7768 = vadd.f32 %v7688, %v7767
    %v7769 = vpop.f32.mrb[0].mxu0
    %v7770 = vadd.f32 %v7692, %v7769
    %7771 = vmatprep.mubr.f32.mxu0 0.0
    %7772 = vmatmul.mubr.f32.gmra.mrb[0].mxu0 %v7699
    %v7773 = vpop.f32.mrb[0].mxu0
    %v7774 = vadd.f32 %v7688, %v7773
    %v7775 = vpop.f32.mrb[0].mxu0
    %v7776 = vadd.f32 %v7692, %v7775
    %7777 = vdwg.mxu0
    %v7778 = vmax.f32 %v7768, 0.0
    %v7779 = vmax.f32 %v7770, 0.0
    %v7780 = vmax.f32 %v7774, 0.0
    %v7781 = vmax.f32 %v7776, 0.0
    %v7783 = vlaneseq
    %v7784 = vshrl.u32 %v7783, 7
    %v7785 = vsub.s32 0, %v7784
    %v7786 = vrot.slane %v136, %v7785
    %7788 = vmatprep.subr.mxu0 0.0
    %7789 = vmatpush1.msra.mxu0 %v97
    %7790 = vmatprep.subr.mxu0 0.0
    %7791 = vmatpush1.msra.mxu0 %v98
    %7792 = vmatprep.subr.mxu0 0.0
    %7793 = vmatpush1.msra.mxu0 %v99
    %7794 = vmatprep.subr.mxu0 0.0
    %7795 = vmatpush1.msra.mxu0 %v100
    %7796 = vmatprep.subr.mxu0 0.0
    %7797 = vmatpush1.msra.mxu0 %v101
    %7798 = vmatprep.subr.mxu0 0.0
    %7799 = vmatpush1.msra.mxu0 %v102
    %7800 = vmatprep.subr.mxu0 0.0
    %7801 = vmatpush1.msra.mxu0 %v103
    %7802 = vmatprep.subr.mxu0 0.0
    %7803 = vmatpush1.msra.mxu0 %v104
    %7804 = vmatprep.subr.mxu0 0.0
    %7805 = vmatpush1.msra.mxu0 %v105
    %7806 = vmatprep.subr.mxu0 0.0
    %7807 = vmatpush1.msra.mxu0 %v106
    %7808 = vmatprep.subr.mxu0 0.0
    %7809 = vmatpush1.msra.mxu0 %v107
    %7810 = vmatprep.subr.mxu0 0.0
    %7811 = vmatpush1.msra.mxu0 %v108
    %7812 = vmatprep.subr.mxu0 0.0
    %7813 = vmatpush1.msra.mxu0 %v109
    %7814 = vmatprep.subr.mxu0 0.0
    %7815 = vmatpush1.msra.mxu0 %v110
    %7816 = vmatprep.subr.mxu0 0.0
    %7817 = vmatpush1.msra.mxu0 %v111
    %7818 = vmatprep.subr.mxu0 0.0
    %7819 = vmatpush1.msra.mxu0 %v112
    %7820 = vmatprep.subr.mxu0 0.0
    %7821 = vmatpush1.msra.mxu0 %v113
    %7822 = vmatprep.subr.mxu0 0.0
    %7823 = vmatpush1.msra.mxu0 %v114
    %7824 = vmatprep.subr.mxu0 0.0
    %7825 = vmatpush1.msra.mxu0 %v115
    %7826 = vmatprep.subr.mxu0 0.0
    %7827 = vmatpush1.msra.mxu0 %v116
    %7828 = vmatprep.subr.mxu0 0.0
    %7829 = vmatpush1.msra.mxu0 %v117
    %7830 = vmatprep.subr.mxu0 0.0
    %7831 = vmatpush1.msra.mxu0 %v118
    %7832 = vmatprep.subr.mxu0 0.0
    %7833 = vmatpush1.msra.mxu0 %v119
    %7834 = vmatprep.subr.mxu0 0.0
    %7835 = vmatpush1.msra.mxu0 %v120
    %7836 = vmatprep.subr.mxu0 0.0
    %7837 = vmatpush1.msra.mxu0 %v121
    %7838 = vmatprep.subr.mxu0 0.0
    %7839 = vmatpush1.msra.mxu0 %v122
    %7840 = vmatprep.subr.mxu0 0.0
    %7841 = vmatpush1.msra.mxu0 %v123
    %7842 = vmatprep.subr.mxu0 0.0
    %7843 = vmatpush1.msra.mxu0 %v124
    %7844 = vmatprep.subr.mxu0 0.0
    %7845 = vmatpush1.msra.mxu0 %v125
    %7846 = vmatprep.subr.mxu0 0.0
    %7847 = vmatpush1.msra.mxu0 %v126
    %7848 = vmatprep.subr.mxu0 0.0
    %7849 = vmatpush1.msra.mxu0 %v127
    %7850 = vmatprep.subr.mxu0 0.0
    %7851 = vmatpush1.msra.mxu0 %v128
    %7852 = vmatprep.mubr.f32.mxu0 %v7779
    %7853 = vmatmul.mubr.f32.gmra.mrb[0].mxu0 %v7778
    %v7854 = vpop.f32.mrb[0].mxu0
    %v7855 = vadd.f32 %v7786, %v7854
    %v7856 = vpop.f32.mrb[0].mxu0
    %7857 = vmatprep.mubr.f32.mxu0 %v7781
    %7858 = vmatmul.mubr.f32.gmra.mrb[0].mxu0 %v7780
    %v7859 = vpop.f32.mrb[0].mxu0
    %v7860 = vadd.f32 %v7786, %v7859
    %v7861 = vpop.f32.mrb[0].mxu0
    %7862 = vdwg.mxu0
    %v7863 = vadd.f32 %v7682, %v7855
    %v7864 = vadd.f32 %v7683, %v7860
    %v7866 = vsel %vm154, %v7863, 0
    %v7869 = vsel %vm154, %v7864, 0
    %7871 = vmatprep.subr.mxu0 0.0
    %7872 = vmatpush1.msra.mxu0 1.0
    %7873 = vmatprep.subr.mxu0 0.0
    %7874 = vmatpush1.msra.mxu0 1.0
    %7875 = vmatprep.subr.mxu0 0.0
    %7876 = vmatpush1.msra.mxu0 1.0
    %7877 = vmatprep.subr.mxu0 0.0
    %7878 = vmatpush1.msra.mxu0 1.0
    %7879 = vmatprep.subr.mxu0 0.0
    %7880 = vmatpush1.msra.mxu0 1.0
    %7881 = vmatprep.subr.mxu0 0.0
    %7882 = vmatpush1.msra.mxu0 1.0
    %7883 = vmatprep.subr.mxu0 0.0
    %7884 = vmatpush1.msra.mxu0 1.0
    %7885 = vmatprep.subr.mxu0 0.0
    %7886 = vmatpush1.msra.mxu0 1.0
    %7887 = vmatprep.subr.mxu0 0.0
    %7888 = vmatpush1.msra.mxu0 0.0
    %7889 = vmatprep.subr.mxu0 0.0
    %7890 = vmatpush1.msra.mxu0 0.0
    %7891 = vmatprep.subr.mxu0 0.0
    %7892 = vmatpush1.msra.mxu0 0.0
    %7893 = vmatprep.subr.mxu0 0.0
    %7894 = vmatpush1.msra.mxu0 0.0
    %7895 = vmatprep.subr.mxu0 0.0
    %7896 = vmatpush1.msra.mxu0 0.0
    %7897 = vmatprep.subr.mxu0 0.0
    %7898 = vmatpush1.msra.mxu0 0.0
    %7899 = vmatprep.subr.mxu0 0.0
    %7900 = vmatpush1.msra.mxu0 0.0
    %7901 = vmatprep.subr.mxu0 0.0
    %7902 = vmatpush1.msra.mxu0 0.0
    %7903 = vmatprep.subr.mxu0 0.0
    %7904 = vmatpush1.msra.mxu0 0.0
    %7905 = vmatprep.subr.mxu0 0.0
    %7906 = vmatpush1.msra.mxu0 0.0
    %7907 = vmatprep.subr.mxu0 0.0
    %7908 = vmatpush1.msra.mxu0 0.0
    %7909 = vmatprep.subr.mxu0 0.0
    %7910 = vmatpush1.msra.mxu0 0.0
    %7911 = vmatprep.subr.mxu0 0.0
    %7912 = vmatpush1.msra.mxu0 0.0
    %7913 = vmatprep.subr.mxu0 0.0
    %7914 = vmatpush1.msra.mxu0 0.0
    %7915 = vmatprep.subr.mxu0 0.0
    %7916 = vmatpush1.msra.mxu0 0.0
    %7917 = vmatprep.subr.mxu0 0.0
    %7918 = vmatpush1.msra.mxu0 0.0
    %7919 = vmatprep.subr.mxu0 0.0
    %7920 = vmatpush1.msra.mxu0 0.0
    %7921 = vmatprep.subr.mxu0 0.0
    %7922 = vmatpush1.msra.mxu0 0.0
    %7923 = vmatprep.subr.mxu0 0.0
    %7924 = vmatpush1.msra.mxu0 0.0
    %7925 = vmatprep.subr.mxu0 0.0
    %7926 = vmatpush1.msra.mxu0 0.0
    %7927 = vmatprep.subr.mxu0 0.0
    %7928 = vmatpush1.msra.mxu0 0.0
    %7929 = vmatprep.subr.mxu0 0.0
    %7930 = vmatpush1.msra.mxu0 0.0
    %7931 = vmatprep.subr.mxu0 0.0
    %7932 = vmatpush1.msra.mxu0 0.0
    %7933 = vmatprep.subr.mxu0 0.0
    %7934 = vmatpush1.msra.mxu0 0.0
    %7935 = vmatprep.mubr.f32.mxu0 0.0
    %7936 = vmatmul.mubr.f32.gmra.mrb[0].mxu0 %v7866
    %v7937 = vpop.f32.mrb[0].mxu0
    %v7938 = vadd.f32 0.0, %v7937
    %v7939 = vpop.f32.mrb[0].mxu0
    %7940 = vmatprep.mubr.f32.mxu0 0.0
    %7941 = vmatmul.mubr.f32.gmra.mrb[0].mxu0 %v7869
    %v7942 = vpop.f32.mrb[0].mxu0
    %v7943 = vadd.f32 0.0, %v7942
    %v7944 = vpop.f32.mrb[0].mxu0
    %7945 = vdwg.mxu0
    %v7946 = vmul.f32 %v7938, 0.015625
    %v7947 = vmul.f32 %v7943, 0.015625
    %v7948 = vmul.f32 %v7863, %v7863
    %v7949 = vmul.f32 %v7864, %v7864
    %v7951 = vsel %vm154, %v7948, 0
    %v7954 = vsel %vm154, %v7949, 0
    %7956 = vmatprep.subr.mxu0 0.0
    %7957 = vmatpush1.msra.mxu0 1.0
    %7958 = vmatprep.subr.mxu0 0.0
    %7959 = vmatpush1.msra.mxu0 1.0
    %7960 = vmatprep.subr.mxu0 0.0
    %7961 = vmatpush1.msra.mxu0 1.0
    %7962 = vmatprep.subr.mxu0 0.0
    %7963 = vmatpush1.msra.mxu0 1.0
    %7964 = vmatprep.subr.mxu0 0.0
    %7965 = vmatpush1.msra.mxu0 1.0
    %7966 = vmatprep.subr.mxu0 0.0
    %7967 = vmatpush1.msra.mxu0 1.0
    %7968 = vmatprep.subr.mxu0 0.0
    %7969 = vmatpush1.msra.mxu0 1.0
    %7970 = vmatprep.subr.mxu0 0.0
    %7971 = vmatpush1.msra.mxu0 1.0
    %7972 = vmatprep.subr.mxu0 0.0
    %7973 = vmatpush1.msra.mxu0 0.0
    %7974 = vmatprep.subr.mxu0 0.0
    %7975 = vmatpush1.msra.mxu0 0.0
    %7976 = vmatprep.subr.mxu0 0.0
    %7977 = vmatpush1.msra.mxu0 0.0
    %7978 = vmatprep.subr.mxu0 0.0
    %7979 = vmatpush1.msra.mxu0 0.0
    %7980 = vmatprep.subr.mxu0 0.0
    %7981 = vmatpush1.msra.mxu0 0.0
    %7982 = vmatprep.subr.mxu0 0.0
    %7983 = vmatpush1.msra.mxu0 0.0
    %7984 = vmatprep.subr.mxu0 0.0
    %7985 = vmatpush1.msra.mxu0 0.0
    %7986 = vmatprep.subr.mxu0 0.0
    %7987 = vmatpush1.msra.mxu0 0.0
    %7988 = vmatprep.subr.mxu0 0.0
    %7989 = vmatpush1.msra.mxu0 0.0
    %7990 = vmatprep.subr.mxu0 0.0
    %7991 = vmatpush1.msra.mxu0 0.0
    %7992 = vmatprep.subr.mxu0 0.0
    %7993 = vmatpush1.msra.mxu0 0.0
    %7994 = vmatprep.subr.mxu0 0.0
    %7995 = vmatpush1.msra.mxu0 0.0
    %7996 = vmatprep.subr.mxu0 0.0
    %7997 = vmatpush1.msra.mxu0 0.0
    %7998 = vmatprep.subr.mxu0 0.0
    %7999 = vmatpush1.msra.mxu0 0.0
    %8000 = vmatprep.subr.mxu0 0.0
    %8001 = vmatpush1.msra.mxu0 0.0
    %8002 = vmatprep.subr.mxu0 0.0
    %8003 = vmatpush1.msra.mxu0 0.0
    %8004 = vmatprep.subr.mxu0 0.0
    %8005 = vmatpush1.msra.mxu0 0.0
    %8006 = vmatprep.subr.mxu0 0.0
    %8007 = vmatpush1.msra.mxu0 0.0
    %8008 = vmatprep.subr.mxu0 0.0
    %8009 = vmatpush1.msra.mxu0 0.0
    %8010 = vmatprep.subr.mxu0 0.0
    %8011 = vmatpush1.msra.mxu0 0.0
    %8012 = vmatprep.subr.mxu0 0.0
    %8013 = vmatpush1.msra.mxu0 0.0
    %8014 = vmatprep.subr.mxu0 0.0
    %8015 = vmatpush1.msra.mxu0 0.0
    %8016 = vmatprep.subr.mxu0 0.0
    %8017 = vmatpush1.msra.mxu0 0.0
    %8018 = vmatprep.subr.mxu0 0.0
    %8019 = vmatpush1.msra.mxu0 0.0
    %8020 = vmatprep.mubr.f32.mxu0 0.0
    %8021 = vmatmul.mubr.f32.gmra.mrb[0].mxu0 %v7951
    %v8022 = vpop.f32.mrb[0].mxu0
    %v8023 = vadd.f32 0.0, %v8022
    %v8024 = vpop.f32.mrb[0].mxu0
    %8025 = vmatprep.mubr.f32.mxu0 0.0
    %8026 = vmatmul.mubr.f32.gmra.mrb[0].mxu0 %v7954
    %v8027 = vpop.f32.mrb[0].mxu0
    %v8028 = vadd.f32 0.0, %v8027
    %v8029 = vpop.f32.mrb[0].mxu0
    %8030 = vdwg.mxu0
    %v8031 = vmul.f32 %v8023, 0.015625
    %v8032 = vmul.f32 %v8028, 0.015625
    %v8033 = vmul.f32 %v7946, %v7946
    %v8034 = vmul.f32 %v7947, %v7947
    %v8035 = vsub.f32 %v8031, %v8033
    %v8036 = vsub.f32 %v8032, %v8034
    %8038 = vset.pattern.permute.xlu0 0
    %8039 = vperm.xlu0 %8038, %v7946
    %v8040 = vpop.permute.xlu0 %8039
    %8043 = vset.pattern.permute.xlu0 0
    %8044 = vperm.xlu0 %8043, %v7947
    %v8045 = vpop.permute.xlu0 %8044
    %v8047 = vsub.f32 %v7863, %v8040
    %v8048 = vsub.f32 %v7864, %v8045
    %v8049 = vadd.f32 %v8035, 1e-05
    %v8050 = vadd.f32 %v8036, 1e-05
    %v8051 = vrsqrt.pop %v8049
    %v8052 = vrsqrt.pop %v8050
    %8054 = vset.pattern.permute.xlu0 0
    %8055 = vperm.xlu0 %8054, %v8051
    %v8056 = vpop.permute.xlu0 %8055
    %8059 = vset.pattern.permute.xlu0 0
    %8060 = vperm.xlu0 %8059, %v8052
    %v8061 = vpop.permute.xlu0 %8060
    %v8063 = vmul.f32 %v8047, %v8056
    %v8064 = vmul.f32 %v8048, %v8061
    %v8065 = vmul.f32 %v8063, %v3781
    %v8066 = vmul.f32 %v8064, %v3781
    %v8067 = vadd.f32 %v8065, %v3786
    %v8068 = vadd.f32 %v8066, %v3786
    %8069 = vst.msk [vmem:[#allocation7] sm:$0xff] %vm154, %v8067
    %8070 = vst.msk [vmem:[#allocation7 + $0x8] sm:$0xff] %vm154, %v8068
    // Predicated region
    $region30: #{tpu_custom_call.1} parent=1 // pred_check
      _
    $region31: #{tpu_custom_call.1} parent=1 // pred_check_branch
      %8072 = sbr.rel (0) target = $region33
    $region32: #{tpu_custom_call.1} parent=1 // pred_region
      %s8074 = ssub.s32 256, 256
      %8075 = vsyncadd [#allocation4], %s8074
      %s8076 = sshll.u32 [#allocation7], 4
      %s8077 = int_to_ptr.vmem [resolvable:$true] %s8076
      %8082 = dma.vmem_to_hbm [thread:$0]  %s8077, 256, %s5, [#allocation4], 128, 128, 8
    $region33: #{tpu_custom_call.1} parent=1 // pred_fallthru
      _
    // Predicated region
    $region34: #{tpu_custom_call.1} parent=1 // pred_check
      _
    $region35: #{tpu_custom_call.1} parent=1 // pred_check_branch
      %8084 = sbr.rel (0) target = $region37
    $region36: #{tpu_custom_call.1} parent=1 // pred_region
      %8085 = dma.done [#allocation4], 256
    $region37: #{tpu_custom_call.1} parent=1 // pred_fallthru
      _
    %8086 = vsyncpa [#allocation3], 1
    %8087 = vsyncpa [#allocation6], 1
    %8088 = vsyncpa [#allocation4], 1

</llo_original>
